<compile_context>
chip_gen: v7x
topology: tpu7x:2x2x1
jax: 0.10.0
libtpu: 0.0.40
codegen_flags: <defaults>
</compile_context>

<pallas_src>
import functools

import jax
import jax.numpy as jnp
from jax.experimental import pallas as pl
from jax.experimental.pallas import tpu as pltpu


# --------------------------------------------------------------------------
# Hardware-derived knobs
# --------------------------------------------------------------------------
def _vmem_limit_bytes():
    """~75% of physical VMEM (leaves headroom for Mosaic internal scratch)."""
    cap = None
    try:
        cap = int(pltpu.get_tpu_info().vmem_capacity_bytes)
    except Exception:
        cap = None
    if cap is None:
        try:
            kind = jax.devices()[0].device_kind.lower()
        except Exception:
            kind = ""
        is_v7 = ("v7" in kind) or ("7x" in kind)
        cap = 64 * 1024 * 1024 if is_v7 else 128 * 1024 * 1024
    return (cap * 3) // 4


def _detect_bf16_eup():
    """bf16 EUP/VPU exists on v6e/v7x; v5e (and older) must stay f32."""
    try:
        kind = jax.devices()[0].device_kind.lower()
    except Exception:
        kind = ""
    return any(t in kind for t in ("v6", "v7", "7x"))


# --------------------------------------------------------------------------
# Kernel 1: per-token projections (LayerNorm + fused linear + SiLU + q/k).
# --------------------------------------------------------------------------
def _proj_kernel(x_ref, ln_ref, wcat_ref, bcat_ref, head_ref,
                 q_ref, k_ref, v_ref, gate_ref, *, hidden_dim, eps,
                 bf16_sigmoid):
    x = x_ref[...]                                    # (tr, D) f32

    # LayerNorm over the feature dim (f32 statistics).
    mean = jnp.mean(x, axis=-1, keepdims=True)
    xc = x - mean
    var = jnp.mean(xc * xc, axis=-1, keepdims=True)
    ln = ln_ref[...]                                  # (2, D): [weight; bias]
    nx = xc * jax.lax.rsqrt(var + eps) * ln[0:1] + ln[1:2]

    # Fused to_hidden | to_qk matmul: bf16 operands, f32 accumulation.
    h = jnp.dot(nx.astype(jnp.bfloat16), wcat_ref[...],
                preferred_element_type=jnp.float32) + bcat_ref[...]

    # SiLU. On v6e/v7x the sigmoid is the EUP-bound slot -> bf16 exp +
    # approximate reciprocal.  On v5e keep the f32 path (no bf16 EUP/VPU).
    if bf16_sigmoid:
        e = jnp.exp((-h).astype(jnp.bfloat16)).astype(jnp.float32)
        sig = pl.reciprocal(1.0 + e, approx=True)
    else:
        sig = jax.nn.sigmoid(h)
    h = h * sig                                       # (tr, C) f32

    H = hidden_dim
    v_ref[...] = h[:, :H].astype(jnp.bfloat16)        # (tr, H)  bf16
    gate_ref[...] = h[:, H:2 * H].astype(jnp.bfloat16)  # (tr, H) bf16
    z = h[:, 2 * H:]                                  # (tr, Qd) f32

    # Per-head offset/scale; rows of head_ref: [gamma0/N; beta0/N; gamma1; beta1].
    hp = head_ref[...]                                # (4, Qd)
    q_ref[...] = (z * hp[0:1] + hp[1:2]).astype(jnp.bfloat16)
    k_ref[...] = (z * hp[2:3] + hp[3:4]).astype(jnp.bfloat16)


# --------------------------------------------------------------------------
# Kernel 2: tiled relu^2 attention + gating + to_out + residual.
# --------------------------------------------------------------------------
def _attn_kernel(q_ref, k_ref, v_ref, gate_ref, x_ref, wo_ref, bo_ref,
                 out_ref, acc_ref):
    j = pl.program_id(2)

    @pl.when(j == 0)
    def _():
        acc_ref[...] = jnp.zeros_like(acc_ref)

    # sim = q . k^T (contract last dims; no explicit transpose of k).
    # q was pre-scaled by 1/seq_len -> no O(N^2) divide here.
    sim = jax.lax.dot_general(
        q_ref[...], k_ref[...],
        dimension_numbers=(((1,), (1,)), ((), ())),
        preferred_element_type=jnp.float32)           # (tq, tk) f32

    a = jnp.maximum(sim, 0.0)
    a = (a * a).astype(jnp.bfloat16)                  # relu(sim)^2, bf16 for MXU

    acc_ref[...] += jnp.dot(a, v_ref[...],
                            preferred_element_type=jnp.float32)

    @pl.when(j == pl.num_programs(2) - 1)
    def _():
        gate = gate_ref[...].astype(jnp.float32)
        vo = (acc_ref[...] * gate).astype(jnp.bfloat16)
        out = jnp.dot(vo, wo_ref[...],
                      preferred_element_type=jnp.float32) + bo_ref[...]
        out_ref[...] = (out + x_ref[...]).astype(out_ref.dtype)


# --------------------------------------------------------------------------
# Wrapper
# --------------------------------------------------------------------------
def gau_forward(x, params, *, tq=512, tk=512, tr=512, eps=1e-5,
                single_buffer_weights=True, bf16_sigmoid=None):
    """x: (B, N, D) float32.  params: dict of GAU parameters."""
    B, N, D = x.shape
    H = params["w_out"].shape[0]
    Qd = params["w_qk"].shape[1]
    C = 2 * H + Qd
    BN = B * N

    if bf16_sigmoid is None:
        bf16_sigmoid = _detect_bf16_eup()

    tq = min(tq, N)
    tk = min(tk, N)
    tr = min(tr, BN)
    # Keep the megacore-parallel extent (B * N/tq) >= 2 for v7x's 2 TensorCores.
    while B * (N // tq) < 2 and tq >= 256 and N % (tq // 2) == 0:
        tq //= 2
    assert N % tq == 0 and N % tk == 0 and BN % tr == 0, "tiles must divide shapes"

    vmem_limit = _vmem_limit_bytes()

    # ---- parameter packing (wrapper-side, negligible cost) ----------------
    w_cat = jnp.concatenate([params["w_hidden"], params["w_qk"]],
                            axis=1).astype(jnp.bfloat16)            # (D, C) bf16
    b_cat = jnp.concatenate([params["b_hidden"], params["b_qk"]], axis=1)  # (1, C)
    inv_n = 1.0 / float(N)     # fold 1/seq_len into q's scale/offset (full N)
    head = jnp.concatenate([params["gamma"][0:1] * inv_n,
                            params["beta"][0:1] * inv_n,
                            params["gamma"][1:2],
                            params["beta"][1:2]], axis=0)            # (4, Qd)
    ln = jnp.concatenate([params["ln_w"], params["ln_b"]], axis=0)   # (2, D)
    w_out = params["w_out"].astype(jnp.bfloat16)                     # (H, D)
    b_out = params["b_out"]                                          # (1, D)

    x_flat = x.reshape(BN, D)

    def const_spec(shape):
        """Constant-index weight block; single-buffered where supported."""
        idx = lambda *_: (0,) * len(shape)
        if single_buffer_weights:
            try:
                return pl.BlockSpec(shape, idx, pipeline_mode=pl.Buffered(1))
            except TypeError:
                pass
        return pl.BlockSpec(shape, idx)

    # ---- pass 1: projections ----------------------------------------------
    proj_bytes = (BN * D * 4                          # x
                  + 2 * D * 4 + D * C * 2 + C * 4 + 4 * Qd * 4   # params
                  + BN * (2 * Qd + 2 * H) * 2)        # q, k, v, gate (bf16)
    q_f, k_f, v_f, gate_f = pl.pallas_call(
        functools.partial(_proj_kernel, hidden_dim=H, eps=eps,
                          bf16_sigmoid=bf16_sigmoid),
        out_shape=(
            jax.ShapeDtypeStruct((BN, Qd), jnp.bfloat16),   # q (pre-scaled)
            jax.ShapeDtypeStruct((BN, Qd), jnp.bfloat16),   # k
            jax.ShapeDtypeStruct((BN, H), jnp.bfloat16),    # v
            jax.ShapeDtypeStruct((BN, H), jnp.bfloat16),    # gate
        ),
        grid_spec=pltpu.PrefetchScalarGridSpec(
            num_scalar_prefetch=0,
            grid=(BN // tr,),
            in_specs=[
                pl.BlockSpec((tr, D), lambda r: (r, 0)),    # x rows
                const_spec((2, D)),                         # ln weight|bias
                const_spec((D, C)),                         # fused weight (bf16)
                const_spec((1, C)),                         # fused bias
                const_spec((4, Qd)),                        # gamma/beta (scaled)
            ],
            out_specs=[
                pl.BlockSpec((tr, Qd), lambda r: (r, 0)),
                pl.BlockSpec((tr, Qd), lambda r: (r, 0)),
                pl.BlockSpec((tr, H), lambda r: (r, 0)),
                pl.BlockSpec((tr, H), lambda r: (r, 0)),
            ],
        ),
        compiler_params=pltpu.CompilerParams(
            dimension_semantics=("parallel",),
            vmem_limit_bytes=vmem_limit),
        cost_estimate=pl.CostEstimate(
            flops=2 * BN * D * C,
            transcendentals=BN * C,
            bytes_accessed=proj_bytes),
    )(x_flat, ln, w_cat, b_cat, head)

    q = q_f.reshape(B, N, Qd)
    k = k_f.reshape(B, N, Qd)
    v = v_f.reshape(B, N, H)
    gate = gate_f.reshape(B, N, H)

    # ---- pass 2: tiled attention + output ----------------------------------
    n_qt = N // tq
    attn_bytes = (B * N * Qd * 2                       # q (once)
                  + n_qt * B * N * (Qd + H) * 2        # k, v re-streamed per q tile
                  + B * N * H * 2                      # gate (bf16)
                  + 2 * B * N * D * 4                  # x in, out
                  + H * D * 2 + D * 4)                 # w_out, b_out
    out = pl.pallas_call(
        _attn_kernel,
        out_shape=jax.ShapeDtypeStruct((B, N, D), x.dtype),
        grid_spec=pltpu.PrefetchScalarGridSpec(
            num_scalar_prefetch=0,
            grid=(B, n_qt, N // tk),
            in_specs=[
                pl.BlockSpec((None, tq, Qd), lambda b, i, j: (b, i, 0)),  # q
                pl.BlockSpec((None, tk, Qd), lambda b, i, j: (b, j, 0)),  # k
                pl.BlockSpec((None, tk, H), lambda b, i, j: (b, j, 0)),   # v
                pl.BlockSpec((None, tq, H), lambda b, i, j: (b, i, 0)),   # gate
                pl.BlockSpec((None, tq, D), lambda b, i, j: (b, i, 0)),   # x (residual)
                const_spec((H, D)),                                       # w_out (bf16)
                const_spec((1, D)),                                       # b_out
            ],
            out_specs=pl.BlockSpec((None, tq, D), lambda b, i, j: (b, i, 0)),
            scratch_shapes=[pltpu.VMEM((tq, H), jnp.float32)],
        ),
        compiler_params=pltpu.CompilerParams(
            dimension_semantics=("parallel", "parallel", "arbitrary"),
            vmem_limit_bytes=vmem_limit),
        cost_estimate=pl.CostEstimate(
            flops=2 * B * N * N * (Qd + H) + 2 * B * N * H * D,
            transcendentals=0,
            bytes_accessed=attn_bytes),
    )(q, k, v, gate, x, w_out, b_out)
    return out


# --------------------------------------------------------------------------
# Pure-JAX reference mirroring the PyTorch forward (f32 end-to-end).
# --------------------------------------------------------------------------
def gau_reference(x, params, *, eps=1e-5):
    N = x.shape[1]
    H = params["w_out"].shape[0]
    mean = jnp.mean(x, axis=-1, keepdims=True)
    var = jnp.mean((x - mean) ** 2, axis=-1, keepdims=True)
    nx = (x - mean) / jnp.sqrt(var + eps) * params["ln_w"][0] + params["ln_b"][0]
    h = nx @ params["w_hidden"] + params["b_hidden"][0]
    h = h * jax.nn.sigmoid(h)
    v, gate = h[..., :H], h[..., H:]
    z = nx @ params["w_qk"] + params["b_qk"][0]
    z = z * jax.nn.sigmoid(z)
    q = z * params["gamma"][0] + params["beta"][0]
    k = z * params["gamma"][1] + params["beta"][1]
    sim = jnp.einsum("bid,bjd->bij", q, k) / N
    a = jnp.maximum(sim, 0.0) ** 2
    vo = jnp.einsum("bij,bjd->bid", a, v) * gate
    out = vo @ params["w_out"] + params["b_out"][0]
    return out + x


def make_params(key, dim, query_key_dim, expansion_factor):
    hidden_dim = int(expansion_factor * dim)
    ks = jax.random.split(key, 8)
    s = lambda fan_in: 1.0 / jnp.sqrt(fan_in)
    return {
        "ln_w": jnp.ones((1, dim), jnp.float32),
        "ln_b": jnp.zeros((1, dim), jnp.float32),
        "w_hidden": jax.random.uniform(ks[0], (dim, hidden_dim * 2), jnp.float32,
                                       -s(dim), s(dim)),
        "b_hidden": jax.random.uniform(ks[1], (1, hidden_dim * 2), jnp.float32,
                                       -s(dim), s(dim)),
        "w_qk": jax.random.uniform(ks[2], (dim, query_key_dim), jnp.float32,
                                   -s(dim), s(dim)),
        "b_qk": jax.random.uniform(ks[3], (1, query_key_dim), jnp.float32,
                                   -s(dim), s(dim)),
        # std chosen so the attention branch is numerically exercised in the test
        "gamma": jax.random.normal(ks[4], (2, query_key_dim), jnp.float32),
        "beta": jnp.zeros((2, query_key_dim), jnp.float32),
        "w_out": jax.random.uniform(ks[5], (hidden_dim, dim), jnp.float32,
                                    -s(hidden_dim), s(hidden_dim)),
        "b_out": jax.random.uniform(ks[6], (1, dim), jnp.float32,
                                    -s(hidden_dim), s(hidden_dim)),
    }


if __name__ == "__main__":
    # Small, tile-friendly shapes consistent with the module's forward:
    # batch=2, seq=256, dim=128, query_key_dim=128, expansion_factor=2 -> H=256.
    # tq=tk=128 so the (B, q-tile, kv-tile) grid and the VMEM accumulator path
    # are actually exercised (grid = (2, 2, 2)).
    B, N, D = 2, 256, 128
    QK_DIM, EXPANSION = 128, 2

    key = jax.random.PRNGKey(0)
    kx, kp = jax.random.split(key)
    x = jax.random.normal(kx, (B, N, D), jnp.float32)
    params = make_params(kp, D, QK_DIM, EXPANSION)

    try:
        out = gau_forward(x, params, tq=128, tk=128, tr=256)
    except Exception:
        # Fallback for jax builds where pl.Buffered(1) single-buffering of the
        # constant weight blocks is rejected by the Mosaic pipeliner.
        out = gau_forward(x, params, tq=128, tk=128, tr=256,
                          single_buffer_weights=False)
    out = jax.block_until_ready(out)

    ref = gau_reference(x, params)
    assert out.shape == (B, N, D)
    # bf16 MXU inputs / bf16 gate / (v6e+) bf16 sigmoid, f32 accumulation ->
    # slightly looser tolerance than pure f32.
    assert jnp.allclose(out, ref, atol=2e-2, rtol=2e-2), "mismatch vs reference"
    # Also check the non-residual branch (to_out(V*gate) + bias) with margin.
    assert jnp.allclose(out - x, ref - x, atol=8e-3, rtol=8e-2), "branch mismatch"

    print("KERNEL_OK")
</pallas_src>

<mosaic_0001>
module attributes {stable_mosaic.version = 11 : i64} {
  func.func @_proj_kernel(%arg0: i32, %arg1: memref<256x128xf32, #tpu.memory_space<vmem>>, %arg2: memref<2x128xf32, #tpu.memory_space<vmem>>, %arg3: memref<128x640xbf16, #tpu.memory_space<vmem>>, %arg4: memref<1x640xf32, #tpu.memory_space<vmem>>, %arg5: memref<4x128xf32, #tpu.memory_space<vmem>>, %arg6: memref<256x128xbf16, #tpu.memory_space<vmem>>, %arg7: memref<256x128xbf16, #tpu.memory_space<vmem>>, %arg8: memref<256x256xbf16, #tpu.memory_space<vmem>>, %arg9: memref<256x256xbf16, #tpu.memory_space<vmem>>) attributes {dimension_semantics = [#tpu.dimension_semantics<parallel>], iteration_bounds = array<i64: 2>, scalar_prefetch = 0 : i64, scratch_operands = 0 : i64, tpu.core_type = #tpu.core_type<tc>, window_params = [{transform_indices = @transform_0, window_bounds = array<i64: 256, 128>}, {pipeline_mode = #tpu.pipeline_mode<synchronous>, transform_indices = @transform_1, window_bounds = array<i64: 2, 128>}, {pipeline_mode = #tpu.pipeline_mode<synchronous>, transform_indices = @transform_2, window_bounds = array<i64: 128, 640>}, {pipeline_mode = #tpu.pipeline_mode<synchronous>, transform_indices = @transform_3, window_bounds = array<i64: 1, 640>}, {pipeline_mode = #tpu.pipeline_mode<synchronous>, transform_indices = @transform_4, window_bounds = array<i64: 4, 128>}, {transform_indices = @transform_5, window_bounds = array<i64: 256, 128>}, {transform_indices = @transform_6, window_bounds = array<i64: 256, 128>}, {transform_indices = @transform_7, window_bounds = array<i64: 256, 256>}, {transform_indices = @transform_8, window_bounds = array<i64: 256, 256>}]} {
    %c0 = arith.constant 0 : index
    %c0_0 = arith.constant 0 : index
    %0 = vector.load %arg1[%c0, %c0_0] : memref<256x128xf32, #tpu.memory_space<vmem>>, vector<256x128xf32>
    %cst = arith.constant dense<0.000000e+00> : vector<256xf32>
    %1 = vector.multi_reduction <add>, %0, %cst [1] : vector<256x128xf32> to vector<256xf32>
    %2 = vector.shape_cast %1 : vector<256xf32> to vector<256x1xf32>
    %cst_1 = arith.constant 1.280000e+02 : f32
    %3 = vector.broadcast %cst_1 : f32 to vector<256x1xf32>
    %4 = arith.divf %2, %3 : vector<256x1xf32>
    %5 = vector.broadcast %4 : vector<256x1xf32> to vector<256x128xf32>
    %6 = arith.subf %0, %5 : vector<256x128xf32>
    %7 = arith.mulf %6, %6 : vector<256x128xf32>
    %cst_2 = arith.constant dense<0.000000e+00> : vector<256xf32>
    %8 = vector.multi_reduction <add>, %7, %cst_2 [1] : vector<256x128xf32> to vector<256xf32>
    %9 = vector.shape_cast %8 : vector<256xf32> to vector<256x1xf32>
    %cst_3 = arith.constant 1.280000e+02 : f32
    %10 = vector.broadcast %cst_3 : f32 to vector<256x1xf32>
    %11 = arith.divf %9, %10 : vector<256x1xf32>
    %c0_4 = arith.constant 0 : index
    %c0_5 = arith.constant 0 : index
    %12 = vector.load %arg2[%c0_4, %c0_5] : memref<2x128xf32, #tpu.memory_space<vmem>>, vector<2x128xf32>
    %cst_6 = arith.constant 9.99999974E-6 : f32
    %13 = vector.broadcast %cst_6 : f32 to vector<256x1xf32>
    %14 = arith.addf %11, %13 : vector<256x1xf32>
    %15 = math.rsqrt %14 : vector<256x1xf32>
    %16 = vector.broadcast %15 : vector<256x1xf32> to vector<256x128xf32>
    %17 = arith.mulf %6, %16 : vector<256x128xf32>
    %18 = vector.extract_strided_slice %12 {offsets = [0, 0], sizes = [1, 128], strides = [1, 1]} : vector<2x128xf32> to vector<1x128xf32>
    %19 = vector.broadcast %18 : vector<1x128xf32> to vector<256x128xf32>
    %20 = arith.mulf %17, %19 : vector<256x128xf32>
    %21 = vector.extract_strided_slice %12 {offsets = [1, 0], sizes = [1, 128], strides = [1, 1]} : vector<2x128xf32> to vector<1x128xf32>
    %22 = vector.broadcast %21 : vector<1x128xf32> to vector<256x128xf32>
    %23 = arith.addf %20, %22 : vector<256x128xf32>
    %24 = arith.truncf %23 : vector<256x128xf32> to vector<256x128xbf16>
    %c0_7 = arith.constant 0 : index
    %c0_8 = arith.constant 0 : index
    %25 = vector.load %arg3[%c0_7, %c0_8] : memref<128x640xbf16, #tpu.memory_space<vmem>>, vector<128x640xbf16>
    %cst_9 = arith.constant dense<0.000000e+00> : vector<256x640xf32>
    %26 = tpu.matmul %24, %25, %cst_9 {dimension_numbers = #tpu.dot_dimension_numbers<[1], [0], [0], [1], [0, 0, 1, 1], [], []>} : vector<256x128xbf16>, vector<128x640xbf16>, vector<256x640xf32> -> vector<256x640xf32>
    %c0_10 = arith.constant 0 : index
    %c0_11 = arith.constant 0 : index
    %27 = vector.load %arg4[%c0_10, %c0_11] : memref<1x640xf32, #tpu.memory_space<vmem>>, vector<1x640xf32>
    %28 = vector.broadcast %27 : vector<1x640xf32> to vector<256x640xf32>
    %29 = arith.addf %26, %28 : vector<256x640xf32>
    %30 = arith.negf %29 : vector<256x640xf32>
    %31 = math.exp %30 : vector<256x640xf32>
    %cst_12 = arith.constant 1.000000e+00 : f32
    %32 = vector.broadcast %cst_12 : f32 to vector<256x640xf32>
    %33 = arith.addf %32, %31 : vector<256x640xf32>
    %34 = arith.divf %32, %33 : vector<256x640xf32>
    %35 = arith.mulf %29, %34 : vector<256x640xf32>
    %36 = vector.extract_strided_slice %35 {offsets = [0, 0], sizes = [256, 256], strides = [1, 1]} : vector<256x640xf32> to vector<256x256xf32>
    %37 = arith.truncf %36 : vector<256x256xf32> to vector<256x256xbf16>
    %c0_13 = arith.constant 0 : index
    %c0_14 = arith.constant 0 : index
    %38 = vector.load %arg8[%c0_13, %c0_14] : memref<256x256xbf16, #tpu.memory_space<vmem>>, vector<256x256xbf16>
    tpu.vector_store %arg8[%c0_13, %c0_14], %37 {strides = array<i32>} : memref<256x256xbf16, #tpu.memory_space<vmem>>, vector<256x256xbf16>,
    %39 = vector.extract_strided_slice %35 {offsets = [0, 256], sizes = [256, 256], strides = [1, 1]} : vector<256x640xf32> to vector<256x256xf32>
    %40 = arith.truncf %39 : vector<256x256xf32> to vector<256x256xbf16>
    %c0_15 = arith.constant 0 : index
    %c0_16 = arith.constant 0 : index
    %41 = vector.load %arg9[%c0_15, %c0_16] : memref<256x256xbf16, #tpu.memory_space<vmem>>, vector<256x256xbf16>
    tpu.vector_store %arg9[%c0_15, %c0_16], %40 {strides = array<i32>} : memref<256x256xbf16, #tpu.memory_space<vmem>>, vector<256x256xbf16>,
    %42 = vector.extract_strided_slice %35 {offsets = [0, 512], sizes = [256, 128], strides = [1, 1]} : vector<256x640xf32> to vector<256x128xf32>
    %c0_17 = arith.constant 0 : index
    %c0_18 = arith.constant 0 : index
    %43 = vector.load %arg5[%c0_17, %c0_18] : memref<4x128xf32, #tpu.memory_space<vmem>>, vector<4x128xf32>
    %44 = vector.extract_strided_slice %43 {offsets = [0, 0], sizes = [1, 128], strides = [1, 1]} : vector<4x128xf32> to vector<1x128xf32>
    %45 = vector.broadcast %44 : vector<1x128xf32> to vector<256x128xf32>
    %46 = arith.mulf %42, %45 : vector<256x128xf32>
    %47 = vector.extract_strided_slice %43 {offsets = [1, 0], sizes = [1, 128], strides = [1, 1]} : vector<4x128xf32> to vector<1x128xf32>
    %48 = vector.broadcast %47 : vector<1x128xf32> to vector<256x128xf32>
    %49 = arith.addf %46, %48 : vector<256x128xf32>
    %50 = arith.truncf %49 : vector<256x128xf32> to vector<256x128xbf16>
    %c0_19 = arith.constant 0 : index
    %c0_20 = arith.constant 0 : index
    %51 = vector.load %arg6[%c0_19, %c0_20] : memref<256x128xbf16, #tpu.memory_space<vmem>>, vector<256x128xbf16>
    tpu.vector_store %arg6[%c0_19, %c0_20], %50 {strides = array<i32>} : memref<256x128xbf16, #tpu.memory_space<vmem>>, vector<256x128xbf16>,
    %52 = vector.extract_strided_slice %43 {offsets = [2, 0], sizes = [1, 128], strides = [1, 1]} : vector<4x128xf32> to vector<1x128xf32>
    %53 = vector.broadcast %52 : vector<1x128xf32> to vector<256x128xf32>
    %54 = arith.mulf %42, %53 : vector<256x128xf32>
    %55 = vector.extract_strided_slice %43 {offsets = [3, 0], sizes = [1, 128], strides = [1, 1]} : vector<4x128xf32> to vector<1x128xf32>
    %56 = vector.broadcast %55 : vector<1x128xf32> to vector<256x128xf32>
    %57 = arith.addf %54, %56 : vector<256x128xf32>
    %58 = arith.truncf %57 : vector<256x128xf32> to vector<256x128xbf16>
    %c0_21 = arith.constant 0 : index
    %c0_22 = arith.constant 0 : index
    %59 = vector.load %arg7[%c0_21, %c0_22] : memref<256x128xbf16, #tpu.memory_space<vmem>>, vector<256x128xbf16>
    tpu.vector_store %arg7[%c0_21, %c0_22], %58 {strides = array<i32>} : memref<256x128xbf16, #tpu.memory_space<vmem>>, vector<256x128xbf16>,
    return
  }
  func.func @transform_0(%arg0: i32) -> (i32, i32) {
    %c0_i32 = arith.constant 0 : i32
    %c0_i32_0 = arith.constant 0 : i32
    return %arg0, %c0_i32 : i32, i32
  }
  func.func @transform_1(%arg0: i32) -> (i32, i32) {
    %c0_i32 = arith.constant 0 : i32
    %c0_i32_0 = arith.constant 0 : i32
    %c0_i32_1 = arith.constant 0 : i32
    return %c0_i32, %c0_i32_0 : i32, i32
  }
  func.func @transform_2(%arg0: i32) -> (i32, i32) {
    %c0_i32 = arith.constant 0 : i32
    %c0_i32_0 = arith.constant 0 : i32
    %c0_i32_1 = arith.constant 0 : i32
    return %c0_i32, %c0_i32_0 : i32, i32
  }
  func.func @transform_3(%arg0: i32) -> (i32, i32) {
    %c0_i32 = arith.constant 0 : i32
    %c0_i32_0 = arith.constant 0 : i32
    %c0_i32_1 = arith.constant 0 : i32
    return %c0_i32, %c0_i32_0 : i32, i32
  }
  func.func @transform_4(%arg0: i32) -> (i32, i32) {
    %c0_i32 = arith.constant 0 : i32
    %c0_i32_0 = arith.constant 0 : i32
    %c0_i32_1 = arith.constant 0 : i32
    return %c0_i32, %c0_i32_0 : i32, i32
  }
  func.func @transform_5(%arg0: i32) -> (i32, i32) {
    %c0_i32 = arith.constant 0 : i32
    %c0_i32_0 = arith.constant 0 : i32
    return %arg0, %c0_i32 : i32, i32
  }
  func.func @transform_6(%arg0: i32) -> (i32, i32) {
    %c0_i32 = arith.constant 0 : i32
    %c0_i32_0 = arith.constant 0 : i32
    return %arg0, %c0_i32 : i32, i32
  }
  func.func @transform_7(%arg0: i32) -> (i32, i32) {
    %c0_i32 = arith.constant 0 : i32
    %c0_i32_0 = arith.constant 0 : i32
    return %arg0, %c0_i32 : i32, i32
  }
  func.func @transform_8(%arg0: i32) -> (i32, i32) {
    %c0_i32 = arith.constant 0 : i32
    %c0_i32_0 = arith.constant 0 : i32
    return %arg0, %c0_i32 : i32, i32
  }
}

module attributes {stable_mosaic.version = 11 : i64} {
  func.func @_proj_kernel(%arg0: i32, %arg1: memref<256x128xf32, #tpu.memory_space<vmem>>, %arg2: memref<2x128xf32, #tpu.memory_space<vmem>>, %arg3: memref<128x640xbf16, #tpu.memory_space<vmem>>, %arg4: memref<1x640xf32, #tpu.memory_space<vmem>>, %arg5: memref<4x128xf32, #tpu.memory_space<vmem>>, %arg6: memref<256x128xbf16, #tpu.memory_space<vmem>>, %arg7: memref<256x128xbf16, #tpu.memory_space<vmem>>, %arg8: memref<256x256xbf16, #tpu.memory_space<vmem>>, %arg9: memref<256x256xbf16, #tpu.memory_space<vmem>>) attributes {dimension_semantics = [#tpu.dimension_semantics<parallel>], iteration_bounds = array<i64: 2>, scalar_prefetch = 0 : i64, scratch_operands = 0 : i64, tpu.core_type = #tpu.core_type<tc>, window_params = [{transform_indices = @transform_0, window_bounds = array<i64: 256, 128>}, {pipeline_mode = #tpu.pipeline_mode<synchronous>, transform_indices = @transform_1, window_bounds = array<i64: 2, 128>}, {pipeline_mode = #tpu.pipeline_mode<synchronous>, transform_indices = @transform_2, window_bounds = array<i64: 128, 640>}, {pipeline_mode = #tpu.pipeline_mode<synchronous>, transform_indices = @transform_3, window_bounds = array<i64: 1, 640>}, {pipeline_mode = #tpu.pipeline_mode<synchronous>, transform_indices = @transform_4, window_bounds = array<i64: 4, 128>}, {transform_indices = @transform_5, window_bounds = array<i64: 256, 128>}, {transform_indices = @transform_6, window_bounds = array<i64: 256, 128>}, {transform_indices = @transform_7, window_bounds = array<i64: 256, 256>}, {transform_indices = @transform_8, window_bounds = array<i64: 256, 256>}]} {
    %c0 = arith.constant 0 : index
    %c0_0 = arith.constant 0 : index
    %0 = vector.load %arg1[%c0, %c0_0] : memref<256x128xf32, #tpu.memory_space<vmem>>, vector<256x128xf32>
    %cst = arith.constant dense<0.000000e+00> : vector<256xf32>
    %1 = vector.multi_reduction <add>, %0, %cst [1] : vector<256x128xf32> to vector<256xf32>
    %2 = vector.shape_cast %1 : vector<256xf32> to vector<256x1xf32>
    %cst_1 = arith.constant 1.280000e+02 : f32
    %3 = vector.broadcast %cst_1 : f32 to vector<256x1xf32>
    %4 = arith.divf %2, %3 : vector<256x1xf32>
    %5 = vector.broadcast %4 : vector<256x1xf32> to vector<256x128xf32>
    %6 = arith.subf %0, %5 : vector<256x128xf32>
    %7 = arith.mulf %6, %6 : vector<256x128xf32>
    %cst_2 = arith.constant dense<0.000000e+00> : vector<256xf32>
    %8 = vector.multi_reduction <add>, %7, %cst_2 [1] : vector<256x128xf32> to vector<256xf32>
    %9 = vector.shape_cast %8 : vector<256xf32> to vector<256x1xf32>
    %cst_3 = arith.constant 1.280000e+02 : f32
    %10 = vector.broadcast %cst_3 : f32 to vector<256x1xf32>
    %11 = arith.divf %9, %10 : vector<256x1xf32>
    %c0_4 = arith.constant 0 : index
    %c0_5 = arith.constant 0 : index
    %12 = vector.load %arg2[%c0_4, %c0_5] : memref<2x128xf32, #tpu.memory_space<vmem>>, vector<2x128xf32>
    %cst_6 = arith.constant 9.99999974E-6 : f32
    %13 = vector.broadcast %cst_6 : f32 to vector<256x1xf32>
    %14 = arith.addf %11, %13 : vector<256x1xf32>
    %15 = math.rsqrt %14 : vector<256x1xf32>
    %16 = vector.broadcast %15 : vector<256x1xf32> to vector<256x128xf32>
    %17 = arith.mulf %6, %16 : vector<256x128xf32>
    %18 = vector.extract_strided_slice %12 {offsets = [0, 0], sizes = [1, 128], strides = [1, 1]} : vector<2x128xf32> to vector<1x128xf32>
    %19 = vector.broadcast %18 : vector<1x128xf32> to vector<256x128xf32>
    %20 = arith.mulf %17, %19 : vector<256x128xf32>
    %21 = vector.extract_strided_slice %12 {offsets = [1, 0], sizes = [1, 128], strides = [1, 1]} : vector<2x128xf32> to vector<1x128xf32>
    %22 = vector.broadcast %21 : vector<1x128xf32> to vector<256x128xf32>
    %23 = arith.addf %20, %22 : vector<256x128xf32>
    %24 = arith.truncf %23 : vector<256x128xf32> to vector<256x128xbf16>
    %c0_7 = arith.constant 0 : index
    %c0_8 = arith.constant 0 : index
    %25 = vector.load %arg3[%c0_7, %c0_8] : memref<128x640xbf16, #tpu.memory_space<vmem>>, vector<128x640xbf16>
    %cst_9 = arith.constant dense<0.000000e+00> : vector<256x640xf32>
    %26 = tpu.matmul %24, %25, %cst_9 {dimension_numbers = #tpu.dot_dimension_numbers<[1], [0], [0], [1], [0, 0, 1, 1], [], []>} : vector<256x128xbf16>, vector<128x640xbf16>, vector<256x640xf32> -> vector<256x640xf32>
    %c0_10 = arith.constant 0 : index
    %c0_11 = arith.constant 0 : index
    %27 = vector.load %arg4[%c0_10, %c0_11] : memref<1x640xf32, #tpu.memory_space<vmem>>, vector<1x640xf32>
    %28 = vector.broadcast %27 : vector<1x640xf32> to vector<256x640xf32>
    %29 = arith.addf %26, %28 : vector<256x640xf32>
    %30 = arith.negf %29 : vector<256x640xf32>
    %31 = math.exp %30 : vector<256x640xf32>
    %cst_12 = arith.constant 1.000000e+00 : f32
    %32 = vector.broadcast %cst_12 : f32 to vector<256x640xf32>
    %33 = arith.addf %32, %31 : vector<256x640xf32>
    %34 = arith.divf %32, %33 : vector<256x640xf32>
    %35 = arith.mulf %29, %34 : vector<256x640xf32>
    %36 = vector.extract_strided_slice %35 {offsets = [0, 0], sizes = [256, 256], strides = [1, 1]} : vector<256x640xf32> to vector<256x256xf32>
    %37 = arith.truncf %36 : vector<256x256xf32> to vector<256x256xbf16>
    %c0_13 = arith.constant 0 : index
    %c0_14 = arith.constant 0 : index
    %38 = vector.load %arg8[%c0_13, %c0_14] : memref<256x256xbf16, #tpu.memory_space<vmem>>, vector<256x256xbf16>
    tpu.vector_store %arg8[%c0_13, %c0_14], %37 {strides = array<i32>} : memref<256x256xbf16, #tpu.memory_space<vmem>>, vector<256x256xbf16>,
    %39 = vector.extract_strided_slice %35 {offsets = [0, 256], sizes = [256, 256], strides = [1, 1]} : vector<256x640xf32> to vector<256x256xf32>
    %40 = arith.truncf %39 : vector<256x256xf32> to vector<256x256xbf16>
    %c0_15 = arith.constant 0 : index
    %c0_16 = arith.constant 0 : index
    %41 = vector.load %arg9[%c0_15, %c0_16] : memref<256x256xbf16, #tpu.memory_space<vmem>>, vector<256x256xbf16>
    tpu.vector_store %arg9[%c0_15, %c0_16], %40 {strides = array<i32>} : memref<256x256xbf16, #tpu.memory_space<vmem>>, vector<256x256xbf16>,
    %42 = vector.extract_strided_slice %35 {offsets = [0, 512], sizes = [256, 128], strides = [1, 1]} : vector<256x640xf32> to vector<256x128xf32>
    %c0_17 = arith.constant 0 : index
    %c0_18 = arith.constant 0 : index
    %43 = vector.load %arg5[%c0_17, %c0_18] : memref<4x128xf32, #tpu.memory_space<vmem>>, vector<4x128xf32>
    %44 = vector.extract_strided_slice %43 {offsets = [0, 0], sizes = [1, 128], strides = [1, 1]} : vector<4x128xf32> to vector<1x128xf32>
    %45 = vector.broadcast %44 : vector<1x128xf32> to vector<256x128xf32>
    %46 = arith.mulf %42, %45 : vector<256x128xf32>
    %47 = vector.extract_strided_slice %43 {offsets = [1, 0], sizes = [1, 128], strides = [1, 1]} : vector<4x128xf32> to vector<1x128xf32>
    %48 = vector.broadcast %47 : vector<1x128xf32> to vector<256x128xf32>
    %49 = arith.addf %46, %48 : vector<256x128xf32>
    %50 = arith.truncf %49 : vector<256x128xf32> to vector<256x128xbf16>
    %c0_19 = arith.constant 0 : index
    %c0_20 = arith.constant 0 : index
    %51 = vector.load %arg6[%c0_19, %c0_20] : memref<256x128xbf16, #tpu.memory_space<vmem>>, vector<256x128xbf16>
    tpu.vector_store %arg6[%c0_19, %c0_20], %50 {strides = array<i32>} : memref<256x128xbf16, #tpu.memory_space<vmem>>, vector<256x128xbf16>,
    %52 = vector.extract_strided_slice %43 {offsets = [2, 0], sizes = [1, 128], strides = [1, 1]} : vector<4x128xf32> to vector<1x128xf32>
    %53 = vector.broadcast %52 : vector<1x128xf32> to vector<256x128xf32>
    %54 = arith.mulf %42, %53 : vector<256x128xf32>
    %55 = vector.extract_strided_slice %43 {offsets = [3, 0], sizes = [1, 128], strides = [1, 1]} : vector<4x128xf32> to vector<1x128xf32>
    %56 = vector.broadcast %55 : vector<1x128xf32> to vector<256x128xf32>
    %57 = arith.addf %54, %56 : vector<256x128xf32>
    %58 = arith.truncf %57 : vector<256x128xf32> to vector<256x128xbf16>
    %c0_21 = arith.constant 0 : index
    %c0_22 = arith.constant 0 : index
    %59 = vector.load %arg7[%c0_21, %c0_22] : memref<256x128xbf16, #tpu.memory_space<vmem>>, vector<256x128xbf16>
    tpu.vector_store %arg7[%c0_21, %c0_22], %58 {strides = array<i32>} : memref<256x128xbf16, #tpu.memory_space<vmem>>, vector<256x128xbf16>,
    return
  }
  func.func @transform_0(%arg0: i32) -> (i32, i32) {
    %c0_i32 = arith.constant 0 : i32
    %c0_i32_0 = arith.constant 0 : i32
    return %arg0, %c0_i32 : i32, i32
  }
  func.func @transform_1(%arg0: i32) -> (i32, i32) {
    %c0_i32 = arith.constant 0 : i32
    %c0_i32_0 = arith.constant 0 : i32
    %c0_i32_1 = arith.constant 0 : i32
    return %c0_i32, %c0_i32_0 : i32, i32
  }
  func.func @transform_2(%arg0: i32) -> (i32, i32) {
    %c0_i32 = arith.constant 0 : i32
    %c0_i32_0 = arith.constant 0 : i32
    %c0_i32_1 = arith.constant 0 : i32
    return %c0_i32, %c0_i32_0 : i32, i32
  }
  func.func @transform_3(%arg0: i32) -> (i32, i32) {
    %c0_i32 = arith.constant 0 : i32
    %c0_i32_0 = arith.constant 0 : i32
    %c0_i32_1 = arith.constant 0 : i32
    return %c0_i32, %c0_i32_0 : i32, i32
  }
  func.func @transform_4(%arg0: i32) -> (i32, i32) {
    %c0_i32 = arith.constant 0 : i32
    %c0_i32_0 = arith.constant 0 : i32
    %c0_i32_1 = arith.constant 0 : i32
    return %c0_i32, %c0_i32_0 : i32, i32
  }
  func.func @transform_5(%arg0: i32) -> (i32, i32) {
    %c0_i32 = arith.constant 0 : i32
    %c0_i32_0 = arith.constant 0 : i32
    return %arg0, %c0_i32 : i32, i32
  }
  func.func @transform_6(%arg0: i32) -> (i32, i32) {
    %c0_i32 = arith.constant 0 : i32
    %c0_i32_0 = arith.constant 0 : i32
    return %arg0, %c0_i32 : i32, i32
  }
  func.func @transform_7(%arg0: i32) -> (i32, i32) {
    %c0_i32 = arith.constant 0 : i32
    %c0_i32_0 = arith.constant 0 : i32
    return %arg0, %c0_i32 : i32, i32
  }
  func.func @transform_8(%arg0: i32) -> (i32, i32) {
    %c0_i32 = arith.constant 0 : i32
    %c0_i32_0 = arith.constant 0 : i32
    return %arg0, %c0_i32 : i32, i32
  }
}

</mosaic_0001>

<llo_original>
// kernel: tpu_custom_call.1
$region0: #{tpu_custom_call.1}
  #allocation0 [shape = 'u32[]', space=smem, size = 0x4, offset = 0x4, fixed_abs, tag = 'smem constant byte address 0x4 - core index']
  #allocation1 [shape = 'u32[144,128]{1,0:T(1,128)}', space=vmem, size = 0x12000, scoped, tag = 'internal scratch']
  %s0 = inlined_call_operand.hbm [shape: f32[512,128], index: 0, kind: input, shape index: {}]
  %s1 = inlined_call_operand.hbm [shape: f32[2,128], index: 1, kind: input, shape index: {}]
  %s2 = inlined_call_operand.hbm [shape: bf16[128,640], index: 2, kind: input, shape index: {}]
  %s3 = inlined_call_operand.hbm [shape: f32[1,640], index: 3, kind: input, shape index: {}]
  %s4 = inlined_call_operand.hbm [shape: f32[4,128], index: 4, kind: input, shape index: {}]
  %s5 = inlined_call_operand.hbm [shape: bf16[512,128], index: 5, kind: output, shape index: {0}]
  %s6 = inlined_call_operand.hbm [shape: bf16[512,128], index: 6, kind: output, shape index: {1}]
  %s7 = inlined_call_operand.hbm [shape: bf16[512,256], index: 7, kind: output, shape index: {2}]
  %s8 = inlined_call_operand.hbm [shape: bf16[512,256], index: 8, kind: output, shape index: {3}]
  %9 = xla_tuple %s5, %s6, %s7, %s8
  %s10 = sld [smem:[#allocation0]]
  $region97: #{tpu_custom_call.1} parent=0
    _
  %s12 = ssub.s32 1, %s10
  %s13 = scalar_select 0, %s12, %s10
  $region1: #{tpu_custom_call.1} parent=0
    #allocation2 [shape = 'u8[262144]{0}', space=vmem, size = 0x40000, scoped, tag = 'input window, operand 0']
    #allocation3 [shape = 's32[2]{0}', space=sflag, size = 0x8, scoped, tag = 'scoped memory for tpu_custom_call.1']
    #allocation4 [shape = 's32[2]{0}', space=sflag, size = 0x8, scoped, tag = 'scoped memory for tpu_custom_call.1']
    #allocation5 [shape = 'u8[1024]{0}', space=vmem, size = 0x400, scoped, tag = 'input window, operand 1, single buffered']
    #allocation6 [shape = 's32[1]{0}', space=sflag, size = 0x4, scoped, tag = 'scoped memory for tpu_custom_call.1']
    #allocation7 [shape = 'u8[163840]{0}', space=vmem, size = 0x28000, scoped, tag = 'input window, operand 2, single buffered']
    #allocation8 [shape = 'u8[2560]{0}', space=vmem, size = 0xc00, scoped, tag = 'input window, operand 3, single buffered']
    #allocation9 [shape = 's32[1]{0}', space=sflag, size = 0x4, scoped, tag = 'scoped memory for tpu_custom_call.1']
    #allocation10 [shape = 'u8[2048]{0}', space=vmem, size = 0x800, scoped, tag = 'input window, operand 4, single buffered']
    #allocation11 [shape = 'u8[131072]{0}', space=vmem, size = 0x20000, scoped, tag = 'output window, operand 0']
    #allocation12 [shape = 'u8[131072]{0}', space=vmem, size = 0x20000, scoped, tag = 'output window, operand 1']
    #allocation13 [shape = 's32[2]{0}', space=sflag, size = 0x8, scoped, tag = 'scoped memory for tpu_custom_call.1']
    #allocation14 [shape = 'u8[262144]{0}', space=vmem, size = 0x40000, scoped, tag = 'output window, operand 2']
    #allocation15 [shape = 'u8[262144]{0}', space=vmem, size = 0x40000, scoped, tag = 'output window, operand 3']
    #allocation16 [shape = 's32[2]{0}', space=sflag, size = 0x8, scoped, tag = 'scoped memory for tpu_custom_call.1']
    %14 = vsyncpa [#allocation3], 0
    %s15 = scalar_lea.sflag [#allocation3], 1
    %16 = vsyncpa %s15, 0
    %17 = vsyncpa [#allocation6], 0
    %18 = vsyncpa [#allocation9], 0
    %19 = vsyncpa [#allocation4], 0
    %s20 = scalar_lea.sflag [#allocation4], 1
    %21 = vsyncpa %s20, 0
    %22 = vsyncpa [#allocation13], 0
    %s23 = scalar_lea.sflag [#allocation13], 1
    %24 = vsyncpa %s23, 0
    %25 = vsyncpa [#allocation16], 0
    %s26 = scalar_lea.sflag [#allocation16], 1
    %27 = vsyncpa %s26, 0
    loop: start=0, step=1, limit=4
    $region2: #{tpu_custom_call.1} parent=1 // loop_pre_header
      _
    $region3: #{tpu_custom_call.1} parent=1 // loop_header
      %s29 = sphi 0, %s33
      %p30 = scmp.ge.s32.totalorder %s29, 4
      %s39 = sphi 0, %s41
      %s42 = sphi 0, %s39
      %s43 = sphi 0, %s42
      %s59 = sphi 0, %s43
      %s63 = sphi 0, %s63
      %s65 = sphi 0, %s63
      %s66 = sphi 0, %s65
      %s80 = sphi 0, %s66
      %s84 = sphi 0, %s84
      %s86 = sphi 0, %s84
      %s87 = sphi 0, %s86
      %s101 = sphi 0, %s87
      %s105 = sphi 0, %s105
      %s107 = sphi 0, %s105
      %s108 = sphi 0, %s107
      %s122 = sphi 0, %s108
      %s126 = sphi 0, %s126
      %s128 = sphi 0, %s126
      %s129 = sphi 0, %s128
      %s143 = sphi 0, %s129
      %s149 = sphi 0, %s151
      %s152 = sphi 0, %s149
      %s153 = sphi 0, %s152
      %s169 = sphi 0, %s153
      %s175 = sphi 0, %s177
      %s178 = sphi 0, %s175
      %s179 = sphi 0, %s178
      %s195 = sphi 0, %s179
      %s201 = sphi 0, %s203
      %s204 = sphi 0, %s201
      %s205 = sphi 0, %s204
      %s221 = sphi 0, %s205
      %s227 = sphi 0, %s229
      %s230 = sphi 0, %s227
      %s231 = sphi 0, %s230
      %s247 = sphi 0, %s231
    $region4: #{tpu_custom_call.1} parent=1 // loop_header_branch
      %32 = sbr.rel (%p30) target = $region8
    $region5: #{tpu_custom_call.1} parent=1 // loop_body
      %s34 = ssub.s32 %s29, 1
      %s35 = ssub.s32 %s29, 2
      %s36 = sadd.s32 %s29, 1
      %s37 = ssub.s32 %s29, %s36
      %p38 = scmp.eq.s32.totalorder %s37, 0
      %s40 = sadd.s32 %s39, 1
      %s41 = scalar_select %p38, %s39, %s40
      %p44 = pneg %p38
      %p45 = scmp.eq.s32.totalorder %s29, 1
      %p46 = por %p44, %p45
      %p47 = scmp.ne.s32.totalorder %s39, %s42
      %p48 = scmp.eq.s32.totalorder %s29, 0
      %p49 = por %p47, %p48
      %p50 = scmp.ne.s32.totalorder %s39, %s42
      %p51 = scmp.eq.s32.totalorder %s34, 1
      %p52 = por %p50, %p51
      %p53 = scmp.ne.s32.totalorder %s42, %s43
      %p54 = scmp.eq.s32.totalorder %s34, 0
      %p55 = por %p53, %p54
      %p56 = scmp.ne.s32.totalorder %s42, %s43
      %p57 = scmp.eq.s32.totalorder %s35, 1
      %p58 = por %p56, %p57
      %p60 = scmp.ne.s32.totalorder %s43, %s59
      %p61 = scmp.eq.s32.totalorder %s35, 0
      %p62 = por %p60, %p61
      %s64 = sadd.s32 %s63, 1
      %p67 = scmp.eq.s32.totalorder %s29, 1
      %p68 = scmp.ne.s32.totalorder %s63, %s65
      %p69 = scmp.eq.s32.totalorder %s29, 0
      %p70 = por %p68, %p69
      %p71 = scmp.ne.s32.totalorder %s63, %s65
      %p72 = scmp.eq.s32.totalorder %s34, 1
      %p73 = por %p71, %p72
      %p74 = scmp.ne.s32.totalorder %s65, %s66
      %p75 = scmp.eq.s32.totalorder %s34, 0
      %p76 = por %p74, %p75
      %p77 = scmp.ne.s32.totalorder %s65, %s66
      %p78 = scmp.eq.s32.totalorder %s35, 1
      %p79 = por %p77, %p78
      %p81 = scmp.ne.s32.totalorder %s66, %s80
      %p82 = scmp.eq.s32.totalorder %s35, 0
      %p83 = por %p81, %p82
      %s85 = sadd.s32 %s84, 1
      %p88 = scmp.eq.s32.totalorder %s29, 1
      %p89 = scmp.ne.s32.totalorder %s84, %s86
      %p90 = scmp.eq.s32.totalorder %s29, 0
      %p91 = por %p89, %p90
      %p92 = scmp.ne.s32.totalorder %s84, %s86
      %p93 = scmp.eq.s32.totalorder %s34, 1
      %p94 = por %p92, %p93
      %p95 = scmp.ne.s32.totalorder %s86, %s87
      %p96 = scmp.eq.s32.totalorder %s34, 0
      %p97 = por %p95, %p96
      %p98 = scmp.ne.s32.totalorder %s86, %s87
      %p99 = scmp.eq.s32.totalorder %s35, 1
      %p100 = por %p98, %p99
      %p102 = scmp.ne.s32.totalorder %s87, %s101
      %p103 = scmp.eq.s32.totalorder %s35, 0
      %p104 = por %p102, %p103
      %s106 = sadd.s32 %s105, 1
      %p109 = scmp.eq.s32.totalorder %s29, 1
      %p110 = scmp.ne.s32.totalorder %s105, %s107
      %p111 = scmp.eq.s32.totalorder %s29, 0
      %p112 = por %p110, %p111
      %p113 = scmp.ne.s32.totalorder %s105, %s107
      %p114 = scmp.eq.s32.totalorder %s34, 1
      %p115 = por %p113, %p114
      %p116 = scmp.ne.s32.totalorder %s107, %s108
      %p117 = scmp.eq.s32.totalorder %s34, 0
      %p118 = por %p116, %p117
      %p119 = scmp.ne.s32.totalorder %s107, %s108
      %p120 = scmp.eq.s32.totalorder %s35, 1
      %p121 = por %p119, %p120
      %p123 = scmp.ne.s32.totalorder %s108, %s122
      %p124 = scmp.eq.s32.totalorder %s35, 0
      %p125 = por %p123, %p124
      %s127 = sadd.s32 %s126, 1
      %p130 = scmp.eq.s32.totalorder %s29, 1
      %p131 = scmp.ne.s32.totalorder %s126, %s128
      %p132 = scmp.eq.s32.totalorder %s29, 0
      %p133 = por %p131, %p132
      %p134 = scmp.ne.s32.totalorder %s126, %s128
      %p135 = scmp.eq.s32.totalorder %s34, 1
      %p136 = por %p134, %p135
      %p137 = scmp.ne.s32.totalorder %s128, %s129
      %p138 = scmp.eq.s32.totalorder %s34, 0
      %p139 = por %p137, %p138
      %p140 = scmp.ne.s32.totalorder %s128, %s129
      %p141 = scmp.eq.s32.totalorder %s35, 1
      %p142 = por %p140, %p141
      %p144 = scmp.ne.s32.totalorder %s129, %s143
      %p145 = scmp.eq.s32.totalorder %s35, 0
      %p146 = por %p144, %p145
      %s147 = ssub.s32 %s29, %s36
      %p148 = scmp.eq.s32.totalorder %s147, 0
      %s150 = sadd.s32 %s149, 1
      %s151 = scalar_select %p148, %s149, %s150
      %p154 = pneg %p148
      %p155 = scmp.eq.s32.totalorder %s29, 1
      %p156 = por %p154, %p155
      %p157 = scmp.ne.s32.totalorder %s149, %s152
      %p158 = scmp.eq.s32.totalorder %s29, 0
      %p159 = por %p157, %p158
      %p160 = scmp.ne.s32.totalorder %s149, %s152
      %p161 = scmp.eq.s32.totalorder %s34, 1
      %p162 = por %p160, %p161
      %p163 = scmp.ne.s32.totalorder %s152, %s153
      %p164 = scmp.eq.s32.totalorder %s34, 0
      %p165 = por %p163, %p164
      %p166 = scmp.ne.s32.totalorder %s152, %s153
      %p167 = scmp.eq.s32.totalorder %s35, 1
      %p168 = por %p166, %p167
      %p170 = scmp.ne.s32.totalorder %s153, %s169
      %p171 = scmp.eq.s32.totalorder %s35, 0
      %p172 = por %p170, %p171
      %s173 = ssub.s32 %s29, %s36
      %p174 = scmp.eq.s32.totalorder %s173, 0
      %s176 = sadd.s32 %s175, 1
      %s177 = scalar_select %p174, %s175, %s176
      %p180 = pneg %p174
      %p181 = scmp.eq.s32.totalorder %s29, 1
      %p182 = por %p180, %p181
      %p183 = scmp.ne.s32.totalorder %s175, %s178
      %p184 = scmp.eq.s32.totalorder %s29, 0
      %p185 = por %p183, %p184
      %p186 = scmp.ne.s32.totalorder %s175, %s178
      %p187 = scmp.eq.s32.totalorder %s34, 1
      %p188 = por %p186, %p187
      %p189 = scmp.ne.s32.totalorder %s178, %s179
      %p190 = scmp.eq.s32.totalorder %s34, 0
      %p191 = por %p189, %p190
      %p192 = scmp.ne.s32.totalorder %s178, %s179
      %p193 = scmp.eq.s32.totalorder %s35, 1
      %p194 = por %p192, %p193
      %p196 = scmp.ne.s32.totalorder %s179, %s195
      %p197 = scmp.eq.s32.totalorder %s35, 0
      %p198 = por %p196, %p197
      %s199 = ssub.s32 %s29, %s36
      %p200 = scmp.eq.s32.totalorder %s199, 0
      %s202 = sadd.s32 %s201, 1
      %s203 = scalar_select %p200, %s201, %s202
      %p206 = pneg %p200
      %p207 = scmp.eq.s32.totalorder %s29, 1
      %p208 = por %p206, %p207
      %p209 = scmp.ne.s32.totalorder %s201, %s204
      %p210 = scmp.eq.s32.totalorder %s29, 0
      %p211 = por %p209, %p210
      %p212 = scmp.ne.s32.totalorder %s201, %s204
      %p213 = scmp.eq.s32.totalorder %s34, 1
      %p214 = por %p212, %p213
      %p215 = scmp.ne.s32.totalorder %s204, %s205
      %p216 = scmp.eq.s32.totalorder %s34, 0
      %p217 = por %p215, %p216
      %p218 = scmp.ne.s32.totalorder %s204, %s205
      %p219 = scmp.eq.s32.totalorder %s35, 1
      %p220 = por %p218, %p219
      %p222 = scmp.ne.s32.totalorder %s205, %s221
      %p223 = scmp.eq.s32.totalorder %s35, 0
      %p224 = por %p222, %p223
      %s225 = ssub.s32 %s29, %s36
      %p226 = scmp.eq.s32.totalorder %s225, 0
      %s228 = sadd.s32 %s227, 1
      %s229 = scalar_select %p226, %s227, %s228
      %p232 = pneg %p226
      %p233 = scmp.eq.s32.totalorder %s29, 1
      %p234 = por %p232, %p233
      %p235 = scmp.ne.s32.totalorder %s227, %s230
      %p236 = scmp.eq.s32.totalorder %s29, 0
      %p237 = por %p235, %p236
      %p238 = scmp.ne.s32.totalorder %s227, %s230
      %p239 = scmp.eq.s32.totalorder %s34, 1
      %p240 = por %p238, %p239
      %p241 = scmp.ne.s32.totalorder %s230, %s231
      %p242 = scmp.eq.s32.totalorder %s34, 0
      %p243 = por %p241, %p242
      %p244 = scmp.ne.s32.totalorder %s230, %s231
      %p245 = scmp.eq.s32.totalorder %s35, 1
      %p246 = por %p244, %p245
      %p248 = scmp.ne.s32.totalorder %s231, %s247
      %p249 = scmp.eq.s32.totalorder %s35, 0
      %p250 = por %p248, %p249
      %p251 = scmp.le.s32.totalorder 1, %s29
      %p252 = scmp.lt.s32.totalorder %s29, 3
      %p253 = pnand %p251, %p252
      %p254 = pneg %p253
      // Predicated region
      $region9: #{tpu_custom_call.1} parent=5 // pred_check
        _
      $region10: #{tpu_custom_call.1} parent=5 // pred_check_branch
        %256 = sbr.rel (%p253) target = $region12
      $region11: #{tpu_custom_call.1} parent=5 // pred_region
        %s257 = ssub.s32 %s29, 1
        // Predicated region
        $region13: #{tpu_custom_call.1} parent=11 // pred_check
          %p258 = pneg %p76
        $region14: #{tpu_custom_call.1} parent=11 // pred_check_branch
          %260 = sbr.rel (%p258) target = $region16
        $region15: #{tpu_custom_call.1} parent=11 // pred_region
          %s262 = ssub.s32 32, 32
          %263 = vsyncadd [#allocation6], %s262
          %s265 = sshll.u32 [#allocation5], 4
          %s266 = int_to_ptr.vmem [resolvable:$true] %s265
          %268 = dma.hbm_to_vmem [thread:$0]  %s1, 32, %s266, [#allocation6]
        $region16: #{tpu_custom_call.1} parent=11 // pred_fallthru
          _
        // Predicated region
        $region17: #{tpu_custom_call.1} parent=11 // pred_check
          %p269 = pneg %p97
        $region18: #{tpu_custom_call.1} parent=11 // pred_check_branch
          %271 = sbr.rel (%p269) target = $region20
        $region19: #{tpu_custom_call.1} parent=11 // pred_region
          %s273 = ssub.s32 5120, 5120
          %274 = vsyncadd [#allocation6], %s273
          %s275 = sshll.u32 [#allocation7], 4
          %s276 = int_to_ptr.vmem [resolvable:$true] %s275
          %281 = dma.hbm_to_vmem [thread:$0]  %s2, 5120, %s276, [#allocation6], 320, 320, 20
        $region20: #{tpu_custom_call.1} parent=11 // pred_fallthru
          _
        // Predicated region
        $region21: #{tpu_custom_call.1} parent=11 // pred_check
          %p282 = pneg %p118
        $region22: #{tpu_custom_call.1} parent=11 // pred_check_branch
          %284 = sbr.rel (%p282) target = $region24
        $region23: #{tpu_custom_call.1} parent=11 // pred_region
          %s286 = ssub.s32 80, 80
          %287 = vsyncadd [#allocation9], %s286
          %s289 = sshll.u32 [#allocation8], 4
          %s290 = int_to_ptr.vmem [resolvable:$true] %s289
          %292 = dma.hbm_to_vmem [thread:$0]  %s3, 80, %s290, [#allocation9]
        $region24: #{tpu_custom_call.1} parent=11 // pred_fallthru
          _
        // Predicated region
        $region25: #{tpu_custom_call.1} parent=11 // pred_check
          %p293 = pneg %p139
        $region26: #{tpu_custom_call.1} parent=11 // pred_check_branch
          %295 = sbr.rel (%p293) target = $region28
        $region27: #{tpu_custom_call.1} parent=11 // pred_region
          %s297 = ssub.s32 64, 64
          %298 = vsyncadd [#allocation9], %s297
          %s300 = sshll.u32 [#allocation10], 4
          %s301 = int_to_ptr.vmem [resolvable:$true] %s300
          %303 = dma.hbm_to_vmem [thread:$0]  %s4, 64, %s301, [#allocation9]
        $region28: #{tpu_custom_call.1} parent=11 // pred_fallthru
          _
      $region12: #{tpu_custom_call.1} parent=5 // pred_fallthru
        _
      %p304 = scmp.lt.s32.totalorder %s29, 2
      // Predicated region
      $region29: #{tpu_custom_call.1} parent=5 // pred_check
        %p305 = pneg %p304
      $region30: #{tpu_custom_call.1} parent=5 // pred_check_branch
        %307 = sbr.rel (%p305) target = $region32
      $region31: #{tpu_custom_call.1} parent=5 // pred_region
        // Predicated region
        $region33: #{tpu_custom_call.1} parent=31 // pred_check
          %p308 = pneg %p49
        $region34: #{tpu_custom_call.1} parent=31 // pred_check_branch
          %310 = sbr.rel (%p308) target = $region36
        $region35: #{tpu_custom_call.1} parent=31 // pred_region
          %s311 = sand.u32 %s39, 1
          %s312 = scalar_lea.sflag [#allocation3], %s311
          %s313 = sand.u32 %s39, 1
          %s314 = smul.addr %s313, 256
          %s315 = scalar_lea.vmem [#allocation2], %s314
          %s316 = smul.u32 32, %s29
          %s318 = ssub.s32 4096, 4096
          %319 = vsyncadd %s312, %s318
          %s320 = smul.addr %s316, 128
          %s321 = scalar_lea.hbm %s0, %s320
          %s322 = sshll.u32 %s315, 4
          %s323 = int_to_ptr.vmem [resolvable:$true] %s322
          %328 = dma.hbm_to_vmem [thread:$0]  %s321, 4096, %s323, %s312, 128, 128, 8
        $region36: #{tpu_custom_call.1} parent=31 // pred_fallthru
          _
      $region32: #{tpu_custom_call.1} parent=5 // pred_fallthru
        _
      %p329 = scmp.le.s32.totalorder 1, %s29
      %p330 = scmp.lt.s32.totalorder %s29, 3
      %p331 = pnand %p329, %p330
      %p332 = pneg %p331
      // Predicated region
      $region37: #{tpu_custom_call.1} parent=5 // pred_check
        _
      $region38: #{tpu_custom_call.1} parent=5 // pred_check_branch
        %334 = sbr.rel (%p331) target = $region40
      $region39: #{tpu_custom_call.1} parent=5 // pred_region
        %s335 = ssub.s32 %s29, 1
        %s336 = sand.u32 %s42, 1
        %s337 = scalar_lea.sflag [#allocation3], %s336
        %s338 = sand.u32 %s42, 1
        %s339 = smul.addr %s338, 256
        %s340 = scalar_lea.vmem [#allocation2], %s339
        // Predicated region
        $region41: #{tpu_custom_call.1} parent=39 // pred_check
          %p341 = pneg %p55
        $region42: #{tpu_custom_call.1} parent=39 // pred_check_branch
          %343 = sbr.rel (%p341) target = $region44
        $region43: #{tpu_custom_call.1} parent=39 // pred_region
          %344 = dma.done %s337, 4096
        $region44: #{tpu_custom_call.1} parent=39 // pred_fallthru
          _
        // Predicated region
        $region45: #{tpu_custom_call.1} parent=39 // pred_check
          %p345 = pneg %p76
        $region46: #{tpu_custom_call.1} parent=39 // pred_check_branch
          %347 = sbr.rel (%p345) target = $region48
        $region47: #{tpu_custom_call.1} parent=39 // pred_region
          %348 = dma.done [#allocation6], 32
        $region48: #{tpu_custom_call.1} parent=39 // pred_fallthru
          _
        // Predicated region
        $region49: #{tpu_custom_call.1} parent=39 // pred_check
          %p349 = pneg %p97
        $region50: #{tpu_custom_call.1} parent=39 // pred_check_branch
          %351 = sbr.rel (%p349) target = $region52
        $region51: #{tpu_custom_call.1} parent=39 // pred_region
          %352 = dma.done [#allocation6], 5120
        $region52: #{tpu_custom_call.1} parent=39 // pred_fallthru
          _
        // Predicated region
        $region53: #{tpu_custom_call.1} parent=39 // pred_check
          %p353 = pneg %p118
        $region54: #{tpu_custom_call.1} parent=39 // pred_check_branch
          %355 = sbr.rel (%p353) target = $region56
        $region55: #{tpu_custom_call.1} parent=39 // pred_region
          %356 = dma.done [#allocation9], 80
        $region56: #{tpu_custom_call.1} parent=39 // pred_fallthru
          _
        // Predicated region
        $region57: #{tpu_custom_call.1} parent=39 // pred_check
          %p357 = pneg %p139
        $region58: #{tpu_custom_call.1} parent=39 // pred_check_branch
          %359 = sbr.rel (%p357) target = $region60
        $region59: #{tpu_custom_call.1} parent=39 // pred_region
          %360 = dma.done [#allocation9], 64
        $region60: #{tpu_custom_call.1} parent=39 // pred_fallthru
          _
        %s361 = sand.u32 %s42, 1
        %s362 = scalar_lea.sflag [#allocation3], %s361
        %s363 = sand.u32 %s42, 1
        %s364 = smul.addr %s363, 256
        %s365 = scalar_lea.vmem [#allocation2], %s364
        %p366 = pneg %p55
        %p367 = pneg %p52
        %p368 = pneg %p76
        %p369 = pneg %p73
        %p370 = pneg %p97
        %p371 = pneg %p94
        %p372 = pneg %p118
        %p373 = pneg %p115
        %p374 = pneg %p139
        %p375 = pneg %p136
        %p376 = pneg %p165
        %p377 = pneg %p162
        %s378 = sand.u32 %s152, 1
        %s379 = scalar_lea.sflag [#allocation4], %s378
        %s380 = sand.u32 %s152, 1
        %s381 = smul.addr %s380, 128
        %s382 = scalar_lea.vmem [#allocation11], %s381
        %p383 = pneg %p191
        %p384 = pneg %p188
        %s385 = sand.u32 %s34, 1
        %s386 = scalar_lea.sflag [#allocation13], %s385
        %s387 = sand.u32 %s178, 1
        %s388 = smul.addr %s387, 128
        %s389 = scalar_lea.vmem [#allocation12], %s388
        %p390 = pneg %p217
        %p391 = pneg %p214
        %s392 = sand.u32 %s34, 1
        %s393 = scalar_lea.sflag [#allocation13], %s392
        %s394 = sand.u32 %s204, 1
        %s395 = smul.addr %s394, 256
        %s396 = scalar_lea.vmem [#allocation14], %s395
        %p397 = pneg %p243
        %p398 = pneg %p240
        %s399 = sand.u32 %s230, 1
        %s400 = scalar_lea.sflag [#allocation16], %s399
        %s401 = sand.u32 %s230, 1
        %s402 = smul.addr %s401, 256
        %s403 = scalar_lea.vmem [#allocation15], %s402
        %s404 = smul.u32 32, %s34
        %s405 = smul.u32 32, %s34
        %s406 = smul.u32 32, %s34
        %s407 = smul.u32 32, %s34
        %s408 = smul.u32 32, %s34
        %v410 = vld [vmem:[%s340] sm:$0xff]
        %v411 = vld [vmem:[%s340 + $0x8] sm:$0xff]
        %v412 = vld [vmem:[%s340 + $0x10] sm:$0xff]
        %v413 = vld [vmem:[%s340 + $0x18] sm:$0xff]
        %v414 = vld [vmem:[%s340 + $0x20] sm:$0xff]
        %v415 = vld [vmem:[%s340 + $0x28] sm:$0xff]
        %v416 = vld [vmem:[%s340 + $0x30] sm:$0xff]
        %v417 = vld [vmem:[%s340 + $0x38] sm:$0xff]
        %v418 = vld [vmem:[%s340 + $0x40] sm:$0xff]
        %v419 = vld [vmem:[%s340 + $0x48] sm:$0xff]
        %v420 = vld [vmem:[%s340 + $0x50] sm:$0xff]
        %v421 = vld [vmem:[%s340 + $0x58] sm:$0xff]
        %v422 = vld [vmem:[%s340 + $0x60] sm:$0xff]
        %v423 = vld [vmem:[%s340 + $0x68] sm:$0xff]
        %v424 = vld [vmem:[%s340 + $0x70] sm:$0xff]
        %v425 = vld [vmem:[%s340 + $0x78] sm:$0xff]
        %v426 = vld [vmem:[%s340 + $0x80] sm:$0xff]
        %v427 = vld [vmem:[%s340 + $0x88] sm:$0xff]
        %v428 = vld [vmem:[%s340 + $0x90] sm:$0xff]
        %v429 = vld [vmem:[%s340 + $0x98] sm:$0xff]
        %v430 = vld [vmem:[%s340 + $0xa0] sm:$0xff]
        %v431 = vld [vmem:[%s340 + $0xa8] sm:$0xff]
        %v432 = vld [vmem:[%s340 + $0xb0] sm:$0xff]
        %v433 = vld [vmem:[%s340 + $0xb8] sm:$0xff]
        %v434 = vld [vmem:[%s340 + $0xc0] sm:$0xff]
        %v435 = vld [vmem:[%s340 + $0xc8] sm:$0xff]
        %v436 = vld [vmem:[%s340 + $0xd0] sm:$0xff]
        %v437 = vld [vmem:[%s340 + $0xd8] sm:$0xff]
        %v438 = vld [vmem:[%s340 + $0xe0] sm:$0xff]
        %v439 = vld [vmem:[%s340 + $0xe8] sm:$0xff]
        %v440 = vld [vmem:[%s340 + $0xf0] sm:$0xff]
        %v441 = vld [vmem:[%s340 + $0xf8] sm:$0xff]
        %442 = vadd.xlane.f32.xlu0 %v410
        %v443 = vpop.xlane.xlu0 %442
        %444 = vadd.xlane.f32.xlu0 %v411
        %v445 = vpop.xlane.xlu0 %444
        %446 = vadd.xlane.f32.xlu0 %v412
        %v447 = vpop.xlane.xlu0 %446
        %448 = vadd.xlane.f32.xlu0 %v413
        %v449 = vpop.xlane.xlu0 %448
        %450 = vadd.xlane.f32.xlu0 %v414
        %v451 = vpop.xlane.xlu0 %450
        %452 = vadd.xlane.f32.xlu0 %v415
        %v453 = vpop.xlane.xlu0 %452
        %454 = vadd.xlane.f32.xlu0 %v416
        %v455 = vpop.xlane.xlu0 %454
        %456 = vadd.xlane.f32.xlu0 %v417
        %v457 = vpop.xlane.xlu0 %456
        %458 = vadd.xlane.f32.xlu0 %v418
        %v459 = vpop.xlane.xlu0 %458
        %460 = vadd.xlane.f32.xlu0 %v419
        %v461 = vpop.xlane.xlu0 %460
        %462 = vadd.xlane.f32.xlu0 %v420
        %v463 = vpop.xlane.xlu0 %462
        %464 = vadd.xlane.f32.xlu0 %v421
        %v465 = vpop.xlane.xlu0 %464
        %466 = vadd.xlane.f32.xlu0 %v422
        %v467 = vpop.xlane.xlu0 %466
        %468 = vadd.xlane.f32.xlu0 %v423
        %v469 = vpop.xlane.xlu0 %468
        %470 = vadd.xlane.f32.xlu0 %v424
        %v471 = vpop.xlane.xlu0 %470
        %472 = vadd.xlane.f32.xlu0 %v425
        %v473 = vpop.xlane.xlu0 %472
        %474 = vadd.xlane.f32.xlu0 %v426
        %v475 = vpop.xlane.xlu0 %474
        %476 = vadd.xlane.f32.xlu0 %v427
        %v477 = vpop.xlane.xlu0 %476
        %478 = vadd.xlane.f32.xlu0 %v428
        %v479 = vpop.xlane.xlu0 %478
        %480 = vadd.xlane.f32.xlu0 %v429
        %v481 = vpop.xlane.xlu0 %480
        %482 = vadd.xlane.f32.xlu0 %v430
        %v483 = vpop.xlane.xlu0 %482
        %484 = vadd.xlane.f32.xlu0 %v431
        %v485 = vpop.xlane.xlu0 %484
        %486 = vadd.xlane.f32.xlu0 %v432
        %v487 = vpop.xlane.xlu0 %486
        %488 = vadd.xlane.f32.xlu0 %v433
        %v489 = vpop.xlane.xlu0 %488
        %490 = vadd.xlane.f32.xlu0 %v434
        %v491 = vpop.xlane.xlu0 %490
        %492 = vadd.xlane.f32.xlu0 %v435
        %v493 = vpop.xlane.xlu0 %492
        %494 = vadd.xlane.f32.xlu0 %v436
        %v495 = vpop.xlane.xlu0 %494
        %496 = vadd.xlane.f32.xlu0 %v437
        %v497 = vpop.xlane.xlu0 %496
        %498 = vadd.xlane.f32.xlu0 %v438
        %v499 = vpop.xlane.xlu0 %498
        %500 = vadd.xlane.f32.xlu0 %v439
        %v501 = vpop.xlane.xlu0 %500
        %502 = vadd.xlane.f32.xlu0 %v440
        %v503 = vpop.xlane.xlu0 %502
        %504 = vadd.xlane.f32.xlu0 %v441
        %v505 = vpop.xlane.xlu0 %504
        %v506 = vrcp.pop 128.0
        %v507 = vmul.f32 %v443, %v506
        %v508 = vmul.f32 %v445, %v506
        %v509 = vmul.f32 %v447, %v506
        %v510 = vmul.f32 %v449, %v506
        %v511 = vmul.f32 %v451, %v506
        %v512 = vmul.f32 %v453, %v506
        %v513 = vmul.f32 %v455, %v506
        %v514 = vmul.f32 %v457, %v506
        %v515 = vmul.f32 %v459, %v506
        %v516 = vmul.f32 %v461, %v506
        %v517 = vmul.f32 %v463, %v506
        %v518 = vmul.f32 %v465, %v506
        %v519 = vmul.f32 %v467, %v506
        %v520 = vmul.f32 %v469, %v506
        %v521 = vmul.f32 %v471, %v506
        %v522 = vmul.f32 %v473, %v506
        %v523 = vmul.f32 %v475, %v506
        %v524 = vmul.f32 %v477, %v506
        %v525 = vmul.f32 %v479, %v506
        %v526 = vmul.f32 %v481, %v506
        %v527 = vmul.f32 %v483, %v506
        %v528 = vmul.f32 %v485, %v506
        %v529 = vmul.f32 %v487, %v506
        %v530 = vmul.f32 %v489, %v506
        %v531 = vmul.f32 %v491, %v506
        %v532 = vmul.f32 %v493, %v506
        %v533 = vmul.f32 %v495, %v506
        %v534 = vmul.f32 %v497, %v506
        %v535 = vmul.f32 %v499, %v506
        %v536 = vmul.f32 %v501, %v506
        %v537 = vmul.f32 %v503, %v506
        %v538 = vmul.f32 %v505, %v506
        %v539 = vsub.f32 %v410, %v507
        %v540 = vsub.f32 %v411, %v508
        %v541 = vsub.f32 %v412, %v509
        %v542 = vsub.f32 %v413, %v510
        %v543 = vsub.f32 %v414, %v511
        %v544 = vsub.f32 %v415, %v512
        %v545 = vsub.f32 %v416, %v513
        %v546 = vsub.f32 %v417, %v514
        %v547 = vsub.f32 %v418, %v515
        %v548 = vsub.f32 %v419, %v516
        %v549 = vsub.f32 %v420, %v517
        %v550 = vsub.f32 %v421, %v518
        %v551 = vsub.f32 %v422, %v519
        %v552 = vsub.f32 %v423, %v520
        %v553 = vsub.f32 %v424, %v521
        %v554 = vsub.f32 %v425, %v522
        %v555 = vsub.f32 %v426, %v523
        %v556 = vsub.f32 %v427, %v524
        %v557 = vsub.f32 %v428, %v525
        %v558 = vsub.f32 %v429, %v526
        %v559 = vsub.f32 %v430, %v527
        %v560 = vsub.f32 %v431, %v528
        %v561 = vsub.f32 %v432, %v529
        %v562 = vsub.f32 %v433, %v530
        %v563 = vsub.f32 %v434, %v531
        %v564 = vsub.f32 %v435, %v532
        %v565 = vsub.f32 %v436, %v533
        %v566 = vsub.f32 %v437, %v534
        %v567 = vsub.f32 %v438, %v535
        %v568 = vsub.f32 %v439, %v536
        %v569 = vsub.f32 %v440, %v537
        %v570 = vsub.f32 %v441, %v538
        %v571 = vmul.f32 %v539, %v539
        %v572 = vmul.f32 %v540, %v540
        %v573 = vmul.f32 %v541, %v541
        %v574 = vmul.f32 %v542, %v542
        %v575 = vmul.f32 %v543, %v543
        %v576 = vmul.f32 %v544, %v544
        %v577 = vmul.f32 %v545, %v545
        %v578 = vmul.f32 %v546, %v546
        %v579 = vmul.f32 %v547, %v547
        %v580 = vmul.f32 %v548, %v548
        %v581 = vmul.f32 %v549, %v549
        %v582 = vmul.f32 %v550, %v550
        %v583 = vmul.f32 %v551, %v551
        %v584 = vmul.f32 %v552, %v552
        %v585 = vmul.f32 %v553, %v553
        %v586 = vmul.f32 %v554, %v554
        %v587 = vmul.f32 %v555, %v555
        %v588 = vmul.f32 %v556, %v556
        %v589 = vmul.f32 %v557, %v557
        %v590 = vmul.f32 %v558, %v558
        %v591 = vmul.f32 %v559, %v559
        %v592 = vmul.f32 %v560, %v560
        %v593 = vmul.f32 %v561, %v561
        %v594 = vmul.f32 %v562, %v562
        %v595 = vmul.f32 %v563, %v563
        %v596 = vmul.f32 %v564, %v564
        %v597 = vmul.f32 %v565, %v565
        %v598 = vmul.f32 %v566, %v566
        %v599 = vmul.f32 %v567, %v567
        %v600 = vmul.f32 %v568, %v568
        %v601 = vmul.f32 %v569, %v569
        %v602 = vmul.f32 %v570, %v570
        %603 = vadd.xlane.f32.xlu0 %v571
        %v604 = vpop.xlane.xlu0 %603
        %605 = vadd.xlane.f32.xlu0 %v572
        %v606 = vpop.xlane.xlu0 %605
        %607 = vadd.xlane.f32.xlu0 %v573
        %v608 = vpop.xlane.xlu0 %607
        %609 = vadd.xlane.f32.xlu0 %v574
        %v610 = vpop.xlane.xlu0 %609
        %611 = vadd.xlane.f32.xlu0 %v575
        %v612 = vpop.xlane.xlu0 %611
        %613 = vadd.xlane.f32.xlu0 %v576
        %v614 = vpop.xlane.xlu0 %613
        %615 = vadd.xlane.f32.xlu0 %v577
        %v616 = vpop.xlane.xlu0 %615
        %617 = vadd.xlane.f32.xlu0 %v578
        %v618 = vpop.xlane.xlu0 %617
        %619 = vadd.xlane.f32.xlu0 %v579
        %v620 = vpop.xlane.xlu0 %619
        %621 = vadd.xlane.f32.xlu0 %v580
        %v622 = vpop.xlane.xlu0 %621
        %623 = vadd.xlane.f32.xlu0 %v581
        %v624 = vpop.xlane.xlu0 %623
        %625 = vadd.xlane.f32.xlu0 %v582
        %v626 = vpop.xlane.xlu0 %625
        %627 = vadd.xlane.f32.xlu0 %v583
        %v628 = vpop.xlane.xlu0 %627
        %629 = vadd.xlane.f32.xlu0 %v584
        %v630 = vpop.xlane.xlu0 %629
        %631 = vadd.xlane.f32.xlu0 %v585
        %v632 = vpop.xlane.xlu0 %631
        %633 = vadd.xlane.f32.xlu0 %v586
        %v634 = vpop.xlane.xlu0 %633
        %635 = vadd.xlane.f32.xlu0 %v587
        %v636 = vpop.xlane.xlu0 %635
        %637 = vadd.xlane.f32.xlu0 %v588
        %v638 = vpop.xlane.xlu0 %637
        %639 = vadd.xlane.f32.xlu0 %v589
        %v640 = vpop.xlane.xlu0 %639
        %641 = vadd.xlane.f32.xlu0 %v590
        %v642 = vpop.xlane.xlu0 %641
        %643 = vadd.xlane.f32.xlu0 %v591
        %v644 = vpop.xlane.xlu0 %643
        %645 = vadd.xlane.f32.xlu0 %v592
        %v646 = vpop.xlane.xlu0 %645
        %647 = vadd.xlane.f32.xlu0 %v593
        %v648 = vpop.xlane.xlu0 %647
        %649 = vadd.xlane.f32.xlu0 %v594
        %v650 = vpop.xlane.xlu0 %649
        %651 = vadd.xlane.f32.xlu0 %v595
        %v652 = vpop.xlane.xlu0 %651
        %653 = vadd.xlane.f32.xlu0 %v596
        %v654 = vpop.xlane.xlu0 %653
        %655 = vadd.xlane.f32.xlu0 %v597
        %v656 = vpop.xlane.xlu0 %655
        %657 = vadd.xlane.f32.xlu0 %v598
        %v658 = vpop.xlane.xlu0 %657
        %659 = vadd.xlane.f32.xlu0 %v599
        %v660 = vpop.xlane.xlu0 %659
        %661 = vadd.xlane.f32.xlu0 %v600
        %v662 = vpop.xlane.xlu0 %661
        %663 = vadd.xlane.f32.xlu0 %v601
        %v664 = vpop.xlane.xlu0 %663
        %665 = vadd.xlane.f32.xlu0 %v602
        %v666 = vpop.xlane.xlu0 %665
        %v667 = vmul.f32 %v604, %v506
        %v668 = vmul.f32 %v606, %v506
        %v669 = vmul.f32 %v608, %v506
        %v670 = vmul.f32 %v610, %v506
        %v671 = vmul.f32 %v612, %v506
        %v672 = vmul.f32 %v614, %v506
        %v673 = vmul.f32 %v616, %v506
        %v674 = vmul.f32 %v618, %v506
        %v675 = vmul.f32 %v620, %v506
        %v676 = vmul.f32 %v622, %v506
        %v677 = vmul.f32 %v624, %v506
        %v678 = vmul.f32 %v626, %v506
        %v679 = vmul.f32 %v628, %v506
        %v680 = vmul.f32 %v630, %v506
        %v681 = vmul.f32 %v632, %v506
        %v682 = vmul.f32 %v634, %v506
        %v683 = vmul.f32 %v636, %v506
        %v684 = vmul.f32 %v638, %v506
        %v685 = vmul.f32 %v640, %v506
        %v686 = vmul.f32 %v642, %v506
        %v687 = vmul.f32 %v644, %v506
        %v688 = vmul.f32 %v646, %v506
        %v689 = vmul.f32 %v648, %v506
        %v690 = vmul.f32 %v650, %v506
        %v691 = vmul.f32 %v652, %v506
        %v692 = vmul.f32 %v654, %v506
        %v693 = vmul.f32 %v656, %v506
        %v694 = vmul.f32 %v658, %v506
        %v695 = vmul.f32 %v660, %v506
        %v696 = vmul.f32 %v662, %v506
        %v697 = vmul.f32 %v664, %v506
        %v698 = vmul.f32 %v666, %v506
        %v699 = vld [vmem:[#allocation5] sm:$0x3]
        %v700 = vadd.f32 %v667, 1e-05
        %v701 = vadd.f32 %v668, 1e-05
        %v702 = vadd.f32 %v669, 1e-05
        %v703 = vadd.f32 %v670, 1e-05
        %v704 = vadd.f32 %v671, 1e-05
        %v705 = vadd.f32 %v672, 1e-05
        %v706 = vadd.f32 %v673, 1e-05
        %v707 = vadd.f32 %v674, 1e-05
        %v708 = vadd.f32 %v675, 1e-05
        %v709 = vadd.f32 %v676, 1e-05
        %v710 = vadd.f32 %v677, 1e-05
        %v711 = vadd.f32 %v678, 1e-05
        %v712 = vadd.f32 %v679, 1e-05
        %v713 = vadd.f32 %v680, 1e-05
        %v714 = vadd.f32 %v681, 1e-05
        %v715 = vadd.f32 %v682, 1e-05
        %v716 = vadd.f32 %v683, 1e-05
        %v717 = vadd.f32 %v684, 1e-05
        %v718 = vadd.f32 %v685, 1e-05
        %v719 = vadd.f32 %v686, 1e-05
        %v720 = vadd.f32 %v687, 1e-05
        %v721 = vadd.f32 %v688, 1e-05
        %v722 = vadd.f32 %v689, 1e-05
        %v723 = vadd.f32 %v690, 1e-05
        %v724 = vadd.f32 %v691, 1e-05
        %v725 = vadd.f32 %v692, 1e-05
        %v726 = vadd.f32 %v693, 1e-05
        %v727 = vadd.f32 %v694, 1e-05
        %v728 = vadd.f32 %v695, 1e-05
        %v729 = vadd.f32 %v696, 1e-05
        %v730 = vadd.f32 %v697, 1e-05
        %v731 = vadd.f32 %v698, 1e-05
        %v732 = vrsqrt.pop %v700
        %v733 = vrsqrt.pop %v701
        %v734 = vrsqrt.pop %v702
        %v735 = vrsqrt.pop %v703
        %v736 = vrsqrt.pop %v704
        %v737 = vrsqrt.pop %v705
        %v738 = vrsqrt.pop %v706
        %v739 = vrsqrt.pop %v707
        %v740 = vrsqrt.pop %v708
        %v741 = vrsqrt.pop %v709
        %v742 = vrsqrt.pop %v710
        %v743 = vrsqrt.pop %v711
        %v744 = vrsqrt.pop %v712
        %v745 = vrsqrt.pop %v713
        %v746 = vrsqrt.pop %v714
        %v747 = vrsqrt.pop %v715
        %v748 = vrsqrt.pop %v716
        %v749 = vrsqrt.pop %v717
        %v750 = vrsqrt.pop %v718
        %v751 = vrsqrt.pop %v719
        %v752 = vrsqrt.pop %v720
        %v753 = vrsqrt.pop %v721
        %v754 = vrsqrt.pop %v722
        %v755 = vrsqrt.pop %v723
        %v756 = vrsqrt.pop %v724
        %v757 = vrsqrt.pop %v725
        %v758 = vrsqrt.pop %v726
        %v759 = vrsqrt.pop %v727
        %v760 = vrsqrt.pop %v728
        %v761 = vrsqrt.pop %v729
        %v762 = vrsqrt.pop %v730
        %v763 = vrsqrt.pop %v731
        %v764 = vmul.f32 %v539, %v732
        %v765 = vmul.f32 %v540, %v733
        %v766 = vmul.f32 %v541, %v734
        %v767 = vmul.f32 %v542, %v735
        %v768 = vmul.f32 %v543, %v736
        %v769 = vmul.f32 %v544, %v737
        %v770 = vmul.f32 %v545, %v738
        %v771 = vmul.f32 %v546, %v739
        %v772 = vmul.f32 %v547, %v740
        %v773 = vmul.f32 %v548, %v741
        %v774 = vmul.f32 %v549, %v742
        %v775 = vmul.f32 %v550, %v743
        %v776 = vmul.f32 %v551, %v744
        %v777 = vmul.f32 %v552, %v745
        %v778 = vmul.f32 %v553, %v746
        %v779 = vmul.f32 %v554, %v747
        %v780 = vmul.f32 %v555, %v748
        %v781 = vmul.f32 %v556, %v749
        %v782 = vmul.f32 %v557, %v750
        %v783 = vmul.f32 %v558, %v751
        %v784 = vmul.f32 %v559, %v752
        %v785 = vmul.f32 %v560, %v753
        %v786 = vmul.f32 %v561, %v754
        %v787 = vmul.f32 %v562, %v755
        %v788 = vmul.f32 %v563, %v756
        %v789 = vmul.f32 %v564, %v757
        %v790 = vmul.f32 %v565, %v758
        %v791 = vmul.f32 %v566, %v759
        %v792 = vmul.f32 %v567, %v760
        %v793 = vmul.f32 %v568, %v761
        %v794 = vmul.f32 %v569, %v762
        %v795 = vmul.f32 %v570, %v763
        %v796 = vlaneseq
        %v797 = vshrl.u32 %v796, 7
        %v798 = vsub.s32 0, %v797
        %v799 = vrot.slane %v699, %v798
        %v800 = vmul.f32 %v764, %v799
        %v801 = vmul.f32 %v765, %v799
        %v802 = vmul.f32 %v766, %v799
        %v803 = vmul.f32 %v767, %v799
        %v804 = vmul.f32 %v768, %v799
        %v805 = vmul.f32 %v769, %v799
        %v806 = vmul.f32 %v770, %v799
        %v807 = vmul.f32 %v771, %v799
        %v808 = vmul.f32 %v772, %v799
        %v809 = vmul.f32 %v773, %v799
        %v810 = vmul.f32 %v774, %v799
        %v811 = vmul.f32 %v775, %v799
        %v812 = vmul.f32 %v776, %v799
        %v813 = vmul.f32 %v777, %v799
        %v814 = vmul.f32 %v778, %v799
        %v815 = vmul.f32 %v779, %v799
        %v816 = vmul.f32 %v780, %v799
        %v817 = vmul.f32 %v781, %v799
        %v818 = vmul.f32 %v782, %v799
        %v819 = vmul.f32 %v783, %v799
        %v820 = vmul.f32 %v784, %v799
        %v821 = vmul.f32 %v785, %v799
        %v822 = vmul.f32 %v786, %v799
        %v823 = vmul.f32 %v787, %v799
        %v824 = vmul.f32 %v788, %v799
        %v825 = vmul.f32 %v789, %v799
        %v826 = vmul.f32 %v790, %v799
        %v827 = vmul.f32 %v791, %v799
        %v828 = vmul.f32 %v792, %v799
        %v829 = vmul.f32 %v793, %v799
        %v830 = vmul.f32 %v794, %v799
        %v831 = vmul.f32 %v795, %v799
        %v832 = vlaneseq
        %v833 = vshrl.u32 %v832, 7
        %v834 = vsub.s32 1, %v833
        %v835 = vrot.slane %v699, %v834
        %v836 = vadd.f32 %v800, %v835
        %v837 = vadd.f32 %v801, %v835
        %v838 = vadd.f32 %v802, %v835
        %v839 = vadd.f32 %v803, %v835
        %v840 = vadd.f32 %v804, %v835
        %v841 = vadd.f32 %v805, %v835
        %v842 = vadd.f32 %v806, %v835
        %v843 = vadd.f32 %v807, %v835
        %v844 = vadd.f32 %v808, %v835
        %v845 = vadd.f32 %v809, %v835
        %v846 = vadd.f32 %v810, %v835
        %v847 = vadd.f32 %v811, %v835
        %v848 = vadd.f32 %v812, %v835
        %v849 = vadd.f32 %v813, %v835
        %v850 = vadd.f32 %v814, %v835
        %v851 = vadd.f32 %v815, %v835
        %v852 = vadd.f32 %v816, %v835
        %v853 = vadd.f32 %v817, %v835
        %v854 = vadd.f32 %v818, %v835
        %v855 = vadd.f32 %v819, %v835
        %v856 = vadd.f32 %v820, %v835
        %v857 = vadd.f32 %v821, %v835
        %v858 = vadd.f32 %v822, %v835
        %v859 = vadd.f32 %v823, %v835
        %v860 = vadd.f32 %v824, %v835
        %v861 = vadd.f32 %v825, %v835
        %v862 = vadd.f32 %v826, %v835
        %v863 = vadd.f32 %v827, %v835
        %v864 = vadd.f32 %v828, %v835
        %v865 = vadd.f32 %v829, %v835
        %v866 = vadd.f32 %v830, %v835
        %v867 = vadd.f32 %v831, %v835
        %v868 = vpack.c.bf16 %v837, %v836
        %v869 = vpack.c.bf16 %v839, %v838
        %v870 = vpack.c.bf16 %v841, %v840
        %v871 = vpack.c.bf16 %v843, %v842
        %v872 = vpack.c.bf16 %v845, %v844
        %v873 = vpack.c.bf16 %v847, %v846
        %v874 = vpack.c.bf16 %v849, %v848
        %v875 = vpack.c.bf16 %v851, %v850
        %v876 = vpack.c.bf16 %v853, %v852
        %v877 = vpack.c.bf16 %v855, %v854
        %v878 = vpack.c.bf16 %v857, %v856
        %v879 = vpack.c.bf16 %v859, %v858
        %v880 = vpack.c.bf16 %v861, %v860
        %v881 = vpack.c.bf16 %v863, %v862
        %v882 = vpack.c.bf16 %v865, %v864
        %v883 = vpack.c.bf16 %v867, %v866
        %v884 = vld [vmem:[#allocation7] sm:$0xff]
        %v885 = vld [vmem:[#allocation7 + $0x8] sm:$0xff]
        %v886 = vld [vmem:[#allocation7 + $0x10] sm:$0xf]
        %v887 = vld [vmem:[#allocation7 + $0x14] sm:$0xff]
        %v888 = vld [vmem:[#allocation7 + $0x1c] sm:$0xff]
        %v889 = vld [vmem:[#allocation7 + $0x24] sm:$0xf]
        %v890 = vld [vmem:[#allocation7 + $0x28] sm:$0xff]
        %v891 = vld [vmem:[#allocation7 + $0x30] sm:$0xff]
        %v892 = vld [vmem:[#allocation7 + $0x38] sm:$0xf]
        %v893 = vld [vmem:[#allocation7 + $0x3c] sm:$0xff]
        %v894 = vld [vmem:[#allocation7 + $0x44] sm:$0xff]
        %v895 = vld [vmem:[#allocation7 + $0x4c] sm:$0xf]
        %v896 = vld [vmem:[#allocation7 + $0x50] sm:$0xff]
        %v897 = vld [vmem:[#allocation7 + $0x58] sm:$0xff]
        %v898 = vld [vmem:[#allocation7 + $0x60] sm:$0xf]
        %v899 = vld [vmem:[#allocation7 + $0x64] sm:$0xff]
        %v900 = vld [vmem:[#allocation7 + $0x6c] sm:$0xff]
        %v901 = vld [vmem:[#allocation7 + $0x74] sm:$0xf]
        %v902 = vld [vmem:[#allocation7 + $0x78] sm:$0xff]
        %v903 = vld [vmem:[#allocation7 + $0x80] sm:$0xff]
        %v904 = vld [vmem:[#allocation7 + $0x88] sm:$0xf]
        %v905 = vld [vmem:[#allocation7 + $0x8c] sm:$0xff]
        %v906 = vld [vmem:[#allocation7 + $0x94] sm:$0xff]
        %v907 = vld [vmem:[#allocation7 + $0x9c] sm:$0xf]
        %v908 = vld [vmem:[#allocation7 + $0xa0] sm:$0xff]
        %v909 = vld [vmem:[#allocation7 + $0xa8] sm:$0xff]
        %v910 = vld [vmem:[#allocation7 + $0xb0] sm:$0xf]
        %v911 = vld [vmem:[#allocation7 + $0xb4] sm:$0xff]
        %v912 = vld [vmem:[#allocation7 + $0xbc] sm:$0xff]
        %v913 = vld [vmem:[#allocation7 + $0xc4] sm:$0xf]
        %v914 = vld [vmem:[#allocation7 + $0xc8] sm:$0xff]
        %v915 = vld [vmem:[#allocation7 + $0xd0] sm:$0xff]
        %v916 = vld [vmem:[#allocation7 + $0xd8] sm:$0xf]
        %v917 = vld [vmem:[#allocation7 + $0xdc] sm:$0xff]
        %v918 = vld [vmem:[#allocation7 + $0xe4] sm:$0xff]
        %v919 = vld [vmem:[#allocation7 + $0xec] sm:$0xf]
        %v920 = vld [vmem:[#allocation7 + $0xf0] sm:$0xff]
        %v921 = vld [vmem:[#allocation7 + $0xf8] sm:$0xff]
        %v922 = vld [vmem:[#allocation7 + $0x100] sm:$0xf]
        %v923 = vld [vmem:[#allocation7 + $0x104] sm:$0xff]
        %v924 = vld [vmem:[#allocation7 + $0x10c] sm:$0xff]
        %v925 = vld [vmem:[#allocation7 + $0x114] sm:$0xf]
        %v926 = vld [vmem:[#allocation7 + $0x118] sm:$0xff]
        %v927 = vld [vmem:[#allocation7 + $0x120] sm:$0xff]
        %v928 = vld [vmem:[#allocation7 + $0x128] sm:$0xf]
        %v929 = vld [vmem:[#allocation7 + $0x12c] sm:$0xff]
        %v930 = vld [vmem:[#allocation7 + $0x134] sm:$0xff]
        %v931 = vld [vmem:[#allocation7 + $0x13c] sm:$0xf]
        %v932 = vld [vmem:[#allocation8] sm:$0x1f]
        %v934 = vlaneseq
        %v935 = vshrl.u32 %v934, 7
        %v936 = vsub.s32 0, %v935
        %v937 = vrot.slane %v932, %v936
        %v938 = vlaneseq
        %v939 = vshrl.u32 %v938, 7
        %v940 = vsub.s32 1, %v939
        %v941 = vrot.slane %v932, %v940
        %v942 = vlaneseq
        %v943 = vshrl.u32 %v942, 7
        %v944 = vsub.s32 2, %v943
        %v945 = vrot.slane %v932, %v944
        %v946 = vlaneseq
        %v947 = vshrl.u32 %v946, 7
        %v948 = vsub.s32 3, %v947
        %v949 = vrot.slane %v932, %v948
        %v950 = vlaneseq
        %v951 = vshrl.u32 %v950, 7
        %v952 = vsub.s32 4, %v951
        %v953 = vrot.slane %v932, %v952
        %v1007 = vunpack.c.l.b16 %v884
        %v1008 = vunpack.c.h.b16 %v884
        %v1009 = vunpack.c.l.b16 %v885
        %v1010 = vunpack.c.h.b16 %v885
        %v1011 = vunpack.c.l.b16 %v886
        %v1012 = vunpack.c.l.b16 %v887
        %v1013 = vunpack.c.h.b16 %v887
        %v1014 = vunpack.c.l.b16 %v888
        %v1015 = vunpack.c.h.b16 %v888
        %v1016 = vunpack.c.l.b16 %v889
        %v1017 = vunpack.c.l.b16 %v890
        %v1018 = vunpack.c.h.b16 %v890
        %v1019 = vunpack.c.l.b16 %v891
        %v1020 = vunpack.c.h.b16 %v891
        %v1021 = vunpack.c.l.b16 %v892
        %v1022 = vunpack.c.l.b16 %v893
        %v1023 = vunpack.c.h.b16 %v893
        %v1024 = vunpack.c.l.b16 %v894
        %v1025 = vunpack.c.h.b16 %v894
        %v1026 = vunpack.c.l.b16 %v895
        %v1027 = vunpack.c.l.b16 %v896
        %v1028 = vunpack.c.h.b16 %v896
        %v1029 = vunpack.c.l.b16 %v897
        %v1030 = vunpack.c.h.b16 %v897
        %v1031 = vunpack.c.l.b16 %v898
        %v1032 = vunpack.c.l.b16 %v899
        %v1033 = vunpack.c.h.b16 %v899
        %v1034 = vunpack.c.l.b16 %v900
        %v1035 = vunpack.c.h.b16 %v900
        %v1036 = vunpack.c.l.b16 %v901
        %v1037 = vunpack.c.l.b16 %v902
        %v1038 = vunpack.c.h.b16 %v902
        %v1039 = vunpack.c.l.b16 %v903
        %v1040 = vunpack.c.h.b16 %v903
        %v1041 = vunpack.c.l.b16 %v904
        %v1042 = vunpack.c.l.b16 %v905
        %v1043 = vunpack.c.h.b16 %v905
        %v1044 = vunpack.c.l.b16 %v906
        %v1045 = vunpack.c.h.b16 %v906
        %v1046 = vunpack.c.l.b16 %v907
        %v1047 = vunpack.c.l.b16 %v908
        %v1048 = vunpack.c.h.b16 %v908
        %v1049 = vunpack.c.l.b16 %v909
        %v1050 = vunpack.c.h.b16 %v909
        %v1051 = vunpack.c.l.b16 %v910
        %v1052 = vunpack.c.l.b16 %v911
        %v1053 = vunpack.c.h.b16 %v911
        %v1054 = vunpack.c.l.b16 %v912
        %v1055 = vunpack.c.h.b16 %v912
        %v1056 = vunpack.c.l.b16 %v913
        %v1057 = vunpack.c.l.b16 %v914
        %v1058 = vunpack.c.h.b16 %v914
        %v1059 = vunpack.c.l.b16 %v915
        %v1060 = vunpack.c.h.b16 %v915
        %v1061 = vunpack.c.l.b16 %v916
        %v1062 = vunpack.c.l.b16 %v917
        %v1063 = vunpack.c.h.b16 %v917
        %v1064 = vunpack.c.l.b16 %v918
        %v1065 = vunpack.c.h.b16 %v918
        %v1066 = vunpack.c.l.b16 %v919
        %v1067 = vunpack.c.l.b16 %v920
        %v1068 = vunpack.c.h.b16 %v920
        %v1069 = vunpack.c.l.b16 %v921
        %v1070 = vunpack.c.h.b16 %v921
        %v1071 = vunpack.c.l.b16 %v922
        %v1072 = vunpack.c.l.b16 %v923
        %v1073 = vunpack.c.h.b16 %v923
        %v1074 = vunpack.c.l.b16 %v924
        %v1075 = vunpack.c.h.b16 %v924
        %v1076 = vunpack.c.l.b16 %v925
        %v1077 = vunpack.c.l.b16 %v926
        %v1078 = vunpack.c.h.b16 %v926
        %v1079 = vunpack.c.l.b16 %v927
        %v1080 = vunpack.c.h.b16 %v927
        %v1081 = vunpack.c.l.b16 %v928
        %v1082 = vunpack.c.l.b16 %v929
        %v1083 = vunpack.c.h.b16 %v929
        %v1084 = vunpack.c.l.b16 %v930
        %v1085 = vunpack.c.h.b16 %v930
        %v1086 = vunpack.c.l.b16 %v931
        %v1087 = vpack.c.b16 %v1012, %v1007
        %v1088 = vpack.c.b16 %v1013, %v1008
        %v1089 = vpack.c.b16 %v1014, %v1009
        %v1090 = vpack.c.b16 %v1015, %v1010
        %v1091 = vpack.c.b16 %v1016, %v1011
        %v1092 = vpack.c.b16 %v1022, %v1017
        %v1093 = vpack.c.b16 %v1023, %v1018
        %v1094 = vpack.c.b16 %v1024, %v1019
        %v1095 = vpack.c.b16 %v1025, %v1020
        %v1096 = vpack.c.b16 %v1026, %v1021
        %v1097 = vpack.c.b16 %v1032, %v1027
        %v1098 = vpack.c.b16 %v1033, %v1028
        %v1099 = vpack.c.b16 %v1034, %v1029
        %v1100 = vpack.c.b16 %v1035, %v1030
        %v1101 = vpack.c.b16 %v1036, %v1031
        %v1102 = vpack.c.b16 %v1042, %v1037
        %v1103 = vpack.c.b16 %v1043, %v1038
        %v1104 = vpack.c.b16 %v1044, %v1039
        %v1105 = vpack.c.b16 %v1045, %v1040
        %v1106 = vpack.c.b16 %v1046, %v1041
        %v1107 = vpack.c.b16 %v1052, %v1047
        %v1108 = vpack.c.b16 %v1053, %v1048
        %v1109 = vpack.c.b16 %v1054, %v1049
        %v1110 = vpack.c.b16 %v1055, %v1050
        %v1111 = vpack.c.b16 %v1056, %v1051
        %v1112 = vpack.c.b16 %v1062, %v1057
        %v1113 = vpack.c.b16 %v1063, %v1058
        %v1114 = vpack.c.b16 %v1064, %v1059
        %v1115 = vpack.c.b16 %v1065, %v1060
        %v1116 = vpack.c.b16 %v1066, %v1061
        %v1117 = vpack.c.b16 %v1072, %v1067
        %v1118 = vpack.c.b16 %v1073, %v1068
        %v1119 = vpack.c.b16 %v1074, %v1069
        %v1120 = vpack.c.b16 %v1075, %v1070
        %v1121 = vpack.c.b16 %v1076, %v1071
        %v1122 = vpack.c.b16 %v1082, %v1077
        %v1123 = vpack.c.b16 %v1083, %v1078
        %v1124 = vpack.c.b16 %v1084, %v1079
        %v1125 = vpack.c.b16 %v1085, %v1080
        %v1126 = vpack.c.b16 %v1086, %v1081
        %1167 = vmatprep.subr.bf16.mxu0 %v1088
        %1168 = vmatpush1.bf16.msra.mxu0 %v1087
        %1169 = vmatprep.subr.bf16.mxu0 %v1093
        %1170 = vmatpush1.bf16.msra.mxu0 %v1092
        %1171 = vmatprep.subr.bf16.mxu0 %v1098
        %1172 = vmatpush1.bf16.msra.mxu0 %v1097
        %1173 = vmatprep.subr.bf16.mxu0 %v1103
        %1174 = vmatpush1.bf16.msra.mxu0 %v1102
        %1175 = vmatprep.subr.bf16.mxu0 %v1108
        %1176 = vmatpush1.bf16.msra.mxu0 %v1107
        %1177 = vmatprep.subr.bf16.mxu0 %v1113
        %1178 = vmatpush1.bf16.msra.mxu0 %v1112
        %1179 = vmatprep.subr.bf16.mxu0 %v1118
        %1180 = vmatpush1.bf16.msra.mxu0 %v1117
        %1181 = vmatprep.subr.bf16.mxu0 %v1123
        %1182 = vmatpush1.bf16.msra.mxu0 %v1122
        %1183 = vmatprep.subr.bf16.mxu0 0
        %1184 = vmatpush1.bf16.msra.mxu0 0
        %1185 = vmatprep.subr.bf16.mxu0 0
        %1186 = vmatpush1.bf16.msra.mxu0 0
        %1187 = vmatprep.subr.bf16.mxu0 0
        %1188 = vmatpush1.bf16.msra.mxu0 0
        %1189 = vmatprep.subr.bf16.mxu0 0
        %1190 = vmatpush1.bf16.msra.mxu0 0
        %1191 = vmatprep.subr.bf16.mxu0 0
        %1192 = vmatpush1.bf16.msra.mxu0 0
        %1193 = vmatprep.subr.bf16.mxu0 0
        %1194 = vmatpush1.bf16.msra.mxu0 0
        %1195 = vmatprep.subr.bf16.mxu0 0
        %1196 = vmatpush1.bf16.msra.mxu0 0
        %1197 = vmatprep.subr.bf16.mxu0 0
        %1198 = vmatpush1.bf16.msra.mxu0 0
        %1199 = vmatprep.mubr.bf16.mxu0 0
        %1200 = vmatmul.mubr.bf16.gmra.mrb[0].mxu0 %v868
        %v1201 = vpop.f32.mrb[0].mxu0
        %v1202 = vadd.f32 %v937, %v1201
        %v1203 = vpop.f32.mrb[0].mxu0
        %v1204 = vadd.f32 %v941, %v1203
        %v1205 = vpop.f32.mrb[0].mxu0
        %v1206 = vadd.f32 %v937, %v1205
        %v1207 = vpop.f32.mrb[0].mxu0
        %v1208 = vadd.f32 %v941, %v1207
        %1209 = vmatprep.mubr.bf16.mxu0 0
        %1210 = vmatmul.mubr.bf16.gmra.mrb[0].mxu0 %v869
        %v1211 = vpop.f32.mrb[0].mxu0
        %v1212 = vadd.f32 %v937, %v1211
        %v1213 = vpop.f32.mrb[0].mxu0
        %v1214 = vadd.f32 %v941, %v1213
        %v1215 = vpop.f32.mrb[0].mxu0
        %v1216 = vadd.f32 %v937, %v1215
        %v1217 = vpop.f32.mrb[0].mxu0
        %v1218 = vadd.f32 %v941, %v1217
        %1219 = vmatprep.mubr.bf16.mxu0 0
        %1220 = vmatmul.mubr.bf16.gmra.mrb[0].mxu0 %v870
        %v1221 = vpop.f32.mrb[0].mxu0
        %v1222 = vadd.f32 %v937, %v1221
        %v1223 = vpop.f32.mrb[0].mxu0
        %v1224 = vadd.f32 %v941, %v1223
        %v1225 = vpop.f32.mrb[0].mxu0
        %v1226 = vadd.f32 %v937, %v1225
        %v1227 = vpop.f32.mrb[0].mxu0
        %v1228 = vadd.f32 %v941, %v1227
        %1229 = vmatprep.mubr.bf16.mxu0 0
        %1230 = vmatmul.mubr.bf16.gmra.mrb[0].mxu0 %v871
        %v1231 = vpop.f32.mrb[0].mxu0
        %v1232 = vadd.f32 %v937, %v1231
        %v1233 = vpop.f32.mrb[0].mxu0
        %v1234 = vadd.f32 %v941, %v1233
        %v1235 = vpop.f32.mrb[0].mxu0
        %v1236 = vadd.f32 %v937, %v1235
        %v1237 = vpop.f32.mrb[0].mxu0
        %v1238 = vadd.f32 %v941, %v1237
        %1239 = vmatprep.mubr.bf16.mxu0 0
        %1240 = vmatmul.mubr.bf16.gmra.mrb[0].mxu0 %v872
        %v1241 = vpop.f32.mrb[0].mxu0
        %v1242 = vadd.f32 %v937, %v1241
        %v1243 = vpop.f32.mrb[0].mxu0
        %v1244 = vadd.f32 %v941, %v1243
        %v1245 = vpop.f32.mrb[0].mxu0
        %v1246 = vadd.f32 %v937, %v1245
        %v1247 = vpop.f32.mrb[0].mxu0
        %v1248 = vadd.f32 %v941, %v1247
        %1249 = vmatprep.mubr.bf16.mxu0 0
        %1250 = vmatmul.mubr.bf16.gmra.mrb[0].mxu0 %v873
        %v1251 = vpop.f32.mrb[0].mxu0
        %v1252 = vadd.f32 %v937, %v1251
        %v1253 = vpop.f32.mrb[0].mxu0
        %v1254 = vadd.f32 %v941, %v1253
        %v1255 = vpop.f32.mrb[0].mxu0
        %v1256 = vadd.f32 %v937, %v1255
        %v1257 = vpop.f32.mrb[0].mxu0
        %v1258 = vadd.f32 %v941, %v1257
        %1259 = vmatprep.mubr.bf16.mxu0 0
        %1260 = vmatmul.mubr.bf16.gmra.mrb[0].mxu0 %v874
        %v1261 = vpop.f32.mrb[0].mxu0
        %v1262 = vadd.f32 %v937, %v1261
        %v1263 = vpop.f32.mrb[0].mxu0
        %v1264 = vadd.f32 %v941, %v1263
        %v1265 = vpop.f32.mrb[0].mxu0
        %v1266 = vadd.f32 %v937, %v1265
        %v1267 = vpop.f32.mrb[0].mxu0
        %v1268 = vadd.f32 %v941, %v1267
        %1269 = vmatprep.mubr.bf16.mxu0 0
        %1270 = vmatmul.mubr.bf16.gmra.mrb[0].mxu0 %v875
        %v1271 = vpop.f32.mrb[0].mxu0
        %v1272 = vadd.f32 %v937, %v1271
        %v1273 = vpop.f32.mrb[0].mxu0
        %v1274 = vadd.f32 %v941, %v1273
        %v1275 = vpop.f32.mrb[0].mxu0
        %v1276 = vadd.f32 %v937, %v1275
        %v1277 = vpop.f32.mrb[0].mxu0
        %v1278 = vadd.f32 %v941, %v1277
        %1279 = vmatprep.mubr.bf16.mxu0 0
        %1280 = vmatmul.mubr.bf16.gmra.mrb[0].mxu0 %v876
        %v1281 = vpop.f32.mrb[0].mxu0
        %v1282 = vadd.f32 %v937, %v1281
        %v1283 = vpop.f32.mrb[0].mxu0
        %v1284 = vadd.f32 %v941, %v1283
        %v1285 = vpop.f32.mrb[0].mxu0
        %v1286 = vadd.f32 %v937, %v1285
        %v1287 = vpop.f32.mrb[0].mxu0
        %v1288 = vadd.f32 %v941, %v1287
        %1289 = vmatprep.mubr.bf16.mxu0 0
        %1290 = vmatmul.mubr.bf16.gmra.mrb[0].mxu0 %v877
        %v1291 = vpop.f32.mrb[0].mxu0
        %v1292 = vadd.f32 %v937, %v1291
        %v1293 = vpop.f32.mrb[0].mxu0
        %v1294 = vadd.f32 %v941, %v1293
        %v1295 = vpop.f32.mrb[0].mxu0
        %v1296 = vadd.f32 %v937, %v1295
        %v1297 = vpop.f32.mrb[0].mxu0
        %v1298 = vadd.f32 %v941, %v1297
        %1299 = vmatprep.mubr.bf16.mxu0 0
        %1300 = vmatmul.mubr.bf16.gmra.mrb[0].mxu0 %v878
        %v1301 = vpop.f32.mrb[0].mxu0
        %v1302 = vadd.f32 %v937, %v1301
        %v1303 = vpop.f32.mrb[0].mxu0
        %v1304 = vadd.f32 %v941, %v1303
        %v1305 = vpop.f32.mrb[0].mxu0
        %v1306 = vadd.f32 %v937, %v1305
        %v1307 = vpop.f32.mrb[0].mxu0
        %v1308 = vadd.f32 %v941, %v1307
        %1309 = vmatprep.mubr.bf16.mxu0 0
        %1310 = vmatmul.mubr.bf16.gmra.mrb[0].mxu0 %v879
        %v1311 = vpop.f32.mrb[0].mxu0
        %v1312 = vadd.f32 %v937, %v1311
        %v1313 = vpop.f32.mrb[0].mxu0
        %v1314 = vadd.f32 %v941, %v1313
        %v1315 = vpop.f32.mrb[0].mxu0
        %v1316 = vadd.f32 %v937, %v1315
        %v1317 = vpop.f32.mrb[0].mxu0
        %v1318 = vadd.f32 %v941, %v1317
        %1319 = vmatprep.mubr.bf16.mxu0 0
        %1320 = vmatmul.mubr.bf16.gmra.mrb[0].mxu0 %v880
        %v1321 = vpop.f32.mrb[0].mxu0
        %v1322 = vadd.f32 %v937, %v1321
        %v1323 = vpop.f32.mrb[0].mxu0
        %v1324 = vadd.f32 %v941, %v1323
        %v1325 = vpop.f32.mrb[0].mxu0
        %v1326 = vadd.f32 %v937, %v1325
        %v1327 = vpop.f32.mrb[0].mxu0
        %v1328 = vadd.f32 %v941, %v1327
        %1329 = vmatprep.mubr.bf16.mxu0 0
        %1330 = vmatmul.mubr.bf16.gmra.mrb[0].mxu0 %v881
        %v1331 = vpop.f32.mrb[0].mxu0
        %v1332 = vadd.f32 %v937, %v1331
        %v1333 = vpop.f32.mrb[0].mxu0
        %v1334 = vadd.f32 %v941, %v1333
        %v1335 = vpop.f32.mrb[0].mxu0
        %v1336 = vadd.f32 %v937, %v1335
        %v1337 = vpop.f32.mrb[0].mxu0
        %v1338 = vadd.f32 %v941, %v1337
        %1339 = vmatprep.mubr.bf16.mxu0 0
        %1340 = vmatmul.mubr.bf16.gmra.mrb[0].mxu0 %v882
        %v1341 = vpop.f32.mrb[0].mxu0
        %v1342 = vadd.f32 %v937, %v1341
        %v1343 = vpop.f32.mrb[0].mxu0
        %v1344 = vadd.f32 %v941, %v1343
        %v1345 = vpop.f32.mrb[0].mxu0
        %v1346 = vadd.f32 %v937, %v1345
        %v1347 = vpop.f32.mrb[0].mxu0
        %v1348 = vadd.f32 %v941, %v1347
        %1349 = vmatprep.mubr.bf16.mxu0 0
        %1350 = vmatmul.mubr.bf16.gmra.mrb[0].mxu0 %v883
        %v1351 = vpop.f32.mrb[0].mxu0
        %v1352 = vadd.f32 %v937, %v1351
        %v1353 = vpop.f32.mrb[0].mxu0
        %v1354 = vadd.f32 %v941, %v1353
        %v1355 = vpop.f32.mrb[0].mxu0
        %v1356 = vadd.f32 %v937, %v1355
        %v1357 = vpop.f32.mrb[0].mxu0
        %v1358 = vadd.f32 %v941, %v1357
        %1359 = vdwg.mxu0
        %1360 = vmatprep.subr.bf16.mxu0 %v1090
        %1361 = vmatpush1.bf16.msra.mxu0 %v1089
        %1362 = vmatprep.subr.bf16.mxu0 %v1095
        %1363 = vmatpush1.bf16.msra.mxu0 %v1094
        %1364 = vmatprep.subr.bf16.mxu0 %v1100
        %1365 = vmatpush1.bf16.msra.mxu0 %v1099
        %1366 = vmatprep.subr.bf16.mxu0 %v1105
        %1367 = vmatpush1.bf16.msra.mxu0 %v1104
        %1368 = vmatprep.subr.bf16.mxu0 %v1110
        %1369 = vmatpush1.bf16.msra.mxu0 %v1109
        %1370 = vmatprep.subr.bf16.mxu0 %v1115
        %1371 = vmatpush1.bf16.msra.mxu0 %v1114
        %1372 = vmatprep.subr.bf16.mxu0 %v1120
        %1373 = vmatpush1.bf16.msra.mxu0 %v1119
        %1374 = vmatprep.subr.bf16.mxu0 %v1125
        %1375 = vmatpush1.bf16.msra.mxu0 %v1124
        %1376 = vmatprep.subr.bf16.mxu0 0
        %1377 = vmatpush1.bf16.msra.mxu0 0
        %1378 = vmatprep.subr.bf16.mxu0 0
        %1379 = vmatpush1.bf16.msra.mxu0 0
        %1380 = vmatprep.subr.bf16.mxu0 0
        %1381 = vmatpush1.bf16.msra.mxu0 0
        %1382 = vmatprep.subr.bf16.mxu0 0
        %1383 = vmatpush1.bf16.msra.mxu0 0
        %1384 = vmatprep.subr.bf16.mxu0 0
        %1385 = vmatpush1.bf16.msra.mxu0 0
        %1386 = vmatprep.subr.bf16.mxu0 0
        %1387 = vmatpush1.bf16.msra.mxu0 0
        %1388 = vmatprep.subr.bf16.mxu0 0
        %1389 = vmatpush1.bf16.msra.mxu0 0
        %1390 = vmatprep.subr.bf16.mxu0 0
        %1391 = vmatpush1.bf16.msra.mxu0 0
        %1392 = vmatprep.mubr.bf16.mxu0 0
        %1393 = vmatmul.mubr.bf16.gmra.mrb[0].mxu0 %v868
        %v1394 = vpop.f32.mrb[0].mxu0
        %v1395 = vadd.f32 %v945, %v1394
        %v1396 = vpop.f32.mrb[0].mxu0
        %v1397 = vadd.f32 %v949, %v1396
        %v1398 = vpop.f32.mrb[0].mxu0
        %v1399 = vadd.f32 %v945, %v1398
        %v1400 = vpop.f32.mrb[0].mxu0
        %v1401 = vadd.f32 %v949, %v1400
        %1402 = vmatprep.mubr.bf16.mxu0 0
        %1403 = vmatmul.mubr.bf16.gmra.mrb[0].mxu0 %v869
        %v1404 = vpop.f32.mrb[0].mxu0
        %v1405 = vadd.f32 %v945, %v1404
        %v1406 = vpop.f32.mrb[0].mxu0
        %v1407 = vadd.f32 %v949, %v1406
        %v1408 = vpop.f32.mrb[0].mxu0
        %v1409 = vadd.f32 %v945, %v1408
        %v1410 = vpop.f32.mrb[0].mxu0
        %v1411 = vadd.f32 %v949, %v1410
        %1412 = vmatprep.mubr.bf16.mxu0 0
        %1413 = vmatmul.mubr.bf16.gmra.mrb[0].mxu0 %v870
        %v1414 = vpop.f32.mrb[0].mxu0
        %v1415 = vadd.f32 %v945, %v1414
        %v1416 = vpop.f32.mrb[0].mxu0
        %v1417 = vadd.f32 %v949, %v1416
        %v1418 = vpop.f32.mrb[0].mxu0
        %v1419 = vadd.f32 %v945, %v1418
        %v1420 = vpop.f32.mrb[0].mxu0
        %v1421 = vadd.f32 %v949, %v1420
        %1422 = vmatprep.mubr.bf16.mxu0 0
        %1423 = vmatmul.mubr.bf16.gmra.mrb[0].mxu0 %v871
        %v1424 = vpop.f32.mrb[0].mxu0
        %v1425 = vadd.f32 %v945, %v1424
        %v1426 = vpop.f32.mrb[0].mxu0
        %v1427 = vadd.f32 %v949, %v1426
        %v1428 = vpop.f32.mrb[0].mxu0
        %v1429 = vadd.f32 %v945, %v1428
        %v1430 = vpop.f32.mrb[0].mxu0
        %v1431 = vadd.f32 %v949, %v1430
        %1432 = vmatprep.mubr.bf16.mxu0 0
        %1433 = vmatmul.mubr.bf16.gmra.mrb[0].mxu0 %v872
        %v1434 = vpop.f32.mrb[0].mxu0
        %v1435 = vadd.f32 %v945, %v1434
        %v1436 = vpop.f32.mrb[0].mxu0
        %v1437 = vadd.f32 %v949, %v1436
        %v1438 = vpop.f32.mrb[0].mxu0
        %v1439 = vadd.f32 %v945, %v1438
        %v1440 = vpop.f32.mrb[0].mxu0
        %v1441 = vadd.f32 %v949, %v1440
        %1442 = vmatprep.mubr.bf16.mxu0 0
        %1443 = vmatmul.mubr.bf16.gmra.mrb[0].mxu0 %v873
        %v1444 = vpop.f32.mrb[0].mxu0
        %v1445 = vadd.f32 %v945, %v1444
        %v1446 = vpop.f32.mrb[0].mxu0
        %v1447 = vadd.f32 %v949, %v1446
        %v1448 = vpop.f32.mrb[0].mxu0
        %v1449 = vadd.f32 %v945, %v1448
        %v1450 = vpop.f32.mrb[0].mxu0
        %v1451 = vadd.f32 %v949, %v1450
        %1452 = vmatprep.mubr.bf16.mxu0 0
        %1453 = vmatmul.mubr.bf16.gmra.mrb[0].mxu0 %v874
        %v1454 = vpop.f32.mrb[0].mxu0
        %v1455 = vadd.f32 %v945, %v1454
        %v1456 = vpop.f32.mrb[0].mxu0
        %v1457 = vadd.f32 %v949, %v1456
        %v1458 = vpop.f32.mrb[0].mxu0
        %v1459 = vadd.f32 %v945, %v1458
        %v1460 = vpop.f32.mrb[0].mxu0
        %v1461 = vadd.f32 %v949, %v1460
        %1462 = vmatprep.mubr.bf16.mxu0 0
        %1463 = vmatmul.mubr.bf16.gmra.mrb[0].mxu0 %v875
        %v1464 = vpop.f32.mrb[0].mxu0
        %v1465 = vadd.f32 %v945, %v1464
        %v1466 = vpop.f32.mrb[0].mxu0
        %v1467 = vadd.f32 %v949, %v1466
        %v1468 = vpop.f32.mrb[0].mxu0
        %v1469 = vadd.f32 %v945, %v1468
        %v1470 = vpop.f32.mrb[0].mxu0
        %v1471 = vadd.f32 %v949, %v1470
        %1472 = vmatprep.mubr.bf16.mxu0 0
        %1473 = vmatmul.mubr.bf16.gmra.mrb[0].mxu0 %v876
        %v1474 = vpop.f32.mrb[0].mxu0
        %v1475 = vadd.f32 %v945, %v1474
        %v1476 = vpop.f32.mrb[0].mxu0
        %v1477 = vadd.f32 %v949, %v1476
        %v1478 = vpop.f32.mrb[0].mxu0
        %v1479 = vadd.f32 %v945, %v1478
        %v1480 = vpop.f32.mrb[0].mxu0
        %v1481 = vadd.f32 %v949, %v1480
        %1482 = vmatprep.mubr.bf16.mxu0 0
        %1483 = vmatmul.mubr.bf16.gmra.mrb[0].mxu0 %v877
        %v1484 = vpop.f32.mrb[0].mxu0
        %v1485 = vadd.f32 %v945, %v1484
        %v1486 = vpop.f32.mrb[0].mxu0
        %v1487 = vadd.f32 %v949, %v1486
        %v1488 = vpop.f32.mrb[0].mxu0
        %v1489 = vadd.f32 %v945, %v1488
        %v1490 = vpop.f32.mrb[0].mxu0
        %v1491 = vadd.f32 %v949, %v1490
        %1492 = vmatprep.mubr.bf16.mxu0 0
        %1493 = vmatmul.mubr.bf16.gmra.mrb[0].mxu0 %v878
        %v1494 = vpop.f32.mrb[0].mxu0
        %v1495 = vadd.f32 %v945, %v1494
        %v1496 = vpop.f32.mrb[0].mxu0
        %v1497 = vadd.f32 %v949, %v1496
        %v1498 = vpop.f32.mrb[0].mxu0
        %v1499 = vadd.f32 %v945, %v1498
        %v1500 = vpop.f32.mrb[0].mxu0
        %v1501 = vadd.f32 %v949, %v1500
        %1502 = vmatprep.mubr.bf16.mxu0 0
        %1503 = vmatmul.mubr.bf16.gmra.mrb[0].mxu0 %v879
        %v1504 = vpop.f32.mrb[0].mxu0
        %v1505 = vadd.f32 %v945, %v1504
        %v1506 = vpop.f32.mrb[0].mxu0
        %v1507 = vadd.f32 %v949, %v1506
        %v1508 = vpop.f32.mrb[0].mxu0
        %v1509 = vadd.f32 %v945, %v1508
        %v1510 = vpop.f32.mrb[0].mxu0
        %v1511 = vadd.f32 %v949, %v1510
        %1512 = vmatprep.mubr.bf16.mxu0 0
        %1513 = vmatmul.mubr.bf16.gmra.mrb[0].mxu0 %v880
        %v1514 = vpop.f32.mrb[0].mxu0
        %v1515 = vadd.f32 %v945, %v1514
        %v1516 = vpop.f32.mrb[0].mxu0
        %v1517 = vadd.f32 %v949, %v1516
        %v1518 = vpop.f32.mrb[0].mxu0
        %v1519 = vadd.f32 %v945, %v1518
        %v1520 = vpop.f32.mrb[0].mxu0
        %v1521 = vadd.f32 %v949, %v1520
        %1522 = vmatprep.mubr.bf16.mxu0 0
        %1523 = vmatmul.mubr.bf16.gmra.mrb[0].mxu0 %v881
        %v1524 = vpop.f32.mrb[0].mxu0
        %v1525 = vadd.f32 %v945, %v1524
        %v1526 = vpop.f32.mrb[0].mxu0
        %v1527 = vadd.f32 %v949, %v1526
        %v1528 = vpop.f32.mrb[0].mxu0
        %v1529 = vadd.f32 %v945, %v1528
        %v1530 = vpop.f32.mrb[0].mxu0
        %v1531 = vadd.f32 %v949, %v1530
        %1532 = vmatprep.mubr.bf16.mxu0 0
        %1533 = vmatmul.mubr.bf16.gmra.mrb[0].mxu0 %v882
        %v1534 = vpop.f32.mrb[0].mxu0
        %v1535 = vadd.f32 %v945, %v1534
        %v1536 = vpop.f32.mrb[0].mxu0
        %v1537 = vadd.f32 %v949, %v1536
        %v1538 = vpop.f32.mrb[0].mxu0
        %v1539 = vadd.f32 %v945, %v1538
        %v1540 = vpop.f32.mrb[0].mxu0
        %v1541 = vadd.f32 %v949, %v1540
        %1542 = vmatprep.mubr.bf16.mxu0 0
        %1543 = vmatmul.mubr.bf16.gmra.mrb[0].mxu0 %v883
        %v1544 = vpop.f32.mrb[0].mxu0
        %v1545 = vadd.f32 %v945, %v1544
        %v1546 = vpop.f32.mrb[0].mxu0
        %v1547 = vadd.f32 %v949, %v1546
        %v1548 = vpop.f32.mrb[0].mxu0
        %v1549 = vadd.f32 %v945, %v1548
        %v1550 = vpop.f32.mrb[0].mxu0
        %v1551 = vadd.f32 %v949, %v1550
        %1552 = vdwg.mxu0
        %1553 = vmatprep.subr.bf16.mxu0 0
        %1554 = vmatpush1.bf16.msra.mxu0 %v1091
        %1555 = vmatprep.subr.bf16.mxu0 0
        %1556 = vmatpush1.bf16.msra.mxu0 %v1096
        %1557 = vmatprep.subr.bf16.mxu0 0
        %1558 = vmatpush1.bf16.msra.mxu0 %v1101
        %1559 = vmatprep.subr.bf16.mxu0 0
        %1560 = vmatpush1.bf16.msra.mxu0 %v1106
        %1561 = vmatprep.subr.bf16.mxu0 0
        %1562 = vmatpush1.bf16.msra.mxu0 %v1111
        %1563 = vmatprep.subr.bf16.mxu0 0
        %1564 = vmatpush1.bf16.msra.mxu0 %v1116
        %1565 = vmatprep.subr.bf16.mxu0 0
        %1566 = vmatpush1.bf16.msra.mxu0 %v1121
        %1567 = vmatprep.subr.bf16.mxu0 0
        %1568 = vmatpush1.bf16.msra.mxu0 %v1126
        %1569 = vmatprep.subr.bf16.mxu0 0
        %1570 = vmatpush1.bf16.msra.mxu0 0
        %1571 = vmatprep.subr.bf16.mxu0 0
        %1572 = vmatpush1.bf16.msra.mxu0 0
        %1573 = vmatprep.subr.bf16.mxu0 0
        %1574 = vmatpush1.bf16.msra.mxu0 0
        %1575 = vmatprep.subr.bf16.mxu0 0
        %1576 = vmatpush1.bf16.msra.mxu0 0
        %1577 = vmatprep.subr.bf16.mxu0 0
        %1578 = vmatpush1.bf16.msra.mxu0 0
        %1579 = vmatprep.subr.bf16.mxu0 0
        %1580 = vmatpush1.bf16.msra.mxu0 0
        %1581 = vmatprep.subr.bf16.mxu0 0
        %1582 = vmatpush1.bf16.msra.mxu0 0
        %1583 = vmatprep.subr.bf16.mxu0 0
        %1584 = vmatpush1.bf16.msra.mxu0 0
        %1585 = vmatprep.mubr.bf16.mxu0 0
        %1586 = vmatmul.mubr.bf16.gmra.mrb[0].mxu0 %v868
        %v1587 = vpop.f32.mrb[0].mxu0
        %v1588 = vadd.f32 %v953, %v1587
        %v1589 = vpop.f32.mrb[0].mxu0
        %v1590 = vpop.f32.mrb[0].mxu0
        %v1591 = vadd.f32 %v953, %v1590
        %v1592 = vpop.f32.mrb[0].mxu0
        %1593 = vmatprep.mubr.bf16.mxu0 0
        %1594 = vmatmul.mubr.bf16.gmra.mrb[0].mxu0 %v869
        %v1595 = vpop.f32.mrb[0].mxu0
        %v1596 = vadd.f32 %v953, %v1595
        %v1597 = vpop.f32.mrb[0].mxu0
        %v1598 = vpop.f32.mrb[0].mxu0
        %v1599 = vadd.f32 %v953, %v1598
        %v1600 = vpop.f32.mrb[0].mxu0
        %1601 = vmatprep.mubr.bf16.mxu0 0
        %1602 = vmatmul.mubr.bf16.gmra.mrb[0].mxu0 %v870
        %v1603 = vpop.f32.mrb[0].mxu0
        %v1604 = vadd.f32 %v953, %v1603
        %v1605 = vpop.f32.mrb[0].mxu0
        %v1606 = vpop.f32.mrb[0].mxu0
        %v1607 = vadd.f32 %v953, %v1606
        %v1608 = vpop.f32.mrb[0].mxu0
        %1609 = vmatprep.mubr.bf16.mxu0 0
        %1610 = vmatmul.mubr.bf16.gmra.mrb[0].mxu0 %v871
        %v1611 = vpop.f32.mrb[0].mxu0
        %v1612 = vadd.f32 %v953, %v1611
        %v1613 = vpop.f32.mrb[0].mxu0
        %v1614 = vpop.f32.mrb[0].mxu0
        %v1615 = vadd.f32 %v953, %v1614
        %v1616 = vpop.f32.mrb[0].mxu0
        %1617 = vmatprep.mubr.bf16.mxu0 0
        %1618 = vmatmul.mubr.bf16.gmra.mrb[0].mxu0 %v872
        %v1619 = vpop.f32.mrb[0].mxu0
        %v1620 = vadd.f32 %v953, %v1619
        %v1621 = vpop.f32.mrb[0].mxu0
        %v1622 = vpop.f32.mrb[0].mxu0
        %v1623 = vadd.f32 %v953, %v1622
        %v1624 = vpop.f32.mrb[0].mxu0
        %1625 = vmatprep.mubr.bf16.mxu0 0
        %1626 = vmatmul.mubr.bf16.gmra.mrb[0].mxu0 %v873
        %v1627 = vpop.f32.mrb[0].mxu0
        %v1628 = vadd.f32 %v953, %v1627
        %v1629 = vpop.f32.mrb[0].mxu0
        %v1630 = vpop.f32.mrb[0].mxu0
        %v1631 = vadd.f32 %v953, %v1630
        %v1632 = vpop.f32.mrb[0].mxu0
        %1633 = vmatprep.mubr.bf16.mxu0 0
        %1634 = vmatmul.mubr.bf16.gmra.mrb[0].mxu0 %v874
        %v1635 = vpop.f32.mrb[0].mxu0
        %v1636 = vadd.f32 %v953, %v1635
        %v1637 = vpop.f32.mrb[0].mxu0
        %v1638 = vpop.f32.mrb[0].mxu0
        %v1639 = vadd.f32 %v953, %v1638
        %v1640 = vpop.f32.mrb[0].mxu0
        %1641 = vmatprep.mubr.bf16.mxu0 0
        %1642 = vmatmul.mubr.bf16.gmra.mrb[0].mxu0 %v875
        %v1643 = vpop.f32.mrb[0].mxu0
        %v1644 = vadd.f32 %v953, %v1643
        %v1645 = vpop.f32.mrb[0].mxu0
        %v1646 = vpop.f32.mrb[0].mxu0
        %v1647 = vadd.f32 %v953, %v1646
        %v1648 = vpop.f32.mrb[0].mxu0
        %1649 = vmatprep.mubr.bf16.mxu0 0
        %1650 = vmatmul.mubr.bf16.gmra.mrb[0].mxu0 %v876
        %v1651 = vpop.f32.mrb[0].mxu0
        %v1652 = vadd.f32 %v953, %v1651
        %v1653 = vpop.f32.mrb[0].mxu0
        %v1654 = vpop.f32.mrb[0].mxu0
        %v1655 = vadd.f32 %v953, %v1654
        %v1656 = vpop.f32.mrb[0].mxu0
        %1657 = vmatprep.mubr.bf16.mxu0 0
        %1658 = vmatmul.mubr.bf16.gmra.mrb[0].mxu0 %v877
        %v1659 = vpop.f32.mrb[0].mxu0
        %v1660 = vadd.f32 %v953, %v1659
        %v1661 = vpop.f32.mrb[0].mxu0
        %v1662 = vpop.f32.mrb[0].mxu0
        %v1663 = vadd.f32 %v953, %v1662
        %v1664 = vpop.f32.mrb[0].mxu0
        %1665 = vmatprep.mubr.bf16.mxu0 0
        %1666 = vmatmul.mubr.bf16.gmra.mrb[0].mxu0 %v878
        %v1667 = vpop.f32.mrb[0].mxu0
        %v1668 = vadd.f32 %v953, %v1667
        %v1669 = vpop.f32.mrb[0].mxu0
        %v1670 = vpop.f32.mrb[0].mxu0
        %v1671 = vadd.f32 %v953, %v1670
        %v1672 = vpop.f32.mrb[0].mxu0
        %1673 = vmatprep.mubr.bf16.mxu0 0
        %1674 = vmatmul.mubr.bf16.gmra.mrb[0].mxu0 %v879
        %v1675 = vpop.f32.mrb[0].mxu0
        %v1676 = vadd.f32 %v953, %v1675
        %v1677 = vpop.f32.mrb[0].mxu0
        %v1678 = vpop.f32.mrb[0].mxu0
        %v1679 = vadd.f32 %v953, %v1678
        %v1680 = vpop.f32.mrb[0].mxu0
        %1681 = vmatprep.mubr.bf16.mxu0 0
        %1682 = vmatmul.mubr.bf16.gmra.mrb[0].mxu0 %v880
        %v1683 = vpop.f32.mrb[0].mxu0
        %v1684 = vadd.f32 %v953, %v1683
        %v1685 = vpop.f32.mrb[0].mxu0
        %v1686 = vpop.f32.mrb[0].mxu0
        %v1687 = vadd.f32 %v953, %v1686
        %v1688 = vpop.f32.mrb[0].mxu0
        %1689 = vmatprep.mubr.bf16.mxu0 0
        %1690 = vmatmul.mubr.bf16.gmra.mrb[0].mxu0 %v881
        %v1691 = vpop.f32.mrb[0].mxu0
        %v1692 = vadd.f32 %v953, %v1691
        %v1693 = vpop.f32.mrb[0].mxu0
        %v1694 = vpop.f32.mrb[0].mxu0
        %v1695 = vadd.f32 %v953, %v1694
        %v1696 = vpop.f32.mrb[0].mxu0
        %1697 = vmatprep.mubr.bf16.mxu0 0
        %1698 = vmatmul.mubr.bf16.gmra.mrb[0].mxu0 %v882
        %v1699 = vpop.f32.mrb[0].mxu0
        %v1700 = vadd.f32 %v953, %v1699
        %v1701 = vpop.f32.mrb[0].mxu0
        %v1702 = vpop.f32.mrb[0].mxu0
        %v1703 = vadd.f32 %v953, %v1702
        %v1704 = vpop.f32.mrb[0].mxu0
        %1705 = vmatprep.mubr.bf16.mxu0 0
        %1706 = vmatmul.mubr.bf16.gmra.mrb[0].mxu0 %v883
        %v1707 = vpop.f32.mrb[0].mxu0
        %v1708 = vadd.f32 %v953, %v1707
        %v1709 = vpop.f32.mrb[0].mxu0
        %v1710 = vpop.f32.mrb[0].mxu0
        %v1711 = vadd.f32 %v953, %v1710
        %v1712 = vpop.f32.mrb[0].mxu0
        %1713 = vdwg.mxu0
        %v1714 = vxor.u32 %v1202, 2147483648
        %v1715 = vxor.u32 %v1204, 2147483648
        %v1716 = vxor.u32 %v1395, 2147483648
        %v1717 = vxor.u32 %v1397, 2147483648
        %v1718 = vxor.u32 %v1588, 2147483648
        %v1719 = vxor.u32 %v1206, 2147483648
        %v1720 = vxor.u32 %v1208, 2147483648
        %v1721 = vxor.u32 %v1399, 2147483648
        %v1722 = vxor.u32 %v1401, 2147483648
        %v1723 = vxor.u32 %v1591, 2147483648
        %v1724 = vxor.u32 %v1212, 2147483648
        %v1725 = vxor.u32 %v1214, 2147483648
        %v1726 = vxor.u32 %v1405, 2147483648
        %v1727 = vxor.u32 %v1407, 2147483648
        %v1728 = vxor.u32 %v1596, 2147483648
        %v1729 = vxor.u32 %v1216, 2147483648
        %v1730 = vxor.u32 %v1218, 2147483648
        %v1731 = vxor.u32 %v1409, 2147483648
        %v1732 = vxor.u32 %v1411, 2147483648
        %v1733 = vxor.u32 %v1599, 2147483648
        %v1734 = vxor.u32 %v1222, 2147483648
        %v1735 = vxor.u32 %v1224, 2147483648
        %v1736 = vxor.u32 %v1415, 2147483648
        %v1737 = vxor.u32 %v1417, 2147483648
        %v1738 = vxor.u32 %v1604, 2147483648
        %v1739 = vxor.u32 %v1226, 2147483648
        %v1740 = vxor.u32 %v1228, 2147483648
        %v1741 = vxor.u32 %v1419, 2147483648
        %v1742 = vxor.u32 %v1421, 2147483648
        %v1743 = vxor.u32 %v1607, 2147483648
        %v1744 = vxor.u32 %v1232, 2147483648
        %v1745 = vxor.u32 %v1234, 2147483648
        %v1746 = vxor.u32 %v1425, 2147483648
        %v1747 = vxor.u32 %v1427, 2147483648
        %v1748 = vxor.u32 %v1612, 2147483648
        %v1749 = vxor.u32 %v1236, 2147483648
        %v1750 = vxor.u32 %v1238, 2147483648
        %v1751 = vxor.u32 %v1429, 2147483648
        %v1752 = vxor.u32 %v1431, 2147483648
        %v1753 = vxor.u32 %v1615, 2147483648
        %v1754 = vxor.u32 %v1242, 2147483648
        %v1755 = vxor.u32 %v1244, 2147483648
        %v1756 = vxor.u32 %v1435, 2147483648
        %v1757 = vxor.u32 %v1437, 2147483648
        %v1758 = vxor.u32 %v1620, 2147483648
        %v1759 = vxor.u32 %v1246, 2147483648
        %v1760 = vxor.u32 %v1248, 2147483648
        %v1761 = vxor.u32 %v1439, 2147483648
        %v1762 = vxor.u32 %v1441, 2147483648
        %v1763 = vxor.u32 %v1623, 2147483648
        %v1764 = vxor.u32 %v1252, 2147483648
        %v1765 = vxor.u32 %v1254, 2147483648
        %v1766 = vxor.u32 %v1445, 2147483648
        %v1767 = vxor.u32 %v1447, 2147483648
        %v1768 = vxor.u32 %v1628, 2147483648
        %v1769 = vxor.u32 %v1256, 2147483648
        %v1770 = vxor.u32 %v1258, 2147483648
        %v1771 = vxor.u32 %v1449, 2147483648
        %v1772 = vxor.u32 %v1451, 2147483648
        %v1773 = vxor.u32 %v1631, 2147483648
        %v1774 = vxor.u32 %v1262, 2147483648
        %v1775 = vxor.u32 %v1264, 2147483648
        %v1776 = vxor.u32 %v1455, 2147483648
        %v1777 = vxor.u32 %v1457, 2147483648
        %v1778 = vxor.u32 %v1636, 2147483648
        %v1779 = vxor.u32 %v1266, 2147483648
        %v1780 = vxor.u32 %v1268, 2147483648
        %v1781 = vxor.u32 %v1459, 2147483648
        %v1782 = vxor.u32 %v1461, 2147483648
        %v1783 = vxor.u32 %v1639, 2147483648
        %v1784 = vxor.u32 %v1272, 2147483648
        %v1785 = vxor.u32 %v1274, 2147483648
        %v1786 = vxor.u32 %v1465, 2147483648
        %v1787 = vxor.u32 %v1467, 2147483648
        %v1788 = vxor.u32 %v1644, 2147483648
        %v1789 = vxor.u32 %v1276, 2147483648
        %v1790 = vxor.u32 %v1278, 2147483648
        %v1791 = vxor.u32 %v1469, 2147483648
        %v1792 = vxor.u32 %v1471, 2147483648
        %v1793 = vxor.u32 %v1647, 2147483648
        %v1794 = vxor.u32 %v1282, 2147483648
        %v1795 = vxor.u32 %v1284, 2147483648
        %v1796 = vxor.u32 %v1475, 2147483648
        %v1797 = vxor.u32 %v1477, 2147483648
        %v1798 = vxor.u32 %v1652, 2147483648
        %v1799 = vxor.u32 %v1286, 2147483648
        %v1800 = vxor.u32 %v1288, 2147483648
        %v1801 = vxor.u32 %v1479, 2147483648
        %v1802 = vxor.u32 %v1481, 2147483648
        %v1803 = vxor.u32 %v1655, 2147483648
        %v1804 = vxor.u32 %v1292, 2147483648
        %v1805 = vxor.u32 %v1294, 2147483648
        %v1806 = vxor.u32 %v1485, 2147483648
        %v1807 = vxor.u32 %v1487, 2147483648
        %v1808 = vxor.u32 %v1660, 2147483648
        %v1809 = vxor.u32 %v1296, 2147483648
        %v1810 = vxor.u32 %v1298, 2147483648
        %v1811 = vxor.u32 %v1489, 2147483648
        %v1812 = vxor.u32 %v1491, 2147483648
        %v1813 = vxor.u32 %v1663, 2147483648
        %v1814 = vxor.u32 %v1302, 2147483648
        %v1815 = vxor.u32 %v1304, 2147483648
        %v1816 = vxor.u32 %v1495, 2147483648
        %v1817 = vxor.u32 %v1497, 2147483648
        %v1818 = vxor.u32 %v1668, 2147483648
        %v1819 = vxor.u32 %v1306, 2147483648
        %v1820 = vxor.u32 %v1308, 2147483648
        %v1821 = vxor.u32 %v1499, 2147483648
        %v1822 = vxor.u32 %v1501, 2147483648
        %v1823 = vxor.u32 %v1671, 2147483648
        %v1824 = vxor.u32 %v1312, 2147483648
        %v1825 = vxor.u32 %v1314, 2147483648
        %v1826 = vxor.u32 %v1505, 2147483648
        %v1827 = vxor.u32 %v1507, 2147483648
        %v1828 = vxor.u32 %v1676, 2147483648
        %v1829 = vxor.u32 %v1316, 2147483648
        %v1830 = vxor.u32 %v1318, 2147483648
        %v1831 = vxor.u32 %v1509, 2147483648
        %v1832 = vxor.u32 %v1511, 2147483648
        %v1833 = vxor.u32 %v1679, 2147483648
        %v1834 = vxor.u32 %v1322, 2147483648
        %v1835 = vxor.u32 %v1324, 2147483648
        %v1836 = vxor.u32 %v1515, 2147483648
        %v1837 = vxor.u32 %v1517, 2147483648
        %v1838 = vxor.u32 %v1684, 2147483648
        %v1839 = vxor.u32 %v1326, 2147483648
        %v1840 = vxor.u32 %v1328, 2147483648
        %v1841 = vxor.u32 %v1519, 2147483648
        %v1842 = vxor.u32 %v1521, 2147483648
        %v1843 = vxor.u32 %v1687, 2147483648
        %v1844 = vxor.u32 %v1332, 2147483648
        %v1845 = vxor.u32 %v1334, 2147483648
        %v1846 = vxor.u32 %v1525, 2147483648
        %v1847 = vxor.u32 %v1527, 2147483648
        %v1848 = vxor.u32 %v1692, 2147483648
        %v1849 = vxor.u32 %v1336, 2147483648
        %v1850 = vxor.u32 %v1338, 2147483648
        %v1851 = vxor.u32 %v1529, 2147483648
        %v1852 = vxor.u32 %v1531, 2147483648
        %v1853 = vxor.u32 %v1695, 2147483648
        %v1854 = vxor.u32 %v1342, 2147483648
        %v1855 = vxor.u32 %v1344, 2147483648
        %v1856 = vxor.u32 %v1535, 2147483648
        %v1857 = vxor.u32 %v1537, 2147483648
        %v1858 = vxor.u32 %v1700, 2147483648
        %v1859 = vxor.u32 %v1346, 2147483648
        %v1860 = vxor.u32 %v1348, 2147483648
        %v1861 = vxor.u32 %v1539, 2147483648
        %v1862 = vxor.u32 %v1541, 2147483648
        %v1863 = vxor.u32 %v1703, 2147483648
        %v1864 = vxor.u32 %v1352, 2147483648
        %v1865 = vxor.u32 %v1354, 2147483648
        %v1866 = vxor.u32 %v1545, 2147483648
        %v1867 = vxor.u32 %v1547, 2147483648
        %v1868 = vxor.u32 %v1708, 2147483648
        %v1869 = vxor.u32 %v1356, 2147483648
        %v1870 = vxor.u32 %v1358, 2147483648
        %v1871 = vxor.u32 %v1549, 2147483648
        %v1872 = vxor.u32 %v1551, 2147483648
        %v1873 = vxor.u32 %v1711, 2147483648
        %v1874 = vmul.f32 %v1714, 1.442695
        %v1875 = vpow.pop %v1874
        %v1876 = vmul.f32 %v1715, 1.442695
        %v1877 = vpow.pop %v1876
        %v1878 = vmul.f32 %v1716, 1.442695
        %v1879 = vpow.pop %v1878
        %v1880 = vmul.f32 %v1717, 1.442695
        %v1881 = vpow.pop %v1880
        %v1882 = vmul.f32 %v1718, 1.442695
        %v1883 = vpow.pop %v1882
        %v1884 = vmul.f32 %v1719, 1.442695
        %v1885 = vpow.pop %v1884
        %v1886 = vmul.f32 %v1720, 1.442695
        %v1887 = vpow.pop %v1886
        %v1888 = vmul.f32 %v1721, 1.442695
        %v1889 = vpow.pop %v1888
        %v1890 = vmul.f32 %v1722, 1.442695
        %v1891 = vpow.pop %v1890
        %v1892 = vmul.f32 %v1723, 1.442695
        %v1893 = vpow.pop %v1892
        %v1894 = vmul.f32 %v1724, 1.442695
        %v1895 = vpow.pop %v1894
        %v1896 = vmul.f32 %v1725, 1.442695
        %v1897 = vpow.pop %v1896
        %v1898 = vmul.f32 %v1726, 1.442695
        %v1899 = vpow.pop %v1898
        %v1900 = vmul.f32 %v1727, 1.442695
        %v1901 = vpow.pop %v1900
        %v1902 = vmul.f32 %v1728, 1.442695
        %v1903 = vpow.pop %v1902
        %v1904 = vmul.f32 %v1729, 1.442695
        %v1905 = vpow.pop %v1904
        %v1906 = vmul.f32 %v1730, 1.442695
        %v1907 = vpow.pop %v1906
        %v1908 = vmul.f32 %v1731, 1.442695
        %v1909 = vpow.pop %v1908
        %v1910 = vmul.f32 %v1732, 1.442695
        %v1911 = vpow.pop %v1910
        %v1912 = vmul.f32 %v1733, 1.442695
        %v1913 = vpow.pop %v1912
        %v1914 = vmul.f32 %v1734, 1.442695
        %v1915 = vpow.pop %v1914
        %v1916 = vmul.f32 %v1735, 1.442695
        %v1917 = vpow.pop %v1916
        %v1918 = vmul.f32 %v1736, 1.442695
        %v1919 = vpow.pop %v1918
        %v1920 = vmul.f32 %v1737, 1.442695
        %v1921 = vpow.pop %v1920
        %v1922 = vmul.f32 %v1738, 1.442695
        %v1923 = vpow.pop %v1922
        %v1924 = vmul.f32 %v1739, 1.442695
        %v1925 = vpow.pop %v1924
        %v1926 = vmul.f32 %v1740, 1.442695
        %v1927 = vpow.pop %v1926
        %v1928 = vmul.f32 %v1741, 1.442695
        %v1929 = vpow.pop %v1928
        %v1930 = vmul.f32 %v1742, 1.442695
        %v1931 = vpow.pop %v1930
        %v1932 = vmul.f32 %v1743, 1.442695
        %v1933 = vpow.pop %v1932
        %v1934 = vmul.f32 %v1744, 1.442695
        %v1935 = vpow.pop %v1934
        %v1936 = vmul.f32 %v1745, 1.442695
        %v1937 = vpow.pop %v1936
        %v1938 = vmul.f32 %v1746, 1.442695
        %v1939 = vpow.pop %v1938
        %v1940 = vmul.f32 %v1747, 1.442695
        %v1941 = vpow.pop %v1940
        %v1942 = vmul.f32 %v1748, 1.442695
        %v1943 = vpow.pop %v1942
        %v1944 = vmul.f32 %v1749, 1.442695
        %v1945 = vpow.pop %v1944
        %v1946 = vmul.f32 %v1750, 1.442695
        %v1947 = vpow.pop %v1946
        %v1948 = vmul.f32 %v1751, 1.442695
        %v1949 = vpow.pop %v1948
        %v1950 = vmul.f32 %v1752, 1.442695
        %v1951 = vpow.pop %v1950
        %v1952 = vmul.f32 %v1753, 1.442695
        %v1953 = vpow.pop %v1952
        %v1954 = vmul.f32 %v1754, 1.442695
        %v1955 = vpow.pop %v1954
        %v1956 = vmul.f32 %v1755, 1.442695
        %v1957 = vpow.pop %v1956
        %v1958 = vmul.f32 %v1756, 1.442695
        %v1959 = vpow.pop %v1958
        %v1960 = vmul.f32 %v1757, 1.442695
        %v1961 = vpow.pop %v1960
        %v1962 = vmul.f32 %v1758, 1.442695
        %v1963 = vpow.pop %v1962
        %v1964 = vmul.f32 %v1759, 1.442695
        %v1965 = vpow.pop %v1964
        %v1966 = vmul.f32 %v1760, 1.442695
        %v1967 = vpow.pop %v1966
        %v1968 = vmul.f32 %v1761, 1.442695
        %v1969 = vpow.pop %v1968
        %v1970 = vmul.f32 %v1762, 1.442695
        %v1971 = vpow.pop %v1970
        %v1972 = vmul.f32 %v1763, 1.442695
        %v1973 = vpow.pop %v1972
        %v1974 = vmul.f32 %v1764, 1.442695
        %v1975 = vpow.pop %v1974
        %v1976 = vmul.f32 %v1765, 1.442695
        %v1977 = vpow.pop %v1976
        %v1978 = vmul.f32 %v1766, 1.442695
        %v1979 = vpow.pop %v1978
        %v1980 = vmul.f32 %v1767, 1.442695
        %v1981 = vpow.pop %v1980
        %v1982 = vmul.f32 %v1768, 1.442695
        %v1983 = vpow.pop %v1982
        %v1984 = vmul.f32 %v1769, 1.442695
        %v1985 = vpow.pop %v1984
        %v1986 = vmul.f32 %v1770, 1.442695
        %v1987 = vpow.pop %v1986
        %v1988 = vmul.f32 %v1771, 1.442695
        %v1989 = vpow.pop %v1988
        %v1990 = vmul.f32 %v1772, 1.442695
        %v1991 = vpow.pop %v1990
        %v1992 = vmul.f32 %v1773, 1.442695
        %v1993 = vpow.pop %v1992
        %v1994 = vmul.f32 %v1774, 1.442695
        %v1995 = vpow.pop %v1994
        %v1996 = vmul.f32 %v1775, 1.442695
        %v1997 = vpow.pop %v1996
        %v1998 = vmul.f32 %v1776, 1.442695
        %v1999 = vpow.pop %v1998
        %v2000 = vmul.f32 %v1777, 1.442695
        %v2001 = vpow.pop %v2000
        %v2002 = vmul.f32 %v1778, 1.442695
        %v2003 = vpow.pop %v2002
        %v2004 = vmul.f32 %v1779, 1.442695
        %v2005 = vpow.pop %v2004
        %v2006 = vmul.f32 %v1780, 1.442695
        %v2007 = vpow.pop %v2006
        %v2008 = vmul.f32 %v1781, 1.442695
        %v2009 = vpow.pop %v2008
        %v2010 = vmul.f32 %v1782, 1.442695
        %v2011 = vpow.pop %v2010
        %v2012 = vmul.f32 %v1783, 1.442695
        %v2013 = vpow.pop %v2012
        %v2014 = vmul.f32 %v1784, 1.442695
        %v2015 = vpow.pop %v2014
        %v2016 = vmul.f32 %v1785, 1.442695
        %v2017 = vpow.pop %v2016
        %v2018 = vmul.f32 %v1786, 1.442695
        %v2019 = vpow.pop %v2018
        %v2020 = vmul.f32 %v1787, 1.442695
        %v2021 = vpow.pop %v2020
        %v2022 = vmul.f32 %v1788, 1.442695
        %v2023 = vpow.pop %v2022
        %v2024 = vmul.f32 %v1789, 1.442695
        %v2025 = vpow.pop %v2024
        %v2026 = vmul.f32 %v1790, 1.442695
        %v2027 = vpow.pop %v2026
        %v2028 = vmul.f32 %v1791, 1.442695
        %v2029 = vpow.pop %v2028
        %v2030 = vmul.f32 %v1792, 1.442695
        %v2031 = vpow.pop %v2030
        %v2032 = vmul.f32 %v1793, 1.442695
        %v2033 = vpow.pop %v2032
        %v2034 = vmul.f32 %v1794, 1.442695
        %v2035 = vpow.pop %v2034
        %v2036 = vmul.f32 %v1795, 1.442695
        %v2037 = vpow.pop %v2036
        %v2038 = vmul.f32 %v1796, 1.442695
        %v2039 = vpow.pop %v2038
        %v2040 = vmul.f32 %v1797, 1.442695
        %v2041 = vpow.pop %v2040
        %v2042 = vmul.f32 %v1798, 1.442695
        %v2043 = vpow.pop %v2042
        %v2044 = vmul.f32 %v1799, 1.442695
        %v2045 = vpow.pop %v2044
        %v2046 = vmul.f32 %v1800, 1.442695
        %v2047 = vpow.pop %v2046
        %v2048 = vmul.f32 %v1801, 1.442695
        %v2049 = vpow.pop %v2048
        %v2050 = vmul.f32 %v1802, 1.442695
        %v2051 = vpow.pop %v2050
        %v2052 = vmul.f32 %v1803, 1.442695
        %v2053 = vpow.pop %v2052
        %v2054 = vmul.f32 %v1804, 1.442695
        %v2055 = vpow.pop %v2054
        %v2056 = vmul.f32 %v1805, 1.442695
        %v2057 = vpow.pop %v2056
        %v2058 = vmul.f32 %v1806, 1.442695
        %v2059 = vpow.pop %v2058
        %v2060 = vmul.f32 %v1807, 1.442695
        %v2061 = vpow.pop %v2060
        %v2062 = vmul.f32 %v1808, 1.442695
        %v2063 = vpow.pop %v2062
        %v2064 = vmul.f32 %v1809, 1.442695
        %v2065 = vpow.pop %v2064
        %v2066 = vmul.f32 %v1810, 1.442695
        %v2067 = vpow.pop %v2066
        %v2068 = vmul.f32 %v1811, 1.442695
        %v2069 = vpow.pop %v2068
        %v2070 = vmul.f32 %v1812, 1.442695
        %v2071 = vpow.pop %v2070
        %v2072 = vmul.f32 %v1813, 1.442695
        %v2073 = vpow.pop %v2072
        %v2074 = vmul.f32 %v1814, 1.442695
        %v2075 = vpow.pop %v2074
        %v2076 = vmul.f32 %v1815, 1.442695
        %v2077 = vpow.pop %v2076
        %v2078 = vmul.f32 %v1816, 1.442695
        %v2079 = vpow.pop %v2078
        %v2080 = vmul.f32 %v1817, 1.442695
        %v2081 = vpow.pop %v2080
        %v2082 = vmul.f32 %v1818, 1.442695
        %v2083 = vpow.pop %v2082
        %v2084 = vmul.f32 %v1819, 1.442695
        %v2085 = vpow.pop %v2084
        %v2086 = vmul.f32 %v1820, 1.442695
        %v2087 = vpow.pop %v2086
        %v2088 = vmul.f32 %v1821, 1.442695
        %v2089 = vpow.pop %v2088
        %v2090 = vmul.f32 %v1822, 1.442695
        %v2091 = vpow.pop %v2090
        %v2092 = vmul.f32 %v1823, 1.442695
        %v2093 = vpow.pop %v2092
        %v2094 = vmul.f32 %v1824, 1.442695
        %v2095 = vpow.pop %v2094
        %v2096 = vmul.f32 %v1825, 1.442695
        %v2097 = vpow.pop %v2096
        %v2098 = vmul.f32 %v1826, 1.442695
        %v2099 = vpow.pop %v2098
        %v2100 = vmul.f32 %v1827, 1.442695
        %v2101 = vpow.pop %v2100
        %v2102 = vmul.f32 %v1828, 1.442695
        %v2103 = vpow.pop %v2102
        %v2104 = vmul.f32 %v1829, 1.442695
        %v2105 = vpow.pop %v2104
        %v2106 = vmul.f32 %v1830, 1.442695
        %v2107 = vpow.pop %v2106
        %v2108 = vmul.f32 %v1831, 1.442695
        %v2109 = vpow.pop %v2108
        %v2110 = vmul.f32 %v1832, 1.442695
        %v2111 = vpow.pop %v2110
        %v2112 = vmul.f32 %v1833, 1.442695
        %v2113 = vpow.pop %v2112
        %v2114 = vmul.f32 %v1834, 1.442695
        %v2115 = vpow.pop %v2114
        %v2116 = vmul.f32 %v1835, 1.442695
        %v2117 = vpow.pop %v2116
        %v2118 = vmul.f32 %v1836, 1.442695
        %v2119 = vpow.pop %v2118
        %v2120 = vmul.f32 %v1837, 1.442695
        %v2121 = vpow.pop %v2120
        %v2122 = vmul.f32 %v1838, 1.442695
        %v2123 = vpow.pop %v2122
        %v2124 = vmul.f32 %v1839, 1.442695
        %v2125 = vpow.pop %v2124
        %v2126 = vmul.f32 %v1840, 1.442695
        %v2127 = vpow.pop %v2126
        %v2128 = vmul.f32 %v1841, 1.442695
        %v2129 = vpow.pop %v2128
        %v2130 = vmul.f32 %v1842, 1.442695
        %v2131 = vpow.pop %v2130
        %v2132 = vmul.f32 %v1843, 1.442695
        %v2133 = vpow.pop %v2132
        %v2134 = vmul.f32 %v1844, 1.442695
        %v2135 = vpow.pop %v2134
        %v2136 = vmul.f32 %v1845, 1.442695
        %v2137 = vpow.pop %v2136
        %v2138 = vmul.f32 %v1846, 1.442695
        %v2139 = vpow.pop %v2138
        %v2140 = vmul.f32 %v1847, 1.442695
        %v2141 = vpow.pop %v2140
        %v2142 = vmul.f32 %v1848, 1.442695
        %v2143 = vpow.pop %v2142
        %v2144 = vmul.f32 %v1849, 1.442695
        %v2145 = vpow.pop %v2144
        %v2146 = vmul.f32 %v1850, 1.442695
        %v2147 = vpow.pop %v2146
        %v2148 = vmul.f32 %v1851, 1.442695
        %v2149 = vpow.pop %v2148
        %v2150 = vmul.f32 %v1852, 1.442695
        %v2151 = vpow.pop %v2150
        %v2152 = vmul.f32 %v1853, 1.442695
        %v2153 = vpow.pop %v2152
        %v2154 = vmul.f32 %v1854, 1.442695
        %v2155 = vpow.pop %v2154
        %v2156 = vmul.f32 %v1855, 1.442695
        %v2157 = vpow.pop %v2156
        %v2158 = vmul.f32 %v1856, 1.442695
        %v2159 = vpow.pop %v2158
        %v2160 = vmul.f32 %v1857, 1.442695
        %v2161 = vpow.pop %v2160
        %v2162 = vmul.f32 %v1858, 1.442695
        %v2163 = vpow.pop %v2162
        %v2164 = vmul.f32 %v1859, 1.442695
        %v2165 = vpow.pop %v2164
        %v2166 = vmul.f32 %v1860, 1.442695
        %v2167 = vpow.pop %v2166
        %v2168 = vmul.f32 %v1861, 1.442695
        %v2169 = vpow.pop %v2168
        %v2170 = vmul.f32 %v1862, 1.442695
        %v2171 = vpow.pop %v2170
        %v2172 = vmul.f32 %v1863, 1.442695
        %v2173 = vpow.pop %v2172
        %v2174 = vmul.f32 %v1864, 1.442695
        %v2175 = vpow.pop %v2174
        %v2176 = vmul.f32 %v1865, 1.442695
        %v2177 = vpow.pop %v2176
        %v2178 = vmul.f32 %v1866, 1.442695
        %v2179 = vpow.pop %v2178
        %v2180 = vmul.f32 %v1867, 1.442695
        %v2181 = vpow.pop %v2180
        %v2182 = vmul.f32 %v1868, 1.442695
        %v2183 = vpow.pop %v2182
        %v2184 = vmul.f32 %v1869, 1.442695
        %v2185 = vpow.pop %v2184
        %v2186 = vmul.f32 %v1870, 1.442695
        %v2187 = vpow.pop %v2186
        %v2188 = vmul.f32 %v1871, 1.442695
        %v2189 = vpow.pop %v2188
        %v2190 = vmul.f32 %v1872, 1.442695
        %v2191 = vpow.pop %v2190
        %v2192 = vmul.f32 %v1873, 1.442695
        %v2193 = vpow.pop %v2192
        %v2194 = vadd.f32 %v1875, 1.0
        %v2195 = vadd.f32 %v1877, 1.0
        %v2196 = vadd.f32 %v1879, 1.0
        %v2197 = vadd.f32 %v1881, 1.0
        %v2198 = vadd.f32 %v1883, 1.0
        %v2199 = vadd.f32 %v1885, 1.0
        %v2200 = vadd.f32 %v1887, 1.0
        %v2201 = vadd.f32 %v1889, 1.0
        %v2202 = vadd.f32 %v1891, 1.0
        %v2203 = vadd.f32 %v1893, 1.0
        %v2204 = vadd.f32 %v1895, 1.0
        %v2205 = vadd.f32 %v1897, 1.0
        %v2206 = vadd.f32 %v1899, 1.0
        %v2207 = vadd.f32 %v1901, 1.0
        %v2208 = vadd.f32 %v1903, 1.0
        %v2209 = vadd.f32 %v1905, 1.0
        %v2210 = vadd.f32 %v1907, 1.0
        %v2211 = vadd.f32 %v1909, 1.0
        %v2212 = vadd.f32 %v1911, 1.0
        %v2213 = vadd.f32 %v1913, 1.0
        %v2214 = vadd.f32 %v1915, 1.0
        %v2215 = vadd.f32 %v1917, 1.0
        %v2216 = vadd.f32 %v1919, 1.0
        %v2217 = vadd.f32 %v1921, 1.0
        %v2218 = vadd.f32 %v1923, 1.0
        %v2219 = vadd.f32 %v1925, 1.0
        %v2220 = vadd.f32 %v1927, 1.0
        %v2221 = vadd.f32 %v1929, 1.0
        %v2222 = vadd.f32 %v1931, 1.0
        %v2223 = vadd.f32 %v1933, 1.0
        %v2224 = vadd.f32 %v1935, 1.0
        %v2225 = vadd.f32 %v1937, 1.0
        %v2226 = vadd.f32 %v1939, 1.0
        %v2227 = vadd.f32 %v1941, 1.0
        %v2228 = vadd.f32 %v1943, 1.0
        %v2229 = vadd.f32 %v1945, 1.0
        %v2230 = vadd.f32 %v1947, 1.0
        %v2231 = vadd.f32 %v1949, 1.0
        %v2232 = vadd.f32 %v1951, 1.0
        %v2233 = vadd.f32 %v1953, 1.0
        %v2234 = vadd.f32 %v1955, 1.0
        %v2235 = vadd.f32 %v1957, 1.0
        %v2236 = vadd.f32 %v1959, 1.0
        %v2237 = vadd.f32 %v1961, 1.0
        %v2238 = vadd.f32 %v1963, 1.0
        %v2239 = vadd.f32 %v1965, 1.0
        %v2240 = vadd.f32 %v1967, 1.0
        %v2241 = vadd.f32 %v1969, 1.0
        %v2242 = vadd.f32 %v1971, 1.0
        %v2243 = vadd.f32 %v1973, 1.0
        %v2244 = vadd.f32 %v1975, 1.0
        %v2245 = vadd.f32 %v1977, 1.0
        %v2246 = vadd.f32 %v1979, 1.0
        %v2247 = vadd.f32 %v1981, 1.0
        %v2248 = vadd.f32 %v1983, 1.0
        %v2249 = vadd.f32 %v1985, 1.0
        %v2250 = vadd.f32 %v1987, 1.0
        %v2251 = vadd.f32 %v1989, 1.0
        %v2252 = vadd.f32 %v1991, 1.0
        %v2253 = vadd.f32 %v1993, 1.0
        %v2254 = vadd.f32 %v1995, 1.0
        %v2255 = vadd.f32 %v1997, 1.0
        %v2256 = vadd.f32 %v1999, 1.0
        %v2257 = vadd.f32 %v2001, 1.0
        %v2258 = vadd.f32 %v2003, 1.0
        %v2259 = vadd.f32 %v2005, 1.0
        %v2260 = vadd.f32 %v2007, 1.0
        %v2261 = vadd.f32 %v2009, 1.0
        %v2262 = vadd.f32 %v2011, 1.0
        %v2263 = vadd.f32 %v2013, 1.0
        %v2264 = vadd.f32 %v2015, 1.0
        %v2265 = vadd.f32 %v2017, 1.0
        %v2266 = vadd.f32 %v2019, 1.0
        %v2267 = vadd.f32 %v2021, 1.0
        %v2268 = vadd.f32 %v2023, 1.0
        %v2269 = vadd.f32 %v2025, 1.0
        %v2270 = vadd.f32 %v2027, 1.0
        %v2271 = vadd.f32 %v2029, 1.0
        %v2272 = vadd.f32 %v2031, 1.0
        %v2273 = vadd.f32 %v2033, 1.0
        %v2274 = vadd.f32 %v2035, 1.0
        %v2275 = vadd.f32 %v2037, 1.0
        %v2276 = vadd.f32 %v2039, 1.0
        %v2277 = vadd.f32 %v2041, 1.0
        %v2278 = vadd.f32 %v2043, 1.0
        %v2279 = vadd.f32 %v2045, 1.0
        %v2280 = vadd.f32 %v2047, 1.0
        %v2281 = vadd.f32 %v2049, 1.0
        %v2282 = vadd.f32 %v2051, 1.0
        %v2283 = vadd.f32 %v2053, 1.0
        %v2284 = vadd.f32 %v2055, 1.0
        %v2285 = vadd.f32 %v2057, 1.0
        %v2286 = vadd.f32 %v2059, 1.0
        %v2287 = vadd.f32 %v2061, 1.0
        %v2288 = vadd.f32 %v2063, 1.0
        %v2289 = vadd.f32 %v2065, 1.0
        %v2290 = vadd.f32 %v2067, 1.0
        %v2291 = vadd.f32 %v2069, 1.0
        %v2292 = vadd.f32 %v2071, 1.0
        %v2293 = vadd.f32 %v2073, 1.0
        %v2294 = vadd.f32 %v2075, 1.0
        %v2295 = vadd.f32 %v2077, 1.0
        %v2296 = vadd.f32 %v2079, 1.0
        %v2297 = vadd.f32 %v2081, 1.0
        %v2298 = vadd.f32 %v2083, 1.0
        %v2299 = vadd.f32 %v2085, 1.0
        %v2300 = vadd.f32 %v2087, 1.0
        %v2301 = vadd.f32 %v2089, 1.0
        %v2302 = vadd.f32 %v2091, 1.0
        %v2303 = vadd.f32 %v2093, 1.0
        %v2304 = vadd.f32 %v2095, 1.0
        %v2305 = vadd.f32 %v2097, 1.0
        %v2306 = vadd.f32 %v2099, 1.0
        %v2307 = vadd.f32 %v2101, 1.0
        %v2308 = vadd.f32 %v2103, 1.0
        %v2309 = vadd.f32 %v2105, 1.0
        %v2310 = vadd.f32 %v2107, 1.0
        %v2311 = vadd.f32 %v2109, 1.0
        %v2312 = vadd.f32 %v2111, 1.0
        %v2313 = vadd.f32 %v2113, 1.0
        %v2314 = vadd.f32 %v2115, 1.0
        %v2315 = vadd.f32 %v2117, 1.0
        %v2316 = vadd.f32 %v2119, 1.0
        %v2317 = vadd.f32 %v2121, 1.0
        %v2318 = vadd.f32 %v2123, 1.0
        %v2319 = vadd.f32 %v2125, 1.0
        %v2320 = vadd.f32 %v2127, 1.0
        %v2321 = vadd.f32 %v2129, 1.0
        %v2322 = vadd.f32 %v2131, 1.0
        %v2323 = vadd.f32 %v2133, 1.0
        %v2324 = vadd.f32 %v2135, 1.0
        %v2325 = vadd.f32 %v2137, 1.0
        %v2326 = vadd.f32 %v2139, 1.0
        %v2327 = vadd.f32 %v2141, 1.0
        %v2328 = vadd.f32 %v2143, 1.0
        %v2329 = vadd.f32 %v2145, 1.0
        %v2330 = vadd.f32 %v2147, 1.0
        %v2331 = vadd.f32 %v2149, 1.0
        %v2332 = vadd.f32 %v2151, 1.0
        %v2333 = vadd.f32 %v2153, 1.0
        %v2334 = vadd.f32 %v2155, 1.0
        %v2335 = vadd.f32 %v2157, 1.0
        %v2336 = vadd.f32 %v2159, 1.0
        %v2337 = vadd.f32 %v2161, 1.0
        %v2338 = vadd.f32 %v2163, 1.0
        %v2339 = vadd.f32 %v2165, 1.0
        %v2340 = vadd.f32 %v2167, 1.0
        %v2341 = vadd.f32 %v2169, 1.0
        %v2342 = vadd.f32 %v2171, 1.0
        %v2343 = vadd.f32 %v2173, 1.0
        %v2344 = vadd.f32 %v2175, 1.0
        %v2345 = vadd.f32 %v2177, 1.0
        %v2346 = vadd.f32 %v2179, 1.0
        %v2347 = vadd.f32 %v2181, 1.0
        %v2348 = vadd.f32 %v2183, 1.0
        %v2349 = vadd.f32 %v2185, 1.0
        %v2350 = vadd.f32 %v2187, 1.0
        %v2351 = vadd.f32 %v2189, 1.0
        %v2352 = vadd.f32 %v2191, 1.0
        %v2353 = vadd.f32 %v2193, 1.0
        %v2354 = vrcp.pop %v2194
        %v2355 = vmul.f32 1.0, %v2354
        %v2356 = vrcp.pop %v2195
        %v2357 = vmul.f32 1.0, %v2356
        %v2358 = vrcp.pop %v2196
        %v2359 = vmul.f32 1.0, %v2358
        %v2360 = vrcp.pop %v2197
        %v2361 = vmul.f32 1.0, %v2360
        %v2362 = vrcp.pop %v2198
        %v2363 = vmul.f32 1.0, %v2362
        %v2364 = vrcp.pop %v2199
        %v2365 = vmul.f32 1.0, %v2364
        %v2366 = vrcp.pop %v2200
        %v2367 = vmul.f32 1.0, %v2366
        %v2368 = vrcp.pop %v2201
        %v2369 = vmul.f32 1.0, %v2368
        %v2370 = vrcp.pop %v2202
        %v2371 = vmul.f32 1.0, %v2370
        %v2372 = vrcp.pop %v2203
        %v2373 = vmul.f32 1.0, %v2372
        %v2374 = vrcp.pop %v2204
        %v2375 = vmul.f32 1.0, %v2374
        %v2376 = vrcp.pop %v2205
        %v2377 = vmul.f32 1.0, %v2376
        %v2378 = vrcp.pop %v2206
        %v2379 = vmul.f32 1.0, %v2378
        %v2380 = vrcp.pop %v2207
        %v2381 = vmul.f32 1.0, %v2380
        %v2382 = vrcp.pop %v2208
        %v2383 = vmul.f32 1.0, %v2382
        %v2384 = vrcp.pop %v2209
        %v2385 = vmul.f32 1.0, %v2384
        %v2386 = vrcp.pop %v2210
        %v2387 = vmul.f32 1.0, %v2386
        %v2388 = vrcp.pop %v2211
        %v2389 = vmul.f32 1.0, %v2388
        %v2390 = vrcp.pop %v2212
        %v2391 = vmul.f32 1.0, %v2390
        %v2392 = vrcp.pop %v2213
        %v2393 = vmul.f32 1.0, %v2392
        %v2394 = vrcp.pop %v2214
        %v2395 = vmul.f32 1.0, %v2394
        %v2396 = vrcp.pop %v2215
        %v2397 = vmul.f32 1.0, %v2396
        %v2398 = vrcp.pop %v2216
        %v2399 = vmul.f32 1.0, %v2398
        %v2400 = vrcp.pop %v2217
        %v2401 = vmul.f32 1.0, %v2400
        %v2402 = vrcp.pop %v2218
        %v2403 = vmul.f32 1.0, %v2402
        %v2404 = vrcp.pop %v2219
        %v2405 = vmul.f32 1.0, %v2404
        %v2406 = vrcp.pop %v2220
        %v2407 = vmul.f32 1.0, %v2406
        %v2408 = vrcp.pop %v2221
        %v2409 = vmul.f32 1.0, %v2408
        %v2410 = vrcp.pop %v2222
        %v2411 = vmul.f32 1.0, %v2410
        %v2412 = vrcp.pop %v2223
        %v2413 = vmul.f32 1.0, %v2412
        %v2414 = vrcp.pop %v2224
        %v2415 = vmul.f32 1.0, %v2414
        %v2416 = vrcp.pop %v2225
        %v2417 = vmul.f32 1.0, %v2416
        %v2418 = vrcp.pop %v2226
        %v2419 = vmul.f32 1.0, %v2418
        %v2420 = vrcp.pop %v2227
        %v2421 = vmul.f32 1.0, %v2420
        %v2422 = vrcp.pop %v2228
        %v2423 = vmul.f32 1.0, %v2422
        %v2424 = vrcp.pop %v2229
        %v2425 = vmul.f32 1.0, %v2424
        %v2426 = vrcp.pop %v2230
        %v2427 = vmul.f32 1.0, %v2426
        %v2428 = vrcp.pop %v2231
        %v2429 = vmul.f32 1.0, %v2428
        %v2430 = vrcp.pop %v2232
        %v2431 = vmul.f32 1.0, %v2430
        %v2432 = vrcp.pop %v2233
        %v2433 = vmul.f32 1.0, %v2432
        %v2434 = vrcp.pop %v2234
        %v2435 = vmul.f32 1.0, %v2434
        %v2436 = vrcp.pop %v2235
        %v2437 = vmul.f32 1.0, %v2436
        %v2438 = vrcp.pop %v2236
        %v2439 = vmul.f32 1.0, %v2438
        %v2440 = vrcp.pop %v2237
        %v2441 = vmul.f32 1.0, %v2440
        %v2442 = vrcp.pop %v2238
        %v2443 = vmul.f32 1.0, %v2442
        %v2444 = vrcp.pop %v2239
        %v2445 = vmul.f32 1.0, %v2444
        %v2446 = vrcp.pop %v2240
        %v2447 = vmul.f32 1.0, %v2446
        %v2448 = vrcp.pop %v2241
        %v2449 = vmul.f32 1.0, %v2448
        %v2450 = vrcp.pop %v2242
        %v2451 = vmul.f32 1.0, %v2450
        %v2452 = vrcp.pop %v2243
        %v2453 = vmul.f32 1.0, %v2452
        %v2454 = vrcp.pop %v2244
        %v2455 = vmul.f32 1.0, %v2454
        %v2456 = vrcp.pop %v2245
        %v2457 = vmul.f32 1.0, %v2456
        %v2458 = vrcp.pop %v2246
        %v2459 = vmul.f32 1.0, %v2458
        %v2460 = vrcp.pop %v2247
        %v2461 = vmul.f32 1.0, %v2460
        %v2462 = vrcp.pop %v2248
        %v2463 = vmul.f32 1.0, %v2462
        %v2464 = vrcp.pop %v2249
        %v2465 = vmul.f32 1.0, %v2464
        %v2466 = vrcp.pop %v2250
        %v2467 = vmul.f32 1.0, %v2466
        %v2468 = vrcp.pop %v2251
        %v2469 = vmul.f32 1.0, %v2468
        %v2470 = vrcp.pop %v2252
        %v2471 = vmul.f32 1.0, %v2470
        %v2472 = vrcp.pop %v2253
        %v2473 = vmul.f32 1.0, %v2472
        %v2474 = vrcp.pop %v2254
        %v2475 = vmul.f32 1.0, %v2474
        %v2476 = vrcp.pop %v2255
        %v2477 = vmul.f32 1.0, %v2476
        %v2478 = vrcp.pop %v2256
        %v2479 = vmul.f32 1.0, %v2478
        %v2480 = vrcp.pop %v2257
        %v2481 = vmul.f32 1.0, %v2480
        %v2482 = vrcp.pop %v2258
        %v2483 = vmul.f32 1.0, %v2482
        %v2484 = vrcp.pop %v2259
        %v2485 = vmul.f32 1.0, %v2484
        %v2486 = vrcp.pop %v2260
        %v2487 = vmul.f32 1.0, %v2486
        %v2488 = vrcp.pop %v2261
        %v2489 = vmul.f32 1.0, %v2488
        %v2490 = vrcp.pop %v2262
        %v2491 = vmul.f32 1.0, %v2490
        %v2492 = vrcp.pop %v2263
        %v2493 = vmul.f32 1.0, %v2492
        %v2494 = vrcp.pop %v2264
        %v2495 = vmul.f32 1.0, %v2494
        %v2496 = vrcp.pop %v2265
        %v2497 = vmul.f32 1.0, %v2496
        %v2498 = vrcp.pop %v2266
        %v2499 = vmul.f32 1.0, %v2498
        %v2500 = vrcp.pop %v2267
        %v2501 = vmul.f32 1.0, %v2500
        %v2502 = vrcp.pop %v2268
        %v2503 = vmul.f32 1.0, %v2502
        %v2504 = vrcp.pop %v2269
        %v2505 = vmul.f32 1.0, %v2504
        %v2506 = vrcp.pop %v2270
        %v2507 = vmul.f32 1.0, %v2506
        %v2508 = vrcp.pop %v2271
        %v2509 = vmul.f32 1.0, %v2508
        %v2510 = vrcp.pop %v2272
        %v2511 = vmul.f32 1.0, %v2510
        %v2512 = vrcp.pop %v2273
        %v2513 = vmul.f32 1.0, %v2512
        %v2514 = vrcp.pop %v2274
        %v2515 = vmul.f32 1.0, %v2514
        %v2516 = vrcp.pop %v2275
        %v2517 = vmul.f32 1.0, %v2516
        %v2518 = vrcp.pop %v2276
        %v2519 = vmul.f32 1.0, %v2518
        %v2520 = vrcp.pop %v2277
        %v2521 = vmul.f32 1.0, %v2520
        %v2522 = vrcp.pop %v2278
        %v2523 = vmul.f32 1.0, %v2522
        %v2524 = vrcp.pop %v2279
        %v2525 = vmul.f32 1.0, %v2524
        %v2526 = vrcp.pop %v2280
        %v2527 = vmul.f32 1.0, %v2526
        %v2528 = vrcp.pop %v2281
        %v2529 = vmul.f32 1.0, %v2528
        %v2530 = vrcp.pop %v2282
        %v2531 = vmul.f32 1.0, %v2530
        %v2532 = vrcp.pop %v2283
        %v2533 = vmul.f32 1.0, %v2532
        %v2534 = vrcp.pop %v2284
        %v2535 = vmul.f32 1.0, %v2534
        %v2536 = vrcp.pop %v2285
        %v2537 = vmul.f32 1.0, %v2536
        %v2538 = vrcp.pop %v2286
        %v2539 = vmul.f32 1.0, %v2538
        %v2540 = vrcp.pop %v2287
        %v2541 = vmul.f32 1.0, %v2540
        %v2542 = vrcp.pop %v2288
        %v2543 = vmul.f32 1.0, %v2542
        %v2544 = vrcp.pop %v2289
        %v2545 = vmul.f32 1.0, %v2544
        %v2546 = vrcp.pop %v2290
        %v2547 = vmul.f32 1.0, %v2546
        %v2548 = vrcp.pop %v2291
        %v2549 = vmul.f32 1.0, %v2548
        %v2550 = vrcp.pop %v2292
        %v2551 = vmul.f32 1.0, %v2550
        %v2552 = vrcp.pop %v2293
        %v2553 = vmul.f32 1.0, %v2552
        %v2554 = vrcp.pop %v2294
        %v2555 = vmul.f32 1.0, %v2554
        %v2556 = vrcp.pop %v2295
        %v2557 = vmul.f32 1.0, %v2556
        %v2558 = vrcp.pop %v2296
        %v2559 = vmul.f32 1.0, %v2558
        %v2560 = vrcp.pop %v2297
        %v2561 = vmul.f32 1.0, %v2560
        %v2562 = vrcp.pop %v2298
        %v2563 = vmul.f32 1.0, %v2562
        %v2564 = vrcp.pop %v2299
        %v2565 = vmul.f32 1.0, %v2564
        %v2566 = vrcp.pop %v2300
        %v2567 = vmul.f32 1.0, %v2566
        %v2568 = vrcp.pop %v2301
        %v2569 = vmul.f32 1.0, %v2568
        %v2570 = vrcp.pop %v2302
        %v2571 = vmul.f32 1.0, %v2570
        %v2572 = vrcp.pop %v2303
        %v2573 = vmul.f32 1.0, %v2572
        %v2574 = vrcp.pop %v2304
        %v2575 = vmul.f32 1.0, %v2574
        %v2576 = vrcp.pop %v2305
        %v2577 = vmul.f32 1.0, %v2576
        %v2578 = vrcp.pop %v2306
        %v2579 = vmul.f32 1.0, %v2578
        %v2580 = vrcp.pop %v2307
        %v2581 = vmul.f32 1.0, %v2580
        %v2582 = vrcp.pop %v2308
        %v2583 = vmul.f32 1.0, %v2582
        %v2584 = vrcp.pop %v2309
        %v2585 = vmul.f32 1.0, %v2584
        %v2586 = vrcp.pop %v2310
        %v2587 = vmul.f32 1.0, %v2586
        %v2588 = vrcp.pop %v2311
        %v2589 = vmul.f32 1.0, %v2588
        %v2590 = vrcp.pop %v2312
        %v2591 = vmul.f32 1.0, %v2590
        %v2592 = vrcp.pop %v2313
        %v2593 = vmul.f32 1.0, %v2592
        %v2594 = vrcp.pop %v2314
        %v2595 = vmul.f32 1.0, %v2594
        %v2596 = vrcp.pop %v2315
        %v2597 = vmul.f32 1.0, %v2596
        %v2598 = vrcp.pop %v2316
        %v2599 = vmul.f32 1.0, %v2598
        %v2600 = vrcp.pop %v2317
        %v2601 = vmul.f32 1.0, %v2600
        %v2602 = vrcp.pop %v2318
        %v2603 = vmul.f32 1.0, %v2602
        %v2604 = vrcp.pop %v2319
        %v2605 = vmul.f32 1.0, %v2604
        %v2606 = vrcp.pop %v2320
        %v2607 = vmul.f32 1.0, %v2606
        %v2608 = vrcp.pop %v2321
        %v2609 = vmul.f32 1.0, %v2608
        %v2610 = vrcp.pop %v2322
        %v2611 = vmul.f32 1.0, %v2610
        %v2612 = vrcp.pop %v2323
        %v2613 = vmul.f32 1.0, %v2612
        %v2614 = vrcp.pop %v2324
        %v2615 = vmul.f32 1.0, %v2614
        %v2616 = vrcp.pop %v2325
        %v2617 = vmul.f32 1.0, %v2616
        %v2618 = vrcp.pop %v2326
        %v2619 = vmul.f32 1.0, %v2618
        %v2620 = vrcp.pop %v2327
        %v2621 = vmul.f32 1.0, %v2620
        %v2622 = vrcp.pop %v2328
        %v2623 = vmul.f32 1.0, %v2622
        %v2624 = vrcp.pop %v2329
        %v2625 = vmul.f32 1.0, %v2624
        %v2626 = vrcp.pop %v2330
        %v2627 = vmul.f32 1.0, %v2626
        %v2628 = vrcp.pop %v2331
        %v2629 = vmul.f32 1.0, %v2628
        %v2630 = vrcp.pop %v2332
        %v2631 = vmul.f32 1.0, %v2630
        %v2632 = vrcp.pop %v2333
        %v2633 = vmul.f32 1.0, %v2632
        %v2634 = vrcp.pop %v2334
        %v2635 = vmul.f32 1.0, %v2634
        %v2636 = vrcp.pop %v2335
        %v2637 = vmul.f32 1.0, %v2636
        %v2638 = vrcp.pop %v2336
        %v2639 = vmul.f32 1.0, %v2638
        %v2640 = vrcp.pop %v2337
        %v2641 = vmul.f32 1.0, %v2640
        %v2642 = vrcp.pop %v2338
        %v2643 = vmul.f32 1.0, %v2642
        %v2644 = vrcp.pop %v2339
        %v2645 = vmul.f32 1.0, %v2644
        %v2646 = vrcp.pop %v2340
        %v2647 = vmul.f32 1.0, %v2646
        %v2648 = vrcp.pop %v2341
        %v2649 = vmul.f32 1.0, %v2648
        %v2650 = vrcp.pop %v2342
        %v2651 = vmul.f32 1.0, %v2650
        %v2652 = vrcp.pop %v2343
        %v2653 = vmul.f32 1.0, %v2652
        %v2654 = vrcp.pop %v2344
        %v2655 = vmul.f32 1.0, %v2654
        %v2656 = vrcp.pop %v2345
        %v2657 = vmul.f32 1.0, %v2656
        %v2658 = vrcp.pop %v2346
        %v2659 = vmul.f32 1.0, %v2658
        %v2660 = vrcp.pop %v2347
        %v2661 = vmul.f32 1.0, %v2660
        %v2662 = vrcp.pop %v2348
        %v2663 = vmul.f32 1.0, %v2662
        %v2664 = vrcp.pop %v2349
        %v2665 = vmul.f32 1.0, %v2664
        %v2666 = vrcp.pop %v2350
        %v2667 = vmul.f32 1.0, %v2666
        %v2668 = vrcp.pop %v2351
        %v2669 = vmul.f32 1.0, %v2668
        %v2670 = vrcp.pop %v2352
        %v2671 = vmul.f32 1.0, %v2670
        %v2672 = vrcp.pop %v2353
        %v2673 = vmul.f32 1.0, %v2672
        %v2674 = vmul.f32 %v1202, %v2355
        %v2675 = vmul.f32 %v1204, %v2357
        %v2676 = vmul.f32 %v1395, %v2359
        %v2677 = vmul.f32 %v1397, %v2361
        %v2678 = vmul.f32 %v1588, %v2363
        %v2679 = vmul.f32 %v1206, %v2365
        %v2680 = vmul.f32 %v1208, %v2367
        %v2681 = vmul.f32 %v1399, %v2369
        %v2682 = vmul.f32 %v1401, %v2371
        %v2683 = vmul.f32 %v1591, %v2373
        %v2684 = vmul.f32 %v1212, %v2375
        %v2685 = vmul.f32 %v1214, %v2377
        %v2686 = vmul.f32 %v1405, %v2379
        %v2687 = vmul.f32 %v1407, %v2381
        %v2688 = vmul.f32 %v1596, %v2383
        %v2689 = vmul.f32 %v1216, %v2385
        %v2690 = vmul.f32 %v1218, %v2387
        %v2691 = vmul.f32 %v1409, %v2389
        %v2692 = vmul.f32 %v1411, %v2391
        %v2693 = vmul.f32 %v1599, %v2393
        %v2694 = vmul.f32 %v1222, %v2395
        %v2695 = vmul.f32 %v1224, %v2397
        %v2696 = vmul.f32 %v1415, %v2399
        %v2697 = vmul.f32 %v1417, %v2401
        %v2698 = vmul.f32 %v1604, %v2403
        %v2699 = vmul.f32 %v1226, %v2405
        %v2700 = vmul.f32 %v1228, %v2407
        %v2701 = vmul.f32 %v1419, %v2409
        %v2702 = vmul.f32 %v1421, %v2411
        %v2703 = vmul.f32 %v1607, %v2413
        %v2704 = vmul.f32 %v1232, %v2415
        %v2705 = vmul.f32 %v1234, %v2417
        %v2706 = vmul.f32 %v1425, %v2419
        %v2707 = vmul.f32 %v1427, %v2421
        %v2708 = vmul.f32 %v1612, %v2423
        %v2709 = vmul.f32 %v1236, %v2425
        %v2710 = vmul.f32 %v1238, %v2427
        %v2711 = vmul.f32 %v1429, %v2429
        %v2712 = vmul.f32 %v1431, %v2431
        %v2713 = vmul.f32 %v1615, %v2433
        %v2714 = vmul.f32 %v1242, %v2435
        %v2715 = vmul.f32 %v1244, %v2437
        %v2716 = vmul.f32 %v1435, %v2439
        %v2717 = vmul.f32 %v1437, %v2441
        %v2718 = vmul.f32 %v1620, %v2443
        %v2719 = vmul.f32 %v1246, %v2445
        %v2720 = vmul.f32 %v1248, %v2447
        %v2721 = vmul.f32 %v1439, %v2449
        %v2722 = vmul.f32 %v1441, %v2451
        %v2723 = vmul.f32 %v1623, %v2453
        %v2724 = vmul.f32 %v1252, %v2455
        %v2725 = vmul.f32 %v1254, %v2457
        %v2726 = vmul.f32 %v1445, %v2459
        %v2727 = vmul.f32 %v1447, %v2461
        %v2728 = vmul.f32 %v1628, %v2463
        %v2729 = vmul.f32 %v1256, %v2465
        %v2730 = vmul.f32 %v1258, %v2467
        %v2731 = vmul.f32 %v1449, %v2469
        %v2732 = vmul.f32 %v1451, %v2471
        %v2733 = vmul.f32 %v1631, %v2473
        %v2734 = vmul.f32 %v1262, %v2475
        %v2735 = vmul.f32 %v1264, %v2477
        %v2736 = vmul.f32 %v1455, %v2479
        %v2737 = vmul.f32 %v1457, %v2481
        %v2738 = vmul.f32 %v1636, %v2483
        %v2739 = vmul.f32 %v1266, %v2485
        %v2740 = vmul.f32 %v1268, %v2487
        %v2741 = vmul.f32 %v1459, %v2489
        %v2742 = vmul.f32 %v1461, %v2491
        %v2743 = vmul.f32 %v1639, %v2493
        %v2744 = vmul.f32 %v1272, %v2495
        %v2745 = vmul.f32 %v1274, %v2497
        %v2746 = vmul.f32 %v1465, %v2499
        %v2747 = vmul.f32 %v1467, %v2501
        %v2748 = vmul.f32 %v1644, %v2503
        %v2749 = vmul.f32 %v1276, %v2505
        %v2750 = vmul.f32 %v1278, %v2507
        %v2751 = vmul.f32 %v1469, %v2509
        %v2752 = vmul.f32 %v1471, %v2511
        %v2753 = vmul.f32 %v1647, %v2513
        %v2754 = vmul.f32 %v1282, %v2515
        %v2755 = vmul.f32 %v1284, %v2517
        %v2756 = vmul.f32 %v1475, %v2519
        %v2757 = vmul.f32 %v1477, %v2521
        %v2758 = vmul.f32 %v1652, %v2523
        %v2759 = vmul.f32 %v1286, %v2525
        %v2760 = vmul.f32 %v1288, %v2527
        %v2761 = vmul.f32 %v1479, %v2529
        %v2762 = vmul.f32 %v1481, %v2531
        %v2763 = vmul.f32 %v1655, %v2533
        %v2764 = vmul.f32 %v1292, %v2535
        %v2765 = vmul.f32 %v1294, %v2537
        %v2766 = vmul.f32 %v1485, %v2539
        %v2767 = vmul.f32 %v1487, %v2541
        %v2768 = vmul.f32 %v1660, %v2543
        %v2769 = vmul.f32 %v1296, %v2545
        %v2770 = vmul.f32 %v1298, %v2547
        %v2771 = vmul.f32 %v1489, %v2549
        %v2772 = vmul.f32 %v1491, %v2551
        %v2773 = vmul.f32 %v1663, %v2553
        %v2774 = vmul.f32 %v1302, %v2555
        %v2775 = vmul.f32 %v1304, %v2557
        %v2776 = vmul.f32 %v1495, %v2559
        %v2777 = vmul.f32 %v1497, %v2561
        %v2778 = vmul.f32 %v1668, %v2563
        %v2779 = vmul.f32 %v1306, %v2565
        %v2780 = vmul.f32 %v1308, %v2567
        %v2781 = vmul.f32 %v1499, %v2569
        %v2782 = vmul.f32 %v1501, %v2571
        %v2783 = vmul.f32 %v1671, %v2573
        %v2784 = vmul.f32 %v1312, %v2575
        %v2785 = vmul.f32 %v1314, %v2577
        %v2786 = vmul.f32 %v1505, %v2579
        %v2787 = vmul.f32 %v1507, %v2581
        %v2788 = vmul.f32 %v1676, %v2583
        %v2789 = vmul.f32 %v1316, %v2585
        %v2790 = vmul.f32 %v1318, %v2587
        %v2791 = vmul.f32 %v1509, %v2589
        %v2792 = vmul.f32 %v1511, %v2591
        %v2793 = vmul.f32 %v1679, %v2593
        %v2794 = vmul.f32 %v1322, %v2595
        %v2795 = vmul.f32 %v1324, %v2597
        %v2796 = vmul.f32 %v1515, %v2599
        %v2797 = vmul.f32 %v1517, %v2601
        %v2798 = vmul.f32 %v1684, %v2603
        %v2799 = vmul.f32 %v1326, %v2605
        %v2800 = vmul.f32 %v1328, %v2607
        %v2801 = vmul.f32 %v1519, %v2609
        %v2802 = vmul.f32 %v1521, %v2611
        %v2803 = vmul.f32 %v1687, %v2613
        %v2804 = vmul.f32 %v1332, %v2615
        %v2805 = vmul.f32 %v1334, %v2617
        %v2806 = vmul.f32 %v1525, %v2619
        %v2807 = vmul.f32 %v1527, %v2621
        %v2808 = vmul.f32 %v1692, %v2623
        %v2809 = vmul.f32 %v1336, %v2625
        %v2810 = vmul.f32 %v1338, %v2627
        %v2811 = vmul.f32 %v1529, %v2629
        %v2812 = vmul.f32 %v1531, %v2631
        %v2813 = vmul.f32 %v1695, %v2633
        %v2814 = vmul.f32 %v1342, %v2635
        %v2815 = vmul.f32 %v1344, %v2637
        %v2816 = vmul.f32 %v1535, %v2639
        %v2817 = vmul.f32 %v1537, %v2641
        %v2818 = vmul.f32 %v1700, %v2643
        %v2819 = vmul.f32 %v1346, %v2645
        %v2820 = vmul.f32 %v1348, %v2647
        %v2821 = vmul.f32 %v1539, %v2649
        %v2822 = vmul.f32 %v1541, %v2651
        %v2823 = vmul.f32 %v1703, %v2653
        %v2824 = vmul.f32 %v1352, %v2655
        %v2825 = vmul.f32 %v1354, %v2657
        %v2826 = vmul.f32 %v1545, %v2659
        %v2827 = vmul.f32 %v1547, %v2661
        %v2828 = vmul.f32 %v1708, %v2663
        %v2829 = vmul.f32 %v1356, %v2665
        %v2830 = vmul.f32 %v1358, %v2667
        %v2831 = vmul.f32 %v1549, %v2669
        %v2832 = vmul.f32 %v1551, %v2671
        %v2833 = vmul.f32 %v1711, %v2673
        %v2834 = vpack.c.bf16 %v2679, %v2674
        %v2835 = vpack.c.bf16 %v2680, %v2675
        %v2836 = vpack.c.bf16 %v2689, %v2684
        %v2837 = vpack.c.bf16 %v2690, %v2685
        %v2838 = vpack.c.bf16 %v2699, %v2694
        %v2839 = vpack.c.bf16 %v2700, %v2695
        %v2840 = vpack.c.bf16 %v2709, %v2704
        %v2841 = vpack.c.bf16 %v2710, %v2705
        %v2842 = vpack.c.bf16 %v2719, %v2714
        %v2843 = vpack.c.bf16 %v2720, %v2715
        %v2844 = vpack.c.bf16 %v2729, %v2724
        %v2845 = vpack.c.bf16 %v2730, %v2725
        %v2846 = vpack.c.bf16 %v2739, %v2734
        %v2847 = vpack.c.bf16 %v2740, %v2735
        %v2848 = vpack.c.bf16 %v2749, %v2744
        %v2849 = vpack.c.bf16 %v2750, %v2745
        %v2850 = vpack.c.bf16 %v2759, %v2754
        %v2851 = vpack.c.bf16 %v2760, %v2755
        %v2852 = vpack.c.bf16 %v2769, %v2764
        %v2853 = vpack.c.bf16 %v2770, %v2765
        %v2854 = vpack.c.bf16 %v2779, %v2774
        %v2855 = vpack.c.bf16 %v2780, %v2775
        %v2856 = vpack.c.bf16 %v2789, %v2784
        %v2857 = vpack.c.bf16 %v2790, %v2785
        %v2858 = vpack.c.bf16 %v2799, %v2794
        %v2859 = vpack.c.bf16 %v2800, %v2795
        %v2860 = vpack.c.bf16 %v2809, %v2804
        %v2861 = vpack.c.bf16 %v2810, %v2805
        %v2862 = vpack.c.bf16 %v2819, %v2814
        %v2863 = vpack.c.bf16 %v2820, %v2815
        %v2864 = vpack.c.bf16 %v2829, %v2824
        %v2865 = vpack.c.bf16 %v2830, %v2825
        %v2898 = vunpack.c.l.b16 %v2834
        %v2899 = vunpack.c.l.b16 %v2835
        %v2900 = vunpack.c.h.b16 %v2834
        %v2901 = vunpack.c.h.b16 %v2835
        %v2902 = vunpack.c.l.b16 %v2836
        %v2903 = vunpack.c.l.b16 %v2837
        %v2904 = vunpack.c.h.b16 %v2836
        %v2905 = vunpack.c.h.b16 %v2837
        %v2906 = vunpack.c.l.b16 %v2838
        %v2907 = vunpack.c.l.b16 %v2839
        %v2908 = vunpack.c.h.b16 %v2838
        %v2909 = vunpack.c.h.b16 %v2839
        %v2910 = vunpack.c.l.b16 %v2840
        %v2911 = vunpack.c.l.b16 %v2841
        %v2912 = vunpack.c.h.b16 %v2840
        %v2913 = vunpack.c.h.b16 %v2841
        %v2914 = vunpack.c.l.b16 %v2842
        %v2915 = vunpack.c.l.b16 %v2843
        %v2916 = vunpack.c.h.b16 %v2842
        %v2917 = vunpack.c.h.b16 %v2843
        %v2918 = vunpack.c.l.b16 %v2844
        %v2919 = vunpack.c.l.b16 %v2845
        %v2920 = vunpack.c.h.b16 %v2844
        %v2921 = vunpack.c.h.b16 %v2845
        %v2922 = vunpack.c.l.b16 %v2846
        %v2923 = vunpack.c.l.b16 %v2847
        %v2924 = vunpack.c.h.b16 %v2846
        %v2925 = vunpack.c.h.b16 %v2847
        %v2926 = vunpack.c.l.b16 %v2848
        %v2927 = vunpack.c.l.b16 %v2849
        %v2928 = vunpack.c.h.b16 %v2848
        %v2929 = vunpack.c.h.b16 %v2849
        %v2930 = vunpack.c.l.b16 %v2850
        %v2931 = vunpack.c.l.b16 %v2851
        %v2932 = vunpack.c.h.b16 %v2850
        %v2933 = vunpack.c.h.b16 %v2851
        %v2934 = vunpack.c.l.b16 %v2852
        %v2935 = vunpack.c.l.b16 %v2853
        %v2936 = vunpack.c.h.b16 %v2852
        %v2937 = vunpack.c.h.b16 %v2853
        %v2938 = vunpack.c.l.b16 %v2854
        %v2939 = vunpack.c.l.b16 %v2855
        %v2940 = vunpack.c.h.b16 %v2854
        %v2941 = vunpack.c.h.b16 %v2855
        %v2942 = vunpack.c.l.b16 %v2856
        %v2943 = vunpack.c.l.b16 %v2857
        %v2944 = vunpack.c.h.b16 %v2856
        %v2945 = vunpack.c.h.b16 %v2857
        %v2946 = vunpack.c.l.b16 %v2858
        %v2947 = vunpack.c.l.b16 %v2859
        %v2948 = vunpack.c.h.b16 %v2858
        %v2949 = vunpack.c.h.b16 %v2859
        %v2950 = vunpack.c.l.b16 %v2860
        %v2951 = vunpack.c.l.b16 %v2861
        %v2952 = vunpack.c.h.b16 %v2860
        %v2953 = vunpack.c.h.b16 %v2861
        %v2954 = vunpack.c.l.b16 %v2862
        %v2955 = vunpack.c.l.b16 %v2863
        %v2956 = vunpack.c.h.b16 %v2862
        %v2957 = vunpack.c.h.b16 %v2863
        %v2958 = vunpack.c.l.b16 %v2864
        %v2959 = vunpack.c.l.b16 %v2865
        %v2960 = vunpack.c.h.b16 %v2864
        %v2961 = vunpack.c.h.b16 %v2865
        %v2962 = vpack.c.b16 %v2899, %v2898
        %v2963 = vpack.c.b16 %v2901, %v2900
        %v2964 = vpack.c.b16 %v2903, %v2902
        %v2965 = vpack.c.b16 %v2905, %v2904
        %v2966 = vpack.c.b16 %v2907, %v2906
        %v2967 = vpack.c.b16 %v2909, %v2908
        %v2968 = vpack.c.b16 %v2911, %v2910
        %v2969 = vpack.c.b16 %v2913, %v2912
        %v2970 = vpack.c.b16 %v2915, %v2914
        %v2971 = vpack.c.b16 %v2917, %v2916
        %v2972 = vpack.c.b16 %v2919, %v2918
        %v2973 = vpack.c.b16 %v2921, %v2920
        %v2974 = vpack.c.b16 %v2923, %v2922
        %v2975 = vpack.c.b16 %v2925, %v2924
        %v2976 = vpack.c.b16 %v2927, %v2926
        %v2977 = vpack.c.b16 %v2929, %v2928
        %v2978 = vpack.c.b16 %v2931, %v2930
        %v2979 = vpack.c.b16 %v2933, %v2932
        %v2980 = vpack.c.b16 %v2935, %v2934
        %v2981 = vpack.c.b16 %v2937, %v2936
        %v2982 = vpack.c.b16 %v2939, %v2938
        %v2983 = vpack.c.b16 %v2941, %v2940
        %v2984 = vpack.c.b16 %v2943, %v2942
        %v2985 = vpack.c.b16 %v2945, %v2944
        %v2986 = vpack.c.b16 %v2947, %v2946
        %v2987 = vpack.c.b16 %v2949, %v2948
        %v2988 = vpack.c.b16 %v2951, %v2950
        %v2989 = vpack.c.b16 %v2953, %v2952
        %v2990 = vpack.c.b16 %v2955, %v2954
        %v2991 = vpack.c.b16 %v2957, %v2956
        %v2992 = vpack.c.b16 %v2959, %v2958
        %v2993 = vpack.c.b16 %v2961, %v2960
        %3026 = vst [vmem:[%s396] sm:$0xff] %v2962
        %3027 = vst [vmem:[%s396 + $0x8] sm:$0xff] %v2963
        %3028 = vst [vmem:[%s396 + $0x10] sm:$0xff] %v2964
        %3029 = vst [vmem:[%s396 + $0x18] sm:$0xff] %v2965
        %3030 = vst [vmem:[%s396 + $0x20] sm:$0xff] %v2966
        %3031 = vst [vmem:[%s396 + $0x28] sm:$0xff] %v2967
        %3032 = vst [vmem:[%s396 + $0x30] sm:$0xff] %v2968
        %3033 = vst [vmem:[%s396 + $0x38] sm:$0xff] %v2969
        %3034 = vst [vmem:[%s396 + $0x40] sm:$0xff] %v2970
        %3035 = vst [vmem:[%s396 + $0x48] sm:$0xff] %v2971
        %3036 = vst [vmem:[%s396 + $0x50] sm:$0xff] %v2972
        %3037 = vst [vmem:[%s396 + $0x58] sm:$0xff] %v2973
        %3038 = vst [vmem:[%s396 + $0x60] sm:$0xff] %v2974
        %3039 = vst [vmem:[%s396 + $0x68] sm:$0xff] %v2975
        %3040 = vst [vmem:[%s396 + $0x70] sm:$0xff] %v2976
        %3041 = vst [vmem:[%s396 + $0x78] sm:$0xff] %v2977
        %3042 = vst [vmem:[%s396 + $0x80] sm:$0xff] %v2978
        %3043 = vst [vmem:[%s396 + $0x88] sm:$0xff] %v2979
        %3044 = vst [vmem:[%s396 + $0x90] sm:$0xff] %v2980
        %3045 = vst [vmem:[%s396 + $0x98] sm:$0xff] %v2981
        %3046 = vst [vmem:[%s396 + $0xa0] sm:$0xff] %v2982
        %3047 = vst [vmem:[%s396 + $0xa8] sm:$0xff] %v2983
        %3048 = vst [vmem:[%s396 + $0xb0] sm:$0xff] %v2984
        %3049 = vst [vmem:[%s396 + $0xb8] sm:$0xff] %v2985
        %3050 = vst [vmem:[%s396 + $0xc0] sm:$0xff] %v2986
        %3051 = vst [vmem:[%s396 + $0xc8] sm:$0xff] %v2987
        %3052 = vst [vmem:[%s396 + $0xd0] sm:$0xff] %v2988
        %3053 = vst [vmem:[%s396 + $0xd8] sm:$0xff] %v2989
        %3054 = vst [vmem:[%s396 + $0xe0] sm:$0xff] %v2990
        %3055 = vst [vmem:[%s396 + $0xe8] sm:$0xff] %v2991
        %3056 = vst [vmem:[%s396 + $0xf0] sm:$0xff] %v2992
        %3057 = vst [vmem:[%s396 + $0xf8] sm:$0xff] %v2993
        %v3058 = vpack.c.bf16 %v2681, %v2676
        %v3059 = vpack.c.bf16 %v2682, %v2677
        %v3060 = vpack.c.bf16 %v2691, %v2686
        %v3061 = vpack.c.bf16 %v2692, %v2687
        %v3062 = vpack.c.bf16 %v2701, %v2696
        %v3063 = vpack.c.bf16 %v2702, %v2697
        %v3064 = vpack.c.bf16 %v2711, %v2706
        %v3065 = vpack.c.bf16 %v2712, %v2707
        %v3066 = vpack.c.bf16 %v2721, %v2716
        %v3067 = vpack.c.bf16 %v2722, %v2717
        %v3068 = vpack.c.bf16 %v2731, %v2726
        %v3069 = vpack.c.bf16 %v2732, %v2727
        %v3070 = vpack.c.bf16 %v2741, %v2736
        %v3071 = vpack.c.bf16 %v2742, %v2737
        %v3072 = vpack.c.bf16 %v2751, %v2746
        %v3073 = vpack.c.bf16 %v2752, %v2747
        %v3074 = vpack.c.bf16 %v2761, %v2756
        %v3075 = vpack.c.bf16 %v2762, %v2757
        %v3076 = vpack.c.bf16 %v2771, %v2766
        %v3077 = vpack.c.bf16 %v2772, %v2767
        %v3078 = vpack.c.bf16 %v2781, %v2776
        %v3079 = vpack.c.bf16 %v2782, %v2777
        %v3080 = vpack.c.bf16 %v2791, %v2786
        %v3081 = vpack.c.bf16 %v2792, %v2787
        %v3082 = vpack.c.bf16 %v2801, %v2796
        %v3083 = vpack.c.bf16 %v2802, %v2797
        %v3084 = vpack.c.bf16 %v2811, %v2806
        %v3085 = vpack.c.bf16 %v2812, %v2807
        %v3086 = vpack.c.bf16 %v2821, %v2816
        %v3087 = vpack.c.bf16 %v2822, %v2817
        %v3088 = vpack.c.bf16 %v2831, %v2826
        %v3089 = vpack.c.bf16 %v2832, %v2827
        %v3122 = vunpack.c.l.b16 %v3058
        %v3123 = vunpack.c.l.b16 %v3059
        %v3124 = vunpack.c.h.b16 %v3058
        %v3125 = vunpack.c.h.b16 %v3059
        %v3126 = vunpack.c.l.b16 %v3060
        %v3127 = vunpack.c.l.b16 %v3061
        %v3128 = vunpack.c.h.b16 %v3060
        %v3129 = vunpack.c.h.b16 %v3061
        %v3130 = vunpack.c.l.b16 %v3062
        %v3131 = vunpack.c.l.b16 %v3063
        %v3132 = vunpack.c.h.b16 %v3062
        %v3133 = vunpack.c.h.b16 %v3063
        %v3134 = vunpack.c.l.b16 %v3064
        %v3135 = vunpack.c.l.b16 %v3065
        %v3136 = vunpack.c.h.b16 %v3064
        %v3137 = vunpack.c.h.b16 %v3065
        %v3138 = vunpack.c.l.b16 %v3066
        %v3139 = vunpack.c.l.b16 %v3067
        %v3140 = vunpack.c.h.b16 %v3066
        %v3141 = vunpack.c.h.b16 %v3067
        %v3142 = vunpack.c.l.b16 %v3068
        %v3143 = vunpack.c.l.b16 %v3069
        %v3144 = vunpack.c.h.b16 %v3068
        %v3145 = vunpack.c.h.b16 %v3069
        %v3146 = vunpack.c.l.b16 %v3070
        %v3147 = vunpack.c.l.b16 %v3071
        %v3148 = vunpack.c.h.b16 %v3070
        %v3149 = vunpack.c.h.b16 %v3071
        %v3150 = vunpack.c.l.b16 %v3072
        %v3151 = vunpack.c.l.b16 %v3073
        %v3152 = vunpack.c.h.b16 %v3072
        %v3153 = vunpack.c.h.b16 %v3073
        %v3154 = vunpack.c.l.b16 %v3074
        %v3155 = vunpack.c.l.b16 %v3075
        %v3156 = vunpack.c.h.b16 %v3074
        %v3157 = vunpack.c.h.b16 %v3075
        %v3158 = vunpack.c.l.b16 %v3076
        %v3159 = vunpack.c.l.b16 %v3077
        %v3160 = vunpack.c.h.b16 %v3076
        %v3161 = vunpack.c.h.b16 %v3077
        %v3162 = vunpack.c.l.b16 %v3078
        %v3163 = vunpack.c.l.b16 %v3079
        %v3164 = vunpack.c.h.b16 %v3078
        %v3165 = vunpack.c.h.b16 %v3079
        %v3166 = vunpack.c.l.b16 %v3080
        %v3167 = vunpack.c.l.b16 %v3081
        %v3168 = vunpack.c.h.b16 %v3080
        %v3169 = vunpack.c.h.b16 %v3081
        %v3170 = vunpack.c.l.b16 %v3082
        %v3171 = vunpack.c.l.b16 %v3083
        %v3172 = vunpack.c.h.b16 %v3082
        %v3173 = vunpack.c.h.b16 %v3083
        %v3174 = vunpack.c.l.b16 %v3084
        %v3175 = vunpack.c.l.b16 %v3085
        %v3176 = vunpack.c.h.b16 %v3084
        %v3177 = vunpack.c.h.b16 %v3085
        %v3178 = vunpack.c.l.b16 %v3086
        %v3179 = vunpack.c.l.b16 %v3087
        %v3180 = vunpack.c.h.b16 %v3086
        %v3181 = vunpack.c.h.b16 %v3087
        %v3182 = vunpack.c.l.b16 %v3088
        %v3183 = vunpack.c.l.b16 %v3089
        %v3184 = vunpack.c.h.b16 %v3088
        %v3185 = vunpack.c.h.b16 %v3089
        %v3186 = vpack.c.b16 %v3123, %v3122
        %v3187 = vpack.c.b16 %v3125, %v3124
        %v3188 = vpack.c.b16 %v3127, %v3126
        %v3189 = vpack.c.b16 %v3129, %v3128
        %v3190 = vpack.c.b16 %v3131, %v3130
        %v3191 = vpack.c.b16 %v3133, %v3132
        %v3192 = vpack.c.b16 %v3135, %v3134
        %v3193 = vpack.c.b16 %v3137, %v3136
        %v3194 = vpack.c.b16 %v3139, %v3138
        %v3195 = vpack.c.b16 %v3141, %v3140
        %v3196 = vpack.c.b16 %v3143, %v3142
        %v3197 = vpack.c.b16 %v3145, %v3144
        %v3198 = vpack.c.b16 %v3147, %v3146
        %v3199 = vpack.c.b16 %v3149, %v3148
        %v3200 = vpack.c.b16 %v3151, %v3150
        %v3201 = vpack.c.b16 %v3153, %v3152
        %v3202 = vpack.c.b16 %v3155, %v3154
        %v3203 = vpack.c.b16 %v3157, %v3156
        %v3204 = vpack.c.b16 %v3159, %v3158
        %v3205 = vpack.c.b16 %v3161, %v3160
        %v3206 = vpack.c.b16 %v3163, %v3162
        %v3207 = vpack.c.b16 %v3165, %v3164
        %v3208 = vpack.c.b16 %v3167, %v3166
        %v3209 = vpack.c.b16 %v3169, %v3168
        %v3210 = vpack.c.b16 %v3171, %v3170
        %v3211 = vpack.c.b16 %v3173, %v3172
        %v3212 = vpack.c.b16 %v3175, %v3174
        %v3213 = vpack.c.b16 %v3177, %v3176
        %v3214 = vpack.c.b16 %v3179, %v3178
        %v3215 = vpack.c.b16 %v3181, %v3180
        %v3216 = vpack.c.b16 %v3183, %v3182
        %v3217 = vpack.c.b16 %v3185, %v3184
        %3250 = vst [vmem:[%s403] sm:$0xff] %v3186
        %3251 = vst [vmem:[%s403 + $0x8] sm:$0xff] %v3187
        %3252 = vst [vmem:[%s403 + $0x10] sm:$0xff] %v3188
        %3253 = vst [vmem:[%s403 + $0x18] sm:$0xff] %v3189
        %3254 = vst [vmem:[%s403 + $0x20] sm:$0xff] %v3190
        %3255 = vst [vmem:[%s403 + $0x28] sm:$0xff] %v3191
        %3256 = vst [vmem:[%s403 + $0x30] sm:$0xff] %v3192
        %3257 = vst [vmem:[%s403 + $0x38] sm:$0xff] %v3193
        %3258 = vst [vmem:[%s403 + $0x40] sm:$0xff] %v3194
        %3259 = vst [vmem:[%s403 + $0x48] sm:$0xff] %v3195
        %3260 = vst [vmem:[%s403 + $0x50] sm:$0xff] %v3196
        %3261 = vst [vmem:[%s403 + $0x58] sm:$0xff] %v3197
        %3262 = vst [vmem:[%s403 + $0x60] sm:$0xff] %v3198
        %3263 = vst [vmem:[%s403 + $0x68] sm:$0xff] %v3199
        %3264 = vst [vmem:[%s403 + $0x70] sm:$0xff] %v3200
        %3265 = vst [vmem:[%s403 + $0x78] sm:$0xff] %v3201
        %3266 = vst [vmem:[%s403 + $0x80] sm:$0xff] %v3202
        %3267 = vst [vmem:[%s403 + $0x88] sm:$0xff] %v3203
        %3268 = vst [vmem:[%s403 + $0x90] sm:$0xff] %v3204
        %3269 = vst [vmem:[%s403 + $0x98] sm:$0xff] %v3205
        %3270 = vst [vmem:[%s403 + $0xa0] sm:$0xff] %v3206
        %3271 = vst [vmem:[%s403 + $0xa8] sm:$0xff] %v3207
        %3272 = vst [vmem:[%s403 + $0xb0] sm:$0xff] %v3208
        %3273 = vst [vmem:[%s403 + $0xb8] sm:$0xff] %v3209
        %3274 = vst [vmem:[%s403 + $0xc0] sm:$0xff] %v3210
        %3275 = vst [vmem:[%s403 + $0xc8] sm:$0xff] %v3211
        %3276 = vst [vmem:[%s403 + $0xd0] sm:$0xff] %v3212
        %3277 = vst [vmem:[%s403 + $0xd8] sm:$0xff] %v3213
        %3278 = vst [vmem:[%s403 + $0xe0] sm:$0xff] %v3214
        %3279 = vst [vmem:[%s403 + $0xe8] sm:$0xff] %v3215
        %3280 = vst [vmem:[%s403 + $0xf0] sm:$0xff] %v3216
        %3281 = vst [vmem:[%s403 + $0xf8] sm:$0xff] %v3217
        %v3282 = vld [vmem:[#allocation10] sm:$0xf]
        %v3283 = vlaneseq
        %v3284 = vshrl.u32 %v3283, 7
        %v3285 = vsub.s32 0, %v3284
        %v3286 = vrot.slane %v3282, %v3285
        %v3287 = vmul.f32 %v2678, %v3286
        %v3288 = vmul.f32 %v2683, %v3286
        %v3289 = vmul.f32 %v2688, %v3286
        %v3290 = vmul.f32 %v2693, %v3286
        %v3291 = vmul.f32 %v2698, %v3286
        %v3292 = vmul.f32 %v2703, %v3286
        %v3293 = vmul.f32 %v2708, %v3286
        %v3294 = vmul.f32 %v2713, %v3286
        %v3295 = vmul.f32 %v2718, %v3286
        %v3296 = vmul.f32 %v2723, %v3286
        %v3297 = vmul.f32 %v2728, %v3286
        %v3298 = vmul.f32 %v2733, %v3286
        %v3299 = vmul.f32 %v2738, %v3286
        %v3300 = vmul.f32 %v2743, %v3286
        %v3301 = vmul.f32 %v2748, %v3286
        %v3302 = vmul.f32 %v2753, %v3286
        %v3303 = vmul.f32 %v2758, %v3286
        %v3304 = vmul.f32 %v2763, %v3286
        %v3305 = vmul.f32 %v2768, %v3286
        %v3306 = vmul.f32 %v2773, %v3286
        %v3307 = vmul.f32 %v2778, %v3286
        %v3308 = vmul.f32 %v2783, %v3286
        %v3309 = vmul.f32 %v2788, %v3286
        %v3310 = vmul.f32 %v2793, %v3286
        %v3311 = vmul.f32 %v2798, %v3286
        %v3312 = vmul.f32 %v2803, %v3286
        %v3313 = vmul.f32 %v2808, %v3286
        %v3314 = vmul.f32 %v2813, %v3286
        %v3315 = vmul.f32 %v2818, %v3286
        %v3316 = vmul.f32 %v2823, %v3286
        %v3317 = vmul.f32 %v2828, %v3286
        %v3318 = vmul.f32 %v2833, %v3286
        %v3319 = vlaneseq
        %v3320 = vshrl.u32 %v3319, 7
        %v3321 = vsub.s32 1, %v3320
        %v3322 = vrot.slane %v3282, %v3321
        %v3323 = vadd.f32 %v3287, %v3322
        %v3324 = vadd.f32 %v3288, %v3322
        %v3325 = vadd.f32 %v3289, %v3322
        %v3326 = vadd.f32 %v3290, %v3322
        %v3327 = vadd.f32 %v3291, %v3322
        %v3328 = vadd.f32 %v3292, %v3322
        %v3329 = vadd.f32 %v3293, %v3322
        %v3330 = vadd.f32 %v3294, %v3322
        %v3331 = vadd.f32 %v3295, %v3322
        %v3332 = vadd.f32 %v3296, %v3322
        %v3333 = vadd.f32 %v3297, %v3322
        %v3334 = vadd.f32 %v3298, %v3322
        %v3335 = vadd.f32 %v3299, %v3322
        %v3336 = vadd.f32 %v3300, %v3322
        %v3337 = vadd.f32 %v3301, %v3322
        %v3338 = vadd.f32 %v3302, %v3322
        %v3339 = vadd.f32 %v3303, %v3322
        %v3340 = vadd.f32 %v3304, %v3322
        %v3341 = vadd.f32 %v3305, %v3322
        %v3342 = vadd.f32 %v3306, %v3322
        %v3343 = vadd.f32 %v3307, %v3322
        %v3344 = vadd.f32 %v3308, %v3322
        %v3345 = vadd.f32 %v3309, %v3322
        %v3346 = vadd.f32 %v3310, %v3322
        %v3347 = vadd.f32 %v3311, %v3322
        %v3348 = vadd.f32 %v3312, %v3322
        %v3349 = vadd.f32 %v3313, %v3322
        %v3350 = vadd.f32 %v3314, %v3322
        %v3351 = vadd.f32 %v3315, %v3322
        %v3352 = vadd.f32 %v3316, %v3322
        %v3353 = vadd.f32 %v3317, %v3322
        %v3354 = vadd.f32 %v3318, %v3322
        %v3355 = vpack.c.bf16 %v3324, %v3323
        %v3356 = vpack.c.bf16 %v3326, %v3325
        %v3357 = vpack.c.bf16 %v3328, %v3327
        %v3358 = vpack.c.bf16 %v3330, %v3329
        %v3359 = vpack.c.bf16 %v3332, %v3331
        %v3360 = vpack.c.bf16 %v3334, %v3333
        %v3361 = vpack.c.bf16 %v3336, %v3335
        %v3362 = vpack.c.bf16 %v3338, %v3337
        %v3363 = vpack.c.bf16 %v3340, %v3339
        %v3364 = vpack.c.bf16 %v3342, %v3341
        %v3365 = vpack.c.bf16 %v3344, %v3343
        %v3366 = vpack.c.bf16 %v3346, %v3345
        %v3367 = vpack.c.bf16 %v3348, %v3347
        %v3368 = vpack.c.bf16 %v3350, %v3349
        %v3369 = vpack.c.bf16 %v3352, %v3351
        %v3370 = vpack.c.bf16 %v3354, %v3353
        %v3387 = vunpack.c.l.b16 %v3355
        %v3388 = vunpack.c.h.b16 %v3355
        %v3389 = vunpack.c.l.b16 %v3356
        %v3390 = vunpack.c.h.b16 %v3356
        %v3391 = vunpack.c.l.b16 %v3357
        %v3392 = vunpack.c.h.b16 %v3357
        %v3393 = vunpack.c.l.b16 %v3358
        %v3394 = vunpack.c.h.b16 %v3358
        %v3395 = vunpack.c.l.b16 %v3359
        %v3396 = vunpack.c.h.b16 %v3359
        %v3397 = vunpack.c.l.b16 %v3360
        %v3398 = vunpack.c.h.b16 %v3360
        %v3399 = vunpack.c.l.b16 %v3361
        %v3400 = vunpack.c.h.b16 %v3361
        %v3401 = vunpack.c.l.b16 %v3362
        %v3402 = vunpack.c.h.b16 %v3362
        %v3403 = vunpack.c.l.b16 %v3363
        %v3404 = vunpack.c.h.b16 %v3363
        %v3405 = vunpack.c.l.b16 %v3364
        %v3406 = vunpack.c.h.b16 %v3364
        %v3407 = vunpack.c.l.b16 %v3365
        %v3408 = vunpack.c.h.b16 %v3365
        %v3409 = vunpack.c.l.b16 %v3366
        %v3410 = vunpack.c.h.b16 %v3366
        %v3411 = vunpack.c.l.b16 %v3367
        %v3412 = vunpack.c.h.b16 %v3367
        %v3413 = vunpack.c.l.b16 %v3368
        %v3414 = vunpack.c.h.b16 %v3368
        %v3415 = vunpack.c.l.b16 %v3369
        %v3416 = vunpack.c.h.b16 %v3369
        %v3417 = vunpack.c.l.b16 %v3370
        %v3418 = vunpack.c.h.b16 %v3370
        %v3419 = vpack.c.b16 %v3387, %v3387
        %v3420 = vpack.c.b16 %v3388, %v3388
        %v3421 = vpack.c.b16 %v3389, %v3389
        %v3422 = vpack.c.b16 %v3390, %v3390
        %v3423 = vpack.c.b16 %v3391, %v3391
        %v3424 = vpack.c.b16 %v3392, %v3392
        %v3425 = vpack.c.b16 %v3393, %v3393
        %v3426 = vpack.c.b16 %v3394, %v3394
        %v3427 = vpack.c.b16 %v3395, %v3395
        %v3428 = vpack.c.b16 %v3396, %v3396
        %v3429 = vpack.c.b16 %v3397, %v3397
        %v3430 = vpack.c.b16 %v3398, %v3398
        %v3431 = vpack.c.b16 %v3399, %v3399
        %v3432 = vpack.c.b16 %v3400, %v3400
        %v3433 = vpack.c.b16 %v3401, %v3401
        %v3434 = vpack.c.b16 %v3402, %v3402
        %v3435 = vpack.c.b16 %v3403, %v3403
        %v3436 = vpack.c.b16 %v3404, %v3404
        %v3437 = vpack.c.b16 %v3405, %v3405
        %v3438 = vpack.c.b16 %v3406, %v3406
        %v3439 = vpack.c.b16 %v3407, %v3407
        %v3440 = vpack.c.b16 %v3408, %v3408
        %v3441 = vpack.c.b16 %v3409, %v3409
        %v3442 = vpack.c.b16 %v3410, %v3410
        %v3443 = vpack.c.b16 %v3411, %v3411
        %v3444 = vpack.c.b16 %v3412, %v3412
        %v3445 = vpack.c.b16 %v3413, %v3413
        %v3446 = vpack.c.b16 %v3414, %v3414
        %v3447 = vpack.c.b16 %v3415, %v3415
        %v3448 = vpack.c.b16 %v3416, %v3416
        %v3449 = vpack.c.b16 %v3417, %v3417
        %v3450 = vpack.c.b16 %v3418, %v3418
        %3483 = vst [vmem:[%s382] sm:$0xf] %v3419
        %3484 = vst [vmem:[%s382 + $0x4] sm:$0xf] %v3420
        %3485 = vst [vmem:[%s382 + $0x8] sm:$0xf] %v3421
        %3486 = vst [vmem:[%s382 + $0xc] sm:$0xf] %v3422
        %3487 = vst [vmem:[%s382 + $0x10] sm:$0xf] %v3423
        %3488 = vst [vmem:[%s382 + $0x14] sm:$0xf] %v3424
        %3489 = vst [vmem:[%s382 + $0x18] sm:$0xf] %v3425
        %3490 = vst [vmem:[%s382 + $0x1c] sm:$0xf] %v3426
        %3491 = vst [vmem:[%s382 + $0x20] sm:$0xf] %v3427
        %3492 = vst [vmem:[%s382 + $0x24] sm:$0xf] %v3428
        %3493 = vst [vmem:[%s382 + $0x28] sm:$0xf] %v3429
        %3494 = vst [vmem:[%s382 + $0x2c] sm:$0xf] %v3430
        %3495 = vst [vmem:[%s382 + $0x30] sm:$0xf] %v3431
        %3496 = vst [vmem:[%s382 + $0x34] sm:$0xf] %v3432
        %3497 = vst [vmem:[%s382 + $0x38] sm:$0xf] %v3433
        %3498 = vst [vmem:[%s382 + $0x3c] sm:$0xf] %v3434
        %3499 = vst [vmem:[%s382 + $0x40] sm:$0xf] %v3435
        %3500 = vst [vmem:[%s382 + $0x44] sm:$0xf] %v3436
        %3501 = vst [vmem:[%s382 + $0x48] sm:$0xf] %v3437
        %3502 = vst [vmem:[%s382 + $0x4c] sm:$0xf] %v3438
        %3503 = vst [vmem:[%s382 + $0x50] sm:$0xf] %v3439
        %3504 = vst [vmem:[%s382 + $0x54] sm:$0xf] %v3440
        %3505 = vst [vmem:[%s382 + $0x58] sm:$0xf] %v3441
        %3506 = vst [vmem:[%s382 + $0x5c] sm:$0xf] %v3442
        %3507 = vst [vmem:[%s382 + $0x60] sm:$0xf] %v3443
        %3508 = vst [vmem:[%s382 + $0x64] sm:$0xf] %v3444
        %3509 = vst [vmem:[%s382 + $0x68] sm:$0xf] %v3445
        %3510 = vst [vmem:[%s382 + $0x6c] sm:$0xf] %v3446
        %3511 = vst [vmem:[%s382 + $0x70] sm:$0xf] %v3447
        %3512 = vst [vmem:[%s382 + $0x74] sm:$0xf] %v3448
        %3513 = vst [vmem:[%s382 + $0x78] sm:$0xf] %v3449
        %3514 = vst [vmem:[%s382 + $0x7c] sm:$0xf] %v3450
        %v3515 = vlaneseq
        %v3516 = vshrl.u32 %v3515, 7
        %v3517 = vsub.s32 2, %v3516
        %v3518 = vrot.slane %v3282, %v3517
        %v3519 = vmul.f32 %v2678, %v3518
        %v3520 = vmul.f32 %v2683, %v3518
        %v3521 = vmul.f32 %v2688, %v3518
        %v3522 = vmul.f32 %v2693, %v3518
        %v3523 = vmul.f32 %v2698, %v3518
        %v3524 = vmul.f32 %v2703, %v3518
        %v3525 = vmul.f32 %v2708, %v3518
        %v3526 = vmul.f32 %v2713, %v3518
        %v3527 = vmul.f32 %v2718, %v3518
        %v3528 = vmul.f32 %v2723, %v3518
        %v3529 = vmul.f32 %v2728, %v3518
        %v3530 = vmul.f32 %v2733, %v3518
        %v3531 = vmul.f32 %v2738, %v3518
        %v3532 = vmul.f32 %v2743, %v3518
        %v3533 = vmul.f32 %v2748, %v3518
        %v3534 = vmul.f32 %v2753, %v3518
        %v3535 = vmul.f32 %v2758, %v3518
        %v3536 = vmul.f32 %v2763, %v3518
        %v3537 = vmul.f32 %v2768, %v3518
        %v3538 = vmul.f32 %v2773, %v3518
        %v3539 = vmul.f32 %v2778, %v3518
        %v3540 = vmul.f32 %v2783, %v3518
        %v3541 = vmul.f32 %v2788, %v3518
        %v3542 = vmul.f32 %v2793, %v3518
        %v3543 = vmul.f32 %v2798, %v3518
        %v3544 = vmul.f32 %v2803, %v3518
        %v3545 = vmul.f32 %v2808, %v3518
        %v3546 = vmul.f32 %v2813, %v3518
        %v3547 = vmul.f32 %v2818, %v3518
        %v3548 = vmul.f32 %v2823, %v3518
        %v3549 = vmul.f32 %v2828, %v3518
        %v3550 = vmul.f32 %v2833, %v3518
        %v3551 = vlaneseq
        %v3552 = vshrl.u32 %v3551, 7
        %v3553 = vsub.s32 3, %v3552
        %v3554 = vrot.slane %v3282, %v3553
        %v3555 = vadd.f32 %v3519, %v3554
        %v3556 = vadd.f32 %v3520, %v3554
        %v3557 = vadd.f32 %v3521, %v3554
        %v3558 = vadd.f32 %v3522, %v3554
        %v3559 = vadd.f32 %v3523, %v3554
        %v3560 = vadd.f32 %v3524, %v3554
        %v3561 = vadd.f32 %v3525, %v3554
        %v3562 = vadd.f32 %v3526, %v3554
        %v3563 = vadd.f32 %v3527, %v3554
        %v3564 = vadd.f32 %v3528, %v3554
        %v3565 = vadd.f32 %v3529, %v3554
        %v3566 = vadd.f32 %v3530, %v3554
        %v3567 = vadd.f32 %v3531, %v3554
        %v3568 = vadd.f32 %v3532, %v3554
        %v3569 = vadd.f32 %v3533, %v3554
        %v3570 = vadd.f32 %v3534, %v3554
        %v3571 = vadd.f32 %v3535, %v3554
        %v3572 = vadd.f32 %v3536, %v3554
        %v3573 = vadd.f32 %v3537, %v3554
        %v3574 = vadd.f32 %v3538, %v3554
        %v3575 = vadd.f32 %v3539, %v3554
        %v3576 = vadd.f32 %v3540, %v3554
        %v3577 = vadd.f32 %v3541, %v3554
        %v3578 = vadd.f32 %v3542, %v3554
        %v3579 = vadd.f32 %v3543, %v3554
        %v3580 = vadd.f32 %v3544, %v3554
        %v3581 = vadd.f32 %v3545, %v3554
        %v3582 = vadd.f32 %v3546, %v3554
        %v3583 = vadd.f32 %v3547, %v3554
        %v3584 = vadd.f32 %v3548, %v3554
        %v3585 = vadd.f32 %v3549, %v3554
        %v3586 = vadd.f32 %v3550, %v3554
        %v3587 = vpack.c.bf16 %v3556, %v3555
        %v3588 = vpack.c.bf16 %v3558, %v3557
        %v3589 = vpack.c.bf16 %v3560, %v3559
        %v3590 = vpack.c.bf16 %v3562, %v3561
        %v3591 = vpack.c.bf16 %v3564, %v3563
        %v3592 = vpack.c.bf16 %v3566, %v3565
        %v3593 = vpack.c.bf16 %v3568, %v3567
        %v3594 = vpack.c.bf16 %v3570, %v3569
        %v3595 = vpack.c.bf16 %v3572, %v3571
        %v3596 = vpack.c.bf16 %v3574, %v3573
        %v3597 = vpack.c.bf16 %v3576, %v3575
        %v3598 = vpack.c.bf16 %v3578, %v3577
        %v3599 = vpack.c.bf16 %v3580, %v3579
        %v3600 = vpack.c.bf16 %v3582, %v3581
        %v3601 = vpack.c.bf16 %v3584, %v3583
        %v3602 = vpack.c.bf16 %v3586, %v3585
        %v3619 = vunpack.c.l.b16 %v3587
        %v3620 = vunpack.c.h.b16 %v3587
        %v3621 = vunpack.c.l.b16 %v3588
        %v3622 = vunpack.c.h.b16 %v3588
        %v3623 = vunpack.c.l.b16 %v3589
        %v3624 = vunpack.c.h.b16 %v3589
        %v3625 = vunpack.c.l.b16 %v3590
        %v3626 = vunpack.c.h.b16 %v3590
        %v3627 = vunpack.c.l.b16 %v3591
        %v3628 = vunpack.c.h.b16 %v3591
        %v3629 = vunpack.c.l.b16 %v3592
        %v3630 = vunpack.c.h.b16 %v3592
        %v3631 = vunpack.c.l.b16 %v3593
        %v3632 = vunpack.c.h.b16 %v3593
        %v3633 = vunpack.c.l.b16 %v3594
        %v3634 = vunpack.c.h.b16 %v3594
        %v3635 = vunpack.c.l.b16 %v3595
        %v3636 = vunpack.c.h.b16 %v3595
        %v3637 = vunpack.c.l.b16 %v3596
        %v3638 = vunpack.c.h.b16 %v3596
        %v3639 = vunpack.c.l.b16 %v3597
        %v3640 = vunpack.c.h.b16 %v3597
        %v3641 = vunpack.c.l.b16 %v3598
        %v3642 = vunpack.c.h.b16 %v3598
        %v3643 = vunpack.c.l.b16 %v3599
        %v3644 = vunpack.c.h.b16 %v3599
        %v3645 = vunpack.c.l.b16 %v3600
        %v3646 = vunpack.c.h.b16 %v3600
        %v3647 = vunpack.c.l.b16 %v3601
        %v3648 = vunpack.c.h.b16 %v3601
        %v3649 = vunpack.c.l.b16 %v3602
        %v3650 = vunpack.c.h.b16 %v3602
        %v3651 = vpack.c.b16 %v3619, %v3619
        %v3652 = vpack.c.b16 %v3620, %v3620
        %v3653 = vpack.c.b16 %v3621, %v3621
        %v3654 = vpack.c.b16 %v3622, %v3622
        %v3655 = vpack.c.b16 %v3623, %v3623
        %v3656 = vpack.c.b16 %v3624, %v3624
        %v3657 = vpack.c.b16 %v3625, %v3625
        %v3658 = vpack.c.b16 %v3626, %v3626
        %v3659 = vpack.c.b16 %v3627, %v3627
        %v3660 = vpack.c.b16 %v3628, %v3628
        %v3661 = vpack.c.b16 %v3629, %v3629
        %v3662 = vpack.c.b16 %v3630, %v3630
        %v3663 = vpack.c.b16 %v3631, %v3631
        %v3664 = vpack.c.b16 %v3632, %v3632
        %v3665 = vpack.c.b16 %v3633, %v3633
        %v3666 = vpack.c.b16 %v3634, %v3634
        %v3667 = vpack.c.b16 %v3635, %v3635
        %v3668 = vpack.c.b16 %v3636, %v3636
        %v3669 = vpack.c.b16 %v3637, %v3637
        %v3670 = vpack.c.b16 %v3638, %v3638
        %v3671 = vpack.c.b16 %v3639, %v3639
        %v3672 = vpack.c.b16 %v3640, %v3640
        %v3673 = vpack.c.b16 %v3641, %v3641
        %v3674 = vpack.c.b16 %v3642, %v3642
        %v3675 = vpack.c.b16 %v3643, %v3643
        %v3676 = vpack.c.b16 %v3644, %v3644
        %v3677 = vpack.c.b16 %v3645, %v3645
        %v3678 = vpack.c.b16 %v3646, %v3646
        %v3679 = vpack.c.b16 %v3647, %v3647
        %v3680 = vpack.c.b16 %v3648, %v3648
        %v3681 = vpack.c.b16 %v3649, %v3649
        %v3682 = vpack.c.b16 %v3650, %v3650
        %3715 = vst [vmem:[%s389] sm:$0xf] %v3651
        %3716 = vst [vmem:[%s389 + $0x4] sm:$0xf] %v3652
        %3717 = vst [vmem:[%s389 + $0x8] sm:$0xf] %v3653
        %3718 = vst [vmem:[%s389 + $0xc] sm:$0xf] %v3654
        %3719 = vst [vmem:[%s389 + $0x10] sm:$0xf] %v3655
        %3720 = vst [vmem:[%s389 + $0x14] sm:$0xf] %v3656
        %3721 = vst [vmem:[%s389 + $0x18] sm:$0xf] %v3657
        %3722 = vst [vmem:[%s389 + $0x1c] sm:$0xf] %v3658
        %3723 = vst [vmem:[%s389 + $0x20] sm:$0xf] %v3659
        %3724 = vst [vmem:[%s389 + $0x24] sm:$0xf] %v3660
        %3725 = vst [vmem:[%s389 + $0x28] sm:$0xf] %v3661
        %3726 = vst [vmem:[%s389 + $0x2c] sm:$0xf] %v3662
        %3727 = vst [vmem:[%s389 + $0x30] sm:$0xf] %v3663
        %3728 = vst [vmem:[%s389 + $0x34] sm:$0xf] %v3664
        %3729 = vst [vmem:[%s389 + $0x38] sm:$0xf] %v3665
        %3730 = vst [vmem:[%s389 + $0x3c] sm:$0xf] %v3666
        %3731 = vst [vmem:[%s389 + $0x40] sm:$0xf] %v3667
        %3732 = vst [vmem:[%s389 + $0x44] sm:$0xf] %v3668
        %3733 = vst [vmem:[%s389 + $0x48] sm:$0xf] %v3669
        %3734 = vst [vmem:[%s389 + $0x4c] sm:$0xf] %v3670
        %3735 = vst [vmem:[%s389 + $0x50] sm:$0xf] %v3671
        %3736 = vst [vmem:[%s389 + $0x54] sm:$0xf] %v3672
        %3737 = vst [vmem:[%s389 + $0x58] sm:$0xf] %v3673
        %3738 = vst [vmem:[%s389 + $0x5c] sm:$0xf] %v3674
        %3739 = vst [vmem:[%s389 + $0x60] sm:$0xf] %v3675
        %3740 = vst [vmem:[%s389 + $0x64] sm:$0xf] %v3676
        %3741 = vst [vmem:[%s389 + $0x68] sm:$0xf] %v3677
        %3742 = vst [vmem:[%s389 + $0x6c] sm:$0xf] %v3678
        %3743 = vst [vmem:[%s389 + $0x70] sm:$0xf] %v3679
        %3744 = vst [vmem:[%s389 + $0x74] sm:$0xf] %v3680
        %3745 = vst [vmem:[%s389 + $0x78] sm:$0xf] %v3681
        %3746 = vst [vmem:[%s389 + $0x7c] sm:$0xf] %v3682
        %s3747 = sand.u32 %s152, 1
        %s3748 = scalar_lea.sflag [#allocation4], %s3747
        %s3749 = sand.u32 %s152, 1
        %s3750 = smul.addr %s3749, 128
        %s3751 = scalar_lea.vmem [#allocation11], %s3750
        %s3752 = sand.u32 %s34, 1
        %s3753 = scalar_lea.sflag [#allocation13], %s3752
        %s3754 = sand.u32 %s178, 1
        %s3755 = smul.addr %s3754, 128
        %s3756 = scalar_lea.vmem [#allocation12], %s3755
        %s3757 = sand.u32 %s34, 1
        %s3758 = scalar_lea.sflag [#allocation13], %s3757
        %s3759 = sand.u32 %s204, 1
        %s3760 = smul.addr %s3759, 256
        %s3761 = scalar_lea.vmem [#allocation14], %s3760
        %s3762 = sand.u32 %s230, 1
        %s3763 = scalar_lea.sflag [#allocation16], %s3762
        %s3764 = sand.u32 %s230, 1
        %s3765 = smul.addr %s3764, 256
        %s3766 = scalar_lea.vmem [#allocation15], %s3765
        // Predicated region
        $region61: #{tpu_custom_call.1} parent=39 // pred_check
          %p3767 = pneg %p162
        $region62: #{tpu_custom_call.1} parent=39 // pred_check_branch
          %3769 = sbr.rel (%p3767) target = $region64
        $region63: #{tpu_custom_call.1} parent=39 // pred_region
          %s3770 = smul.u32 32, %s34
          %s3772 = ssub.s32 2048, 2048
          %3773 = vsyncadd %s3748, %s3772
          %s3774 = smul.addr %s3770, 64
          %s3775 = scalar_lea.hbm %s5, %s3774
          %s3776 = sshll.u32 %s3751, 4
          %s3777 = int_to_ptr.vmem [resolvable:$true] %s3776
          %3782 = dma.vmem_to_hbm [thread:$0]  %s3777, 2048, %s3775, %s3748, 64, 64, 4
        $region64: #{tpu_custom_call.1} parent=39 // pred_fallthru
          _
        // Predicated region
        $region65: #{tpu_custom_call.1} parent=39 // pred_check
          %p3783 = pneg %p188
        $region66: #{tpu_custom_call.1} parent=39 // pred_check_branch
          %3785 = sbr.rel (%p3783) target = $region68
        $region67: #{tpu_custom_call.1} parent=39 // pred_region
          %s3786 = smul.u32 32, %s34
          %s3788 = ssub.s32 2048, 2048
          %3789 = vsyncadd %s3753, %s3788
          %s3790 = smul.addr %s3786, 64
          %s3791 = scalar_lea.hbm %s6, %s3790
          %s3792 = sshll.u32 %s3756, 4
          %s3793 = int_to_ptr.vmem [resolvable:$true] %s3792
          %3798 = dma.vmem_to_hbm [thread:$0]  %s3793, 2048, %s3791, %s3753, 64, 64, 4
        $region68: #{tpu_custom_call.1} parent=39 // pred_fallthru
          _
        // Predicated region
        $region69: #{tpu_custom_call.1} parent=39 // pred_check
          %p3799 = pneg %p214
        $region70: #{tpu_custom_call.1} parent=39 // pred_check_branch
          %3801 = sbr.rel (%p3799) target = $region72
        $region71: #{tpu_custom_call.1} parent=39 // pred_region
          %s3802 = smul.u32 32, %s34
          %s3804 = ssub.s32 4096, 4096
          %3805 = vsyncadd %s3758, %s3804
          %s3806 = smul.addr %s3802, 2
          %s3807 = smul.addr %s3806, 64
          %s3808 = scalar_lea.hbm %s7, %s3807
          %s3809 = sshll.u32 %s3761, 4
          %s3810 = int_to_ptr.vmem [resolvable:$true] %s3809
          %3815 = dma.vmem_to_hbm [thread:$0]  %s3810, 4096, %s3808, %s3758, 128, 128, 8
        $region72: #{tpu_custom_call.1} parent=39 // pred_fallthru
          _
        // Predicated region
        $region73: #{tpu_custom_call.1} parent=39 // pred_check
          %p3816 = pneg %p240
        $region74: #{tpu_custom_call.1} parent=39 // pred_check_branch
          %3818 = sbr.rel (%p3816) target = $region76
        $region75: #{tpu_custom_call.1} parent=39 // pred_region
          %s3819 = smul.u32 32, %s34
          %s3821 = ssub.s32 4096, 4096
          %3822 = vsyncadd %s3763, %s3821
          %s3823 = smul.addr %s3819, 2
          %s3824 = smul.addr %s3823, 64
          %s3825 = scalar_lea.hbm %s8, %s3824
          %s3826 = sshll.u32 %s3766, 4
          %s3827 = int_to_ptr.vmem [resolvable:$true] %s3826
          %3832 = dma.vmem_to_hbm [thread:$0]  %s3827, 4096, %s3825, %s3763, 128, 128, 8
        $region76: #{tpu_custom_call.1} parent=39 // pred_fallthru
          _
      $region40: #{tpu_custom_call.1} parent=5 // pred_fallthru
        _
      %p3833 = scmp.le.s32.totalorder 2, %s29
      // Predicated region
      $region77: #{tpu_custom_call.1} parent=5 // pred_check
        %p3834 = pneg %p3833
      $region78: #{tpu_custom_call.1} parent=5 // pred_check_branch
        %3836 = sbr.rel (%p3834) target = $region80
      $region79: #{tpu_custom_call.1} parent=5 // pred_region
        %s3837 = ssub.s32 %s29, 2
        // Predicated region
        $region81: #{tpu_custom_call.1} parent=79 // pred_check
          %p3838 = pneg %p168
        $region82: #{tpu_custom_call.1} parent=79 // pred_check_branch
          %3840 = sbr.rel (%p3838) target = $region84
        $region83: #{tpu_custom_call.1} parent=79 // pred_region
          %s3841 = sand.u32 %s153, 1
          %s3842 = scalar_lea.sflag [#allocation4], %s3841
          %s3843 = sand.u32 %s153, 1
          %s3844 = smul.addr %s3843, 128
          %s3845 = scalar_lea.vmem [#allocation11], %s3844
          %3846 = dma.done %s3842, 2048
        $region84: #{tpu_custom_call.1} parent=79 // pred_fallthru
          _
        // Predicated region
        $region85: #{tpu_custom_call.1} parent=79 // pred_check
          %p3847 = pneg %p194
        $region86: #{tpu_custom_call.1} parent=79 // pred_check_branch
          %3849 = sbr.rel (%p3847) target = $region88
        $region87: #{tpu_custom_call.1} parent=79 // pred_region
          %s3850 = sand.u32 %s35, 1
          %s3851 = scalar_lea.sflag [#allocation13], %s3850
          %s3852 = sand.u32 %s179, 1
          %s3853 = smul.addr %s3852, 128
          %s3854 = scalar_lea.vmem [#allocation12], %s3853
          %3855 = dma.done %s3851, 2048
        $region88: #{tpu_custom_call.1} parent=79 // pred_fallthru
          _
        // Predicated region
        $region89: #{tpu_custom_call.1} parent=79 // pred_check
          %p3856 = pneg %p220
        $region90: #{tpu_custom_call.1} parent=79 // pred_check_branch
          %3858 = sbr.rel (%p3856) target = $region92
        $region91: #{tpu_custom_call.1} parent=79 // pred_region
          %s3859 = sand.u32 %s35, 1
          %s3860 = scalar_lea.sflag [#allocation13], %s3859
          %s3861 = sand.u32 %s205, 1
          %s3862 = smul.addr %s3861, 256
          %s3863 = scalar_lea.vmem [#allocation14], %s3862
          %3864 = dma.done %s3860, 4096
        $region92: #{tpu_custom_call.1} parent=79 // pred_fallthru
          _
        // Predicated region
        $region93: #{tpu_custom_call.1} parent=79 // pred_check
          %p3865 = pneg %p246
        $region94: #{tpu_custom_call.1} parent=79 // pred_check_branch
          %3867 = sbr.rel (%p3865) target = $region96
        $region95: #{tpu_custom_call.1} parent=79 // pred_region
          %s3868 = sand.u32 %s231, 1
          %s3869 = scalar_lea.sflag [#allocation16], %s3868
          %s3870 = sand.u32 %s231, 1
          %s3871 = smul.addr %s3870, 256
          %s3872 = scalar_lea.vmem [#allocation15], %s3871
          %3873 = dma.done %s3869, 4096
        $region96: #{tpu_custom_call.1} parent=79 // pred_fallthru
          _
      $region80: #{tpu_custom_call.1} parent=5 // pred_fallthru
        _
    $region6: #{tpu_custom_call.1} parent=1 // loop_footer
      %s33 = sadd.s32 1, %s29
    $region7: #{tpu_custom_call.1} parent=1 // loop_footer_branch
      %28 = sbr.rel target = $region3
    $region8: #{tpu_custom_call.1} parent=1 // loop_exit
      _
    %3874 = vsyncpa [#allocation3], 1
    %s3875 = scalar_lea.sflag [#allocation3], 1
    %3876 = vsyncpa %s3875, 1
    %3877 = vsyncpa [#allocation6], 1
    %3878 = vsyncpa [#allocation9], 1
    %3879 = vsyncpa [#allocation4], 1
    %s3880 = scalar_lea.sflag [#allocation4], 1
    %3881 = vsyncpa %s3880, 1
    %3882 = vsyncpa [#allocation13], 1
    %s3883 = scalar_lea.sflag [#allocation13], 1
    %3884 = vsyncpa %s3883, 1
    %3885 = vsyncpa [#allocation16], 1
    %s3886 = scalar_lea.sflag [#allocation16], 1
    %3887 = vsyncpa %s3886, 1

// kernel: tpu_custom_call.1
$region0: #{tpu_custom_call.1}
  #allocation0 [shape = 'u32[]', space=smem, size = 0x4, offset = 0x4, fixed_abs, tag = 'smem constant byte address 0x4 - core index']
  #allocation1 [shape = 'u32[144,128]{1,0:T(1,128)}', space=vmem, size = 0x12000, scoped, tag = 'internal scratch']
  %s0 = inlined_call_operand.hbm [shape: f32[512,128], index: 0, kind: input, shape index: {}]
  %s1 = inlined_call_operand.hbm [shape: f32[2,128], index: 1, kind: input, shape index: {}]
  %s2 = inlined_call_operand.hbm [shape: bf16[128,640], index: 2, kind: input, shape index: {}]
  %s3 = inlined_call_operand.hbm [shape: f32[1,640], index: 3, kind: input, shape index: {}]
  %s4 = inlined_call_operand.hbm [shape: f32[4,128], index: 4, kind: input, shape index: {}]
  %s5 = inlined_call_operand.hbm [shape: bf16[512,128], index: 5, kind: output, shape index: {0}]
  %s6 = inlined_call_operand.hbm [shape: bf16[512,128], index: 6, kind: output, shape index: {1}]
  %s7 = inlined_call_operand.hbm [shape: bf16[512,256], index: 7, kind: output, shape index: {2}]
  %s8 = inlined_call_operand.hbm [shape: bf16[512,256], index: 8, kind: output, shape index: {3}]
  %9 = xla_tuple %s5, %s6, %s7, %s8
  %s10 = sld [smem:[#allocation0]]
  $region97: #{tpu_custom_call.1} parent=0
    _
  %s12 = ssub.s32 1, %s10
  %s13 = scalar_select 0, %s12, %s10
  $region1: #{tpu_custom_call.1} parent=0
    #allocation2 [shape = 'u8[262144]{0}', space=vmem, size = 0x40000, scoped, tag = 'input window, operand 0']
    #allocation3 [shape = 's32[2]{0}', space=sflag, size = 0x8, scoped, tag = 'scoped memory for tpu_custom_call.1']
    #allocation4 [shape = 's32[2]{0}', space=sflag, size = 0x8, scoped, tag = 'scoped memory for tpu_custom_call.1']
    #allocation5 [shape = 'u8[1024]{0}', space=vmem, size = 0x400, scoped, tag = 'input window, operand 1, single buffered']
    #allocation6 [shape = 's32[1]{0}', space=sflag, size = 0x4, scoped, tag = 'scoped memory for tpu_custom_call.1']
    #allocation7 [shape = 'u8[163840]{0}', space=vmem, size = 0x28000, scoped, tag = 'input window, operand 2, single buffered']
    #allocation8 [shape = 'u8[2560]{0}', space=vmem, size = 0xc00, scoped, tag = 'input window, operand 3, single buffered']
    #allocation9 [shape = 's32[1]{0}', space=sflag, size = 0x4, scoped, tag = 'scoped memory for tpu_custom_call.1']
    #allocation10 [shape = 'u8[2048]{0}', space=vmem, size = 0x800, scoped, tag = 'input window, operand 4, single buffered']
    #allocation11 [shape = 'u8[131072]{0}', space=vmem, size = 0x20000, scoped, tag = 'output window, operand 0']
    #allocation12 [shape = 'u8[131072]{0}', space=vmem, size = 0x20000, scoped, tag = 'output window, operand 1']
    #allocation13 [shape = 's32[2]{0}', space=sflag, size = 0x8, scoped, tag = 'scoped memory for tpu_custom_call.1']
    #allocation14 [shape = 'u8[262144]{0}', space=vmem, size = 0x40000, scoped, tag = 'output window, operand 2']
    #allocation15 [shape = 'u8[262144]{0}', space=vmem, size = 0x40000, scoped, tag = 'output window, operand 3']
    #allocation16 [shape = 's32[2]{0}', space=sflag, size = 0x8, scoped, tag = 'scoped memory for tpu_custom_call.1']
    %14 = vsyncpa [#allocation3], 0
    %s15 = scalar_lea.sflag [#allocation3], 1
    %16 = vsyncpa %s15, 0
    %17 = vsyncpa [#allocation6], 0
    %18 = vsyncpa [#allocation9], 0
    %19 = vsyncpa [#allocation4], 0
    %s20 = scalar_lea.sflag [#allocation4], 1
    %21 = vsyncpa %s20, 0
    %22 = vsyncpa [#allocation13], 0
    %s23 = scalar_lea.sflag [#allocation13], 1
    %24 = vsyncpa %s23, 0
    %25 = vsyncpa [#allocation16], 0
    %s26 = scalar_lea.sflag [#allocation16], 1
    %27 = vsyncpa %s26, 0
    loop: start=0, step=1, limit=4
    $region2: #{tpu_custom_call.1} parent=1 // loop_pre_header
      _
    $region3: #{tpu_custom_call.1} parent=1 // loop_header
      %s29 = sphi 0, %s33
      %p30 = scmp.ge.s32.totalorder %s29, 4
      %s39 = sphi 0, %s41
      %s42 = sphi 0, %s39
      %s43 = sphi 0, %s42
      %s59 = sphi 0, %s43
      %s63 = sphi 0, %s63
      %s65 = sphi 0, %s63
      %s66 = sphi 0, %s65
      %s80 = sphi 0, %s66
      %s84 = sphi 0, %s84
      %s86 = sphi 0, %s84
      %s87 = sphi 0, %s86
      %s101 = sphi 0, %s87
      %s105 = sphi 0, %s105
      %s107 = sphi 0, %s105
      %s108 = sphi 0, %s107
      %s122 = sphi 0, %s108
      %s126 = sphi 0, %s126
      %s128 = sphi 0, %s126
      %s129 = sphi 0, %s128
      %s143 = sphi 0, %s129
      %s149 = sphi 0, %s151
      %s152 = sphi 0, %s149
      %s153 = sphi 0, %s152
      %s169 = sphi 0, %s153
      %s175 = sphi 0, %s177
      %s178 = sphi 0, %s175
      %s179 = sphi 0, %s178
      %s195 = sphi 0, %s179
      %s201 = sphi 0, %s203
      %s204 = sphi 0, %s201
      %s205 = sphi 0, %s204
      %s221 = sphi 0, %s205
      %s227 = sphi 0, %s229
      %s230 = sphi 0, %s227
      %s231 = sphi 0, %s230
      %s247 = sphi 0, %s231
    $region4: #{tpu_custom_call.1} parent=1 // loop_header_branch
      %32 = sbr.rel (%p30) target = $region8
    $region5: #{tpu_custom_call.1} parent=1 // loop_body
      %s34 = ssub.s32 %s29, 1
      %s35 = ssub.s32 %s29, 2
      %s36 = sadd.s32 %s29, 1
      %s37 = ssub.s32 %s29, %s36
      %p38 = scmp.eq.s32.totalorder %s37, 0
      %s40 = sadd.s32 %s39, 1
      %s41 = scalar_select %p38, %s39, %s40
      %p44 = pneg %p38
      %p45 = scmp.eq.s32.totalorder %s29, 1
      %p46 = por %p44, %p45
      %p47 = scmp.ne.s32.totalorder %s39, %s42
      %p48 = scmp.eq.s32.totalorder %s29, 0
      %p49 = por %p47, %p48
      %p50 = scmp.ne.s32.totalorder %s39, %s42
      %p51 = scmp.eq.s32.totalorder %s34, 1
      %p52 = por %p50, %p51
      %p53 = scmp.ne.s32.totalorder %s42, %s43
      %p54 = scmp.eq.s32.totalorder %s34, 0
      %p55 = por %p53, %p54
      %p56 = scmp.ne.s32.totalorder %s42, %s43
      %p57 = scmp.eq.s32.totalorder %s35, 1
      %p58 = por %p56, %p57
      %p60 = scmp.ne.s32.totalorder %s43, %s59
      %p61 = scmp.eq.s32.totalorder %s35, 0
      %p62 = por %p60, %p61
      %s64 = sadd.s32 %s63, 1
      %p67 = scmp.eq.s32.totalorder %s29, 1
      %p68 = scmp.ne.s32.totalorder %s63, %s65
      %p69 = scmp.eq.s32.totalorder %s29, 0
      %p70 = por %p68, %p69
      %p71 = scmp.ne.s32.totalorder %s63, %s65
      %p72 = scmp.eq.s32.totalorder %s34, 1
      %p73 = por %p71, %p72
      %p74 = scmp.ne.s32.totalorder %s65, %s66
      %p75 = scmp.eq.s32.totalorder %s34, 0
      %p76 = por %p74, %p75
      %p77 = scmp.ne.s32.totalorder %s65, %s66
      %p78 = scmp.eq.s32.totalorder %s35, 1
      %p79 = por %p77, %p78
      %p81 = scmp.ne.s32.totalorder %s66, %s80
      %p82 = scmp.eq.s32.totalorder %s35, 0
      %p83 = por %p81, %p82
      %s85 = sadd.s32 %s84, 1
      %p88 = scmp.eq.s32.totalorder %s29, 1
      %p89 = scmp.ne.s32.totalorder %s84, %s86
      %p90 = scmp.eq.s32.totalorder %s29, 0
      %p91 = por %p89, %p90
      %p92 = scmp.ne.s32.totalorder %s84, %s86
      %p93 = scmp.eq.s32.totalorder %s34, 1
      %p94 = por %p92, %p93
      %p95 = scmp.ne.s32.totalorder %s86, %s87
      %p96 = scmp.eq.s32.totalorder %s34, 0
      %p97 = por %p95, %p96
      %p98 = scmp.ne.s32.totalorder %s86, %s87
      %p99 = scmp.eq.s32.totalorder %s35, 1
      %p100 = por %p98, %p99
      %p102 = scmp.ne.s32.totalorder %s87, %s101
      %p103 = scmp.eq.s32.totalorder %s35, 0
      %p104 = por %p102, %p103
      %s106 = sadd.s32 %s105, 1
      %p109 = scmp.eq.s32.totalorder %s29, 1
      %p110 = scmp.ne.s32.totalorder %s105, %s107
      %p111 = scmp.eq.s32.totalorder %s29, 0
      %p112 = por %p110, %p111
      %p113 = scmp.ne.s32.totalorder %s105, %s107
      %p114 = scmp.eq.s32.totalorder %s34, 1
      %p115 = por %p113, %p114
      %p116 = scmp.ne.s32.totalorder %s107, %s108
      %p117 = scmp.eq.s32.totalorder %s34, 0
      %p118 = por %p116, %p117
      %p119 = scmp.ne.s32.totalorder %s107, %s108
      %p120 = scmp.eq.s32.totalorder %s35, 1
      %p121 = por %p119, %p120
      %p123 = scmp.ne.s32.totalorder %s108, %s122
      %p124 = scmp.eq.s32.totalorder %s35, 0
      %p125 = por %p123, %p124
      %s127 = sadd.s32 %s126, 1
      %p130 = scmp.eq.s32.totalorder %s29, 1
      %p131 = scmp.ne.s32.totalorder %s126, %s128
      %p132 = scmp.eq.s32.totalorder %s29, 0
      %p133 = por %p131, %p132
      %p134 = scmp.ne.s32.totalorder %s126, %s128
      %p135 = scmp.eq.s32.totalorder %s34, 1
      %p136 = por %p134, %p135
      %p137 = scmp.ne.s32.totalorder %s128, %s129
      %p138 = scmp.eq.s32.totalorder %s34, 0
      %p139 = por %p137, %p138
      %p140 = scmp.ne.s32.totalorder %s128, %s129
      %p141 = scmp.eq.s32.totalorder %s35, 1
      %p142 = por %p140, %p141
      %p144 = scmp.ne.s32.totalorder %s129, %s143
      %p145 = scmp.eq.s32.totalorder %s35, 0
      %p146 = por %p144, %p145
      %s147 = ssub.s32 %s29, %s36
      %p148 = scmp.eq.s32.totalorder %s147, 0
      %s150 = sadd.s32 %s149, 1
      %s151 = scalar_select %p148, %s149, %s150
      %p154 = pneg %p148
      %p155 = scmp.eq.s32.totalorder %s29, 1
      %p156 = por %p154, %p155
      %p157 = scmp.ne.s32.totalorder %s149, %s152
      %p158 = scmp.eq.s32.totalorder %s29, 0
      %p159 = por %p157, %p158
      %p160 = scmp.ne.s32.totalorder %s149, %s152
      %p161 = scmp.eq.s32.totalorder %s34, 1
      %p162 = por %p160, %p161
      %p163 = scmp.ne.s32.totalorder %s152, %s153
      %p164 = scmp.eq.s32.totalorder %s34, 0
      %p165 = por %p163, %p164
      %p166 = scmp.ne.s32.totalorder %s152, %s153
      %p167 = scmp.eq.s32.totalorder %s35, 1
      %p168 = por %p166, %p167
      %p170 = scmp.ne.s32.totalorder %s153, %s169
      %p171 = scmp.eq.s32.totalorder %s35, 0
      %p172 = por %p170, %p171
      %s173 = ssub.s32 %s29, %s36
      %p174 = scmp.eq.s32.totalorder %s173, 0
      %s176 = sadd.s32 %s175, 1
      %s177 = scalar_select %p174, %s175, %s176
      %p180 = pneg %p174
      %p181 = scmp.eq.s32.totalorder %s29, 1
      %p182 = por %p180, %p181
      %p183 = scmp.ne.s32.totalorder %s175, %s178
      %p184 = scmp.eq.s32.totalorder %s29, 0
      %p185 = por %p183, %p184
      %p186 = scmp.ne.s32.totalorder %s175, %s178
      %p187 = scmp.eq.s32.totalorder %s34, 1
      %p188 = por %p186, %p187
      %p189 = scmp.ne.s32.totalorder %s178, %s179
      %p190 = scmp.eq.s32.totalorder %s34, 0
      %p191 = por %p189, %p190
      %p192 = scmp.ne.s32.totalorder %s178, %s179
      %p193 = scmp.eq.s32.totalorder %s35, 1
      %p194 = por %p192, %p193
      %p196 = scmp.ne.s32.totalorder %s179, %s195
      %p197 = scmp.eq.s32.totalorder %s35, 0
      %p198 = por %p196, %p197
      %s199 = ssub.s32 %s29, %s36
      %p200 = scmp.eq.s32.totalorder %s199, 0
      %s202 = sadd.s32 %s201, 1
      %s203 = scalar_select %p200, %s201, %s202
      %p206 = pneg %p200
      %p207 = scmp.eq.s32.totalorder %s29, 1
      %p208 = por %p206, %p207
      %p209 = scmp.ne.s32.totalorder %s201, %s204
      %p210 = scmp.eq.s32.totalorder %s29, 0
      %p211 = por %p209, %p210
      %p212 = scmp.ne.s32.totalorder %s201, %s204
      %p213 = scmp.eq.s32.totalorder %s34, 1
      %p214 = por %p212, %p213
      %p215 = scmp.ne.s32.totalorder %s204, %s205
      %p216 = scmp.eq.s32.totalorder %s34, 0
      %p217 = por %p215, %p216
      %p218 = scmp.ne.s32.totalorder %s204, %s205
      %p219 = scmp.eq.s32.totalorder %s35, 1
      %p220 = por %p218, %p219
      %p222 = scmp.ne.s32.totalorder %s205, %s221
      %p223 = scmp.eq.s32.totalorder %s35, 0
      %p224 = por %p222, %p223
      %s225 = ssub.s32 %s29, %s36
      %p226 = scmp.eq.s32.totalorder %s225, 0
      %s228 = sadd.s32 %s227, 1
      %s229 = scalar_select %p226, %s227, %s228
      %p232 = pneg %p226
      %p233 = scmp.eq.s32.totalorder %s29, 1
      %p234 = por %p232, %p233
      %p235 = scmp.ne.s32.totalorder %s227, %s230
      %p236 = scmp.eq.s32.totalorder %s29, 0
      %p237 = por %p235, %p236
      %p238 = scmp.ne.s32.totalorder %s227, %s230
      %p239 = scmp.eq.s32.totalorder %s34, 1
      %p240 = por %p238, %p239
      %p241 = scmp.ne.s32.totalorder %s230, %s231
      %p242 = scmp.eq.s32.totalorder %s34, 0
      %p243 = por %p241, %p242
      %p244 = scmp.ne.s32.totalorder %s230, %s231
      %p245 = scmp.eq.s32.totalorder %s35, 1
      %p246 = por %p244, %p245
      %p248 = scmp.ne.s32.totalorder %s231, %s247
      %p249 = scmp.eq.s32.totalorder %s35, 0
      %p250 = por %p248, %p249
      %p251 = scmp.le.s32.totalorder 1, %s29
      %p252 = scmp.lt.s32.totalorder %s29, 3
      %p253 = pnand %p251, %p252
      %p254 = pneg %p253
      // Predicated region
      $region9: #{tpu_custom_call.1} parent=5 // pred_check
        _
      $region10: #{tpu_custom_call.1} parent=5 // pred_check_branch
        %256 = sbr.rel (%p253) target = $region12
      $region11: #{tpu_custom_call.1} parent=5 // pred_region
        %s257 = ssub.s32 %s29, 1
        // Predicated region
        $region13: #{tpu_custom_call.1} parent=11 // pred_check
          %p258 = pneg %p76
        $region14: #{tpu_custom_call.1} parent=11 // pred_check_branch
          %260 = sbr.rel (%p258) target = $region16
        $region15: #{tpu_custom_call.1} parent=11 // pred_region
          %s262 = ssub.s32 32, 32
          %263 = vsyncadd [#allocation6], %s262
          %s265 = sshll.u32 [#allocation5], 4
          %s266 = int_to_ptr.vmem [resolvable:$true] %s265
          %268 = dma.hbm_to_vmem [thread:$0]  %s1, 32, %s266, [#allocation6]
        $region16: #{tpu_custom_call.1} parent=11 // pred_fallthru
          _
        // Predicated region
        $region17: #{tpu_custom_call.1} parent=11 // pred_check
          %p269 = pneg %p97
        $region18: #{tpu_custom_call.1} parent=11 // pred_check_branch
          %271 = sbr.rel (%p269) target = $region20
        $region19: #{tpu_custom_call.1} parent=11 // pred_region
          %s273 = ssub.s32 5120, 5120
          %274 = vsyncadd [#allocation6], %s273
          %s275 = sshll.u32 [#allocation7], 4
          %s276 = int_to_ptr.vmem [resolvable:$true] %s275
          %281 = dma.hbm_to_vmem [thread:$0]  %s2, 5120, %s276, [#allocation6], 320, 320, 20
        $region20: #{tpu_custom_call.1} parent=11 // pred_fallthru
          _
        // Predicated region
        $region21: #{tpu_custom_call.1} parent=11 // pred_check
          %p282 = pneg %p118
        $region22: #{tpu_custom_call.1} parent=11 // pred_check_branch
          %284 = sbr.rel (%p282) target = $region24
        $region23: #{tpu_custom_call.1} parent=11 // pred_region
          %s286 = ssub.s32 80, 80
          %287 = vsyncadd [#allocation9], %s286
          %s289 = sshll.u32 [#allocation8], 4
          %s290 = int_to_ptr.vmem [resolvable:$true] %s289
          %292 = dma.hbm_to_vmem [thread:$0]  %s3, 80, %s290, [#allocation9]
        $region24: #{tpu_custom_call.1} parent=11 // pred_fallthru
          _
        // Predicated region
        $region25: #{tpu_custom_call.1} parent=11 // pred_check
          %p293 = pneg %p139
        $region26: #{tpu_custom_call.1} parent=11 // pred_check_branch
          %295 = sbr.rel (%p293) target = $region28
        $region27: #{tpu_custom_call.1} parent=11 // pred_region
          %s297 = ssub.s32 64, 64
          %298 = vsyncadd [#allocation9], %s297
          %s300 = sshll.u32 [#allocation10], 4
          %s301 = int_to_ptr.vmem [resolvable:$true] %s300
          %303 = dma.hbm_to_vmem [thread:$0]  %s4, 64, %s301, [#allocation9]
        $region28: #{tpu_custom_call.1} parent=11 // pred_fallthru
          _
      $region12: #{tpu_custom_call.1} parent=5 // pred_fallthru
        _
      %p304 = scmp.lt.s32.totalorder %s29, 2
      // Predicated region
      $region29: #{tpu_custom_call.1} parent=5 // pred_check
        %p305 = pneg %p304
      $region30: #{tpu_custom_call.1} parent=5 // pred_check_branch
        %307 = sbr.rel (%p305) target = $region32
      $region31: #{tpu_custom_call.1} parent=5 // pred_region
        // Predicated region
        $region33: #{tpu_custom_call.1} parent=31 // pred_check
          %p308 = pneg %p49
        $region34: #{tpu_custom_call.1} parent=31 // pred_check_branch
          %310 = sbr.rel (%p308) target = $region36
        $region35: #{tpu_custom_call.1} parent=31 // pred_region
          %s311 = sand.u32 %s39, 1
          %s312 = scalar_lea.sflag [#allocation3], %s311
          %s313 = sand.u32 %s39, 1
          %s314 = smul.addr %s313, 256
          %s315 = scalar_lea.vmem [#allocation2], %s314
          %s316 = smul.u32 32, %s29
          %s318 = ssub.s32 4096, 4096
          %319 = vsyncadd %s312, %s318
          %s320 = smul.addr %s316, 128
          %s321 = scalar_lea.hbm %s0, %s320
          %s322 = sshll.u32 %s315, 4
          %s323 = int_to_ptr.vmem [resolvable:$true] %s322
          %328 = dma.hbm_to_vmem [thread:$0]  %s321, 4096, %s323, %s312, 128, 128, 8
        $region36: #{tpu_custom_call.1} parent=31 // pred_fallthru
          _
      $region32: #{tpu_custom_call.1} parent=5 // pred_fallthru
        _
      %p329 = scmp.le.s32.totalorder 1, %s29
      %p330 = scmp.lt.s32.totalorder %s29, 3
      %p331 = pnand %p329, %p330
      %p332 = pneg %p331
      // Predicated region
      $region37: #{tpu_custom_call.1} parent=5 // pred_check
        _
      $region38: #{tpu_custom_call.1} parent=5 // pred_check_branch
        %334 = sbr.rel (%p331) target = $region40
      $region39: #{tpu_custom_call.1} parent=5 // pred_region
        %s335 = ssub.s32 %s29, 1
        %s336 = sand.u32 %s42, 1
        %s337 = scalar_lea.sflag [#allocation3], %s336
        %s338 = sand.u32 %s42, 1
        %s339 = smul.addr %s338, 256
        %s340 = scalar_lea.vmem [#allocation2], %s339
        // Predicated region
        $region41: #{tpu_custom_call.1} parent=39 // pred_check
          %p341 = pneg %p55
        $region42: #{tpu_custom_call.1} parent=39 // pred_check_branch
          %343 = sbr.rel (%p341) target = $region44
        $region43: #{tpu_custom_call.1} parent=39 // pred_region
          %344 = dma.done %s337, 4096
        $region44: #{tpu_custom_call.1} parent=39 // pred_fallthru
          _
        // Predicated region
        $region45: #{tpu_custom_call.1} parent=39 // pred_check
          %p345 = pneg %p76
        $region46: #{tpu_custom_call.1} parent=39 // pred_check_branch
          %347 = sbr.rel (%p345) target = $region48
        $region47: #{tpu_custom_call.1} parent=39 // pred_region
          %348 = dma.done [#allocation6], 32
        $region48: #{tpu_custom_call.1} parent=39 // pred_fallthru
          _
        // Predicated region
        $region49: #{tpu_custom_call.1} parent=39 // pred_check
          %p349 = pneg %p97
        $region50: #{tpu_custom_call.1} parent=39 // pred_check_branch
          %351 = sbr.rel (%p349) target = $region52
        $region51: #{tpu_custom_call.1} parent=39 // pred_region
          %352 = dma.done [#allocation6], 5120
        $region52: #{tpu_custom_call.1} parent=39 // pred_fallthru
          _
        // Predicated region
        $region53: #{tpu_custom_call.1} parent=39 // pred_check
          %p353 = pneg %p118
        $region54: #{tpu_custom_call.1} parent=39 // pred_check_branch
          %355 = sbr.rel (%p353) target = $region56
        $region55: #{tpu_custom_call.1} parent=39 // pred_region
          %356 = dma.done [#allocation9], 80
        $region56: #{tpu_custom_call.1} parent=39 // pred_fallthru
          _
        // Predicated region
        $region57: #{tpu_custom_call.1} parent=39 // pred_check
          %p357 = pneg %p139
        $region58: #{tpu_custom_call.1} parent=39 // pred_check_branch
          %359 = sbr.rel (%p357) target = $region60
        $region59: #{tpu_custom_call.1} parent=39 // pred_region
          %360 = dma.done [#allocation9], 64
        $region60: #{tpu_custom_call.1} parent=39 // pred_fallthru
          _
        %s361 = sand.u32 %s42, 1
        %s362 = scalar_lea.sflag [#allocation3], %s361
        %s363 = sand.u32 %s42, 1
        %s364 = smul.addr %s363, 256
        %s365 = scalar_lea.vmem [#allocation2], %s364
        %p366 = pneg %p55
        %p367 = pneg %p52
        %p368 = pneg %p76
        %p369 = pneg %p73
        %p370 = pneg %p97
        %p371 = pneg %p94
        %p372 = pneg %p118
        %p373 = pneg %p115
        %p374 = pneg %p139
        %p375 = pneg %p136
        %p376 = pneg %p165
        %p377 = pneg %p162
        %s378 = sand.u32 %s152, 1
        %s379 = scalar_lea.sflag [#allocation4], %s378
        %s380 = sand.u32 %s152, 1
        %s381 = smul.addr %s380, 128
        %s382 = scalar_lea.vmem [#allocation11], %s381
        %p383 = pneg %p191
        %p384 = pneg %p188
        %s385 = sand.u32 %s34, 1
        %s386 = scalar_lea.sflag [#allocation13], %s385
        %s387 = sand.u32 %s178, 1
        %s388 = smul.addr %s387, 128
        %s389 = scalar_lea.vmem [#allocation12], %s388
        %p390 = pneg %p217
        %p391 = pneg %p214
        %s392 = sand.u32 %s34, 1
        %s393 = scalar_lea.sflag [#allocation13], %s392
        %s394 = sand.u32 %s204, 1
        %s395 = smul.addr %s394, 256
        %s396 = scalar_lea.vmem [#allocation14], %s395
        %p397 = pneg %p243
        %p398 = pneg %p240
        %s399 = sand.u32 %s230, 1
        %s400 = scalar_lea.sflag [#allocation16], %s399
        %s401 = sand.u32 %s230, 1
        %s402 = smul.addr %s401, 256
        %s403 = scalar_lea.vmem [#allocation15], %s402
        %s404 = smul.u32 32, %s34
        %s405 = smul.u32 32, %s34
        %s406 = smul.u32 32, %s34
        %s407 = smul.u32 32, %s34
        %s408 = smul.u32 32, %s34
        %v410 = vld [vmem:[%s340] sm:$0xff]
        %v411 = vld [vmem:[%s340 + $0x8] sm:$0xff]
        %v412 = vld [vmem:[%s340 + $0x10] sm:$0xff]
        %v413 = vld [vmem:[%s340 + $0x18] sm:$0xff]
        %v414 = vld [vmem:[%s340 + $0x20] sm:$0xff]
        %v415 = vld [vmem:[%s340 + $0x28] sm:$0xff]
        %v416 = vld [vmem:[%s340 + $0x30] sm:$0xff]
        %v417 = vld [vmem:[%s340 + $0x38] sm:$0xff]
        %v418 = vld [vmem:[%s340 + $0x40] sm:$0xff]
        %v419 = vld [vmem:[%s340 + $0x48] sm:$0xff]
        %v420 = vld [vmem:[%s340 + $0x50] sm:$0xff]
        %v421 = vld [vmem:[%s340 + $0x58] sm:$0xff]
        %v422 = vld [vmem:[%s340 + $0x60] sm:$0xff]
        %v423 = vld [vmem:[%s340 + $0x68] sm:$0xff]
        %v424 = vld [vmem:[%s340 + $0x70] sm:$0xff]
        %v425 = vld [vmem:[%s340 + $0x78] sm:$0xff]
        %v426 = vld [vmem:[%s340 + $0x80] sm:$0xff]
        %v427 = vld [vmem:[%s340 + $0x88] sm:$0xff]
        %v428 = vld [vmem:[%s340 + $0x90] sm:$0xff]
        %v429 = vld [vmem:[%s340 + $0x98] sm:$0xff]
        %v430 = vld [vmem:[%s340 + $0xa0] sm:$0xff]
        %v431 = vld [vmem:[%s340 + $0xa8] sm:$0xff]
        %v432 = vld [vmem:[%s340 + $0xb0] sm:$0xff]
        %v433 = vld [vmem:[%s340 + $0xb8] sm:$0xff]
        %v434 = vld [vmem:[%s340 + $0xc0] sm:$0xff]
        %v435 = vld [vmem:[%s340 + $0xc8] sm:$0xff]
        %v436 = vld [vmem:[%s340 + $0xd0] sm:$0xff]
        %v437 = vld [vmem:[%s340 + $0xd8] sm:$0xff]
        %v438 = vld [vmem:[%s340 + $0xe0] sm:$0xff]
        %v439 = vld [vmem:[%s340 + $0xe8] sm:$0xff]
        %v440 = vld [vmem:[%s340 + $0xf0] sm:$0xff]
        %v441 = vld [vmem:[%s340 + $0xf8] sm:$0xff]
        %442 = vadd.xlane.f32.xlu0 %v410
        %v443 = vpop.xlane.xlu0 %442
        %444 = vadd.xlane.f32.xlu0 %v411
        %v445 = vpop.xlane.xlu0 %444
        %446 = vadd.xlane.f32.xlu0 %v412
        %v447 = vpop.xlane.xlu0 %446
        %448 = vadd.xlane.f32.xlu0 %v413
        %v449 = vpop.xlane.xlu0 %448
        %450 = vadd.xlane.f32.xlu0 %v414
        %v451 = vpop.xlane.xlu0 %450
        %452 = vadd.xlane.f32.xlu0 %v415
        %v453 = vpop.xlane.xlu0 %452
        %454 = vadd.xlane.f32.xlu0 %v416
        %v455 = vpop.xlane.xlu0 %454
        %456 = vadd.xlane.f32.xlu0 %v417
        %v457 = vpop.xlane.xlu0 %456
        %458 = vadd.xlane.f32.xlu0 %v418
        %v459 = vpop.xlane.xlu0 %458
        %460 = vadd.xlane.f32.xlu0 %v419
        %v461 = vpop.xlane.xlu0 %460
        %462 = vadd.xlane.f32.xlu0 %v420
        %v463 = vpop.xlane.xlu0 %462
        %464 = vadd.xlane.f32.xlu0 %v421
        %v465 = vpop.xlane.xlu0 %464
        %466 = vadd.xlane.f32.xlu0 %v422
        %v467 = vpop.xlane.xlu0 %466
        %468 = vadd.xlane.f32.xlu0 %v423
        %v469 = vpop.xlane.xlu0 %468
        %470 = vadd.xlane.f32.xlu0 %v424
        %v471 = vpop.xlane.xlu0 %470
        %472 = vadd.xlane.f32.xlu0 %v425
        %v473 = vpop.xlane.xlu0 %472
        %474 = vadd.xlane.f32.xlu0 %v426
        %v475 = vpop.xlane.xlu0 %474
        %476 = vadd.xlane.f32.xlu0 %v427
        %v477 = vpop.xlane.xlu0 %476
        %478 = vadd.xlane.f32.xlu0 %v428
        %v479 = vpop.xlane.xlu0 %478
        %480 = vadd.xlane.f32.xlu0 %v429
        %v481 = vpop.xlane.xlu0 %480
        %482 = vadd.xlane.f32.xlu0 %v430
        %v483 = vpop.xlane.xlu0 %482
        %484 = vadd.xlane.f32.xlu0 %v431
        %v485 = vpop.xlane.xlu0 %484
        %486 = vadd.xlane.f32.xlu0 %v432
        %v487 = vpop.xlane.xlu0 %486
        %488 = vadd.xlane.f32.xlu0 %v433
        %v489 = vpop.xlane.xlu0 %488
        %490 = vadd.xlane.f32.xlu0 %v434
        %v491 = vpop.xlane.xlu0 %490
        %492 = vadd.xlane.f32.xlu0 %v435
        %v493 = vpop.xlane.xlu0 %492
        %494 = vadd.xlane.f32.xlu0 %v436
        %v495 = vpop.xlane.xlu0 %494
        %496 = vadd.xlane.f32.xlu0 %v437
        %v497 = vpop.xlane.xlu0 %496
        %498 = vadd.xlane.f32.xlu0 %v438
        %v499 = vpop.xlane.xlu0 %498
        %500 = vadd.xlane.f32.xlu0 %v439
        %v501 = vpop.xlane.xlu0 %500
        %502 = vadd.xlane.f32.xlu0 %v440
        %v503 = vpop.xlane.xlu0 %502
        %504 = vadd.xlane.f32.xlu0 %v441
        %v505 = vpop.xlane.xlu0 %504
        %v506 = vrcp.pop 128.0
        %v507 = vmul.f32 %v443, %v506
        %v508 = vmul.f32 %v445, %v506
        %v509 = vmul.f32 %v447, %v506
        %v510 = vmul.f32 %v449, %v506
        %v511 = vmul.f32 %v451, %v506
        %v512 = vmul.f32 %v453, %v506
        %v513 = vmul.f32 %v455, %v506
        %v514 = vmul.f32 %v457, %v506
        %v515 = vmul.f32 %v459, %v506
        %v516 = vmul.f32 %v461, %v506
        %v517 = vmul.f32 %v463, %v506
        %v518 = vmul.f32 %v465, %v506
        %v519 = vmul.f32 %v467, %v506
        %v520 = vmul.f32 %v469, %v506
        %v521 = vmul.f32 %v471, %v506
        %v522 = vmul.f32 %v473, %v506
        %v523 = vmul.f32 %v475, %v506
        %v524 = vmul.f32 %v477, %v506
        %v525 = vmul.f32 %v479, %v506
        %v526 = vmul.f32 %v481, %v506
        %v527 = vmul.f32 %v483, %v506
        %v528 = vmul.f32 %v485, %v506
        %v529 = vmul.f32 %v487, %v506
        %v530 = vmul.f32 %v489, %v506
        %v531 = vmul.f32 %v491, %v506
        %v532 = vmul.f32 %v493, %v506
        %v533 = vmul.f32 %v495, %v506
        %v534 = vmul.f32 %v497, %v506
        %v535 = vmul.f32 %v499, %v506
        %v536 = vmul.f32 %v501, %v506
        %v537 = vmul.f32 %v503, %v506
        %v538 = vmul.f32 %v505, %v506
        %v539 = vsub.f32 %v410, %v507
        %v540 = vsub.f32 %v411, %v508
        %v541 = vsub.f32 %v412, %v509
        %v542 = vsub.f32 %v413, %v510
        %v543 = vsub.f32 %v414, %v511
        %v544 = vsub.f32 %v415, %v512
        %v545 = vsub.f32 %v416, %v513
        %v546 = vsub.f32 %v417, %v514
        %v547 = vsub.f32 %v418, %v515
        %v548 = vsub.f32 %v419, %v516
        %v549 = vsub.f32 %v420, %v517
        %v550 = vsub.f32 %v421, %v518
        %v551 = vsub.f32 %v422, %v519
        %v552 = vsub.f32 %v423, %v520
        %v553 = vsub.f32 %v424, %v521
        %v554 = vsub.f32 %v425, %v522
        %v555 = vsub.f32 %v426, %v523
        %v556 = vsub.f32 %v427, %v524
        %v557 = vsub.f32 %v428, %v525
        %v558 = vsub.f32 %v429, %v526
        %v559 = vsub.f32 %v430, %v527
        %v560 = vsub.f32 %v431, %v528
        %v561 = vsub.f32 %v432, %v529
        %v562 = vsub.f32 %v433, %v530
        %v563 = vsub.f32 %v434, %v531
        %v564 = vsub.f32 %v435, %v532
        %v565 = vsub.f32 %v436, %v533
        %v566 = vsub.f32 %v437, %v534
        %v567 = vsub.f32 %v438, %v535
        %v568 = vsub.f32 %v439, %v536
        %v569 = vsub.f32 %v440, %v537
        %v570 = vsub.f32 %v441, %v538
        %v571 = vmul.f32 %v539, %v539
        %v572 = vmul.f32 %v540, %v540
        %v573 = vmul.f32 %v541, %v541
        %v574 = vmul.f32 %v542, %v542
        %v575 = vmul.f32 %v543, %v543
        %v576 = vmul.f32 %v544, %v544
        %v577 = vmul.f32 %v545, %v545
        %v578 = vmul.f32 %v546, %v546
        %v579 = vmul.f32 %v547, %v547
        %v580 = vmul.f32 %v548, %v548
        %v581 = vmul.f32 %v549, %v549
        %v582 = vmul.f32 %v550, %v550
        %v583 = vmul.f32 %v551, %v551
        %v584 = vmul.f32 %v552, %v552
        %v585 = vmul.f32 %v553, %v553
        %v586 = vmul.f32 %v554, %v554
        %v587 = vmul.f32 %v555, %v555
        %v588 = vmul.f32 %v556, %v556
        %v589 = vmul.f32 %v557, %v557
        %v590 = vmul.f32 %v558, %v558
        %v591 = vmul.f32 %v559, %v559
        %v592 = vmul.f32 %v560, %v560
        %v593 = vmul.f32 %v561, %v561
        %v594 = vmul.f32 %v562, %v562
        %v595 = vmul.f32 %v563, %v563
        %v596 = vmul.f32 %v564, %v564
        %v597 = vmul.f32 %v565, %v565
        %v598 = vmul.f32 %v566, %v566
        %v599 = vmul.f32 %v567, %v567
        %v600 = vmul.f32 %v568, %v568
        %v601 = vmul.f32 %v569, %v569
        %v602 = vmul.f32 %v570, %v570
        %603 = vadd.xlane.f32.xlu0 %v571
        %v604 = vpop.xlane.xlu0 %603
        %605 = vadd.xlane.f32.xlu0 %v572
        %v606 = vpop.xlane.xlu0 %605
        %607 = vadd.xlane.f32.xlu0 %v573
        %v608 = vpop.xlane.xlu0 %607
        %609 = vadd.xlane.f32.xlu0 %v574
        %v610 = vpop.xlane.xlu0 %609
        %611 = vadd.xlane.f32.xlu0 %v575
        %v612 = vpop.xlane.xlu0 %611
        %613 = vadd.xlane.f32.xlu0 %v576
        %v614 = vpop.xlane.xlu0 %613
        %615 = vadd.xlane.f32.xlu0 %v577
        %v616 = vpop.xlane.xlu0 %615
        %617 = vadd.xlane.f32.xlu0 %v578
        %v618 = vpop.xlane.xlu0 %617
        %619 = vadd.xlane.f32.xlu0 %v579
        %v620 = vpop.xlane.xlu0 %619
        %621 = vadd.xlane.f32.xlu0 %v580
        %v622 = vpop.xlane.xlu0 %621
        %623 = vadd.xlane.f32.xlu0 %v581
        %v624 = vpop.xlane.xlu0 %623
        %625 = vadd.xlane.f32.xlu0 %v582
        %v626 = vpop.xlane.xlu0 %625
        %627 = vadd.xlane.f32.xlu0 %v583
        %v628 = vpop.xlane.xlu0 %627
        %629 = vadd.xlane.f32.xlu0 %v584
        %v630 = vpop.xlane.xlu0 %629
        %631 = vadd.xlane.f32.xlu0 %v585
        %v632 = vpop.xlane.xlu0 %631
        %633 = vadd.xlane.f32.xlu0 %v586
        %v634 = vpop.xlane.xlu0 %633
        %635 = vadd.xlane.f32.xlu0 %v587
        %v636 = vpop.xlane.xlu0 %635
        %637 = vadd.xlane.f32.xlu0 %v588
        %v638 = vpop.xlane.xlu0 %637
        %639 = vadd.xlane.f32.xlu0 %v589
        %v640 = vpop.xlane.xlu0 %639
        %641 = vadd.xlane.f32.xlu0 %v590
        %v642 = vpop.xlane.xlu0 %641
        %643 = vadd.xlane.f32.xlu0 %v591
        %v644 = vpop.xlane.xlu0 %643
        %645 = vadd.xlane.f32.xlu0 %v592
        %v646 = vpop.xlane.xlu0 %645
        %647 = vadd.xlane.f32.xlu0 %v593
        %v648 = vpop.xlane.xlu0 %647
        %649 = vadd.xlane.f32.xlu0 %v594
        %v650 = vpop.xlane.xlu0 %649
        %651 = vadd.xlane.f32.xlu0 %v595
        %v652 = vpop.xlane.xlu0 %651
        %653 = vadd.xlane.f32.xlu0 %v596
        %v654 = vpop.xlane.xlu0 %653
        %655 = vadd.xlane.f32.xlu0 %v597
        %v656 = vpop.xlane.xlu0 %655
        %657 = vadd.xlane.f32.xlu0 %v598
        %v658 = vpop.xlane.xlu0 %657
        %659 = vadd.xlane.f32.xlu0 %v599
        %v660 = vpop.xlane.xlu0 %659
        %661 = vadd.xlane.f32.xlu0 %v600
        %v662 = vpop.xlane.xlu0 %661
        %663 = vadd.xlane.f32.xlu0 %v601
        %v664 = vpop.xlane.xlu0 %663
        %665 = vadd.xlane.f32.xlu0 %v602
        %v666 = vpop.xlane.xlu0 %665
        %v667 = vmul.f32 %v604, %v506
        %v668 = vmul.f32 %v606, %v506
        %v669 = vmul.f32 %v608, %v506
        %v670 = vmul.f32 %v610, %v506
        %v671 = vmul.f32 %v612, %v506
        %v672 = vmul.f32 %v614, %v506
        %v673 = vmul.f32 %v616, %v506
        %v674 = vmul.f32 %v618, %v506
        %v675 = vmul.f32 %v620, %v506
        %v676 = vmul.f32 %v622, %v506
        %v677 = vmul.f32 %v624, %v506
        %v678 = vmul.f32 %v626, %v506
        %v679 = vmul.f32 %v628, %v506
        %v680 = vmul.f32 %v630, %v506
        %v681 = vmul.f32 %v632, %v506
        %v682 = vmul.f32 %v634, %v506
        %v683 = vmul.f32 %v636, %v506
        %v684 = vmul.f32 %v638, %v506
        %v685 = vmul.f32 %v640, %v506
        %v686 = vmul.f32 %v642, %v506
        %v687 = vmul.f32 %v644, %v506
        %v688 = vmul.f32 %v646, %v506
        %v689 = vmul.f32 %v648, %v506
        %v690 = vmul.f32 %v650, %v506
        %v691 = vmul.f32 %v652, %v506
        %v692 = vmul.f32 %v654, %v506
        %v693 = vmul.f32 %v656, %v506
        %v694 = vmul.f32 %v658, %v506
        %v695 = vmul.f32 %v660, %v506
        %v696 = vmul.f32 %v662, %v506
        %v697 = vmul.f32 %v664, %v506
        %v698 = vmul.f32 %v666, %v506
        %v699 = vld [vmem:[#allocation5] sm:$0x3]
        %v700 = vadd.f32 %v667, 1e-05
        %v701 = vadd.f32 %v668, 1e-05
        %v702 = vadd.f32 %v669, 1e-05
        %v703 = vadd.f32 %v670, 1e-05
        %v704 = vadd.f32 %v671, 1e-05
        %v705 = vadd.f32 %v672, 1e-05
        %v706 = vadd.f32 %v673, 1e-05
        %v707 = vadd.f32 %v674, 1e-05
        %v708 = vadd.f32 %v675, 1e-05
        %v709 = vadd.f32 %v676, 1e-05
        %v710 = vadd.f32 %v677, 1e-05
        %v711 = vadd.f32 %v678, 1e-05
        %v712 = vadd.f32 %v679, 1e-05
        %v713 = vadd.f32 %v680, 1e-05
        %v714 = vadd.f32 %v681, 1e-05
        %v715 = vadd.f32 %v682, 1e-05
        %v716 = vadd.f32 %v683, 1e-05
        %v717 = vadd.f32 %v684, 1e-05
        %v718 = vadd.f32 %v685, 1e-05
        %v719 = vadd.f32 %v686, 1e-05
        %v720 = vadd.f32 %v687, 1e-05
        %v721 = vadd.f32 %v688, 1e-05
        %v722 = vadd.f32 %v689, 1e-05
        %v723 = vadd.f32 %v690, 1e-05
        %v724 = vadd.f32 %v691, 1e-05
        %v725 = vadd.f32 %v692, 1e-05
        %v726 = vadd.f32 %v693, 1e-05
        %v727 = vadd.f32 %v694, 1e-05
        %v728 = vadd.f32 %v695, 1e-05
        %v729 = vadd.f32 %v696, 1e-05
        %v730 = vadd.f32 %v697, 1e-05
        %v731 = vadd.f32 %v698, 1e-05
        %v732 = vrsqrt.pop %v700
        %v733 = vrsqrt.pop %v701
        %v734 = vrsqrt.pop %v702
        %v735 = vrsqrt.pop %v703
        %v736 = vrsqrt.pop %v704
        %v737 = vrsqrt.pop %v705
        %v738 = vrsqrt.pop %v706
        %v739 = vrsqrt.pop %v707
        %v740 = vrsqrt.pop %v708
        %v741 = vrsqrt.pop %v709
        %v742 = vrsqrt.pop %v710
        %v743 = vrsqrt.pop %v711
        %v744 = vrsqrt.pop %v712
        %v745 = vrsqrt.pop %v713
        %v746 = vrsqrt.pop %v714
        %v747 = vrsqrt.pop %v715
        %v748 = vrsqrt.pop %v716
        %v749 = vrsqrt.pop %v717
        %v750 = vrsqrt.pop %v718
        %v751 = vrsqrt.pop %v719
        %v752 = vrsqrt.pop %v720
        %v753 = vrsqrt.pop %v721
        %v754 = vrsqrt.pop %v722
        %v755 = vrsqrt.pop %v723
        %v756 = vrsqrt.pop %v724
        %v757 = vrsqrt.pop %v725
        %v758 = vrsqrt.pop %v726
        %v759 = vrsqrt.pop %v727
        %v760 = vrsqrt.pop %v728
        %v761 = vrsqrt.pop %v729
        %v762 = vrsqrt.pop %v730
        %v763 = vrsqrt.pop %v731
        %v764 = vmul.f32 %v539, %v732
        %v765 = vmul.f32 %v540, %v733
        %v766 = vmul.f32 %v541, %v734
        %v767 = vmul.f32 %v542, %v735
        %v768 = vmul.f32 %v543, %v736
        %v769 = vmul.f32 %v544, %v737
        %v770 = vmul.f32 %v545, %v738
        %v771 = vmul.f32 %v546, %v739
        %v772 = vmul.f32 %v547, %v740
        %v773 = vmul.f32 %v548, %v741
        %v774 = vmul.f32 %v549, %v742
        %v775 = vmul.f32 %v550, %v743
        %v776 = vmul.f32 %v551, %v744
        %v777 = vmul.f32 %v552, %v745
        %v778 = vmul.f32 %v553, %v746
        %v779 = vmul.f32 %v554, %v747
        %v780 = vmul.f32 %v555, %v748
        %v781 = vmul.f32 %v556, %v749
        %v782 = vmul.f32 %v557, %v750
        %v783 = vmul.f32 %v558, %v751
        %v784 = vmul.f32 %v559, %v752
        %v785 = vmul.f32 %v560, %v753
        %v786 = vmul.f32 %v561, %v754
        %v787 = vmul.f32 %v562, %v755
        %v788 = vmul.f32 %v563, %v756
        %v789 = vmul.f32 %v564, %v757
        %v790 = vmul.f32 %v565, %v758
        %v791 = vmul.f32 %v566, %v759
        %v792 = vmul.f32 %v567, %v760
        %v793 = vmul.f32 %v568, %v761
        %v794 = vmul.f32 %v569, %v762
        %v795 = vmul.f32 %v570, %v763
        %v796 = vlaneseq
        %v797 = vshrl.u32 %v796, 7
        %v798 = vsub.s32 0, %v797
        %v799 = vrot.slane %v699, %v798
        %v800 = vmul.f32 %v764, %v799
        %v801 = vmul.f32 %v765, %v799
        %v802 = vmul.f32 %v766, %v799
        %v803 = vmul.f32 %v767, %v799
        %v804 = vmul.f32 %v768, %v799
        %v805 = vmul.f32 %v769, %v799
        %v806 = vmul.f32 %v770, %v799
        %v807 = vmul.f32 %v771, %v799
        %v808 = vmul.f32 %v772, %v799
        %v809 = vmul.f32 %v773, %v799
        %v810 = vmul.f32 %v774, %v799
        %v811 = vmul.f32 %v775, %v799
        %v812 = vmul.f32 %v776, %v799
        %v813 = vmul.f32 %v777, %v799
        %v814 = vmul.f32 %v778, %v799
        %v815 = vmul.f32 %v779, %v799
        %v816 = vmul.f32 %v780, %v799
        %v817 = vmul.f32 %v781, %v799
        %v818 = vmul.f32 %v782, %v799
        %v819 = vmul.f32 %v783, %v799
        %v820 = vmul.f32 %v784, %v799
        %v821 = vmul.f32 %v785, %v799
        %v822 = vmul.f32 %v786, %v799
        %v823 = vmul.f32 %v787, %v799
        %v824 = vmul.f32 %v788, %v799
        %v825 = vmul.f32 %v789, %v799
        %v826 = vmul.f32 %v790, %v799
        %v827 = vmul.f32 %v791, %v799
        %v828 = vmul.f32 %v792, %v799
        %v829 = vmul.f32 %v793, %v799
        %v830 = vmul.f32 %v794, %v799
        %v831 = vmul.f32 %v795, %v799
        %v832 = vlaneseq
        %v833 = vshrl.u32 %v832, 7
        %v834 = vsub.s32 1, %v833
        %v835 = vrot.slane %v699, %v834
        %v836 = vadd.f32 %v800, %v835
        %v837 = vadd.f32 %v801, %v835
        %v838 = vadd.f32 %v802, %v835
        %v839 = vadd.f32 %v803, %v835
        %v840 = vadd.f32 %v804, %v835
        %v841 = vadd.f32 %v805, %v835
        %v842 = vadd.f32 %v806, %v835
        %v843 = vadd.f32 %v807, %v835
        %v844 = vadd.f32 %v808, %v835
        %v845 = vadd.f32 %v809, %v835
        %v846 = vadd.f32 %v810, %v835
        %v847 = vadd.f32 %v811, %v835
        %v848 = vadd.f32 %v812, %v835
        %v849 = vadd.f32 %v813, %v835
        %v850 = vadd.f32 %v814, %v835
        %v851 = vadd.f32 %v815, %v835
        %v852 = vadd.f32 %v816, %v835
        %v853 = vadd.f32 %v817, %v835
        %v854 = vadd.f32 %v818, %v835
        %v855 = vadd.f32 %v819, %v835
        %v856 = vadd.f32 %v820, %v835
        %v857 = vadd.f32 %v821, %v835
        %v858 = vadd.f32 %v822, %v835
        %v859 = vadd.f32 %v823, %v835
        %v860 = vadd.f32 %v824, %v835
        %v861 = vadd.f32 %v825, %v835
        %v862 = vadd.f32 %v826, %v835
        %v863 = vadd.f32 %v827, %v835
        %v864 = vadd.f32 %v828, %v835
        %v865 = vadd.f32 %v829, %v835
        %v866 = vadd.f32 %v830, %v835
        %v867 = vadd.f32 %v831, %v835
        %v868 = vpack.c.bf16 %v837, %v836
        %v869 = vpack.c.bf16 %v839, %v838
        %v870 = vpack.c.bf16 %v841, %v840
        %v871 = vpack.c.bf16 %v843, %v842
        %v872 = vpack.c.bf16 %v845, %v844
        %v873 = vpack.c.bf16 %v847, %v846
        %v874 = vpack.c.bf16 %v849, %v848
        %v875 = vpack.c.bf16 %v851, %v850
        %v876 = vpack.c.bf16 %v853, %v852
        %v877 = vpack.c.bf16 %v855, %v854
        %v878 = vpack.c.bf16 %v857, %v856
        %v879 = vpack.c.bf16 %v859, %v858
        %v880 = vpack.c.bf16 %v861, %v860
        %v881 = vpack.c.bf16 %v863, %v862
        %v882 = vpack.c.bf16 %v865, %v864
        %v883 = vpack.c.bf16 %v867, %v866
        %v884 = vld [vmem:[#allocation7] sm:$0xff]
        %v885 = vld [vmem:[#allocation7 + $0x8] sm:$0xff]
        %v886 = vld [vmem:[#allocation7 + $0x10] sm:$0xf]
        %v887 = vld [vmem:[#allocation7 + $0x14] sm:$0xff]
        %v888 = vld [vmem:[#allocation7 + $0x1c] sm:$0xff]
        %v889 = vld [vmem:[#allocation7 + $0x24] sm:$0xf]
        %v890 = vld [vmem:[#allocation7 + $0x28] sm:$0xff]
        %v891 = vld [vmem:[#allocation7 + $0x30] sm:$0xff]
        %v892 = vld [vmem:[#allocation7 + $0x38] sm:$0xf]
        %v893 = vld [vmem:[#allocation7 + $0x3c] sm:$0xff]
        %v894 = vld [vmem:[#allocation7 + $0x44] sm:$0xff]
        %v895 = vld [vmem:[#allocation7 + $0x4c] sm:$0xf]
        %v896 = vld [vmem:[#allocation7 + $0x50] sm:$0xff]
        %v897 = vld [vmem:[#allocation7 + $0x58] sm:$0xff]
        %v898 = vld [vmem:[#allocation7 + $0x60] sm:$0xf]
        %v899 = vld [vmem:[#allocation7 + $0x64] sm:$0xff]
        %v900 = vld [vmem:[#allocation7 + $0x6c] sm:$0xff]
        %v901 = vld [vmem:[#allocation7 + $0x74] sm:$0xf]
        %v902 = vld [vmem:[#allocation7 + $0x78] sm:$0xff]
        %v903 = vld [vmem:[#allocation7 + $0x80] sm:$0xff]
        %v904 = vld [vmem:[#allocation7 + $0x88] sm:$0xf]
        %v905 = vld [vmem:[#allocation7 + $0x8c] sm:$0xff]
        %v906 = vld [vmem:[#allocation7 + $0x94] sm:$0xff]
        %v907 = vld [vmem:[#allocation7 + $0x9c] sm:$0xf]
        %v908 = vld [vmem:[#allocation7 + $0xa0] sm:$0xff]
        %v909 = vld [vmem:[#allocation7 + $0xa8] sm:$0xff]
        %v910 = vld [vmem:[#allocation7 + $0xb0] sm:$0xf]
        %v911 = vld [vmem:[#allocation7 + $0xb4] sm:$0xff]
        %v912 = vld [vmem:[#allocation7 + $0xbc] sm:$0xff]
        %v913 = vld [vmem:[#allocation7 + $0xc4] sm:$0xf]
        %v914 = vld [vmem:[#allocation7 + $0xc8] sm:$0xff]
        %v915 = vld [vmem:[#allocation7 + $0xd0] sm:$0xff]
        %v916 = vld [vmem:[#allocation7 + $0xd8] sm:$0xf]
        %v917 = vld [vmem:[#allocation7 + $0xdc] sm:$0xff]
        %v918 = vld [vmem:[#allocation7 + $0xe4] sm:$0xff]
        %v919 = vld [vmem:[#allocation7 + $0xec] sm:$0xf]
        %v920 = vld [vmem:[#allocation7 + $0xf0] sm:$0xff]
        %v921 = vld [vmem:[#allocation7 + $0xf8] sm:$0xff]
        %v922 = vld [vmem:[#allocation7 + $0x100] sm:$0xf]
        %v923 = vld [vmem:[#allocation7 + $0x104] sm:$0xff]
        %v924 = vld [vmem:[#allocation7 + $0x10c] sm:$0xff]
        %v925 = vld [vmem:[#allocation7 + $0x114] sm:$0xf]
        %v926 = vld [vmem:[#allocation7 + $0x118] sm:$0xff]
        %v927 = vld [vmem:[#allocation7 + $0x120] sm:$0xff]
        %v928 = vld [vmem:[#allocation7 + $0x128] sm:$0xf]
        %v929 = vld [vmem:[#allocation7 + $0x12c] sm:$0xff]
        %v930 = vld [vmem:[#allocation7 + $0x134] sm:$0xff]
        %v931 = vld [vmem:[#allocation7 + $0x13c] sm:$0xf]
        %v932 = vld [vmem:[#allocation8] sm:$0x1f]
        %v934 = vlaneseq
        %v935 = vshrl.u32 %v934, 7
        %v936 = vsub.s32 0, %v935
        %v937 = vrot.slane %v932, %v936
        %v938 = vlaneseq
        %v939 = vshrl.u32 %v938, 7
        %v940 = vsub.s32 1, %v939
        %v941 = vrot.slane %v932, %v940
        %v942 = vlaneseq
        %v943 = vshrl.u32 %v942, 7
        %v944 = vsub.s32 2, %v943
        %v945 = vrot.slane %v932, %v944
        %v946 = vlaneseq
        %v947 = vshrl.u32 %v946, 7
        %v948 = vsub.s32 3, %v947
        %v949 = vrot.slane %v932, %v948
        %v950 = vlaneseq
        %v951 = vshrl.u32 %v950, 7
        %v952 = vsub.s32 4, %v951
        %v953 = vrot.slane %v932, %v952
        %v1007 = vunpack.c.l.b16 %v884
        %v1008 = vunpack.c.h.b16 %v884
        %v1009 = vunpack.c.l.b16 %v885
        %v1010 = vunpack.c.h.b16 %v885
        %v1011 = vunpack.c.l.b16 %v886
        %v1012 = vunpack.c.l.b16 %v887
        %v1013 = vunpack.c.h.b16 %v887
        %v1014 = vunpack.c.l.b16 %v888
        %v1015 = vunpack.c.h.b16 %v888
        %v1016 = vunpack.c.l.b16 %v889
        %v1017 = vunpack.c.l.b16 %v890
        %v1018 = vunpack.c.h.b16 %v890
        %v1019 = vunpack.c.l.b16 %v891
        %v1020 = vunpack.c.h.b16 %v891
        %v1021 = vunpack.c.l.b16 %v892
        %v1022 = vunpack.c.l.b16 %v893
        %v1023 = vunpack.c.h.b16 %v893
        %v1024 = vunpack.c.l.b16 %v894
        %v1025 = vunpack.c.h.b16 %v894
        %v1026 = vunpack.c.l.b16 %v895
        %v1027 = vunpack.c.l.b16 %v896
        %v1028 = vunpack.c.h.b16 %v896
        %v1029 = vunpack.c.l.b16 %v897
        %v1030 = vunpack.c.h.b16 %v897
        %v1031 = vunpack.c.l.b16 %v898
        %v1032 = vunpack.c.l.b16 %v899
        %v1033 = vunpack.c.h.b16 %v899
        %v1034 = vunpack.c.l.b16 %v900
        %v1035 = vunpack.c.h.b16 %v900
        %v1036 = vunpack.c.l.b16 %v901
        %v1037 = vunpack.c.l.b16 %v902
        %v1038 = vunpack.c.h.b16 %v902
        %v1039 = vunpack.c.l.b16 %v903
        %v1040 = vunpack.c.h.b16 %v903
        %v1041 = vunpack.c.l.b16 %v904
        %v1042 = vunpack.c.l.b16 %v905
        %v1043 = vunpack.c.h.b16 %v905
        %v1044 = vunpack.c.l.b16 %v906
        %v1045 = vunpack.c.h.b16 %v906
        %v1046 = vunpack.c.l.b16 %v907
        %v1047 = vunpack.c.l.b16 %v908
        %v1048 = vunpack.c.h.b16 %v908
        %v1049 = vunpack.c.l.b16 %v909
        %v1050 = vunpack.c.h.b16 %v909
        %v1051 = vunpack.c.l.b16 %v910
        %v1052 = vunpack.c.l.b16 %v911
        %v1053 = vunpack.c.h.b16 %v911
        %v1054 = vunpack.c.l.b16 %v912
        %v1055 = vunpack.c.h.b16 %v912
        %v1056 = vunpack.c.l.b16 %v913
        %v1057 = vunpack.c.l.b16 %v914
        %v1058 = vunpack.c.h.b16 %v914
        %v1059 = vunpack.c.l.b16 %v915
        %v1060 = vunpack.c.h.b16 %v915
        %v1061 = vunpack.c.l.b16 %v916
        %v1062 = vunpack.c.l.b16 %v917
        %v1063 = vunpack.c.h.b16 %v917
        %v1064 = vunpack.c.l.b16 %v918
        %v1065 = vunpack.c.h.b16 %v918
        %v1066 = vunpack.c.l.b16 %v919
        %v1067 = vunpack.c.l.b16 %v920
        %v1068 = vunpack.c.h.b16 %v920
        %v1069 = vunpack.c.l.b16 %v921
        %v1070 = vunpack.c.h.b16 %v921
        %v1071 = vunpack.c.l.b16 %v922
        %v1072 = vunpack.c.l.b16 %v923
        %v1073 = vunpack.c.h.b16 %v923
        %v1074 = vunpack.c.l.b16 %v924
        %v1075 = vunpack.c.h.b16 %v924
        %v1076 = vunpack.c.l.b16 %v925
        %v1077 = vunpack.c.l.b16 %v926
        %v1078 = vunpack.c.h.b16 %v926
        %v1079 = vunpack.c.l.b16 %v927
        %v1080 = vunpack.c.h.b16 %v927
        %v1081 = vunpack.c.l.b16 %v928
        %v1082 = vunpack.c.l.b16 %v929
        %v1083 = vunpack.c.h.b16 %v929
        %v1084 = vunpack.c.l.b16 %v930
        %v1085 = vunpack.c.h.b16 %v930
        %v1086 = vunpack.c.l.b16 %v931
        %v1087 = vpack.c.b16 %v1012, %v1007
        %v1088 = vpack.c.b16 %v1013, %v1008
        %v1089 = vpack.c.b16 %v1014, %v1009
        %v1090 = vpack.c.b16 %v1015, %v1010
        %v1091 = vpack.c.b16 %v1016, %v1011
        %v1092 = vpack.c.b16 %v1022, %v1017
        %v1093 = vpack.c.b16 %v1023, %v1018
        %v1094 = vpack.c.b16 %v1024, %v1019
        %v1095 = vpack.c.b16 %v1025, %v1020
        %v1096 = vpack.c.b16 %v1026, %v1021
        %v1097 = vpack.c.b16 %v1032, %v1027
        %v1098 = vpack.c.b16 %v1033, %v1028
        %v1099 = vpack.c.b16 %v1034, %v1029
        %v1100 = vpack.c.b16 %v1035, %v1030
        %v1101 = vpack.c.b16 %v1036, %v1031
        %v1102 = vpack.c.b16 %v1042, %v1037
        %v1103 = vpack.c.b16 %v1043, %v1038
        %v1104 = vpack.c.b16 %v1044, %v1039
        %v1105 = vpack.c.b16 %v1045, %v1040
        %v1106 = vpack.c.b16 %v1046, %v1041
        %v1107 = vpack.c.b16 %v1052, %v1047
        %v1108 = vpack.c.b16 %v1053, %v1048
        %v1109 = vpack.c.b16 %v1054, %v1049
        %v1110 = vpack.c.b16 %v1055, %v1050
        %v1111 = vpack.c.b16 %v1056, %v1051
        %v1112 = vpack.c.b16 %v1062, %v1057
        %v1113 = vpack.c.b16 %v1063, %v1058
        %v1114 = vpack.c.b16 %v1064, %v1059
        %v1115 = vpack.c.b16 %v1065, %v1060
        %v1116 = vpack.c.b16 %v1066, %v1061
        %v1117 = vpack.c.b16 %v1072, %v1067
        %v1118 = vpack.c.b16 %v1073, %v1068
        %v1119 = vpack.c.b16 %v1074, %v1069
        %v1120 = vpack.c.b16 %v1075, %v1070
        %v1121 = vpack.c.b16 %v1076, %v1071
        %v1122 = vpack.c.b16 %v1082, %v1077
        %v1123 = vpack.c.b16 %v1083, %v1078
        %v1124 = vpack.c.b16 %v1084, %v1079
        %v1125 = vpack.c.b16 %v1085, %v1080
        %v1126 = vpack.c.b16 %v1086, %v1081
        %1167 = vmatprep.subr.bf16.mxu0 %v1088
        %1168 = vmatpush1.bf16.msra.mxu0 %v1087
        %1169 = vmatprep.subr.bf16.mxu0 %v1093
        %1170 = vmatpush1.bf16.msra.mxu0 %v1092
        %1171 = vmatprep.subr.bf16.mxu0 %v1098
        %1172 = vmatpush1.bf16.msra.mxu0 %v1097
        %1173 = vmatprep.subr.bf16.mxu0 %v1103
        %1174 = vmatpush1.bf16.msra.mxu0 %v1102
        %1175 = vmatprep.subr.bf16.mxu0 %v1108
        %1176 = vmatpush1.bf16.msra.mxu0 %v1107
        %1177 = vmatprep.subr.bf16.mxu0 %v1113
        %1178 = vmatpush1.bf16.msra.mxu0 %v1112
        %1179 = vmatprep.subr.bf16.mxu0 %v1118
        %1180 = vmatpush1.bf16.msra.mxu0 %v1117
        %1181 = vmatprep.subr.bf16.mxu0 %v1123
        %1182 = vmatpush1.bf16.msra.mxu0 %v1122
        %1183 = vmatprep.subr.bf16.mxu0 0
        %1184 = vmatpush1.bf16.msra.mxu0 0
        %1185 = vmatprep.subr.bf16.mxu0 0
        %1186 = vmatpush1.bf16.msra.mxu0 0
        %1187 = vmatprep.subr.bf16.mxu0 0
        %1188 = vmatpush1.bf16.msra.mxu0 0
        %1189 = vmatprep.subr.bf16.mxu0 0
        %1190 = vmatpush1.bf16.msra.mxu0 0
        %1191 = vmatprep.subr.bf16.mxu0 0
        %1192 = vmatpush1.bf16.msra.mxu0 0
        %1193 = vmatprep.subr.bf16.mxu0 0
        %1194 = vmatpush1.bf16.msra.mxu0 0
        %1195 = vmatprep.subr.bf16.mxu0 0
        %1196 = vmatpush1.bf16.msra.mxu0 0
        %1197 = vmatprep.subr.bf16.mxu0 0
        %1198 = vmatpush1.bf16.msra.mxu0 0
        %1199 = vmatprep.mubr.bf16.mxu0 0
        %1200 = vmatmul.mubr.bf16.gmra.mrb[0].mxu0 %v868
        %v1201 = vpop.f32.mrb[0].mxu0
        %v1202 = vadd.f32 %v937, %v1201
        %v1203 = vpop.f32.mrb[0].mxu0
        %v1204 = vadd.f32 %v941, %v1203
        %v1205 = vpop.f32.mrb[0].mxu0
        %v1206 = vadd.f32 %v937, %v1205
        %v1207 = vpop.f32.mrb[0].mxu0
        %v1208 = vadd.f32 %v941, %v1207
        %1209 = vmatprep.mubr.bf16.mxu0 0
        %1210 = vmatmul.mubr.bf16.gmra.mrb[0].mxu0 %v869
        %v1211 = vpop.f32.mrb[0].mxu0
        %v1212 = vadd.f32 %v937, %v1211
        %v1213 = vpop.f32.mrb[0].mxu0
        %v1214 = vadd.f32 %v941, %v1213
        %v1215 = vpop.f32.mrb[0].mxu0
        %v1216 = vadd.f32 %v937, %v1215
        %v1217 = vpop.f32.mrb[0].mxu0
        %v1218 = vadd.f32 %v941, %v1217
        %1219 = vmatprep.mubr.bf16.mxu0 0
        %1220 = vmatmul.mubr.bf16.gmra.mrb[0].mxu0 %v870
        %v1221 = vpop.f32.mrb[0].mxu0
        %v1222 = vadd.f32 %v937, %v1221
        %v1223 = vpop.f32.mrb[0].mxu0
        %v1224 = vadd.f32 %v941, %v1223
        %v1225 = vpop.f32.mrb[0].mxu0
        %v1226 = vadd.f32 %v937, %v1225
        %v1227 = vpop.f32.mrb[0].mxu0
        %v1228 = vadd.f32 %v941, %v1227
        %1229 = vmatprep.mubr.bf16.mxu0 0
        %1230 = vmatmul.mubr.bf16.gmra.mrb[0].mxu0 %v871
        %v1231 = vpop.f32.mrb[0].mxu0
        %v1232 = vadd.f32 %v937, %v1231
        %v1233 = vpop.f32.mrb[0].mxu0
        %v1234 = vadd.f32 %v941, %v1233
        %v1235 = vpop.f32.mrb[0].mxu0
        %v1236 = vadd.f32 %v937, %v1235
        %v1237 = vpop.f32.mrb[0].mxu0
        %v1238 = vadd.f32 %v941, %v1237
        %1239 = vmatprep.mubr.bf16.mxu0 0
        %1240 = vmatmul.mubr.bf16.gmra.mrb[0].mxu0 %v872
        %v1241 = vpop.f32.mrb[0].mxu0
        %v1242 = vadd.f32 %v937, %v1241
        %v1243 = vpop.f32.mrb[0].mxu0
        %v1244 = vadd.f32 %v941, %v1243
        %v1245 = vpop.f32.mrb[0].mxu0
        %v1246 = vadd.f32 %v937, %v1245
        %v1247 = vpop.f32.mrb[0].mxu0
        %v1248 = vadd.f32 %v941, %v1247
        %1249 = vmatprep.mubr.bf16.mxu0 0
        %1250 = vmatmul.mubr.bf16.gmra.mrb[0].mxu0 %v873
        %v1251 = vpop.f32.mrb[0].mxu0
        %v1252 = vadd.f32 %v937, %v1251
        %v1253 = vpop.f32.mrb[0].mxu0
        %v1254 = vadd.f32 %v941, %v1253
        %v1255 = vpop.f32.mrb[0].mxu0
        %v1256 = vadd.f32 %v937, %v1255
        %v1257 = vpop.f32.mrb[0].mxu0
        %v1258 = vadd.f32 %v941, %v1257
        %1259 = vmatprep.mubr.bf16.mxu0 0
        %1260 = vmatmul.mubr.bf16.gmra.mrb[0].mxu0 %v874
        %v1261 = vpop.f32.mrb[0].mxu0
        %v1262 = vadd.f32 %v937, %v1261
        %v1263 = vpop.f32.mrb[0].mxu0
        %v1264 = vadd.f32 %v941, %v1263
        %v1265 = vpop.f32.mrb[0].mxu0
        %v1266 = vadd.f32 %v937, %v1265
        %v1267 = vpop.f32.mrb[0].mxu0
        %v1268 = vadd.f32 %v941, %v1267
        %1269 = vmatprep.mubr.bf16.mxu0 0
        %1270 = vmatmul.mubr.bf16.gmra.mrb[0].mxu0 %v875
        %v1271 = vpop.f32.mrb[0].mxu0
        %v1272 = vadd.f32 %v937, %v1271
        %v1273 = vpop.f32.mrb[0].mxu0
        %v1274 = vadd.f32 %v941, %v1273
        %v1275 = vpop.f32.mrb[0].mxu0
        %v1276 = vadd.f32 %v937, %v1275
        %v1277 = vpop.f32.mrb[0].mxu0
        %v1278 = vadd.f32 %v941, %v1277
        %1279 = vmatprep.mubr.bf16.mxu0 0
        %1280 = vmatmul.mubr.bf16.gmra.mrb[0].mxu0 %v876
        %v1281 = vpop.f32.mrb[0].mxu0
        %v1282 = vadd.f32 %v937, %v1281
        %v1283 = vpop.f32.mrb[0].mxu0
        %v1284 = vadd.f32 %v941, %v1283
        %v1285 = vpop.f32.mrb[0].mxu0
        %v1286 = vadd.f32 %v937, %v1285
        %v1287 = vpop.f32.mrb[0].mxu0
        %v1288 = vadd.f32 %v941, %v1287
        %1289 = vmatprep.mubr.bf16.mxu0 0
        %1290 = vmatmul.mubr.bf16.gmra.mrb[0].mxu0 %v877
        %v1291 = vpop.f32.mrb[0].mxu0
        %v1292 = vadd.f32 %v937, %v1291
        %v1293 = vpop.f32.mrb[0].mxu0
        %v1294 = vadd.f32 %v941, %v1293
        %v1295 = vpop.f32.mrb[0].mxu0
        %v1296 = vadd.f32 %v937, %v1295
        %v1297 = vpop.f32.mrb[0].mxu0
        %v1298 = vadd.f32 %v941, %v1297
        %1299 = vmatprep.mubr.bf16.mxu0 0
        %1300 = vmatmul.mubr.bf16.gmra.mrb[0].mxu0 %v878
        %v1301 = vpop.f32.mrb[0].mxu0
        %v1302 = vadd.f32 %v937, %v1301
        %v1303 = vpop.f32.mrb[0].mxu0
        %v1304 = vadd.f32 %v941, %v1303
        %v1305 = vpop.f32.mrb[0].mxu0
        %v1306 = vadd.f32 %v937, %v1305
        %v1307 = vpop.f32.mrb[0].mxu0
        %v1308 = vadd.f32 %v941, %v1307
        %1309 = vmatprep.mubr.bf16.mxu0 0
        %1310 = vmatmul.mubr.bf16.gmra.mrb[0].mxu0 %v879
        %v1311 = vpop.f32.mrb[0].mxu0
        %v1312 = vadd.f32 %v937, %v1311
        %v1313 = vpop.f32.mrb[0].mxu0
        %v1314 = vadd.f32 %v941, %v1313
        %v1315 = vpop.f32.mrb[0].mxu0
        %v1316 = vadd.f32 %v937, %v1315
        %v1317 = vpop.f32.mrb[0].mxu0
        %v1318 = vadd.f32 %v941, %v1317
        %1319 = vmatprep.mubr.bf16.mxu0 0
        %1320 = vmatmul.mubr.bf16.gmra.mrb[0].mxu0 %v880
        %v1321 = vpop.f32.mrb[0].mxu0
        %v1322 = vadd.f32 %v937, %v1321
        %v1323 = vpop.f32.mrb[0].mxu0
        %v1324 = vadd.f32 %v941, %v1323
        %v1325 = vpop.f32.mrb[0].mxu0
        %v1326 = vadd.f32 %v937, %v1325
        %v1327 = vpop.f32.mrb[0].mxu0
        %v1328 = vadd.f32 %v941, %v1327
        %1329 = vmatprep.mubr.bf16.mxu0 0
        %1330 = vmatmul.mubr.bf16.gmra.mrb[0].mxu0 %v881
        %v1331 = vpop.f32.mrb[0].mxu0
        %v1332 = vadd.f32 %v937, %v1331
        %v1333 = vpop.f32.mrb[0].mxu0
        %v1334 = vadd.f32 %v941, %v1333
        %v1335 = vpop.f32.mrb[0].mxu0
        %v1336 = vadd.f32 %v937, %v1335
        %v1337 = vpop.f32.mrb[0].mxu0
        %v1338 = vadd.f32 %v941, %v1337
        %1339 = vmatprep.mubr.bf16.mxu0 0
        %1340 = vmatmul.mubr.bf16.gmra.mrb[0].mxu0 %v882
        %v1341 = vpop.f32.mrb[0].mxu0
        %v1342 = vadd.f32 %v937, %v1341
        %v1343 = vpop.f32.mrb[0].mxu0
        %v1344 = vadd.f32 %v941, %v1343
        %v1345 = vpop.f32.mrb[0].mxu0
        %v1346 = vadd.f32 %v937, %v1345
        %v1347 = vpop.f32.mrb[0].mxu0
        %v1348 = vadd.f32 %v941, %v1347
        %1349 = vmatprep.mubr.bf16.mxu0 0
        %1350 = vmatmul.mubr.bf16.gmra.mrb[0].mxu0 %v883
        %v1351 = vpop.f32.mrb[0].mxu0
        %v1352 = vadd.f32 %v937, %v1351
        %v1353 = vpop.f32.mrb[0].mxu0
        %v1354 = vadd.f32 %v941, %v1353
        %v1355 = vpop.f32.mrb[0].mxu0
        %v1356 = vadd.f32 %v937, %v1355
        %v1357 = vpop.f32.mrb[0].mxu0
        %v1358 = vadd.f32 %v941, %v1357
        %1359 = vdwg.mxu0
        %1360 = vmatprep.subr.bf16.mxu0 %v1090
        %1361 = vmatpush1.bf16.msra.mxu0 %v1089
        %1362 = vmatprep.subr.bf16.mxu0 %v1095
        %1363 = vmatpush1.bf16.msra.mxu0 %v1094
        %1364 = vmatprep.subr.bf16.mxu0 %v1100
        %1365 = vmatpush1.bf16.msra.mxu0 %v1099
        %1366 = vmatprep.subr.bf16.mxu0 %v1105
        %1367 = vmatpush1.bf16.msra.mxu0 %v1104
        %1368 = vmatprep.subr.bf16.mxu0 %v1110
        %1369 = vmatpush1.bf16.msra.mxu0 %v1109
        %1370 = vmatprep.subr.bf16.mxu0 %v1115
        %1371 = vmatpush1.bf16.msra.mxu0 %v1114
        %1372 = vmatprep.subr.bf16.mxu0 %v1120
        %1373 = vmatpush1.bf16.msra.mxu0 %v1119
        %1374 = vmatprep.subr.bf16.mxu0 %v1125
        %1375 = vmatpush1.bf16.msra.mxu0 %v1124
        %1376 = vmatprep.subr.bf16.mxu0 0
        %1377 = vmatpush1.bf16.msra.mxu0 0
        %1378 = vmatprep.subr.bf16.mxu0 0
        %1379 = vmatpush1.bf16.msra.mxu0 0
        %1380 = vmatprep.subr.bf16.mxu0 0
        %1381 = vmatpush1.bf16.msra.mxu0 0
        %1382 = vmatprep.subr.bf16.mxu0 0
        %1383 = vmatpush1.bf16.msra.mxu0 0
        %1384 = vmatprep.subr.bf16.mxu0 0
        %1385 = vmatpush1.bf16.msra.mxu0 0
        %1386 = vmatprep.subr.bf16.mxu0 0
        %1387 = vmatpush1.bf16.msra.mxu0 0
        %1388 = vmatprep.subr.bf16.mxu0 0
        %1389 = vmatpush1.bf16.msra.mxu0 0
        %1390 = vmatprep.subr.bf16.mxu0 0
        %1391 = vmatpush1.bf16.msra.mxu0 0
        %1392 = vmatprep.mubr.bf16.mxu0 0
        %1393 = vmatmul.mubr.bf16.gmra.mrb[0].mxu0 %v868
        %v1394 = vpop.f32.mrb[0].mxu0
        %v1395 = vadd.f32 %v945, %v1394
        %v1396 = vpop.f32.mrb[0].mxu0
        %v1397 = vadd.f32 %v949, %v1396
        %v1398 = vpop.f32.mrb[0].mxu0
        %v1399 = vadd.f32 %v945, %v1398
        %v1400 = vpop.f32.mrb[0].mxu0
        %v1401 = vadd.f32 %v949, %v1400
        %1402 = vmatprep.mubr.bf16.mxu0 0
        %1403 = vmatmul.mubr.bf16.gmra.mrb[0].mxu0 %v869
        %v1404 = vpop.f32.mrb[0].mxu0
        %v1405 = vadd.f32 %v945, %v1404
        %v1406 = vpop.f32.mrb[0].mxu0
        %v1407 = vadd.f32 %v949, %v1406
        %v1408 = vpop.f32.mrb[0].mxu0
        %v1409 = vadd.f32 %v945, %v1408
        %v1410 = vpop.f32.mrb[0].mxu0
        %v1411 = vadd.f32 %v949, %v1410
        %1412 = vmatprep.mubr.bf16.mxu0 0
        %1413 = vmatmul.mubr.bf16.gmra.mrb[0].mxu0 %v870
        %v1414 = vpop.f32.mrb[0].mxu0
        %v1415 = vadd.f32 %v945, %v1414
        %v1416 = vpop.f32.mrb[0].mxu0
        %v1417 = vadd.f32 %v949, %v1416
        %v1418 = vpop.f32.mrb[0].mxu0
        %v1419 = vadd.f32 %v945, %v1418
        %v1420 = vpop.f32.mrb[0].mxu0
        %v1421 = vadd.f32 %v949, %v1420
        %1422 = vmatprep.mubr.bf16.mxu0 0
        %1423 = vmatmul.mubr.bf16.gmra.mrb[0].mxu0 %v871
        %v1424 = vpop.f32.mrb[0].mxu0
        %v1425 = vadd.f32 %v945, %v1424
        %v1426 = vpop.f32.mrb[0].mxu0
        %v1427 = vadd.f32 %v949, %v1426
        %v1428 = vpop.f32.mrb[0].mxu0
        %v1429 = vadd.f32 %v945, %v1428
        %v1430 = vpop.f32.mrb[0].mxu0
        %v1431 = vadd.f32 %v949, %v1430
        %1432 = vmatprep.mubr.bf16.mxu0 0
        %1433 = vmatmul.mubr.bf16.gmra.mrb[0].mxu0 %v872
        %v1434 = vpop.f32.mrb[0].mxu0
        %v1435 = vadd.f32 %v945, %v1434
        %v1436 = vpop.f32.mrb[0].mxu0
        %v1437 = vadd.f32 %v949, %v1436
        %v1438 = vpop.f32.mrb[0].mxu0
        %v1439 = vadd.f32 %v945, %v1438
        %v1440 = vpop.f32.mrb[0].mxu0
        %v1441 = vadd.f32 %v949, %v1440
        %1442 = vmatprep.mubr.bf16.mxu0 0
        %1443 = vmatmul.mubr.bf16.gmra.mrb[0].mxu0 %v873
        %v1444 = vpop.f32.mrb[0].mxu0
        %v1445 = vadd.f32 %v945, %v1444
        %v1446 = vpop.f32.mrb[0].mxu0
        %v1447 = vadd.f32 %v949, %v1446
        %v1448 = vpop.f32.mrb[0].mxu0
        %v1449 = vadd.f32 %v945, %v1448
        %v1450 = vpop.f32.mrb[0].mxu0
        %v1451 = vadd.f32 %v949, %v1450
        %1452 = vmatprep.mubr.bf16.mxu0 0
        %1453 = vmatmul.mubr.bf16.gmra.mrb[0].mxu0 %v874
        %v1454 = vpop.f32.mrb[0].mxu0
        %v1455 = vadd.f32 %v945, %v1454
        %v1456 = vpop.f32.mrb[0].mxu0
        %v1457 = vadd.f32 %v949, %v1456
        %v1458 = vpop.f32.mrb[0].mxu0
        %v1459 = vadd.f32 %v945, %v1458
        %v1460 = vpop.f32.mrb[0].mxu0
        %v1461 = vadd.f32 %v949, %v1460
        %1462 = vmatprep.mubr.bf16.mxu0 0
        %1463 = vmatmul.mubr.bf16.gmra.mrb[0].mxu0 %v875
        %v1464 = vpop.f32.mrb[0].mxu0
        %v1465 = vadd.f32 %v945, %v1464
        %v1466 = vpop.f32.mrb[0].mxu0
        %v1467 = vadd.f32 %v949, %v1466
        %v1468 = vpop.f32.mrb[0].mxu0
        %v1469 = vadd.f32 %v945, %v1468
        %v1470 = vpop.f32.mrb[0].mxu0
        %v1471 = vadd.f32 %v949, %v1470
        %1472 = vmatprep.mubr.bf16.mxu0 0
        %1473 = vmatmul.mubr.bf16.gmra.mrb[0].mxu0 %v876
        %v1474 = vpop.f32.mrb[0].mxu0
        %v1475 = vadd.f32 %v945, %v1474
        %v1476 = vpop.f32.mrb[0].mxu0
        %v1477 = vadd.f32 %v949, %v1476
        %v1478 = vpop.f32.mrb[0].mxu0
        %v1479 = vadd.f32 %v945, %v1478
        %v1480 = vpop.f32.mrb[0].mxu0
        %v1481 = vadd.f32 %v949, %v1480
        %1482 = vmatprep.mubr.bf16.mxu0 0
        %1483 = vmatmul.mubr.bf16.gmra.mrb[0].mxu0 %v877
        %v1484 = vpop.f32.mrb[0].mxu0
        %v1485 = vadd.f32 %v945, %v1484
        %v1486 = vpop.f32.mrb[0].mxu0
        %v1487 = vadd.f32 %v949, %v1486
        %v1488 = vpop.f32.mrb[0].mxu0
        %v1489 = vadd.f32 %v945, %v1488
        %v1490 = vpop.f32.mrb[0].mxu0
        %v1491 = vadd.f32 %v949, %v1490
        %1492 = vmatprep.mubr.bf16.mxu0 0
        %1493 = vmatmul.mubr.bf16.gmra.mrb[0].mxu0 %v878
        %v1494 = vpop.f32.mrb[0].mxu0
        %v1495 = vadd.f32 %v945, %v1494
        %v1496 = vpop.f32.mrb[0].mxu0
        %v1497 = vadd.f32 %v949, %v1496
        %v1498 = vpop.f32.mrb[0].mxu0
        %v1499 = vadd.f32 %v945, %v1498
        %v1500 = vpop.f32.mrb[0].mxu0
        %v1501 = vadd.f32 %v949, %v1500
        %1502 = vmatprep.mubr.bf16.mxu0 0
        %1503 = vmatmul.mubr.bf16.gmra.mrb[0].mxu0 %v879
        %v1504 = vpop.f32.mrb[0].mxu0
        %v1505 = vadd.f32 %v945, %v1504
        %v1506 = vpop.f32.mrb[0].mxu0
        %v1507 = vadd.f32 %v949, %v1506
        %v1508 = vpop.f32.mrb[0].mxu0
        %v1509 = vadd.f32 %v945, %v1508
        %v1510 = vpop.f32.mrb[0].mxu0
        %v1511 = vadd.f32 %v949, %v1510
        %1512 = vmatprep.mubr.bf16.mxu0 0
        %1513 = vmatmul.mubr.bf16.gmra.mrb[0].mxu0 %v880
        %v1514 = vpop.f32.mrb[0].mxu0
        %v1515 = vadd.f32 %v945, %v1514
        %v1516 = vpop.f32.mrb[0].mxu0
        %v1517 = vadd.f32 %v949, %v1516
        %v1518 = vpop.f32.mrb[0].mxu0
        %v1519 = vadd.f32 %v945, %v1518
        %v1520 = vpop.f32.mrb[0].mxu0
        %v1521 = vadd.f32 %v949, %v1520
        %1522 = vmatprep.mubr.bf16.mxu0 0
        %1523 = vmatmul.mubr.bf16.gmra.mrb[0].mxu0 %v881
        %v1524 = vpop.f32.mrb[0].mxu0
        %v1525 = vadd.f32 %v945, %v1524
        %v1526 = vpop.f32.mrb[0].mxu0
        %v1527 = vadd.f32 %v949, %v1526
        %v1528 = vpop.f32.mrb[0].mxu0
        %v1529 = vadd.f32 %v945, %v1528
        %v1530 = vpop.f32.mrb[0].mxu0
        %v1531 = vadd.f32 %v949, %v1530
        %1532 = vmatprep.mubr.bf16.mxu0 0
        %1533 = vmatmul.mubr.bf16.gmra.mrb[0].mxu0 %v882
        %v1534 = vpop.f32.mrb[0].mxu0
        %v1535 = vadd.f32 %v945, %v1534
        %v1536 = vpop.f32.mrb[0].mxu0
        %v1537 = vadd.f32 %v949, %v1536
        %v1538 = vpop.f32.mrb[0].mxu0
        %v1539 = vadd.f32 %v945, %v1538
        %v1540 = vpop.f32.mrb[0].mxu0
        %v1541 = vadd.f32 %v949, %v1540
        %1542 = vmatprep.mubr.bf16.mxu0 0
        %1543 = vmatmul.mubr.bf16.gmra.mrb[0].mxu0 %v883
        %v1544 = vpop.f32.mrb[0].mxu0
        %v1545 = vadd.f32 %v945, %v1544
        %v1546 = vpop.f32.mrb[0].mxu0
        %v1547 = vadd.f32 %v949, %v1546
        %v1548 = vpop.f32.mrb[0].mxu0
        %v1549 = vadd.f32 %v945, %v1548
        %v1550 = vpop.f32.mrb[0].mxu0
        %v1551 = vadd.f32 %v949, %v1550
        %1552 = vdwg.mxu0
        %1553 = vmatprep.subr.bf16.mxu0 0
        %1554 = vmatpush1.bf16.msra.mxu0 %v1091
        %1555 = vmatprep.subr.bf16.mxu0 0
        %1556 = vmatpush1.bf16.msra.mxu0 %v1096
        %1557 = vmatprep.subr.bf16.mxu0 0
        %1558 = vmatpush1.bf16.msra.mxu0 %v1101
        %1559 = vmatprep.subr.bf16.mxu0 0
        %1560 = vmatpush1.bf16.msra.mxu0 %v1106
        %1561 = vmatprep.subr.bf16.mxu0 0
        %1562 = vmatpush1.bf16.msra.mxu0 %v1111
        %1563 = vmatprep.subr.bf16.mxu0 0
        %1564 = vmatpush1.bf16.msra.mxu0 %v1116
        %1565 = vmatprep.subr.bf16.mxu0 0
        %1566 = vmatpush1.bf16.msra.mxu0 %v1121
        %1567 = vmatprep.subr.bf16.mxu0 0
        %1568 = vmatpush1.bf16.msra.mxu0 %v1126
        %1569 = vmatprep.subr.bf16.mxu0 0
        %1570 = vmatpush1.bf16.msra.mxu0 0
        %1571 = vmatprep.subr.bf16.mxu0 0
        %1572 = vmatpush1.bf16.msra.mxu0 0
        %1573 = vmatprep.subr.bf16.mxu0 0
        %1574 = vmatpush1.bf16.msra.mxu0 0
        %1575 = vmatprep.subr.bf16.mxu0 0
        %1576 = vmatpush1.bf16.msra.mxu0 0
        %1577 = vmatprep.subr.bf16.mxu0 0
        %1578 = vmatpush1.bf16.msra.mxu0 0
        %1579 = vmatprep.subr.bf16.mxu0 0
        %1580 = vmatpush1.bf16.msra.mxu0 0
        %1581 = vmatprep.subr.bf16.mxu0 0
        %1582 = vmatpush1.bf16.msra.mxu0 0
        %1583 = vmatprep.subr.bf16.mxu0 0
        %1584 = vmatpush1.bf16.msra.mxu0 0
        %1585 = vmatprep.mubr.bf16.mxu0 0
        %1586 = vmatmul.mubr.bf16.gmra.mrb[0].mxu0 %v868
        %v1587 = vpop.f32.mrb[0].mxu0
        %v1588 = vadd.f32 %v953, %v1587
        %v1589 = vpop.f32.mrb[0].mxu0
        %v1590 = vpop.f32.mrb[0].mxu0
        %v1591 = vadd.f32 %v953, %v1590
        %v1592 = vpop.f32.mrb[0].mxu0
        %1593 = vmatprep.mubr.bf16.mxu0 0
        %1594 = vmatmul.mubr.bf16.gmra.mrb[0].mxu0 %v869
        %v1595 = vpop.f32.mrb[0].mxu0
        %v1596 = vadd.f32 %v953, %v1595
        %v1597 = vpop.f32.mrb[0].mxu0
        %v1598 = vpop.f32.mrb[0].mxu0
        %v1599 = vadd.f32 %v953, %v1598
        %v1600 = vpop.f32.mrb[0].mxu0
        %1601 = vmatprep.mubr.bf16.mxu0 0
        %1602 = vmatmul.mubr.bf16.gmra.mrb[0].mxu0 %v870
        %v1603 = vpop.f32.mrb[0].mxu0
        %v1604 = vadd.f32 %v953, %v1603
        %v1605 = vpop.f32.mrb[0].mxu0
        %v1606 = vpop.f32.mrb[0].mxu0
        %v1607 = vadd.f32 %v953, %v1606
        %v1608 = vpop.f32.mrb[0].mxu0
        %1609 = vmatprep.mubr.bf16.mxu0 0
        %1610 = vmatmul.mubr.bf16.gmra.mrb[0].mxu0 %v871
        %v1611 = vpop.f32.mrb[0].mxu0
        %v1612 = vadd.f32 %v953, %v1611
        %v1613 = vpop.f32.mrb[0].mxu0
        %v1614 = vpop.f32.mrb[0].mxu0
        %v1615 = vadd.f32 %v953, %v1614
        %v1616 = vpop.f32.mrb[0].mxu0
        %1617 = vmatprep.mubr.bf16.mxu0 0
        %1618 = vmatmul.mubr.bf16.gmra.mrb[0].mxu0 %v872
        %v1619 = vpop.f32.mrb[0].mxu0
        %v1620 = vadd.f32 %v953, %v1619
        %v1621 = vpop.f32.mrb[0].mxu0
        %v1622 = vpop.f32.mrb[0].mxu0
        %v1623 = vadd.f32 %v953, %v1622
        %v1624 = vpop.f32.mrb[0].mxu0
        %1625 = vmatprep.mubr.bf16.mxu0 0
        %1626 = vmatmul.mubr.bf16.gmra.mrb[0].mxu0 %v873
        %v1627 = vpop.f32.mrb[0].mxu0
        %v1628 = vadd.f32 %v953, %v1627
        %v1629 = vpop.f32.mrb[0].mxu0
        %v1630 = vpop.f32.mrb[0].mxu0
        %v1631 = vadd.f32 %v953, %v1630
        %v1632 = vpop.f32.mrb[0].mxu0
        %1633 = vmatprep.mubr.bf16.mxu0 0
        %1634 = vmatmul.mubr.bf16.gmra.mrb[0].mxu0 %v874
        %v1635 = vpop.f32.mrb[0].mxu0
        %v1636 = vadd.f32 %v953, %v1635
        %v1637 = vpop.f32.mrb[0].mxu0
        %v1638 = vpop.f32.mrb[0].mxu0
        %v1639 = vadd.f32 %v953, %v1638
        %v1640 = vpop.f32.mrb[0].mxu0
        %1641 = vmatprep.mubr.bf16.mxu0 0
        %1642 = vmatmul.mubr.bf16.gmra.mrb[0].mxu0 %v875
        %v1643 = vpop.f32.mrb[0].mxu0
        %v1644 = vadd.f32 %v953, %v1643
        %v1645 = vpop.f32.mrb[0].mxu0
        %v1646 = vpop.f32.mrb[0].mxu0
        %v1647 = vadd.f32 %v953, %v1646
        %v1648 = vpop.f32.mrb[0].mxu0
        %1649 = vmatprep.mubr.bf16.mxu0 0
        %1650 = vmatmul.mubr.bf16.gmra.mrb[0].mxu0 %v876
        %v1651 = vpop.f32.mrb[0].mxu0
        %v1652 = vadd.f32 %v953, %v1651
        %v1653 = vpop.f32.mrb[0].mxu0
        %v1654 = vpop.f32.mrb[0].mxu0
        %v1655 = vadd.f32 %v953, %v1654
        %v1656 = vpop.f32.mrb[0].mxu0
        %1657 = vmatprep.mubr.bf16.mxu0 0
        %1658 = vmatmul.mubr.bf16.gmra.mrb[0].mxu0 %v877
        %v1659 = vpop.f32.mrb[0].mxu0
        %v1660 = vadd.f32 %v953, %v1659
        %v1661 = vpop.f32.mrb[0].mxu0
        %v1662 = vpop.f32.mrb[0].mxu0
        %v1663 = vadd.f32 %v953, %v1662
        %v1664 = vpop.f32.mrb[0].mxu0
        %1665 = vmatprep.mubr.bf16.mxu0 0
        %1666 = vmatmul.mubr.bf16.gmra.mrb[0].mxu0 %v878
        %v1667 = vpop.f32.mrb[0].mxu0
        %v1668 = vadd.f32 %v953, %v1667
        %v1669 = vpop.f32.mrb[0].mxu0
        %v1670 = vpop.f32.mrb[0].mxu0
        %v1671 = vadd.f32 %v953, %v1670
        %v1672 = vpop.f32.mrb[0].mxu0
        %1673 = vmatprep.mubr.bf16.mxu0 0
        %1674 = vmatmul.mubr.bf16.gmra.mrb[0].mxu0 %v879
        %v1675 = vpop.f32.mrb[0].mxu0
        %v1676 = vadd.f32 %v953, %v1675
        %v1677 = vpop.f32.mrb[0].mxu0
        %v1678 = vpop.f32.mrb[0].mxu0
        %v1679 = vadd.f32 %v953, %v1678
        %v1680 = vpop.f32.mrb[0].mxu0
        %1681 = vmatprep.mubr.bf16.mxu0 0
        %1682 = vmatmul.mubr.bf16.gmra.mrb[0].mxu0 %v880
        %v1683 = vpop.f32.mrb[0].mxu0
        %v1684 = vadd.f32 %v953, %v1683
        %v1685 = vpop.f32.mrb[0].mxu0
        %v1686 = vpop.f32.mrb[0].mxu0
        %v1687 = vadd.f32 %v953, %v1686
        %v1688 = vpop.f32.mrb[0].mxu0
        %1689 = vmatprep.mubr.bf16.mxu0 0
        %1690 = vmatmul.mubr.bf16.gmra.mrb[0].mxu0 %v881
        %v1691 = vpop.f32.mrb[0].mxu0
        %v1692 = vadd.f32 %v953, %v1691
        %v1693 = vpop.f32.mrb[0].mxu0
        %v1694 = vpop.f32.mrb[0].mxu0
        %v1695 = vadd.f32 %v953, %v1694
        %v1696 = vpop.f32.mrb[0].mxu0
        %1697 = vmatprep.mubr.bf16.mxu0 0
        %1698 = vmatmul.mubr.bf16.gmra.mrb[0].mxu0 %v882
        %v1699 = vpop.f32.mrb[0].mxu0
        %v1700 = vadd.f32 %v953, %v1699
        %v1701 = vpop.f32.mrb[0].mxu0
        %v1702 = vpop.f32.mrb[0].mxu0
        %v1703 = vadd.f32 %v953, %v1702
        %v1704 = vpop.f32.mrb[0].mxu0
        %1705 = vmatprep.mubr.bf16.mxu0 0
        %1706 = vmatmul.mubr.bf16.gmra.mrb[0].mxu0 %v883
        %v1707 = vpop.f32.mrb[0].mxu0
        %v1708 = vadd.f32 %v953, %v1707
        %v1709 = vpop.f32.mrb[0].mxu0
        %v1710 = vpop.f32.mrb[0].mxu0
        %v1711 = vadd.f32 %v953, %v1710
        %v1712 = vpop.f32.mrb[0].mxu0
        %1713 = vdwg.mxu0
        %v1714 = vxor.u32 %v1202, 2147483648
        %v1715 = vxor.u32 %v1204, 2147483648
        %v1716 = vxor.u32 %v1395, 2147483648
        %v1717 = vxor.u32 %v1397, 2147483648
        %v1718 = vxor.u32 %v1588, 2147483648
        %v1719 = vxor.u32 %v1206, 2147483648
        %v1720 = vxor.u32 %v1208, 2147483648
        %v1721 = vxor.u32 %v1399, 2147483648
        %v1722 = vxor.u32 %v1401, 2147483648
        %v1723 = vxor.u32 %v1591, 2147483648
        %v1724 = vxor.u32 %v1212, 2147483648
        %v1725 = vxor.u32 %v1214, 2147483648
        %v1726 = vxor.u32 %v1405, 2147483648
        %v1727 = vxor.u32 %v1407, 2147483648
        %v1728 = vxor.u32 %v1596, 2147483648
        %v1729 = vxor.u32 %v1216, 2147483648
        %v1730 = vxor.u32 %v1218, 2147483648
        %v1731 = vxor.u32 %v1409, 2147483648
        %v1732 = vxor.u32 %v1411, 2147483648
        %v1733 = vxor.u32 %v1599, 2147483648
        %v1734 = vxor.u32 %v1222, 2147483648
        %v1735 = vxor.u32 %v1224, 2147483648
        %v1736 = vxor.u32 %v1415, 2147483648
        %v1737 = vxor.u32 %v1417, 2147483648
        %v1738 = vxor.u32 %v1604, 2147483648
        %v1739 = vxor.u32 %v1226, 2147483648
        %v1740 = vxor.u32 %v1228, 2147483648
        %v1741 = vxor.u32 %v1419, 2147483648
        %v1742 = vxor.u32 %v1421, 2147483648
        %v1743 = vxor.u32 %v1607, 2147483648
        %v1744 = vxor.u32 %v1232, 2147483648
        %v1745 = vxor.u32 %v1234, 2147483648
        %v1746 = vxor.u32 %v1425, 2147483648
        %v1747 = vxor.u32 %v1427, 2147483648
        %v1748 = vxor.u32 %v1612, 2147483648
        %v1749 = vxor.u32 %v1236, 2147483648
        %v1750 = vxor.u32 %v1238, 2147483648
        %v1751 = vxor.u32 %v1429, 2147483648
        %v1752 = vxor.u32 %v1431, 2147483648
        %v1753 = vxor.u32 %v1615, 2147483648
        %v1754 = vxor.u32 %v1242, 2147483648
        %v1755 = vxor.u32 %v1244, 2147483648
        %v1756 = vxor.u32 %v1435, 2147483648
        %v1757 = vxor.u32 %v1437, 2147483648
        %v1758 = vxor.u32 %v1620, 2147483648
        %v1759 = vxor.u32 %v1246, 2147483648
        %v1760 = vxor.u32 %v1248, 2147483648
        %v1761 = vxor.u32 %v1439, 2147483648
        %v1762 = vxor.u32 %v1441, 2147483648
        %v1763 = vxor.u32 %v1623, 2147483648
        %v1764 = vxor.u32 %v1252, 2147483648
        %v1765 = vxor.u32 %v1254, 2147483648
        %v1766 = vxor.u32 %v1445, 2147483648
        %v1767 = vxor.u32 %v1447, 2147483648
        %v1768 = vxor.u32 %v1628, 2147483648
        %v1769 = vxor.u32 %v1256, 2147483648
        %v1770 = vxor.u32 %v1258, 2147483648
        %v1771 = vxor.u32 %v1449, 2147483648
        %v1772 = vxor.u32 %v1451, 2147483648
        %v1773 = vxor.u32 %v1631, 2147483648
        %v1774 = vxor.u32 %v1262, 2147483648
        %v1775 = vxor.u32 %v1264, 2147483648
        %v1776 = vxor.u32 %v1455, 2147483648
        %v1777 = vxor.u32 %v1457, 2147483648
        %v1778 = vxor.u32 %v1636, 2147483648
        %v1779 = vxor.u32 %v1266, 2147483648
        %v1780 = vxor.u32 %v1268, 2147483648
        %v1781 = vxor.u32 %v1459, 2147483648
        %v1782 = vxor.u32 %v1461, 2147483648
        %v1783 = vxor.u32 %v1639, 2147483648
        %v1784 = vxor.u32 %v1272, 2147483648
        %v1785 = vxor.u32 %v1274, 2147483648
        %v1786 = vxor.u32 %v1465, 2147483648
        %v1787 = vxor.u32 %v1467, 2147483648
        %v1788 = vxor.u32 %v1644, 2147483648
        %v1789 = vxor.u32 %v1276, 2147483648
        %v1790 = vxor.u32 %v1278, 2147483648
        %v1791 = vxor.u32 %v1469, 2147483648
        %v1792 = vxor.u32 %v1471, 2147483648
        %v1793 = vxor.u32 %v1647, 2147483648
        %v1794 = vxor.u32 %v1282, 2147483648
        %v1795 = vxor.u32 %v1284, 2147483648
        %v1796 = vxor.u32 %v1475, 2147483648
        %v1797 = vxor.u32 %v1477, 2147483648
        %v1798 = vxor.u32 %v1652, 2147483648
        %v1799 = vxor.u32 %v1286, 2147483648
        %v1800 = vxor.u32 %v1288, 2147483648
        %v1801 = vxor.u32 %v1479, 2147483648
        %v1802 = vxor.u32 %v1481, 2147483648
        %v1803 = vxor.u32 %v1655, 2147483648
        %v1804 = vxor.u32 %v1292, 2147483648
        %v1805 = vxor.u32 %v1294, 2147483648
        %v1806 = vxor.u32 %v1485, 2147483648
        %v1807 = vxor.u32 %v1487, 2147483648
        %v1808 = vxor.u32 %v1660, 2147483648
        %v1809 = vxor.u32 %v1296, 2147483648
        %v1810 = vxor.u32 %v1298, 2147483648
        %v1811 = vxor.u32 %v1489, 2147483648
        %v1812 = vxor.u32 %v1491, 2147483648
        %v1813 = vxor.u32 %v1663, 2147483648
        %v1814 = vxor.u32 %v1302, 2147483648
        %v1815 = vxor.u32 %v1304, 2147483648
        %v1816 = vxor.u32 %v1495, 2147483648
        %v1817 = vxor.u32 %v1497, 2147483648
        %v1818 = vxor.u32 %v1668, 2147483648
        %v1819 = vxor.u32 %v1306, 2147483648
        %v1820 = vxor.u32 %v1308, 2147483648
        %v1821 = vxor.u32 %v1499, 2147483648
        %v1822 = vxor.u32 %v1501, 2147483648
        %v1823 = vxor.u32 %v1671, 2147483648
        %v1824 = vxor.u32 %v1312, 2147483648
        %v1825 = vxor.u32 %v1314, 2147483648
        %v1826 = vxor.u32 %v1505, 2147483648
        %v1827 = vxor.u32 %v1507, 2147483648
        %v1828 = vxor.u32 %v1676, 2147483648
        %v1829 = vxor.u32 %v1316, 2147483648
        %v1830 = vxor.u32 %v1318, 2147483648
        %v1831 = vxor.u32 %v1509, 2147483648
        %v1832 = vxor.u32 %v1511, 2147483648
        %v1833 = vxor.u32 %v1679, 2147483648
        %v1834 = vxor.u32 %v1322, 2147483648
        %v1835 = vxor.u32 %v1324, 2147483648
        %v1836 = vxor.u32 %v1515, 2147483648
        %v1837 = vxor.u32 %v1517, 2147483648
        %v1838 = vxor.u32 %v1684, 2147483648
        %v1839 = vxor.u32 %v1326, 2147483648
        %v1840 = vxor.u32 %v1328, 2147483648
        %v1841 = vxor.u32 %v1519, 2147483648
        %v1842 = vxor.u32 %v1521, 2147483648
        %v1843 = vxor.u32 %v1687, 2147483648
        %v1844 = vxor.u32 %v1332, 2147483648
        %v1845 = vxor.u32 %v1334, 2147483648
        %v1846 = vxor.u32 %v1525, 2147483648
        %v1847 = vxor.u32 %v1527, 2147483648
        %v1848 = vxor.u32 %v1692, 2147483648
        %v1849 = vxor.u32 %v1336, 2147483648
        %v1850 = vxor.u32 %v1338, 2147483648
        %v1851 = vxor.u32 %v1529, 2147483648
        %v1852 = vxor.u32 %v1531, 2147483648
        %v1853 = vxor.u32 %v1695, 2147483648
        %v1854 = vxor.u32 %v1342, 2147483648
        %v1855 = vxor.u32 %v1344, 2147483648
        %v1856 = vxor.u32 %v1535, 2147483648
        %v1857 = vxor.u32 %v1537, 2147483648
        %v1858 = vxor.u32 %v1700, 2147483648
        %v1859 = vxor.u32 %v1346, 2147483648
        %v1860 = vxor.u32 %v1348, 2147483648
        %v1861 = vxor.u32 %v1539, 2147483648
        %v1862 = vxor.u32 %v1541, 2147483648
        %v1863 = vxor.u32 %v1703, 2147483648
        %v1864 = vxor.u32 %v1352, 2147483648
        %v1865 = vxor.u32 %v1354, 2147483648
        %v1866 = vxor.u32 %v1545, 2147483648
        %v1867 = vxor.u32 %v1547, 2147483648
        %v1868 = vxor.u32 %v1708, 2147483648
        %v1869 = vxor.u32 %v1356, 2147483648
        %v1870 = vxor.u32 %v1358, 2147483648
        %v1871 = vxor.u32 %v1549, 2147483648
        %v1872 = vxor.u32 %v1551, 2147483648
        %v1873 = vxor.u32 %v1711, 2147483648
        %v1874 = vmul.f32 %v1714, 1.442695
        %v1875 = vpow.pop %v1874
        %v1876 = vmul.f32 %v1715, 1.442695
        %v1877 = vpow.pop %v1876
        %v1878 = vmul.f32 %v1716, 1.442695
        %v1879 = vpow.pop %v1878
        %v1880 = vmul.f32 %v1717, 1.442695
        %v1881 = vpow.pop %v1880
        %v1882 = vmul.f32 %v1718, 1.442695
        %v1883 = vpow.pop %v1882
        %v1884 = vmul.f32 %v1719, 1.442695
        %v1885 = vpow.pop %v1884
        %v1886 = vmul.f32 %v1720, 1.442695
        %v1887 = vpow.pop %v1886
        %v1888 = vmul.f32 %v1721, 1.442695
        %v1889 = vpow.pop %v1888
        %v1890 = vmul.f32 %v1722, 1.442695
        %v1891 = vpow.pop %v1890
        %v1892 = vmul.f32 %v1723, 1.442695
        %v1893 = vpow.pop %v1892
        %v1894 = vmul.f32 %v1724, 1.442695
        %v1895 = vpow.pop %v1894
        %v1896 = vmul.f32 %v1725, 1.442695
        %v1897 = vpow.pop %v1896
        %v1898 = vmul.f32 %v1726, 1.442695
        %v1899 = vpow.pop %v1898
        %v1900 = vmul.f32 %v1727, 1.442695
        %v1901 = vpow.pop %v1900
        %v1902 = vmul.f32 %v1728, 1.442695
        %v1903 = vpow.pop %v1902
        %v1904 = vmul.f32 %v1729, 1.442695
        %v1905 = vpow.pop %v1904
        %v1906 = vmul.f32 %v1730, 1.442695
        %v1907 = vpow.pop %v1906
        %v1908 = vmul.f32 %v1731, 1.442695
        %v1909 = vpow.pop %v1908
        %v1910 = vmul.f32 %v1732, 1.442695
        %v1911 = vpow.pop %v1910
        %v1912 = vmul.f32 %v1733, 1.442695
        %v1913 = vpow.pop %v1912
        %v1914 = vmul.f32 %v1734, 1.442695
        %v1915 = vpow.pop %v1914
        %v1916 = vmul.f32 %v1735, 1.442695
        %v1917 = vpow.pop %v1916
        %v1918 = vmul.f32 %v1736, 1.442695
        %v1919 = vpow.pop %v1918
        %v1920 = vmul.f32 %v1737, 1.442695
        %v1921 = vpow.pop %v1920
        %v1922 = vmul.f32 %v1738, 1.442695
        %v1923 = vpow.pop %v1922
        %v1924 = vmul.f32 %v1739, 1.442695
        %v1925 = vpow.pop %v1924
        %v1926 = vmul.f32 %v1740, 1.442695
        %v1927 = vpow.pop %v1926
        %v1928 = vmul.f32 %v1741, 1.442695
        %v1929 = vpow.pop %v1928
        %v1930 = vmul.f32 %v1742, 1.442695
        %v1931 = vpow.pop %v1930
        %v1932 = vmul.f32 %v1743, 1.442695
        %v1933 = vpow.pop %v1932
        %v1934 = vmul.f32 %v1744, 1.442695
        %v1935 = vpow.pop %v1934
        %v1936 = vmul.f32 %v1745, 1.442695
        %v1937 = vpow.pop %v1936
        %v1938 = vmul.f32 %v1746, 1.442695
        %v1939 = vpow.pop %v1938
        %v1940 = vmul.f32 %v1747, 1.442695
        %v1941 = vpow.pop %v1940
        %v1942 = vmul.f32 %v1748, 1.442695
        %v1943 = vpow.pop %v1942
        %v1944 = vmul.f32 %v1749, 1.442695
        %v1945 = vpow.pop %v1944
        %v1946 = vmul.f32 %v1750, 1.442695
        %v1947 = vpow.pop %v1946
        %v1948 = vmul.f32 %v1751, 1.442695
        %v1949 = vpow.pop %v1948
        %v1950 = vmul.f32 %v1752, 1.442695
        %v1951 = vpow.pop %v1950
        %v1952 = vmul.f32 %v1753, 1.442695
        %v1953 = vpow.pop %v1952
        %v1954 = vmul.f32 %v1754, 1.442695
        %v1955 = vpow.pop %v1954
        %v1956 = vmul.f32 %v1755, 1.442695
        %v1957 = vpow.pop %v1956
        %v1958 = vmul.f32 %v1756, 1.442695
        %v1959 = vpow.pop %v1958
        %v1960 = vmul.f32 %v1757, 1.442695
        %v1961 = vpow.pop %v1960
        %v1962 = vmul.f32 %v1758, 1.442695
        %v1963 = vpow.pop %v1962
        %v1964 = vmul.f32 %v1759, 1.442695
        %v1965 = vpow.pop %v1964
        %v1966 = vmul.f32 %v1760, 1.442695
        %v1967 = vpow.pop %v1966
        %v1968 = vmul.f32 %v1761, 1.442695
        %v1969 = vpow.pop %v1968
        %v1970 = vmul.f32 %v1762, 1.442695
        %v1971 = vpow.pop %v1970
        %v1972 = vmul.f32 %v1763, 1.442695
        %v1973 = vpow.pop %v1972
        %v1974 = vmul.f32 %v1764, 1.442695
        %v1975 = vpow.pop %v1974
        %v1976 = vmul.f32 %v1765, 1.442695
        %v1977 = vpow.pop %v1976
        %v1978 = vmul.f32 %v1766, 1.442695
        %v1979 = vpow.pop %v1978
        %v1980 = vmul.f32 %v1767, 1.442695
        %v1981 = vpow.pop %v1980
        %v1982 = vmul.f32 %v1768, 1.442695
        %v1983 = vpow.pop %v1982
        %v1984 = vmul.f32 %v1769, 1.442695
        %v1985 = vpow.pop %v1984
        %v1986 = vmul.f32 %v1770, 1.442695
        %v1987 = vpow.pop %v1986
        %v1988 = vmul.f32 %v1771, 1.442695
        %v1989 = vpow.pop %v1988
        %v1990 = vmul.f32 %v1772, 1.442695
        %v1991 = vpow.pop %v1990
        %v1992 = vmul.f32 %v1773, 1.442695
        %v1993 = vpow.pop %v1992
        %v1994 = vmul.f32 %v1774, 1.442695
        %v1995 = vpow.pop %v1994
        %v1996 = vmul.f32 %v1775, 1.442695
        %v1997 = vpow.pop %v1996
        %v1998 = vmul.f32 %v1776, 1.442695
        %v1999 = vpow.pop %v1998
        %v2000 = vmul.f32 %v1777, 1.442695
        %v2001 = vpow.pop %v2000
        %v2002 = vmul.f32 %v1778, 1.442695
        %v2003 = vpow.pop %v2002
        %v2004 = vmul.f32 %v1779, 1.442695
        %v2005 = vpow.pop %v2004
        %v2006 = vmul.f32 %v1780, 1.442695
        %v2007 = vpow.pop %v2006
        %v2008 = vmul.f32 %v1781, 1.442695
        %v2009 = vpow.pop %v2008
        %v2010 = vmul.f32 %v1782, 1.442695
        %v2011 = vpow.pop %v2010
        %v2012 = vmul.f32 %v1783, 1.442695
        %v2013 = vpow.pop %v2012
        %v2014 = vmul.f32 %v1784, 1.442695
        %v2015 = vpow.pop %v2014
        %v2016 = vmul.f32 %v1785, 1.442695
        %v2017 = vpow.pop %v2016
        %v2018 = vmul.f32 %v1786, 1.442695
        %v2019 = vpow.pop %v2018
        %v2020 = vmul.f32 %v1787, 1.442695
        %v2021 = vpow.pop %v2020
        %v2022 = vmul.f32 %v1788, 1.442695
        %v2023 = vpow.pop %v2022
        %v2024 = vmul.f32 %v1789, 1.442695
        %v2025 = vpow.pop %v2024
        %v2026 = vmul.f32 %v1790, 1.442695
        %v2027 = vpow.pop %v2026
        %v2028 = vmul.f32 %v1791, 1.442695
        %v2029 = vpow.pop %v2028
        %v2030 = vmul.f32 %v1792, 1.442695
        %v2031 = vpow.pop %v2030
        %v2032 = vmul.f32 %v1793, 1.442695
        %v2033 = vpow.pop %v2032
        %v2034 = vmul.f32 %v1794, 1.442695
        %v2035 = vpow.pop %v2034
        %v2036 = vmul.f32 %v1795, 1.442695
        %v2037 = vpow.pop %v2036
        %v2038 = vmul.f32 %v1796, 1.442695
        %v2039 = vpow.pop %v2038
        %v2040 = vmul.f32 %v1797, 1.442695
        %v2041 = vpow.pop %v2040
        %v2042 = vmul.f32 %v1798, 1.442695
        %v2043 = vpow.pop %v2042
        %v2044 = vmul.f32 %v1799, 1.442695
        %v2045 = vpow.pop %v2044
        %v2046 = vmul.f32 %v1800, 1.442695
        %v2047 = vpow.pop %v2046
        %v2048 = vmul.f32 %v1801, 1.442695
        %v2049 = vpow.pop %v2048
        %v2050 = vmul.f32 %v1802, 1.442695
        %v2051 = vpow.pop %v2050
        %v2052 = vmul.f32 %v1803, 1.442695
        %v2053 = vpow.pop %v2052
        %v2054 = vmul.f32 %v1804, 1.442695
        %v2055 = vpow.pop %v2054
        %v2056 = vmul.f32 %v1805, 1.442695
        %v2057 = vpow.pop %v2056
        %v2058 = vmul.f32 %v1806, 1.442695
        %v2059 = vpow.pop %v2058
        %v2060 = vmul.f32 %v1807, 1.442695
        %v2061 = vpow.pop %v2060
        %v2062 = vmul.f32 %v1808, 1.442695
        %v2063 = vpow.pop %v2062
        %v2064 = vmul.f32 %v1809, 1.442695
        %v2065 = vpow.pop %v2064
        %v2066 = vmul.f32 %v1810, 1.442695
        %v2067 = vpow.pop %v2066
        %v2068 = vmul.f32 %v1811, 1.442695
        %v2069 = vpow.pop %v2068
        %v2070 = vmul.f32 %v1812, 1.442695
        %v2071 = vpow.pop %v2070
        %v2072 = vmul.f32 %v1813, 1.442695
        %v2073 = vpow.pop %v2072
        %v2074 = vmul.f32 %v1814, 1.442695
        %v2075 = vpow.pop %v2074
        %v2076 = vmul.f32 %v1815, 1.442695
        %v2077 = vpow.pop %v2076
        %v2078 = vmul.f32 %v1816, 1.442695
        %v2079 = vpow.pop %v2078
        %v2080 = vmul.f32 %v1817, 1.442695
        %v2081 = vpow.pop %v2080
        %v2082 = vmul.f32 %v1818, 1.442695
        %v2083 = vpow.pop %v2082
        %v2084 = vmul.f32 %v1819, 1.442695
        %v2085 = vpow.pop %v2084
        %v2086 = vmul.f32 %v1820, 1.442695
        %v2087 = vpow.pop %v2086
        %v2088 = vmul.f32 %v1821, 1.442695
        %v2089 = vpow.pop %v2088
        %v2090 = vmul.f32 %v1822, 1.442695
        %v2091 = vpow.pop %v2090
        %v2092 = vmul.f32 %v1823, 1.442695
        %v2093 = vpow.pop %v2092
        %v2094 = vmul.f32 %v1824, 1.442695
        %v2095 = vpow.pop %v2094
        %v2096 = vmul.f32 %v1825, 1.442695
        %v2097 = vpow.pop %v2096
        %v2098 = vmul.f32 %v1826, 1.442695
        %v2099 = vpow.pop %v2098
        %v2100 = vmul.f32 %v1827, 1.442695
        %v2101 = vpow.pop %v2100
        %v2102 = vmul.f32 %v1828, 1.442695
        %v2103 = vpow.pop %v2102
        %v2104 = vmul.f32 %v1829, 1.442695
        %v2105 = vpow.pop %v2104
        %v2106 = vmul.f32 %v1830, 1.442695
        %v2107 = vpow.pop %v2106
        %v2108 = vmul.f32 %v1831, 1.442695
        %v2109 = vpow.pop %v2108
        %v2110 = vmul.f32 %v1832, 1.442695
        %v2111 = vpow.pop %v2110
        %v2112 = vmul.f32 %v1833, 1.442695
        %v2113 = vpow.pop %v2112
        %v2114 = vmul.f32 %v1834, 1.442695
        %v2115 = vpow.pop %v2114
        %v2116 = vmul.f32 %v1835, 1.442695
        %v2117 = vpow.pop %v2116
        %v2118 = vmul.f32 %v1836, 1.442695
        %v2119 = vpow.pop %v2118
        %v2120 = vmul.f32 %v1837, 1.442695
        %v2121 = vpow.pop %v2120
        %v2122 = vmul.f32 %v1838, 1.442695
        %v2123 = vpow.pop %v2122
        %v2124 = vmul.f32 %v1839, 1.442695
        %v2125 = vpow.pop %v2124
        %v2126 = vmul.f32 %v1840, 1.442695
        %v2127 = vpow.pop %v2126
        %v2128 = vmul.f32 %v1841, 1.442695
        %v2129 = vpow.pop %v2128
        %v2130 = vmul.f32 %v1842, 1.442695
        %v2131 = vpow.pop %v2130
        %v2132 = vmul.f32 %v1843, 1.442695
        %v2133 = vpow.pop %v2132
        %v2134 = vmul.f32 %v1844, 1.442695
        %v2135 = vpow.pop %v2134
        %v2136 = vmul.f32 %v1845, 1.442695
        %v2137 = vpow.pop %v2136
        %v2138 = vmul.f32 %v1846, 1.442695
        %v2139 = vpow.pop %v2138
        %v2140 = vmul.f32 %v1847, 1.442695
        %v2141 = vpow.pop %v2140
        %v2142 = vmul.f32 %v1848, 1.442695
        %v2143 = vpow.pop %v2142
        %v2144 = vmul.f32 %v1849, 1.442695
        %v2145 = vpow.pop %v2144
        %v2146 = vmul.f32 %v1850, 1.442695
        %v2147 = vpow.pop %v2146
        %v2148 = vmul.f32 %v1851, 1.442695
        %v2149 = vpow.pop %v2148
        %v2150 = vmul.f32 %v1852, 1.442695
        %v2151 = vpow.pop %v2150
        %v2152 = vmul.f32 %v1853, 1.442695
        %v2153 = vpow.pop %v2152
        %v2154 = vmul.f32 %v1854, 1.442695
        %v2155 = vpow.pop %v2154
        %v2156 = vmul.f32 %v1855, 1.442695
        %v2157 = vpow.pop %v2156
        %v2158 = vmul.f32 %v1856, 1.442695
        %v2159 = vpow.pop %v2158
        %v2160 = vmul.f32 %v1857, 1.442695
        %v2161 = vpow.pop %v2160
        %v2162 = vmul.f32 %v1858, 1.442695
        %v2163 = vpow.pop %v2162
        %v2164 = vmul.f32 %v1859, 1.442695
        %v2165 = vpow.pop %v2164
        %v2166 = vmul.f32 %v1860, 1.442695
        %v2167 = vpow.pop %v2166
        %v2168 = vmul.f32 %v1861, 1.442695
        %v2169 = vpow.pop %v2168
        %v2170 = vmul.f32 %v1862, 1.442695
        %v2171 = vpow.pop %v2170
        %v2172 = vmul.f32 %v1863, 1.442695
        %v2173 = vpow.pop %v2172
        %v2174 = vmul.f32 %v1864, 1.442695
        %v2175 = vpow.pop %v2174
        %v2176 = vmul.f32 %v1865, 1.442695
        %v2177 = vpow.pop %v2176
        %v2178 = vmul.f32 %v1866, 1.442695
        %v2179 = vpow.pop %v2178
        %v2180 = vmul.f32 %v1867, 1.442695
        %v2181 = vpow.pop %v2180
        %v2182 = vmul.f32 %v1868, 1.442695
        %v2183 = vpow.pop %v2182
        %v2184 = vmul.f32 %v1869, 1.442695
        %v2185 = vpow.pop %v2184
        %v2186 = vmul.f32 %v1870, 1.442695
        %v2187 = vpow.pop %v2186
        %v2188 = vmul.f32 %v1871, 1.442695
        %v2189 = vpow.pop %v2188
        %v2190 = vmul.f32 %v1872, 1.442695
        %v2191 = vpow.pop %v2190
        %v2192 = vmul.f32 %v1873, 1.442695
        %v2193 = vpow.pop %v2192
        %v2194 = vadd.f32 %v1875, 1.0
        %v2195 = vadd.f32 %v1877, 1.0
        %v2196 = vadd.f32 %v1879, 1.0
        %v2197 = vadd.f32 %v1881, 1.0
        %v2198 = vadd.f32 %v1883, 1.0
        %v2199 = vadd.f32 %v1885, 1.0
        %v2200 = vadd.f32 %v1887, 1.0
        %v2201 = vadd.f32 %v1889, 1.0
        %v2202 = vadd.f32 %v1891, 1.0
        %v2203 = vadd.f32 %v1893, 1.0
        %v2204 = vadd.f32 %v1895, 1.0
        %v2205 = vadd.f32 %v1897, 1.0
        %v2206 = vadd.f32 %v1899, 1.0
        %v2207 = vadd.f32 %v1901, 1.0
        %v2208 = vadd.f32 %v1903, 1.0
        %v2209 = vadd.f32 %v1905, 1.0
        %v2210 = vadd.f32 %v1907, 1.0
        %v2211 = vadd.f32 %v1909, 1.0
        %v2212 = vadd.f32 %v1911, 1.0
        %v2213 = vadd.f32 %v1913, 1.0
        %v2214 = vadd.f32 %v1915, 1.0
        %v2215 = vadd.f32 %v1917, 1.0
        %v2216 = vadd.f32 %v1919, 1.0
        %v2217 = vadd.f32 %v1921, 1.0
        %v2218 = vadd.f32 %v1923, 1.0
        %v2219 = vadd.f32 %v1925, 1.0
        %v2220 = vadd.f32 %v1927, 1.0
        %v2221 = vadd.f32 %v1929, 1.0
        %v2222 = vadd.f32 %v1931, 1.0
        %v2223 = vadd.f32 %v1933, 1.0
        %v2224 = vadd.f32 %v1935, 1.0
        %v2225 = vadd.f32 %v1937, 1.0
        %v2226 = vadd.f32 %v1939, 1.0
        %v2227 = vadd.f32 %v1941, 1.0
        %v2228 = vadd.f32 %v1943, 1.0
        %v2229 = vadd.f32 %v1945, 1.0
        %v2230 = vadd.f32 %v1947, 1.0
        %v2231 = vadd.f32 %v1949, 1.0
        %v2232 = vadd.f32 %v1951, 1.0
        %v2233 = vadd.f32 %v1953, 1.0
        %v2234 = vadd.f32 %v1955, 1.0
        %v2235 = vadd.f32 %v1957, 1.0
        %v2236 = vadd.f32 %v1959, 1.0
        %v2237 = vadd.f32 %v1961, 1.0
        %v2238 = vadd.f32 %v1963, 1.0
        %v2239 = vadd.f32 %v1965, 1.0
        %v2240 = vadd.f32 %v1967, 1.0
        %v2241 = vadd.f32 %v1969, 1.0
        %v2242 = vadd.f32 %v1971, 1.0
        %v2243 = vadd.f32 %v1973, 1.0
        %v2244 = vadd.f32 %v1975, 1.0
        %v2245 = vadd.f32 %v1977, 1.0
        %v2246 = vadd.f32 %v1979, 1.0
        %v2247 = vadd.f32 %v1981, 1.0
        %v2248 = vadd.f32 %v1983, 1.0
        %v2249 = vadd.f32 %v1985, 1.0
        %v2250 = vadd.f32 %v1987, 1.0
        %v2251 = vadd.f32 %v1989, 1.0
        %v2252 = vadd.f32 %v1991, 1.0
        %v2253 = vadd.f32 %v1993, 1.0
        %v2254 = vadd.f32 %v1995, 1.0
        %v2255 = vadd.f32 %v1997, 1.0
        %v2256 = vadd.f32 %v1999, 1.0
        %v2257 = vadd.f32 %v2001, 1.0
        %v2258 = vadd.f32 %v2003, 1.0
        %v2259 = vadd.f32 %v2005, 1.0
        %v2260 = vadd.f32 %v2007, 1.0
        %v2261 = vadd.f32 %v2009, 1.0
        %v2262 = vadd.f32 %v2011, 1.0
        %v2263 = vadd.f32 %v2013, 1.0
        %v2264 = vadd.f32 %v2015, 1.0
        %v2265 = vadd.f32 %v2017, 1.0
        %v2266 = vadd.f32 %v2019, 1.0
        %v2267 = vadd.f32 %v2021, 1.0
        %v2268 = vadd.f32 %v2023, 1.0
        %v2269 = vadd.f32 %v2025, 1.0
        %v2270 = vadd.f32 %v2027, 1.0
        %v2271 = vadd.f32 %v2029, 1.0
        %v2272 = vadd.f32 %v2031, 1.0
        %v2273 = vadd.f32 %v2033, 1.0
        %v2274 = vadd.f32 %v2035, 1.0
        %v2275 = vadd.f32 %v2037, 1.0
        %v2276 = vadd.f32 %v2039, 1.0
        %v2277 = vadd.f32 %v2041, 1.0
        %v2278 = vadd.f32 %v2043, 1.0
        %v2279 = vadd.f32 %v2045, 1.0
        %v2280 = vadd.f32 %v2047, 1.0
        %v2281 = vadd.f32 %v2049, 1.0
        %v2282 = vadd.f32 %v2051, 1.0
        %v2283 = vadd.f32 %v2053, 1.0
        %v2284 = vadd.f32 %v2055, 1.0
        %v2285 = vadd.f32 %v2057, 1.0
        %v2286 = vadd.f32 %v2059, 1.0
        %v2287 = vadd.f32 %v2061, 1.0
        %v2288 = vadd.f32 %v2063, 1.0
        %v2289 = vadd.f32 %v2065, 1.0
        %v2290 = vadd.f32 %v2067, 1.0
        %v2291 = vadd.f32 %v2069, 1.0
        %v2292 = vadd.f32 %v2071, 1.0
        %v2293 = vadd.f32 %v2073, 1.0
        %v2294 = vadd.f32 %v2075, 1.0
        %v2295 = vadd.f32 %v2077, 1.0
        %v2296 = vadd.f32 %v2079, 1.0
        %v2297 = vadd.f32 %v2081, 1.0
        %v2298 = vadd.f32 %v2083, 1.0
        %v2299 = vadd.f32 %v2085, 1.0
        %v2300 = vadd.f32 %v2087, 1.0
        %v2301 = vadd.f32 %v2089, 1.0
        %v2302 = vadd.f32 %v2091, 1.0
        %v2303 = vadd.f32 %v2093, 1.0
        %v2304 = vadd.f32 %v2095, 1.0
        %v2305 = vadd.f32 %v2097, 1.0
        %v2306 = vadd.f32 %v2099, 1.0
        %v2307 = vadd.f32 %v2101, 1.0
        %v2308 = vadd.f32 %v2103, 1.0
        %v2309 = vadd.f32 %v2105, 1.0
        %v2310 = vadd.f32 %v2107, 1.0
        %v2311 = vadd.f32 %v2109, 1.0
        %v2312 = vadd.f32 %v2111, 1.0
        %v2313 = vadd.f32 %v2113, 1.0
        %v2314 = vadd.f32 %v2115, 1.0
        %v2315 = vadd.f32 %v2117, 1.0
        %v2316 = vadd.f32 %v2119, 1.0
        %v2317 = vadd.f32 %v2121, 1.0
        %v2318 = vadd.f32 %v2123, 1.0
        %v2319 = vadd.f32 %v2125, 1.0
        %v2320 = vadd.f32 %v2127, 1.0
        %v2321 = vadd.f32 %v2129, 1.0
        %v2322 = vadd.f32 %v2131, 1.0
        %v2323 = vadd.f32 %v2133, 1.0
        %v2324 = vadd.f32 %v2135, 1.0
        %v2325 = vadd.f32 %v2137, 1.0
        %v2326 = vadd.f32 %v2139, 1.0
        %v2327 = vadd.f32 %v2141, 1.0
        %v2328 = vadd.f32 %v2143, 1.0
        %v2329 = vadd.f32 %v2145, 1.0
        %v2330 = vadd.f32 %v2147, 1.0
        %v2331 = vadd.f32 %v2149, 1.0
        %v2332 = vadd.f32 %v2151, 1.0
        %v2333 = vadd.f32 %v2153, 1.0
        %v2334 = vadd.f32 %v2155, 1.0
        %v2335 = vadd.f32 %v2157, 1.0
        %v2336 = vadd.f32 %v2159, 1.0
        %v2337 = vadd.f32 %v2161, 1.0
        %v2338 = vadd.f32 %v2163, 1.0
        %v2339 = vadd.f32 %v2165, 1.0
        %v2340 = vadd.f32 %v2167, 1.0
        %v2341 = vadd.f32 %v2169, 1.0
        %v2342 = vadd.f32 %v2171, 1.0
        %v2343 = vadd.f32 %v2173, 1.0
        %v2344 = vadd.f32 %v2175, 1.0
        %v2345 = vadd.f32 %v2177, 1.0
        %v2346 = vadd.f32 %v2179, 1.0
        %v2347 = vadd.f32 %v2181, 1.0
        %v2348 = vadd.f32 %v2183, 1.0
        %v2349 = vadd.f32 %v2185, 1.0
        %v2350 = vadd.f32 %v2187, 1.0
        %v2351 = vadd.f32 %v2189, 1.0
        %v2352 = vadd.f32 %v2191, 1.0
        %v2353 = vadd.f32 %v2193, 1.0
        %v2354 = vrcp.pop %v2194
        %v2355 = vmul.f32 1.0, %v2354
        %v2356 = vrcp.pop %v2195
        %v2357 = vmul.f32 1.0, %v2356
        %v2358 = vrcp.pop %v2196
        %v2359 = vmul.f32 1.0, %v2358
        %v2360 = vrcp.pop %v2197
        %v2361 = vmul.f32 1.0, %v2360
        %v2362 = vrcp.pop %v2198
        %v2363 = vmul.f32 1.0, %v2362
        %v2364 = vrcp.pop %v2199
        %v2365 = vmul.f32 1.0, %v2364
        %v2366 = vrcp.pop %v2200
        %v2367 = vmul.f32 1.0, %v2366
        %v2368 = vrcp.pop %v2201
        %v2369 = vmul.f32 1.0, %v2368
        %v2370 = vrcp.pop %v2202
        %v2371 = vmul.f32 1.0, %v2370
        %v2372 = vrcp.pop %v2203
        %v2373 = vmul.f32 1.0, %v2372
        %v2374 = vrcp.pop %v2204
        %v2375 = vmul.f32 1.0, %v2374
        %v2376 = vrcp.pop %v2205
        %v2377 = vmul.f32 1.0, %v2376
        %v2378 = vrcp.pop %v2206
        %v2379 = vmul.f32 1.0, %v2378
        %v2380 = vrcp.pop %v2207
        %v2381 = vmul.f32 1.0, %v2380
        %v2382 = vrcp.pop %v2208
        %v2383 = vmul.f32 1.0, %v2382
        %v2384 = vrcp.pop %v2209
        %v2385 = vmul.f32 1.0, %v2384
        %v2386 = vrcp.pop %v2210
        %v2387 = vmul.f32 1.0, %v2386
        %v2388 = vrcp.pop %v2211
        %v2389 = vmul.f32 1.0, %v2388
        %v2390 = vrcp.pop %v2212
        %v2391 = vmul.f32 1.0, %v2390
        %v2392 = vrcp.pop %v2213
        %v2393 = vmul.f32 1.0, %v2392
        %v2394 = vrcp.pop %v2214
        %v2395 = vmul.f32 1.0, %v2394
        %v2396 = vrcp.pop %v2215
        %v2397 = vmul.f32 1.0, %v2396
        %v2398 = vrcp.pop %v2216
        %v2399 = vmul.f32 1.0, %v2398
        %v2400 = vrcp.pop %v2217
        %v2401 = vmul.f32 1.0, %v2400
        %v2402 = vrcp.pop %v2218
        %v2403 = vmul.f32 1.0, %v2402
        %v2404 = vrcp.pop %v2219
        %v2405 = vmul.f32 1.0, %v2404
        %v2406 = vrcp.pop %v2220
        %v2407 = vmul.f32 1.0, %v2406
        %v2408 = vrcp.pop %v2221
        %v2409 = vmul.f32 1.0, %v2408
        %v2410 = vrcp.pop %v2222
        %v2411 = vmul.f32 1.0, %v2410
        %v2412 = vrcp.pop %v2223
        %v2413 = vmul.f32 1.0, %v2412
        %v2414 = vrcp.pop %v2224
        %v2415 = vmul.f32 1.0, %v2414
        %v2416 = vrcp.pop %v2225
        %v2417 = vmul.f32 1.0, %v2416
        %v2418 = vrcp.pop %v2226
        %v2419 = vmul.f32 1.0, %v2418
        %v2420 = vrcp.pop %v2227
        %v2421 = vmul.f32 1.0, %v2420
        %v2422 = vrcp.pop %v2228
        %v2423 = vmul.f32 1.0, %v2422
        %v2424 = vrcp.pop %v2229
        %v2425 = vmul.f32 1.0, %v2424
        %v2426 = vrcp.pop %v2230
        %v2427 = vmul.f32 1.0, %v2426
        %v2428 = vrcp.pop %v2231
        %v2429 = vmul.f32 1.0, %v2428
        %v2430 = vrcp.pop %v2232
        %v2431 = vmul.f32 1.0, %v2430
        %v2432 = vrcp.pop %v2233
        %v2433 = vmul.f32 1.0, %v2432
        %v2434 = vrcp.pop %v2234
        %v2435 = vmul.f32 1.0, %v2434
        %v2436 = vrcp.pop %v2235
        %v2437 = vmul.f32 1.0, %v2436
        %v2438 = vrcp.pop %v2236
        %v2439 = vmul.f32 1.0, %v2438
        %v2440 = vrcp.pop %v2237
        %v2441 = vmul.f32 1.0, %v2440
        %v2442 = vrcp.pop %v2238
        %v2443 = vmul.f32 1.0, %v2442
        %v2444 = vrcp.pop %v2239
        %v2445 = vmul.f32 1.0, %v2444
        %v2446 = vrcp.pop %v2240
        %v2447 = vmul.f32 1.0, %v2446
        %v2448 = vrcp.pop %v2241
        %v2449 = vmul.f32 1.0, %v2448
        %v2450 = vrcp.pop %v2242
        %v2451 = vmul.f32 1.0, %v2450
        %v2452 = vrcp.pop %v2243
        %v2453 = vmul.f32 1.0, %v2452
        %v2454 = vrcp.pop %v2244
        %v2455 = vmul.f32 1.0, %v2454
        %v2456 = vrcp.pop %v2245
        %v2457 = vmul.f32 1.0, %v2456
        %v2458 = vrcp.pop %v2246
        %v2459 = vmul.f32 1.0, %v2458
        %v2460 = vrcp.pop %v2247
        %v2461 = vmul.f32 1.0, %v2460
        %v2462 = vrcp.pop %v2248
        %v2463 = vmul.f32 1.0, %v2462
        %v2464 = vrcp.pop %v2249
        %v2465 = vmul.f32 1.0, %v2464
        %v2466 = vrcp.pop %v2250
        %v2467 = vmul.f32 1.0, %v2466
        %v2468 = vrcp.pop %v2251
        %v2469 = vmul.f32 1.0, %v2468
        %v2470 = vrcp.pop %v2252
        %v2471 = vmul.f32 1.0, %v2470
        %v2472 = vrcp.pop %v2253
        %v2473 = vmul.f32 1.0, %v2472
        %v2474 = vrcp.pop %v2254
        %v2475 = vmul.f32 1.0, %v2474
        %v2476 = vrcp.pop %v2255
        %v2477 = vmul.f32 1.0, %v2476
        %v2478 = vrcp.pop %v2256
        %v2479 = vmul.f32 1.0, %v2478
        %v2480 = vrcp.pop %v2257
        %v2481 = vmul.f32 1.0, %v2480
        %v2482 = vrcp.pop %v2258
        %v2483 = vmul.f32 1.0, %v2482
        %v2484 = vrcp.pop %v2259
        %v2485 = vmul.f32 1.0, %v2484
        %v2486 = vrcp.pop %v2260
        %v2487 = vmul.f32 1.0, %v2486
        %v2488 = vrcp.pop %v2261
        %v2489 = vmul.f32 1.0, %v2488
        %v2490 = vrcp.pop %v2262
        %v2491 = vmul.f32 1.0, %v2490
        %v2492 = vrcp.pop %v2263
        %v2493 = vmul.f32 1.0, %v2492
        %v2494 = vrcp.pop %v2264
        %v2495 = vmul.f32 1.0, %v2494
        %v2496 = vrcp.pop %v2265
        %v2497 = vmul.f32 1.0, %v2496
        %v2498 = vrcp.pop %v2266
        %v2499 = vmul.f32 1.0, %v2498
        %v2500 = vrcp.pop %v2267
        %v2501 = vmul.f32 1.0, %v2500
        %v2502 = vrcp.pop %v2268
        %v2503 = vmul.f32 1.0, %v2502
        %v2504 = vrcp.pop %v2269
        %v2505 = vmul.f32 1.0, %v2504
        %v2506 = vrcp.pop %v2270
        %v2507 = vmul.f32 1.0, %v2506
        %v2508 = vrcp.pop %v2271
        %v2509 = vmul.f32 1.0, %v2508
        %v2510 = vrcp.pop %v2272
        %v2511 = vmul.f32 1.0, %v2510
        %v2512 = vrcp.pop %v2273
        %v2513 = vmul.f32 1.0, %v2512
        %v2514 = vrcp.pop %v2274
        %v2515 = vmul.f32 1.0, %v2514
        %v2516 = vrcp.pop %v2275
        %v2517 = vmul.f32 1.0, %v2516
        %v2518 = vrcp.pop %v2276
        %v2519 = vmul.f32 1.0, %v2518
        %v2520 = vrcp.pop %v2277
        %v2521 = vmul.f32 1.0, %v2520
        %v2522 = vrcp.pop %v2278
        %v2523 = vmul.f32 1.0, %v2522
        %v2524 = vrcp.pop %v2279
        %v2525 = vmul.f32 1.0, %v2524
        %v2526 = vrcp.pop %v2280
        %v2527 = vmul.f32 1.0, %v2526
        %v2528 = vrcp.pop %v2281
        %v2529 = vmul.f32 1.0, %v2528
        %v2530 = vrcp.pop %v2282
        %v2531 = vmul.f32 1.0, %v2530
        %v2532 = vrcp.pop %v2283
        %v2533 = vmul.f32 1.0, %v2532
        %v2534 = vrcp.pop %v2284
        %v2535 = vmul.f32 1.0, %v2534
        %v2536 = vrcp.pop %v2285
        %v2537 = vmul.f32 1.0, %v2536
        %v2538 = vrcp.pop %v2286
        %v2539 = vmul.f32 1.0, %v2538
        %v2540 = vrcp.pop %v2287
        %v2541 = vmul.f32 1.0, %v2540
        %v2542 = vrcp.pop %v2288
        %v2543 = vmul.f32 1.0, %v2542
        %v2544 = vrcp.pop %v2289
        %v2545 = vmul.f32 1.0, %v2544
        %v2546 = vrcp.pop %v2290
        %v2547 = vmul.f32 1.0, %v2546
        %v2548 = vrcp.pop %v2291
        %v2549 = vmul.f32 1.0, %v2548
        %v2550 = vrcp.pop %v2292
        %v2551 = vmul.f32 1.0, %v2550
        %v2552 = vrcp.pop %v2293
        %v2553 = vmul.f32 1.0, %v2552
        %v2554 = vrcp.pop %v2294
        %v2555 = vmul.f32 1.0, %v2554
        %v2556 = vrcp.pop %v2295
        %v2557 = vmul.f32 1.0, %v2556
        %v2558 = vrcp.pop %v2296
        %v2559 = vmul.f32 1.0, %v2558
        %v2560 = vrcp.pop %v2297
        %v2561 = vmul.f32 1.0, %v2560
        %v2562 = vrcp.pop %v2298
        %v2563 = vmul.f32 1.0, %v2562
        %v2564 = vrcp.pop %v2299
        %v2565 = vmul.f32 1.0, %v2564
        %v2566 = vrcp.pop %v2300
        %v2567 = vmul.f32 1.0, %v2566
        %v2568 = vrcp.pop %v2301
        %v2569 = vmul.f32 1.0, %v2568
        %v2570 = vrcp.pop %v2302
        %v2571 = vmul.f32 1.0, %v2570
        %v2572 = vrcp.pop %v2303
        %v2573 = vmul.f32 1.0, %v2572
        %v2574 = vrcp.pop %v2304
        %v2575 = vmul.f32 1.0, %v2574
        %v2576 = vrcp.pop %v2305
        %v2577 = vmul.f32 1.0, %v2576
        %v2578 = vrcp.pop %v2306
        %v2579 = vmul.f32 1.0, %v2578
        %v2580 = vrcp.pop %v2307
        %v2581 = vmul.f32 1.0, %v2580
        %v2582 = vrcp.pop %v2308
        %v2583 = vmul.f32 1.0, %v2582
        %v2584 = vrcp.pop %v2309
        %v2585 = vmul.f32 1.0, %v2584
        %v2586 = vrcp.pop %v2310
        %v2587 = vmul.f32 1.0, %v2586
        %v2588 = vrcp.pop %v2311
        %v2589 = vmul.f32 1.0, %v2588
        %v2590 = vrcp.pop %v2312
        %v2591 = vmul.f32 1.0, %v2590
        %v2592 = vrcp.pop %v2313
        %v2593 = vmul.f32 1.0, %v2592
        %v2594 = vrcp.pop %v2314
        %v2595 = vmul.f32 1.0, %v2594
        %v2596 = vrcp.pop %v2315
        %v2597 = vmul.f32 1.0, %v2596
        %v2598 = vrcp.pop %v2316
        %v2599 = vmul.f32 1.0, %v2598
        %v2600 = vrcp.pop %v2317
        %v2601 = vmul.f32 1.0, %v2600
        %v2602 = vrcp.pop %v2318
        %v2603 = vmul.f32 1.0, %v2602
        %v2604 = vrcp.pop %v2319
        %v2605 = vmul.f32 1.0, %v2604
        %v2606 = vrcp.pop %v2320
        %v2607 = vmul.f32 1.0, %v2606
        %v2608 = vrcp.pop %v2321
        %v2609 = vmul.f32 1.0, %v2608
        %v2610 = vrcp.pop %v2322
        %v2611 = vmul.f32 1.0, %v2610
        %v2612 = vrcp.pop %v2323
        %v2613 = vmul.f32 1.0, %v2612
        %v2614 = vrcp.pop %v2324
        %v2615 = vmul.f32 1.0, %v2614
        %v2616 = vrcp.pop %v2325
        %v2617 = vmul.f32 1.0, %v2616
        %v2618 = vrcp.pop %v2326
        %v2619 = vmul.f32 1.0, %v2618
        %v2620 = vrcp.pop %v2327
        %v2621 = vmul.f32 1.0, %v2620
        %v2622 = vrcp.pop %v2328
        %v2623 = vmul.f32 1.0, %v2622
        %v2624 = vrcp.pop %v2329
        %v2625 = vmul.f32 1.0, %v2624
        %v2626 = vrcp.pop %v2330
        %v2627 = vmul.f32 1.0, %v2626
        %v2628 = vrcp.pop %v2331
        %v2629 = vmul.f32 1.0, %v2628
        %v2630 = vrcp.pop %v2332
        %v2631 = vmul.f32 1.0, %v2630
        %v2632 = vrcp.pop %v2333
        %v2633 = vmul.f32 1.0, %v2632
        %v2634 = vrcp.pop %v2334
        %v2635 = vmul.f32 1.0, %v2634
        %v2636 = vrcp.pop %v2335
        %v2637 = vmul.f32 1.0, %v2636
        %v2638 = vrcp.pop %v2336
        %v2639 = vmul.f32 1.0, %v2638
        %v2640 = vrcp.pop %v2337
        %v2641 = vmul.f32 1.0, %v2640
        %v2642 = vrcp.pop %v2338
        %v2643 = vmul.f32 1.0, %v2642
        %v2644 = vrcp.pop %v2339
        %v2645 = vmul.f32 1.0, %v2644
        %v2646 = vrcp.pop %v2340
        %v2647 = vmul.f32 1.0, %v2646
        %v2648 = vrcp.pop %v2341
        %v2649 = vmul.f32 1.0, %v2648
        %v2650 = vrcp.pop %v2342
        %v2651 = vmul.f32 1.0, %v2650
        %v2652 = vrcp.pop %v2343
        %v2653 = vmul.f32 1.0, %v2652
        %v2654 = vrcp.pop %v2344
        %v2655 = vmul.f32 1.0, %v2654
        %v2656 = vrcp.pop %v2345
        %v2657 = vmul.f32 1.0, %v2656
        %v2658 = vrcp.pop %v2346
        %v2659 = vmul.f32 1.0, %v2658
        %v2660 = vrcp.pop %v2347
        %v2661 = vmul.f32 1.0, %v2660
        %v2662 = vrcp.pop %v2348
        %v2663 = vmul.f32 1.0, %v2662
        %v2664 = vrcp.pop %v2349
        %v2665 = vmul.f32 1.0, %v2664
        %v2666 = vrcp.pop %v2350
        %v2667 = vmul.f32 1.0, %v2666
        %v2668 = vrcp.pop %v2351
        %v2669 = vmul.f32 1.0, %v2668
        %v2670 = vrcp.pop %v2352
        %v2671 = vmul.f32 1.0, %v2670
        %v2672 = vrcp.pop %v2353
        %v2673 = vmul.f32 1.0, %v2672
        %v2674 = vmul.f32 %v1202, %v2355
        %v2675 = vmul.f32 %v1204, %v2357
        %v2676 = vmul.f32 %v1395, %v2359
        %v2677 = vmul.f32 %v1397, %v2361
        %v2678 = vmul.f32 %v1588, %v2363
        %v2679 = vmul.f32 %v1206, %v2365
        %v2680 = vmul.f32 %v1208, %v2367
        %v2681 = vmul.f32 %v1399, %v2369
        %v2682 = vmul.f32 %v1401, %v2371
        %v2683 = vmul.f32 %v1591, %v2373
        %v2684 = vmul.f32 %v1212, %v2375
        %v2685 = vmul.f32 %v1214, %v2377
        %v2686 = vmul.f32 %v1405, %v2379
        %v2687 = vmul.f32 %v1407, %v2381
        %v2688 = vmul.f32 %v1596, %v2383
        %v2689 = vmul.f32 %v1216, %v2385
        %v2690 = vmul.f32 %v1218, %v2387
        %v2691 = vmul.f32 %v1409, %v2389
        %v2692 = vmul.f32 %v1411, %v2391
        %v2693 = vmul.f32 %v1599, %v2393
        %v2694 = vmul.f32 %v1222, %v2395
        %v2695 = vmul.f32 %v1224, %v2397
        %v2696 = vmul.f32 %v1415, %v2399
        %v2697 = vmul.f32 %v1417, %v2401
        %v2698 = vmul.f32 %v1604, %v2403
        %v2699 = vmul.f32 %v1226, %v2405
        %v2700 = vmul.f32 %v1228, %v2407
        %v2701 = vmul.f32 %v1419, %v2409
        %v2702 = vmul.f32 %v1421, %v2411
        %v2703 = vmul.f32 %v1607, %v2413
        %v2704 = vmul.f32 %v1232, %v2415
        %v2705 = vmul.f32 %v1234, %v2417
        %v2706 = vmul.f32 %v1425, %v2419
        %v2707 = vmul.f32 %v1427, %v2421
        %v2708 = vmul.f32 %v1612, %v2423
        %v2709 = vmul.f32 %v1236, %v2425
        %v2710 = vmul.f32 %v1238, %v2427
        %v2711 = vmul.f32 %v1429, %v2429
        %v2712 = vmul.f32 %v1431, %v2431
        %v2713 = vmul.f32 %v1615, %v2433
        %v2714 = vmul.f32 %v1242, %v2435
        %v2715 = vmul.f32 %v1244, %v2437
        %v2716 = vmul.f32 %v1435, %v2439
        %v2717 = vmul.f32 %v1437, %v2441
        %v2718 = vmul.f32 %v1620, %v2443
        %v2719 = vmul.f32 %v1246, %v2445
        %v2720 = vmul.f32 %v1248, %v2447
        %v2721 = vmul.f32 %v1439, %v2449
        %v2722 = vmul.f32 %v1441, %v2451
        %v2723 = vmul.f32 %v1623, %v2453
        %v2724 = vmul.f32 %v1252, %v2455
        %v2725 = vmul.f32 %v1254, %v2457
        %v2726 = vmul.f32 %v1445, %v2459
        %v2727 = vmul.f32 %v1447, %v2461
        %v2728 = vmul.f32 %v1628, %v2463
        %v2729 = vmul.f32 %v1256, %v2465
        %v2730 = vmul.f32 %v1258, %v2467
        %v2731 = vmul.f32 %v1449, %v2469
        %v2732 = vmul.f32 %v1451, %v2471
        %v2733 = vmul.f32 %v1631, %v2473
        %v2734 = vmul.f32 %v1262, %v2475
        %v2735 = vmul.f32 %v1264, %v2477
        %v2736 = vmul.f32 %v1455, %v2479
        %v2737 = vmul.f32 %v1457, %v2481
        %v2738 = vmul.f32 %v1636, %v2483
        %v2739 = vmul.f32 %v1266, %v2485
        %v2740 = vmul.f32 %v1268, %v2487
        %v2741 = vmul.f32 %v1459, %v2489
        %v2742 = vmul.f32 %v1461, %v2491
        %v2743 = vmul.f32 %v1639, %v2493
        %v2744 = vmul.f32 %v1272, %v2495
        %v2745 = vmul.f32 %v1274, %v2497
        %v2746 = vmul.f32 %v1465, %v2499
        %v2747 = vmul.f32 %v1467, %v2501
        %v2748 = vmul.f32 %v1644, %v2503
        %v2749 = vmul.f32 %v1276, %v2505
        %v2750 = vmul.f32 %v1278, %v2507
        %v2751 = vmul.f32 %v1469, %v2509
        %v2752 = vmul.f32 %v1471, %v2511
        %v2753 = vmul.f32 %v1647, %v2513
        %v2754 = vmul.f32 %v1282, %v2515
        %v2755 = vmul.f32 %v1284, %v2517
        %v2756 = vmul.f32 %v1475, %v2519
        %v2757 = vmul.f32 %v1477, %v2521
        %v2758 = vmul.f32 %v1652, %v2523
        %v2759 = vmul.f32 %v1286, %v2525
        %v2760 = vmul.f32 %v1288, %v2527
        %v2761 = vmul.f32 %v1479, %v2529
        %v2762 = vmul.f32 %v1481, %v2531
        %v2763 = vmul.f32 %v1655, %v2533
        %v2764 = vmul.f32 %v1292, %v2535
        %v2765 = vmul.f32 %v1294, %v2537
        %v2766 = vmul.f32 %v1485, %v2539
        %v2767 = vmul.f32 %v1487, %v2541
        %v2768 = vmul.f32 %v1660, %v2543
        %v2769 = vmul.f32 %v1296, %v2545
        %v2770 = vmul.f32 %v1298, %v2547
        %v2771 = vmul.f32 %v1489, %v2549
        %v2772 = vmul.f32 %v1491, %v2551
        %v2773 = vmul.f32 %v1663, %v2553
        %v2774 = vmul.f32 %v1302, %v2555
        %v2775 = vmul.f32 %v1304, %v2557
        %v2776 = vmul.f32 %v1495, %v2559
        %v2777 = vmul.f32 %v1497, %v2561
        %v2778 = vmul.f32 %v1668, %v2563
        %v2779 = vmul.f32 %v1306, %v2565
        %v2780 = vmul.f32 %v1308, %v2567
        %v2781 = vmul.f32 %v1499, %v2569
        %v2782 = vmul.f32 %v1501, %v2571
        %v2783 = vmul.f32 %v1671, %v2573
        %v2784 = vmul.f32 %v1312, %v2575
        %v2785 = vmul.f32 %v1314, %v2577
        %v2786 = vmul.f32 %v1505, %v2579
        %v2787 = vmul.f32 %v1507, %v2581
        %v2788 = vmul.f32 %v1676, %v2583
        %v2789 = vmul.f32 %v1316, %v2585
        %v2790 = vmul.f32 %v1318, %v2587
        %v2791 = vmul.f32 %v1509, %v2589
        %v2792 = vmul.f32 %v1511, %v2591
        %v2793 = vmul.f32 %v1679, %v2593
        %v2794 = vmul.f32 %v1322, %v2595
        %v2795 = vmul.f32 %v1324, %v2597
        %v2796 = vmul.f32 %v1515, %v2599
        %v2797 = vmul.f32 %v1517, %v2601
        %v2798 = vmul.f32 %v1684, %v2603
        %v2799 = vmul.f32 %v1326, %v2605
        %v2800 = vmul.f32 %v1328, %v2607
        %v2801 = vmul.f32 %v1519, %v2609
        %v2802 = vmul.f32 %v1521, %v2611
        %v2803 = vmul.f32 %v1687, %v2613
        %v2804 = vmul.f32 %v1332, %v2615
        %v2805 = vmul.f32 %v1334, %v2617
        %v2806 = vmul.f32 %v1525, %v2619
        %v2807 = vmul.f32 %v1527, %v2621
        %v2808 = vmul.f32 %v1692, %v2623
        %v2809 = vmul.f32 %v1336, %v2625
        %v2810 = vmul.f32 %v1338, %v2627
        %v2811 = vmul.f32 %v1529, %v2629
        %v2812 = vmul.f32 %v1531, %v2631
        %v2813 = vmul.f32 %v1695, %v2633
        %v2814 = vmul.f32 %v1342, %v2635
        %v2815 = vmul.f32 %v1344, %v2637
        %v2816 = vmul.f32 %v1535, %v2639
        %v2817 = vmul.f32 %v1537, %v2641
        %v2818 = vmul.f32 %v1700, %v2643
        %v2819 = vmul.f32 %v1346, %v2645
        %v2820 = vmul.f32 %v1348, %v2647
        %v2821 = vmul.f32 %v1539, %v2649
        %v2822 = vmul.f32 %v1541, %v2651
        %v2823 = vmul.f32 %v1703, %v2653
        %v2824 = vmul.f32 %v1352, %v2655
        %v2825 = vmul.f32 %v1354, %v2657
        %v2826 = vmul.f32 %v1545, %v2659
        %v2827 = vmul.f32 %v1547, %v2661
        %v2828 = vmul.f32 %v1708, %v2663
        %v2829 = vmul.f32 %v1356, %v2665
        %v2830 = vmul.f32 %v1358, %v2667
        %v2831 = vmul.f32 %v1549, %v2669
        %v2832 = vmul.f32 %v1551, %v2671
        %v2833 = vmul.f32 %v1711, %v2673
        %v2834 = vpack.c.bf16 %v2679, %v2674
        %v2835 = vpack.c.bf16 %v2680, %v2675
        %v2836 = vpack.c.bf16 %v2689, %v2684
        %v2837 = vpack.c.bf16 %v2690, %v2685
        %v2838 = vpack.c.bf16 %v2699, %v2694
        %v2839 = vpack.c.bf16 %v2700, %v2695
        %v2840 = vpack.c.bf16 %v2709, %v2704
        %v2841 = vpack.c.bf16 %v2710, %v2705
        %v2842 = vpack.c.bf16 %v2719, %v2714
        %v2843 = vpack.c.bf16 %v2720, %v2715
        %v2844 = vpack.c.bf16 %v2729, %v2724
        %v2845 = vpack.c.bf16 %v2730, %v2725
        %v2846 = vpack.c.bf16 %v2739, %v2734
        %v2847 = vpack.c.bf16 %v2740, %v2735
        %v2848 = vpack.c.bf16 %v2749, %v2744
        %v2849 = vpack.c.bf16 %v2750, %v2745
        %v2850 = vpack.c.bf16 %v2759, %v2754
        %v2851 = vpack.c.bf16 %v2760, %v2755
        %v2852 = vpack.c.bf16 %v2769, %v2764
        %v2853 = vpack.c.bf16 %v2770, %v2765
        %v2854 = vpack.c.bf16 %v2779, %v2774
        %v2855 = vpack.c.bf16 %v2780, %v2775
        %v2856 = vpack.c.bf16 %v2789, %v2784
        %v2857 = vpack.c.bf16 %v2790, %v2785
        %v2858 = vpack.c.bf16 %v2799, %v2794
        %v2859 = vpack.c.bf16 %v2800, %v2795
        %v2860 = vpack.c.bf16 %v2809, %v2804
        %v2861 = vpack.c.bf16 %v2810, %v2805
        %v2862 = vpack.c.bf16 %v2819, %v2814
        %v2863 = vpack.c.bf16 %v2820, %v2815
        %v2864 = vpack.c.bf16 %v2829, %v2824
        %v2865 = vpack.c.bf16 %v2830, %v2825
        %v2898 = vunpack.c.l.b16 %v2834
        %v2899 = vunpack.c.l.b16 %v2835
        %v2900 = vunpack.c.h.b16 %v2834
        %v2901 = vunpack.c.h.b16 %v2835
        %v2902 = vunpack.c.l.b16 %v2836
        %v2903 = vunpack.c.l.b16 %v2837
        %v2904 = vunpack.c.h.b16 %v2836
        %v2905 = vunpack.c.h.b16 %v2837
        %v2906 = vunpack.c.l.b16 %v2838
        %v2907 = vunpack.c.l.b16 %v2839
        %v2908 = vunpack.c.h.b16 %v2838
        %v2909 = vunpack.c.h.b16 %v2839
        %v2910 = vunpack.c.l.b16 %v2840
        %v2911 = vunpack.c.l.b16 %v2841
        %v2912 = vunpack.c.h.b16 %v2840
        %v2913 = vunpack.c.h.b16 %v2841
        %v2914 = vunpack.c.l.b16 %v2842
        %v2915 = vunpack.c.l.b16 %v2843
        %v2916 = vunpack.c.h.b16 %v2842
        %v2917 = vunpack.c.h.b16 %v2843
        %v2918 = vunpack.c.l.b16 %v2844
        %v2919 = vunpack.c.l.b16 %v2845
        %v2920 = vunpack.c.h.b16 %v2844
        %v2921 = vunpack.c.h.b16 %v2845
        %v2922 = vunpack.c.l.b16 %v2846
        %v2923 = vunpack.c.l.b16 %v2847
        %v2924 = vunpack.c.h.b16 %v2846
        %v2925 = vunpack.c.h.b16 %v2847
        %v2926 = vunpack.c.l.b16 %v2848
        %v2927 = vunpack.c.l.b16 %v2849
        %v2928 = vunpack.c.h.b16 %v2848
        %v2929 = vunpack.c.h.b16 %v2849
        %v2930 = vunpack.c.l.b16 %v2850
        %v2931 = vunpack.c.l.b16 %v2851
        %v2932 = vunpack.c.h.b16 %v2850
        %v2933 = vunpack.c.h.b16 %v2851
        %v2934 = vunpack.c.l.b16 %v2852
        %v2935 = vunpack.c.l.b16 %v2853
        %v2936 = vunpack.c.h.b16 %v2852
        %v2937 = vunpack.c.h.b16 %v2853
        %v2938 = vunpack.c.l.b16 %v2854
        %v2939 = vunpack.c.l.b16 %v2855
        %v2940 = vunpack.c.h.b16 %v2854
        %v2941 = vunpack.c.h.b16 %v2855
        %v2942 = vunpack.c.l.b16 %v2856
        %v2943 = vunpack.c.l.b16 %v2857
        %v2944 = vunpack.c.h.b16 %v2856
        %v2945 = vunpack.c.h.b16 %v2857
        %v2946 = vunpack.c.l.b16 %v2858
        %v2947 = vunpack.c.l.b16 %v2859
        %v2948 = vunpack.c.h.b16 %v2858
        %v2949 = vunpack.c.h.b16 %v2859
        %v2950 = vunpack.c.l.b16 %v2860
        %v2951 = vunpack.c.l.b16 %v2861
        %v2952 = vunpack.c.h.b16 %v2860
        %v2953 = vunpack.c.h.b16 %v2861
        %v2954 = vunpack.c.l.b16 %v2862
        %v2955 = vunpack.c.l.b16 %v2863
        %v2956 = vunpack.c.h.b16 %v2862
        %v2957 = vunpack.c.h.b16 %v2863
        %v2958 = vunpack.c.l.b16 %v2864
        %v2959 = vunpack.c.l.b16 %v2865
        %v2960 = vunpack.c.h.b16 %v2864
        %v2961 = vunpack.c.h.b16 %v2865
        %v2962 = vpack.c.b16 %v2899, %v2898
        %v2963 = vpack.c.b16 %v2901, %v2900
        %v2964 = vpack.c.b16 %v2903, %v2902
        %v2965 = vpack.c.b16 %v2905, %v2904
        %v2966 = vpack.c.b16 %v2907, %v2906
        %v2967 = vpack.c.b16 %v2909, %v2908
        %v2968 = vpack.c.b16 %v2911, %v2910
        %v2969 = vpack.c.b16 %v2913, %v2912
        %v2970 = vpack.c.b16 %v2915, %v2914
        %v2971 = vpack.c.b16 %v2917, %v2916
        %v2972 = vpack.c.b16 %v2919, %v2918
        %v2973 = vpack.c.b16 %v2921, %v2920
        %v2974 = vpack.c.b16 %v2923, %v2922
        %v2975 = vpack.c.b16 %v2925, %v2924
        %v2976 = vpack.c.b16 %v2927, %v2926
        %v2977 = vpack.c.b16 %v2929, %v2928
        %v2978 = vpack.c.b16 %v2931, %v2930
        %v2979 = vpack.c.b16 %v2933, %v2932
        %v2980 = vpack.c.b16 %v2935, %v2934
        %v2981 = vpack.c.b16 %v2937, %v2936
        %v2982 = vpack.c.b16 %v2939, %v2938
        %v2983 = vpack.c.b16 %v2941, %v2940
        %v2984 = vpack.c.b16 %v2943, %v2942
        %v2985 = vpack.c.b16 %v2945, %v2944
        %v2986 = vpack.c.b16 %v2947, %v2946
        %v2987 = vpack.c.b16 %v2949, %v2948
        %v2988 = vpack.c.b16 %v2951, %v2950
        %v2989 = vpack.c.b16 %v2953, %v2952
        %v2990 = vpack.c.b16 %v2955, %v2954
        %v2991 = vpack.c.b16 %v2957, %v2956
        %v2992 = vpack.c.b16 %v2959, %v2958
        %v2993 = vpack.c.b16 %v2961, %v2960
        %3026 = vst [vmem:[%s396] sm:$0xff] %v2962
        %3027 = vst [vmem:[%s396 + $0x8] sm:$0xff] %v2963
        %3028 = vst [vmem:[%s396 + $0x10] sm:$0xff] %v2964
        %3029 = vst [vmem:[%s396 + $0x18] sm:$0xff] %v2965
        %3030 = vst [vmem:[%s396 + $0x20] sm:$0xff] %v2966
        %3031 = vst [vmem:[%s396 + $0x28] sm:$0xff] %v2967
        %3032 = vst [vmem:[%s396 + $0x30] sm:$0xff] %v2968
        %3033 = vst [vmem:[%s396 + $0x38] sm:$0xff] %v2969
        %3034 = vst [vmem:[%s396 + $0x40] sm:$0xff] %v2970
        %3035 = vst [vmem:[%s396 + $0x48] sm:$0xff] %v2971
        %3036 = vst [vmem:[%s396 + $0x50] sm:$0xff] %v2972
        %3037 = vst [vmem:[%s396 + $0x58] sm:$0xff] %v2973
        %3038 = vst [vmem:[%s396 + $0x60] sm:$0xff] %v2974
        %3039 = vst [vmem:[%s396 + $0x68] sm:$0xff] %v2975
        %3040 = vst [vmem:[%s396 + $0x70] sm:$0xff] %v2976
        %3041 = vst [vmem:[%s396 + $0x78] sm:$0xff] %v2977
        %3042 = vst [vmem:[%s396 + $0x80] sm:$0xff] %v2978
        %3043 = vst [vmem:[%s396 + $0x88] sm:$0xff] %v2979
        %3044 = vst [vmem:[%s396 + $0x90] sm:$0xff] %v2980
        %3045 = vst [vmem:[%s396 + $0x98] sm:$0xff] %v2981
        %3046 = vst [vmem:[%s396 + $0xa0] sm:$0xff] %v2982
        %3047 = vst [vmem:[%s396 + $0xa8] sm:$0xff] %v2983
        %3048 = vst [vmem:[%s396 + $0xb0] sm:$0xff] %v2984
        %3049 = vst [vmem:[%s396 + $0xb8] sm:$0xff] %v2985
        %3050 = vst [vmem:[%s396 + $0xc0] sm:$0xff] %v2986
        %3051 = vst [vmem:[%s396 + $0xc8] sm:$0xff] %v2987
        %3052 = vst [vmem:[%s396 + $0xd0] sm:$0xff] %v2988
        %3053 = vst [vmem:[%s396 + $0xd8] sm:$0xff] %v2989
        %3054 = vst [vmem:[%s396 + $0xe0] sm:$0xff] %v2990
        %3055 = vst [vmem:[%s396 + $0xe8] sm:$0xff] %v2991
        %3056 = vst [vmem:[%s396 + $0xf0] sm:$0xff] %v2992
        %3057 = vst [vmem:[%s396 + $0xf8] sm:$0xff] %v2993
        %v3058 = vpack.c.bf16 %v2681, %v2676
        %v3059 = vpack.c.bf16 %v2682, %v2677
        %v3060 = vpack.c.bf16 %v2691, %v2686
        %v3061 = vpack.c.bf16 %v2692, %v2687
        %v3062 = vpack.c.bf16 %v2701, %v2696
        %v3063 = vpack.c.bf16 %v2702, %v2697
        %v3064 = vpack.c.bf16 %v2711, %v2706
        %v3065 = vpack.c.bf16 %v2712, %v2707
        %v3066 = vpack.c.bf16 %v2721, %v2716
        %v3067 = vpack.c.bf16 %v2722, %v2717
        %v3068 = vpack.c.bf16 %v2731, %v2726
        %v3069 = vpack.c.bf16 %v2732, %v2727
        %v3070 = vpack.c.bf16 %v2741, %v2736
        %v3071 = vpack.c.bf16 %v2742, %v2737
        %v3072 = vpack.c.bf16 %v2751, %v2746
        %v3073 = vpack.c.bf16 %v2752, %v2747
        %v3074 = vpack.c.bf16 %v2761, %v2756
        %v3075 = vpack.c.bf16 %v2762, %v2757
        %v3076 = vpack.c.bf16 %v2771, %v2766
        %v3077 = vpack.c.bf16 %v2772, %v2767
        %v3078 = vpack.c.bf16 %v2781, %v2776
        %v3079 = vpack.c.bf16 %v2782, %v2777
        %v3080 = vpack.c.bf16 %v2791, %v2786
        %v3081 = vpack.c.bf16 %v2792, %v2787
        %v3082 = vpack.c.bf16 %v2801, %v2796
        %v3083 = vpack.c.bf16 %v2802, %v2797
        %v3084 = vpack.c.bf16 %v2811, %v2806
        %v3085 = vpack.c.bf16 %v2812, %v2807
        %v3086 = vpack.c.bf16 %v2821, %v2816
        %v3087 = vpack.c.bf16 %v2822, %v2817
        %v3088 = vpack.c.bf16 %v2831, %v2826
        %v3089 = vpack.c.bf16 %v2832, %v2827
        %v3122 = vunpack.c.l.b16 %v3058
        %v3123 = vunpack.c.l.b16 %v3059
        %v3124 = vunpack.c.h.b16 %v3058
        %v3125 = vunpack.c.h.b16 %v3059
        %v3126 = vunpack.c.l.b16 %v3060
        %v3127 = vunpack.c.l.b16 %v3061
        %v3128 = vunpack.c.h.b16 %v3060
        %v3129 = vunpack.c.h.b16 %v3061
        %v3130 = vunpack.c.l.b16 %v3062
        %v3131 = vunpack.c.l.b16 %v3063
        %v3132 = vunpack.c.h.b16 %v3062
        %v3133 = vunpack.c.h.b16 %v3063
        %v3134 = vunpack.c.l.b16 %v3064
        %v3135 = vunpack.c.l.b16 %v3065
        %v3136 = vunpack.c.h.b16 %v3064
        %v3137 = vunpack.c.h.b16 %v3065
        %v3138 = vunpack.c.l.b16 %v3066
        %v3139 = vunpack.c.l.b16 %v3067
        %v3140 = vunpack.c.h.b16 %v3066
        %v3141 = vunpack.c.h.b16 %v3067
        %v3142 = vunpack.c.l.b16 %v3068
        %v3143 = vunpack.c.l.b16 %v3069
        %v3144 = vunpack.c.h.b16 %v3068
        %v3145 = vunpack.c.h.b16 %v3069
        %v3146 = vunpack.c.l.b16 %v3070
        %v3147 = vunpack.c.l.b16 %v3071
        %v3148 = vunpack.c.h.b16 %v3070
        %v3149 = vunpack.c.h.b16 %v3071
        %v3150 = vunpack.c.l.b16 %v3072
        %v3151 = vunpack.c.l.b16 %v3073
        %v3152 = vunpack.c.h.b16 %v3072
        %v3153 = vunpack.c.h.b16 %v3073
        %v3154 = vunpack.c.l.b16 %v3074
        %v3155 = vunpack.c.l.b16 %v3075
        %v3156 = vunpack.c.h.b16 %v3074
        %v3157 = vunpack.c.h.b16 %v3075
        %v3158 = vunpack.c.l.b16 %v3076
        %v3159 = vunpack.c.l.b16 %v3077
        %v3160 = vunpack.c.h.b16 %v3076
        %v3161 = vunpack.c.h.b16 %v3077
        %v3162 = vunpack.c.l.b16 %v3078
        %v3163 = vunpack.c.l.b16 %v3079
        %v3164 = vunpack.c.h.b16 %v3078
        %v3165 = vunpack.c.h.b16 %v3079
        %v3166 = vunpack.c.l.b16 %v3080
        %v3167 = vunpack.c.l.b16 %v3081
        %v3168 = vunpack.c.h.b16 %v3080
        %v3169 = vunpack.c.h.b16 %v3081
        %v3170 = vunpack.c.l.b16 %v3082
        %v3171 = vunpack.c.l.b16 %v3083
        %v3172 = vunpack.c.h.b16 %v3082
        %v3173 = vunpack.c.h.b16 %v3083
        %v3174 = vunpack.c.l.b16 %v3084
        %v3175 = vunpack.c.l.b16 %v3085
        %v3176 = vunpack.c.h.b16 %v3084
        %v3177 = vunpack.c.h.b16 %v3085
        %v3178 = vunpack.c.l.b16 %v3086
        %v3179 = vunpack.c.l.b16 %v3087
        %v3180 = vunpack.c.h.b16 %v3086
        %v3181 = vunpack.c.h.b16 %v3087
        %v3182 = vunpack.c.l.b16 %v3088
        %v3183 = vunpack.c.l.b16 %v3089
        %v3184 = vunpack.c.h.b16 %v3088
        %v3185 = vunpack.c.h.b16 %v3089
        %v3186 = vpack.c.b16 %v3123, %v3122
        %v3187 = vpack.c.b16 %v3125, %v3124
        %v3188 = vpack.c.b16 %v3127, %v3126
        %v3189 = vpack.c.b16 %v3129, %v3128
        %v3190 = vpack.c.b16 %v3131, %v3130
        %v3191 = vpack.c.b16 %v3133, %v3132
        %v3192 = vpack.c.b16 %v3135, %v3134
        %v3193 = vpack.c.b16 %v3137, %v3136
        %v3194 = vpack.c.b16 %v3139, %v3138
        %v3195 = vpack.c.b16 %v3141, %v3140
        %v3196 = vpack.c.b16 %v3143, %v3142
        %v3197 = vpack.c.b16 %v3145, %v3144
        %v3198 = vpack.c.b16 %v3147, %v3146
        %v3199 = vpack.c.b16 %v3149, %v3148
        %v3200 = vpack.c.b16 %v3151, %v3150
        %v3201 = vpack.c.b16 %v3153, %v3152
        %v3202 = vpack.c.b16 %v3155, %v3154
        %v3203 = vpack.c.b16 %v3157, %v3156
        %v3204 = vpack.c.b16 %v3159, %v3158
        %v3205 = vpack.c.b16 %v3161, %v3160
        %v3206 = vpack.c.b16 %v3163, %v3162
        %v3207 = vpack.c.b16 %v3165, %v3164
        %v3208 = vpack.c.b16 %v3167, %v3166
        %v3209 = vpack.c.b16 %v3169, %v3168
        %v3210 = vpack.c.b16 %v3171, %v3170
        %v3211 = vpack.c.b16 %v3173, %v3172
        %v3212 = vpack.c.b16 %v3175, %v3174
        %v3213 = vpack.c.b16 %v3177, %v3176
        %v3214 = vpack.c.b16 %v3179, %v3178
        %v3215 = vpack.c.b16 %v3181, %v3180
        %v3216 = vpack.c.b16 %v3183, %v3182
        %v3217 = vpack.c.b16 %v3185, %v3184
        %3250 = vst [vmem:[%s403] sm:$0xff] %v3186
        %3251 = vst [vmem:[%s403 + $0x8] sm:$0xff] %v3187
        %3252 = vst [vmem:[%s403 + $0x10] sm:$0xff] %v3188
        %3253 = vst [vmem:[%s403 + $0x18] sm:$0xff] %v3189
        %3254 = vst [vmem:[%s403 + $0x20] sm:$0xff] %v3190
        %3255 = vst [vmem:[%s403 + $0x28] sm:$0xff] %v3191
        %3256 = vst [vmem:[%s403 + $0x30] sm:$0xff] %v3192
        %3257 = vst [vmem:[%s403 + $0x38] sm:$0xff] %v3193
        %3258 = vst [vmem:[%s403 + $0x40] sm:$0xff] %v3194
        %3259 = vst [vmem:[%s403 + $0x48] sm:$0xff] %v3195
        %3260 = vst [vmem:[%s403 + $0x50] sm:$0xff] %v3196
        %3261 = vst [vmem:[%s403 + $0x58] sm:$0xff] %v3197
        %3262 = vst [vmem:[%s403 + $0x60] sm:$0xff] %v3198
        %3263 = vst [vmem:[%s403 + $0x68] sm:$0xff] %v3199
        %3264 = vst [vmem:[%s403 + $0x70] sm:$0xff] %v3200
        %3265 = vst [vmem:[%s403 + $0x78] sm:$0xff] %v3201
        %3266 = vst [vmem:[%s403 + $0x80] sm:$0xff] %v3202
        %3267 = vst [vmem:[%s403 + $0x88] sm:$0xff] %v3203
        %3268 = vst [vmem:[%s403 + $0x90] sm:$0xff] %v3204
        %3269 = vst [vmem:[%s403 + $0x98] sm:$0xff] %v3205
        %3270 = vst [vmem:[%s403 + $0xa0] sm:$0xff] %v3206
        %3271 = vst [vmem:[%s403 + $0xa8] sm:$0xff] %v3207
        %3272 = vst [vmem:[%s403 + $0xb0] sm:$0xff] %v3208
        %3273 = vst [vmem:[%s403 + $0xb8] sm:$0xff] %v3209
        %3274 = vst [vmem:[%s403 + $0xc0] sm:$0xff] %v3210
        %3275 = vst [vmem:[%s403 + $0xc8] sm:$0xff] %v3211
        %3276 = vst [vmem:[%s403 + $0xd0] sm:$0xff] %v3212
        %3277 = vst [vmem:[%s403 + $0xd8] sm:$0xff] %v3213
        %3278 = vst [vmem:[%s403 + $0xe0] sm:$0xff] %v3214
        %3279 = vst [vmem:[%s403 + $0xe8] sm:$0xff] %v3215
        %3280 = vst [vmem:[%s403 + $0xf0] sm:$0xff] %v3216
        %3281 = vst [vmem:[%s403 + $0xf8] sm:$0xff] %v3217
        %v3282 = vld [vmem:[#allocation10] sm:$0xf]
        %v3283 = vlaneseq
        %v3284 = vshrl.u32 %v3283, 7
        %v3285 = vsub.s32 0, %v3284
        %v3286 = vrot.slane %v3282, %v3285
        %v3287 = vmul.f32 %v2678, %v3286
        %v3288 = vmul.f32 %v2683, %v3286
        %v3289 = vmul.f32 %v2688, %v3286
        %v3290 = vmul.f32 %v2693, %v3286
        %v3291 = vmul.f32 %v2698, %v3286
        %v3292 = vmul.f32 %v2703, %v3286
        %v3293 = vmul.f32 %v2708, %v3286
        %v3294 = vmul.f32 %v2713, %v3286
        %v3295 = vmul.f32 %v2718, %v3286
        %v3296 = vmul.f32 %v2723, %v3286
        %v3297 = vmul.f32 %v2728, %v3286
        %v3298 = vmul.f32 %v2733, %v3286
        %v3299 = vmul.f32 %v2738, %v3286
        %v3300 = vmul.f32 %v2743, %v3286
        %v3301 = vmul.f32 %v2748, %v3286
        %v3302 = vmul.f32 %v2753, %v3286
        %v3303 = vmul.f32 %v2758, %v3286
        %v3304 = vmul.f32 %v2763, %v3286
        %v3305 = vmul.f32 %v2768, %v3286
        %v3306 = vmul.f32 %v2773, %v3286
        %v3307 = vmul.f32 %v2778, %v3286
        %v3308 = vmul.f32 %v2783, %v3286
        %v3309 = vmul.f32 %v2788, %v3286
        %v3310 = vmul.f32 %v2793, %v3286
        %v3311 = vmul.f32 %v2798, %v3286
        %v3312 = vmul.f32 %v2803, %v3286
        %v3313 = vmul.f32 %v2808, %v3286
        %v3314 = vmul.f32 %v2813, %v3286
        %v3315 = vmul.f32 %v2818, %v3286
        %v3316 = vmul.f32 %v2823, %v3286
        %v3317 = vmul.f32 %v2828, %v3286
        %v3318 = vmul.f32 %v2833, %v3286
        %v3319 = vlaneseq
        %v3320 = vshrl.u32 %v3319, 7
        %v3321 = vsub.s32 1, %v3320
        %v3322 = vrot.slane %v3282, %v3321
        %v3323 = vadd.f32 %v3287, %v3322
        %v3324 = vadd.f32 %v3288, %v3322
        %v3325 = vadd.f32 %v3289, %v3322
        %v3326 = vadd.f32 %v3290, %v3322
        %v3327 = vadd.f32 %v3291, %v3322
        %v3328 = vadd.f32 %v3292, %v3322
        %v3329 = vadd.f32 %v3293, %v3322
        %v3330 = vadd.f32 %v3294, %v3322
        %v3331 = vadd.f32 %v3295, %v3322
        %v3332 = vadd.f32 %v3296, %v3322
        %v3333 = vadd.f32 %v3297, %v3322
        %v3334 = vadd.f32 %v3298, %v3322
        %v3335 = vadd.f32 %v3299, %v3322
        %v3336 = vadd.f32 %v3300, %v3322
        %v3337 = vadd.f32 %v3301, %v3322
        %v3338 = vadd.f32 %v3302, %v3322
        %v3339 = vadd.f32 %v3303, %v3322
        %v3340 = vadd.f32 %v3304, %v3322
        %v3341 = vadd.f32 %v3305, %v3322
        %v3342 = vadd.f32 %v3306, %v3322
        %v3343 = vadd.f32 %v3307, %v3322
        %v3344 = vadd.f32 %v3308, %v3322
        %v3345 = vadd.f32 %v3309, %v3322
        %v3346 = vadd.f32 %v3310, %v3322
        %v3347 = vadd.f32 %v3311, %v3322
        %v3348 = vadd.f32 %v3312, %v3322
        %v3349 = vadd.f32 %v3313, %v3322
        %v3350 = vadd.f32 %v3314, %v3322
        %v3351 = vadd.f32 %v3315, %v3322
        %v3352 = vadd.f32 %v3316, %v3322
        %v3353 = vadd.f32 %v3317, %v3322
        %v3354 = vadd.f32 %v3318, %v3322
        %v3355 = vpack.c.bf16 %v3324, %v3323
        %v3356 = vpack.c.bf16 %v3326, %v3325
        %v3357 = vpack.c.bf16 %v3328, %v3327
        %v3358 = vpack.c.bf16 %v3330, %v3329
        %v3359 = vpack.c.bf16 %v3332, %v3331
        %v3360 = vpack.c.bf16 %v3334, %v3333
        %v3361 = vpack.c.bf16 %v3336, %v3335
        %v3362 = vpack.c.bf16 %v3338, %v3337
        %v3363 = vpack.c.bf16 %v3340, %v3339
        %v3364 = vpack.c.bf16 %v3342, %v3341
        %v3365 = vpack.c.bf16 %v3344, %v3343
        %v3366 = vpack.c.bf16 %v3346, %v3345
        %v3367 = vpack.c.bf16 %v3348, %v3347
        %v3368 = vpack.c.bf16 %v3350, %v3349
        %v3369 = vpack.c.bf16 %v3352, %v3351
        %v3370 = vpack.c.bf16 %v3354, %v3353
        %v3387 = vunpack.c.l.b16 %v3355
        %v3388 = vunpack.c.h.b16 %v3355
        %v3389 = vunpack.c.l.b16 %v3356
        %v3390 = vunpack.c.h.b16 %v3356
        %v3391 = vunpack.c.l.b16 %v3357
        %v3392 = vunpack.c.h.b16 %v3357
        %v3393 = vunpack.c.l.b16 %v3358
        %v3394 = vunpack.c.h.b16 %v3358
        %v3395 = vunpack.c.l.b16 %v3359
        %v3396 = vunpack.c.h.b16 %v3359
        %v3397 = vunpack.c.l.b16 %v3360
        %v3398 = vunpack.c.h.b16 %v3360
        %v3399 = vunpack.c.l.b16 %v3361
        %v3400 = vunpack.c.h.b16 %v3361
        %v3401 = vunpack.c.l.b16 %v3362
        %v3402 = vunpack.c.h.b16 %v3362
        %v3403 = vunpack.c.l.b16 %v3363
        %v3404 = vunpack.c.h.b16 %v3363
        %v3405 = vunpack.c.l.b16 %v3364
        %v3406 = vunpack.c.h.b16 %v3364
        %v3407 = vunpack.c.l.b16 %v3365
        %v3408 = vunpack.c.h.b16 %v3365
        %v3409 = vunpack.c.l.b16 %v3366
        %v3410 = vunpack.c.h.b16 %v3366
        %v3411 = vunpack.c.l.b16 %v3367
        %v3412 = vunpack.c.h.b16 %v3367
        %v3413 = vunpack.c.l.b16 %v3368
        %v3414 = vunpack.c.h.b16 %v3368
        %v3415 = vunpack.c.l.b16 %v3369
        %v3416 = vunpack.c.h.b16 %v3369
        %v3417 = vunpack.c.l.b16 %v3370
        %v3418 = vunpack.c.h.b16 %v3370
        %v3419 = vpack.c.b16 %v3387, %v3387
        %v3420 = vpack.c.b16 %v3388, %v3388
        %v3421 = vpack.c.b16 %v3389, %v3389
        %v3422 = vpack.c.b16 %v3390, %v3390
        %v3423 = vpack.c.b16 %v3391, %v3391
        %v3424 = vpack.c.b16 %v3392, %v3392
        %v3425 = vpack.c.b16 %v3393, %v3393
        %v3426 = vpack.c.b16 %v3394, %v3394
        %v3427 = vpack.c.b16 %v3395, %v3395
        %v3428 = vpack.c.b16 %v3396, %v3396
        %v3429 = vpack.c.b16 %v3397, %v3397
        %v3430 = vpack.c.b16 %v3398, %v3398
        %v3431 = vpack.c.b16 %v3399, %v3399
        %v3432 = vpack.c.b16 %v3400, %v3400
        %v3433 = vpack.c.b16 %v3401, %v3401
        %v3434 = vpack.c.b16 %v3402, %v3402
        %v3435 = vpack.c.b16 %v3403, %v3403
        %v3436 = vpack.c.b16 %v3404, %v3404
        %v3437 = vpack.c.b16 %v3405, %v3405
        %v3438 = vpack.c.b16 %v3406, %v3406
        %v3439 = vpack.c.b16 %v3407, %v3407
        %v3440 = vpack.c.b16 %v3408, %v3408
        %v3441 = vpack.c.b16 %v3409, %v3409
        %v3442 = vpack.c.b16 %v3410, %v3410
        %v3443 = vpack.c.b16 %v3411, %v3411
        %v3444 = vpack.c.b16 %v3412, %v3412
        %v3445 = vpack.c.b16 %v3413, %v3413
        %v3446 = vpack.c.b16 %v3414, %v3414
        %v3447 = vpack.c.b16 %v3415, %v3415
        %v3448 = vpack.c.b16 %v3416, %v3416
        %v3449 = vpack.c.b16 %v3417, %v3417
        %v3450 = vpack.c.b16 %v3418, %v3418
        %3483 = vst [vmem:[%s382] sm:$0xf] %v3419
        %3484 = vst [vmem:[%s382 + $0x4] sm:$0xf] %v3420
        %3485 = vst [vmem:[%s382 + $0x8] sm:$0xf] %v3421
        %3486 = vst [vmem:[%s382 + $0xc] sm:$0xf] %v3422
        %3487 = vst [vmem:[%s382 + $0x10] sm:$0xf] %v3423
        %3488 = vst [vmem:[%s382 + $0x14] sm:$0xf] %v3424
        %3489 = vst [vmem:[%s382 + $0x18] sm:$0xf] %v3425
        %3490 = vst [vmem:[%s382 + $0x1c] sm:$0xf] %v3426
        %3491 = vst [vmem:[%s382 + $0x20] sm:$0xf] %v3427
        %3492 = vst [vmem:[%s382 + $0x24] sm:$0xf] %v3428
        %3493 = vst [vmem:[%s382 + $0x28] sm:$0xf] %v3429
        %3494 = vst [vmem:[%s382 + $0x2c] sm:$0xf] %v3430
        %3495 = vst [vmem:[%s382 + $0x30] sm:$0xf] %v3431
        %3496 = vst [vmem:[%s382 + $0x34] sm:$0xf] %v3432
        %3497 = vst [vmem:[%s382 + $0x38] sm:$0xf] %v3433
        %3498 = vst [vmem:[%s382 + $0x3c] sm:$0xf] %v3434
        %3499 = vst [vmem:[%s382 + $0x40] sm:$0xf] %v3435
        %3500 = vst [vmem:[%s382 + $0x44] sm:$0xf] %v3436
        %3501 = vst [vmem:[%s382 + $0x48] sm:$0xf] %v3437
        %3502 = vst [vmem:[%s382 + $0x4c] sm:$0xf] %v3438
        %3503 = vst [vmem:[%s382 + $0x50] sm:$0xf] %v3439
        %3504 = vst [vmem:[%s382 + $0x54] sm:$0xf] %v3440
        %3505 = vst [vmem:[%s382 + $0x58] sm:$0xf] %v3441
        %3506 = vst [vmem:[%s382 + $0x5c] sm:$0xf] %v3442
        %3507 = vst [vmem:[%s382 + $0x60] sm:$0xf] %v3443
        %3508 = vst [vmem:[%s382 + $0x64] sm:$0xf] %v3444
        %3509 = vst [vmem:[%s382 + $0x68] sm:$0xf] %v3445
        %3510 = vst [vmem:[%s382 + $0x6c] sm:$0xf] %v3446
        %3511 = vst [vmem:[%s382 + $0x70] sm:$0xf] %v3447
        %3512 = vst [vmem:[%s382 + $0x74] sm:$0xf] %v3448
        %3513 = vst [vmem:[%s382 + $0x78] sm:$0xf] %v3449
        %3514 = vst [vmem:[%s382 + $0x7c] sm:$0xf] %v3450
        %v3515 = vlaneseq
        %v3516 = vshrl.u32 %v3515, 7
        %v3517 = vsub.s32 2, %v3516
        %v3518 = vrot.slane %v3282, %v3517
        %v3519 = vmul.f32 %v2678, %v3518
        %v3520 = vmul.f32 %v2683, %v3518
        %v3521 = vmul.f32 %v2688, %v3518
        %v3522 = vmul.f32 %v2693, %v3518
        %v3523 = vmul.f32 %v2698, %v3518
        %v3524 = vmul.f32 %v2703, %v3518
        %v3525 = vmul.f32 %v2708, %v3518
        %v3526 = vmul.f32 %v2713, %v3518
        %v3527 = vmul.f32 %v2718, %v3518
        %v3528 = vmul.f32 %v2723, %v3518
        %v3529 = vmul.f32 %v2728, %v3518
        %v3530 = vmul.f32 %v2733, %v3518
        %v3531 = vmul.f32 %v2738, %v3518
        %v3532 = vmul.f32 %v2743, %v3518
        %v3533 = vmul.f32 %v2748, %v3518
        %v3534 = vmul.f32 %v2753, %v3518
        %v3535 = vmul.f32 %v2758, %v3518
        %v3536 = vmul.f32 %v2763, %v3518
        %v3537 = vmul.f32 %v2768, %v3518
        %v3538 = vmul.f32 %v2773, %v3518
        %v3539 = vmul.f32 %v2778, %v3518
        %v3540 = vmul.f32 %v2783, %v3518
        %v3541 = vmul.f32 %v2788, %v3518
        %v3542 = vmul.f32 %v2793, %v3518
        %v3543 = vmul.f32 %v2798, %v3518
        %v3544 = vmul.f32 %v2803, %v3518
        %v3545 = vmul.f32 %v2808, %v3518
        %v3546 = vmul.f32 %v2813, %v3518
        %v3547 = vmul.f32 %v2818, %v3518
        %v3548 = vmul.f32 %v2823, %v3518
        %v3549 = vmul.f32 %v2828, %v3518
        %v3550 = vmul.f32 %v2833, %v3518
        %v3551 = vlaneseq
        %v3552 = vshrl.u32 %v3551, 7
        %v3553 = vsub.s32 3, %v3552
        %v3554 = vrot.slane %v3282, %v3553
        %v3555 = vadd.f32 %v3519, %v3554
        %v3556 = vadd.f32 %v3520, %v3554
        %v3557 = vadd.f32 %v3521, %v3554
        %v3558 = vadd.f32 %v3522, %v3554
        %v3559 = vadd.f32 %v3523, %v3554
        %v3560 = vadd.f32 %v3524, %v3554
        %v3561 = vadd.f32 %v3525, %v3554
        %v3562 = vadd.f32 %v3526, %v3554
        %v3563 = vadd.f32 %v3527, %v3554
        %v3564 = vadd.f32 %v3528, %v3554
        %v3565 = vadd.f32 %v3529, %v3554
        %v3566 = vadd.f32 %v3530, %v3554
        %v3567 = vadd.f32 %v3531, %v3554
        %v3568 = vadd.f32 %v3532, %v3554
        %v3569 = vadd.f32 %v3533, %v3554
        %v3570 = vadd.f32 %v3534, %v3554
        %v3571 = vadd.f32 %v3535, %v3554
        %v3572 = vadd.f32 %v3536, %v3554
        %v3573 = vadd.f32 %v3537, %v3554
        %v3574 = vadd.f32 %v3538, %v3554
        %v3575 = vadd.f32 %v3539, %v3554
        %v3576 = vadd.f32 %v3540, %v3554
        %v3577 = vadd.f32 %v3541, %v3554
        %v3578 = vadd.f32 %v3542, %v3554
        %v3579 = vadd.f32 %v3543, %v3554
        %v3580 = vadd.f32 %v3544, %v3554
        %v3581 = vadd.f32 %v3545, %v3554
        %v3582 = vadd.f32 %v3546, %v3554
        %v3583 = vadd.f32 %v3547, %v3554
        %v3584 = vadd.f32 %v3548, %v3554
        %v3585 = vadd.f32 %v3549, %v3554
        %v3586 = vadd.f32 %v3550, %v3554
        %v3587 = vpack.c.bf16 %v3556, %v3555
        %v3588 = vpack.c.bf16 %v3558, %v3557
        %v3589 = vpack.c.bf16 %v3560, %v3559
        %v3590 = vpack.c.bf16 %v3562, %v3561
        %v3591 = vpack.c.bf16 %v3564, %v3563
        %v3592 = vpack.c.bf16 %v3566, %v3565
        %v3593 = vpack.c.bf16 %v3568, %v3567
        %v3594 = vpack.c.bf16 %v3570, %v3569
        %v3595 = vpack.c.bf16 %v3572, %v3571
        %v3596 = vpack.c.bf16 %v3574, %v3573
        %v3597 = vpack.c.bf16 %v3576, %v3575
        %v3598 = vpack.c.bf16 %v3578, %v3577
        %v3599 = vpack.c.bf16 %v3580, %v3579
        %v3600 = vpack.c.bf16 %v3582, %v3581
        %v3601 = vpack.c.bf16 %v3584, %v3583
        %v3602 = vpack.c.bf16 %v3586, %v3585
        %v3619 = vunpack.c.l.b16 %v3587
        %v3620 = vunpack.c.h.b16 %v3587
        %v3621 = vunpack.c.l.b16 %v3588
        %v3622 = vunpack.c.h.b16 %v3588
        %v3623 = vunpack.c.l.b16 %v3589
        %v3624 = vunpack.c.h.b16 %v3589
        %v3625 = vunpack.c.l.b16 %v3590
        %v3626 = vunpack.c.h.b16 %v3590
        %v3627 = vunpack.c.l.b16 %v3591
        %v3628 = vunpack.c.h.b16 %v3591
        %v3629 = vunpack.c.l.b16 %v3592
        %v3630 = vunpack.c.h.b16 %v3592
        %v3631 = vunpack.c.l.b16 %v3593
        %v3632 = vunpack.c.h.b16 %v3593
        %v3633 = vunpack.c.l.b16 %v3594
        %v3634 = vunpack.c.h.b16 %v3594
        %v3635 = vunpack.c.l.b16 %v3595
        %v3636 = vunpack.c.h.b16 %v3595
        %v3637 = vunpack.c.l.b16 %v3596
        %v3638 = vunpack.c.h.b16 %v3596
        %v3639 = vunpack.c.l.b16 %v3597
        %v3640 = vunpack.c.h.b16 %v3597
        %v3641 = vunpack.c.l.b16 %v3598
        %v3642 = vunpack.c.h.b16 %v3598
        %v3643 = vunpack.c.l.b16 %v3599
        %v3644 = vunpack.c.h.b16 %v3599
        %v3645 = vunpack.c.l.b16 %v3600
        %v3646 = vunpack.c.h.b16 %v3600
        %v3647 = vunpack.c.l.b16 %v3601
        %v3648 = vunpack.c.h.b16 %v3601
        %v3649 = vunpack.c.l.b16 %v3602
        %v3650 = vunpack.c.h.b16 %v3602
        %v3651 = vpack.c.b16 %v3619, %v3619
        %v3652 = vpack.c.b16 %v3620, %v3620
        %v3653 = vpack.c.b16 %v3621, %v3621
        %v3654 = vpack.c.b16 %v3622, %v3622
        %v3655 = vpack.c.b16 %v3623, %v3623
        %v3656 = vpack.c.b16 %v3624, %v3624
        %v3657 = vpack.c.b16 %v3625, %v3625
        %v3658 = vpack.c.b16 %v3626, %v3626
        %v3659 = vpack.c.b16 %v3627, %v3627
        %v3660 = vpack.c.b16 %v3628, %v3628
        %v3661 = vpack.c.b16 %v3629, %v3629
        %v3662 = vpack.c.b16 %v3630, %v3630
        %v3663 = vpack.c.b16 %v3631, %v3631
        %v3664 = vpack.c.b16 %v3632, %v3632
        %v3665 = vpack.c.b16 %v3633, %v3633
        %v3666 = vpack.c.b16 %v3634, %v3634
        %v3667 = vpack.c.b16 %v3635, %v3635
        %v3668 = vpack.c.b16 %v3636, %v3636
        %v3669 = vpack.c.b16 %v3637, %v3637
        %v3670 = vpack.c.b16 %v3638, %v3638
        %v3671 = vpack.c.b16 %v3639, %v3639
        %v3672 = vpack.c.b16 %v3640, %v3640
        %v3673 = vpack.c.b16 %v3641, %v3641
        %v3674 = vpack.c.b16 %v3642, %v3642
        %v3675 = vpack.c.b16 %v3643, %v3643
        %v3676 = vpack.c.b16 %v3644, %v3644
        %v3677 = vpack.c.b16 %v3645, %v3645
        %v3678 = vpack.c.b16 %v3646, %v3646
        %v3679 = vpack.c.b16 %v3647, %v3647
        %v3680 = vpack.c.b16 %v3648, %v3648
        %v3681 = vpack.c.b16 %v3649, %v3649
        %v3682 = vpack.c.b16 %v3650, %v3650
        %3715 = vst [vmem:[%s389] sm:$0xf] %v3651
        %3716 = vst [vmem:[%s389 + $0x4] sm:$0xf] %v3652
        %3717 = vst [vmem:[%s389 + $0x8] sm:$0xf] %v3653
        %3718 = vst [vmem:[%s389 + $0xc] sm:$0xf] %v3654
        %3719 = vst [vmem:[%s389 + $0x10] sm:$0xf] %v3655
        %3720 = vst [vmem:[%s389 + $0x14] sm:$0xf] %v3656
        %3721 = vst [vmem:[%s389 + $0x18] sm:$0xf] %v3657
        %3722 = vst [vmem:[%s389 + $0x1c] sm:$0xf] %v3658
        %3723 = vst [vmem:[%s389 + $0x20] sm:$0xf] %v3659
        %3724 = vst [vmem:[%s389 + $0x24] sm:$0xf] %v3660
        %3725 = vst [vmem:[%s389 + $0x28] sm:$0xf] %v3661
        %3726 = vst [vmem:[%s389 + $0x2c] sm:$0xf] %v3662
        %3727 = vst [vmem:[%s389 + $0x30] sm:$0xf] %v3663
        %3728 = vst [vmem:[%s389 + $0x34] sm:$0xf] %v3664
        %3729 = vst [vmem:[%s389 + $0x38] sm:$0xf] %v3665
        %3730 = vst [vmem:[%s389 + $0x3c] sm:$0xf] %v3666
        %3731 = vst [vmem:[%s389 + $0x40] sm:$0xf] %v3667
        %3732 = vst [vmem:[%s389 + $0x44] sm:$0xf] %v3668
        %3733 = vst [vmem:[%s389 + $0x48] sm:$0xf] %v3669
        %3734 = vst [vmem:[%s389 + $0x4c] sm:$0xf] %v3670
        %3735 = vst [vmem:[%s389 + $0x50] sm:$0xf] %v3671
        %3736 = vst [vmem:[%s389 + $0x54] sm:$0xf] %v3672
        %3737 = vst [vmem:[%s389 + $0x58] sm:$0xf] %v3673
        %3738 = vst [vmem:[%s389 + $0x5c] sm:$0xf] %v3674
        %3739 = vst [vmem:[%s389 + $0x60] sm:$0xf] %v3675
        %3740 = vst [vmem:[%s389 + $0x64] sm:$0xf] %v3676
        %3741 = vst [vmem:[%s389 + $0x68] sm:$0xf] %v3677
        %3742 = vst [vmem:[%s389 + $0x6c] sm:$0xf] %v3678
        %3743 = vst [vmem:[%s389 + $0x70] sm:$0xf] %v3679
        %3744 = vst [vmem:[%s389 + $0x74] sm:$0xf] %v3680
        %3745 = vst [vmem:[%s389 + $0x78] sm:$0xf] %v3681
        %3746 = vst [vmem:[%s389 + $0x7c] sm:$0xf] %v3682
        %s3747 = sand.u32 %s152, 1
        %s3748 = scalar_lea.sflag [#allocation4], %s3747
        %s3749 = sand.u32 %s152, 1
        %s3750 = smul.addr %s3749, 128
        %s3751 = scalar_lea.vmem [#allocation11], %s3750
        %s3752 = sand.u32 %s34, 1
        %s3753 = scalar_lea.sflag [#allocation13], %s3752
        %s3754 = sand.u32 %s178, 1
        %s3755 = smul.addr %s3754, 128
        %s3756 = scalar_lea.vmem [#allocation12], %s3755
        %s3757 = sand.u32 %s34, 1
        %s3758 = scalar_lea.sflag [#allocation13], %s3757
        %s3759 = sand.u32 %s204, 1
        %s3760 = smul.addr %s3759, 256
        %s3761 = scalar_lea.vmem [#allocation14], %s3760
        %s3762 = sand.u32 %s230, 1
        %s3763 = scalar_lea.sflag [#allocation16], %s3762
        %s3764 = sand.u32 %s230, 1
        %s3765 = smul.addr %s3764, 256
        %s3766 = scalar_lea.vmem [#allocation15], %s3765
        // Predicated region
        $region61: #{tpu_custom_call.1} parent=39 // pred_check
          %p3767 = pneg %p162
        $region62: #{tpu_custom_call.1} parent=39 // pred_check_branch
          %3769 = sbr.rel (%p3767) target = $region64
        $region63: #{tpu_custom_call.1} parent=39 // pred_region
          %s3770 = smul.u32 32, %s34
          %s3772 = ssub.s32 2048, 2048
          %3773 = vsyncadd %s3748, %s3772
          %s3774 = smul.addr %s3770, 64
          %s3775 = scalar_lea.hbm %s5, %s3774
          %s3776 = sshll.u32 %s3751, 4
          %s3777 = int_to_ptr.vmem [resolvable:$true] %s3776
          %3782 = dma.vmem_to_hbm [thread:$0]  %s3777, 2048, %s3775, %s3748, 64, 64, 4
        $region64: #{tpu_custom_call.1} parent=39 // pred_fallthru
          _
        // Predicated region
        $region65: #{tpu_custom_call.1} parent=39 // pred_check
          %p3783 = pneg %p188
        $region66: #{tpu_custom_call.1} parent=39 // pred_check_branch
          %3785 = sbr.rel (%p3783) target = $region68
        $region67: #{tpu_custom_call.1} parent=39 // pred_region
          %s3786 = smul.u32 32, %s34
          %s3788 = ssub.s32 2048, 2048
          %3789 = vsyncadd %s3753, %s3788
          %s3790 = smul.addr %s3786, 64
          %s3791 = scalar_lea.hbm %s6, %s3790
          %s3792 = sshll.u32 %s3756, 4
          %s3793 = int_to_ptr.vmem [resolvable:$true] %s3792
          %3798 = dma.vmem_to_hbm [thread:$0]  %s3793, 2048, %s3791, %s3753, 64, 64, 4
        $region68: #{tpu_custom_call.1} parent=39 // pred_fallthru
          _
        // Predicated region
        $region69: #{tpu_custom_call.1} parent=39 // pred_check
          %p3799 = pneg %p214
        $region70: #{tpu_custom_call.1} parent=39 // pred_check_branch
          %3801 = sbr.rel (%p3799) target = $region72
        $region71: #{tpu_custom_call.1} parent=39 // pred_region
          %s3802 = smul.u32 32, %s34
          %s3804 = ssub.s32 4096, 4096
          %3805 = vsyncadd %s3758, %s3804
          %s3806 = smul.addr %s3802, 2
          %s3807 = smul.addr %s3806, 64
          %s3808 = scalar_lea.hbm %s7, %s3807
          %s3809 = sshll.u32 %s3761, 4
          %s3810 = int_to_ptr.vmem [resolvable:$true] %s3809
          %3815 = dma.vmem_to_hbm [thread:$0]  %s3810, 4096, %s3808, %s3758, 128, 128, 8
        $region72: #{tpu_custom_call.1} parent=39 // pred_fallthru
          _
        // Predicated region
        $region73: #{tpu_custom_call.1} parent=39 // pred_check
          %p3816 = pneg %p240
        $region74: #{tpu_custom_call.1} parent=39 // pred_check_branch
          %3818 = sbr.rel (%p3816) target = $region76
        $region75: #{tpu_custom_call.1} parent=39 // pred_region
          %s3819 = smul.u32 32, %s34
          %s3821 = ssub.s32 4096, 4096
          %3822 = vsyncadd %s3763, %s3821
          %s3823 = smul.addr %s3819, 2
          %s3824 = smul.addr %s3823, 64
          %s3825 = scalar_lea.hbm %s8, %s3824
          %s3826 = sshll.u32 %s3766, 4
          %s3827 = int_to_ptr.vmem [resolvable:$true] %s3826
          %3832 = dma.vmem_to_hbm [thread:$0]  %s3827, 4096, %s3825, %s3763, 128, 128, 8
        $region76: #{tpu_custom_call.1} parent=39 // pred_fallthru
          _
      $region40: #{tpu_custom_call.1} parent=5 // pred_fallthru
        _
      %p3833 = scmp.le.s32.totalorder 2, %s29
      // Predicated region
      $region77: #{tpu_custom_call.1} parent=5 // pred_check
        %p3834 = pneg %p3833
      $region78: #{tpu_custom_call.1} parent=5 // pred_check_branch
        %3836 = sbr.rel (%p3834) target = $region80
      $region79: #{tpu_custom_call.1} parent=5 // pred_region
        %s3837 = ssub.s32 %s29, 2
        // Predicated region
        $region81: #{tpu_custom_call.1} parent=79 // pred_check
          %p3838 = pneg %p168
        $region82: #{tpu_custom_call.1} parent=79 // pred_check_branch
          %3840 = sbr.rel (%p3838) target = $region84
        $region83: #{tpu_custom_call.1} parent=79 // pred_region
          %s3841 = sand.u32 %s153, 1
          %s3842 = scalar_lea.sflag [#allocation4], %s3841
          %s3843 = sand.u32 %s153, 1
          %s3844 = smul.addr %s3843, 128
          %s3845 = scalar_lea.vmem [#allocation11], %s3844
          %3846 = dma.done %s3842, 2048
        $region84: #{tpu_custom_call.1} parent=79 // pred_fallthru
          _
        // Predicated region
        $region85: #{tpu_custom_call.1} parent=79 // pred_check
          %p3847 = pneg %p194
        $region86: #{tpu_custom_call.1} parent=79 // pred_check_branch
          %3849 = sbr.rel (%p3847) target = $region88
        $region87: #{tpu_custom_call.1} parent=79 // pred_region
          %s3850 = sand.u32 %s35, 1
          %s3851 = scalar_lea.sflag [#allocation13], %s3850
          %s3852 = sand.u32 %s179, 1
          %s3853 = smul.addr %s3852, 128
          %s3854 = scalar_lea.vmem [#allocation12], %s3853
          %3855 = dma.done %s3851, 2048
        $region88: #{tpu_custom_call.1} parent=79 // pred_fallthru
          _
        // Predicated region
        $region89: #{tpu_custom_call.1} parent=79 // pred_check
          %p3856 = pneg %p220
        $region90: #{tpu_custom_call.1} parent=79 // pred_check_branch
          %3858 = sbr.rel (%p3856) target = $region92
        $region91: #{tpu_custom_call.1} parent=79 // pred_region
          %s3859 = sand.u32 %s35, 1
          %s3860 = scalar_lea.sflag [#allocation13], %s3859
          %s3861 = sand.u32 %s205, 1
          %s3862 = smul.addr %s3861, 256
          %s3863 = scalar_lea.vmem [#allocation14], %s3862
          %3864 = dma.done %s3860, 4096
        $region92: #{tpu_custom_call.1} parent=79 // pred_fallthru
          _
        // Predicated region
        $region93: #{tpu_custom_call.1} parent=79 // pred_check
          %p3865 = pneg %p246
        $region94: #{tpu_custom_call.1} parent=79 // pred_check_branch
          %3867 = sbr.rel (%p3865) target = $region96
        $region95: #{tpu_custom_call.1} parent=79 // pred_region
          %s3868 = sand.u32 %s231, 1
          %s3869 = scalar_lea.sflag [#allocation16], %s3868
          %s3870 = sand.u32 %s231, 1
          %s3871 = smul.addr %s3870, 256
          %s3872 = scalar_lea.vmem [#allocation15], %s3871
          %3873 = dma.done %s3869, 4096
        $region96: #{tpu_custom_call.1} parent=79 // pred_fallthru
          _
      $region80: #{tpu_custom_call.1} parent=5 // pred_fallthru
        _
    $region6: #{tpu_custom_call.1} parent=1 // loop_footer
      %s33 = sadd.s32 1, %s29
    $region7: #{tpu_custom_call.1} parent=1 // loop_footer_branch
      %28 = sbr.rel target = $region3
    $region8: #{tpu_custom_call.1} parent=1 // loop_exit
      _
    %3874 = vsyncpa [#allocation3], 1
    %s3875 = scalar_lea.sflag [#allocation3], 1
    %3876 = vsyncpa %s3875, 1
    %3877 = vsyncpa [#allocation6], 1
    %3878 = vsyncpa [#allocation9], 1
    %3879 = vsyncpa [#allocation4], 1
    %s3880 = scalar_lea.sflag [#allocation4], 1
    %3881 = vsyncpa %s3880, 1
    %3882 = vsyncpa [#allocation13], 1
    %s3883 = scalar_lea.sflag [#allocation13], 1
    %3884 = vsyncpa %s3883, 1
    %3885 = vsyncpa [#allocation16], 1
    %s3886 = scalar_lea.sflag [#allocation16], 1
    %3887 = vsyncpa %s3886, 1

</llo_original>
